<compile_context>
chip_gen: v6e
topology: v6e:2x2x1
jax: 0.10.0
libtpu: 0.0.40
codegen_flags: <defaults>
</compile_context>

<pallas_src>
import functools
import jax
import jax.numpy as jnp
from jax.experimental import pallas as pl
from jax.experimental.pallas import tpu as pltpu


FILTERS = [3, 64, 64, 128, 128, 256, 256]
IMG_HW = 64
LATENT = 32
FLAT = FILTERS[-1]          # 256 channels, spatially 1x1 after six stride-2 convs on 64x64


# ----------------------------------------------------------------------------
# Pallas kernel 1: single-shot (full-K) matmul + per-column affine (+ optional ReLU)
#   o[m, n] = maybe_relu( (x[m, :] @ w[:, n]) * s[n] + t[n] )
# bf16 operands on the MXU, fp32 accumulation + epilogue, cast once at the store.
# BatchNorm (eval-mode running stats) and the conv/linear bias are pre-folded into s/t.
# ----------------------------------------------------------------------------
def fused_matmul_kernel(x_ref, w_ref, s_ref, t_ref, o_ref, *, relu):
    acc = jnp.dot(x_ref[...], w_ref[...], preferred_element_type=jnp.float32)
    y = acc * s_ref[...] + t_ref[...]              # fp32 epilogue (v5e has no bf16 VALU)
    if relu:
        y = jnp.maximum(y, 0.0)
    o_ref[...] = y.astype(o_ref.dtype)


def fused_matmul(x, w, s, t, *, relu, out_dtype, tm=None, tn=None):
    """out = maybe_relu((x @ w) * s + t).  All shapes are pre-aligned at init/call sites:
    no activation padding, no output slicing."""
    M, K = x.shape
    Kw, N = w.shape
    assert K == Kw, (K, Kw)
    if tm is None:
        tm = 256 if (M > 256 and M % 256 == 0) else M
    if tn is None:
        tn = 128 if (N > 128 and N % 128 == 0) else N
    assert M % tm == 0 and N % tn == 0, (M, tm, N, tn)
    grid = (M // tm, N // tn)

    return pl.pallas_call(
        functools.partial(fused_matmul_kernel, relu=relu),
        out_shape=jax.ShapeDtypeStruct((M, N), out_dtype),
        grid_spec=pltpu.PrefetchScalarGridSpec(
            num_scalar_prefetch=0,
            grid=grid,
            in_specs=[
                pl.BlockSpec((tm, K), lambda i, j: (i, 0)),   # full-K activation block
                pl.BlockSpec((K, tn), lambda i, j: (0, j)),   # full-K weight slab
                pl.BlockSpec((1, tn), lambda i, j: (0, j)),   # folded BN scale
                pl.BlockSpec((1, tn), lambda i, j: (0, j)),   # folded BN/bias shift
            ],
            out_specs=pl.BlockSpec((tm, tn), lambda i, j: (i, j)),
        ),
        compiler_params=pltpu.CompilerParams(
            dimension_semantics=("parallel", "parallel")),
    )(x.astype(jnp.bfloat16), w, s, t)


# ----------------------------------------------------------------------------
# Pallas kernel 2: fused tail = conv6 (as Linear(1024->256)) + BN + ReLU + flatten
#                              + fc Linear(256->1024) + BN1d + ReLU
# One launch, both weight slabs (0.5 MiB + 0.5 MiB) resident in VMEM, no HBM round trip
# for the (B, 256) intermediate.
# ----------------------------------------------------------------------------
def tail_kernel(x_ref, w6_ref, s6_ref, t6_ref, wf_ref, sf_ref, tf_ref, o_ref):
    h = jnp.dot(x_ref[...], w6_ref[...], preferred_element_type=jnp.float32)
    h = jnp.maximum(h * s6_ref[...] + t6_ref[...], 0.0).astype(jnp.bfloat16)
    o = jnp.dot(h, wf_ref[...], preferred_element_type=jnp.float32)
    o = jnp.maximum(o * sf_ref[...] + tf_ref[...], 0.0)
    o_ref[...] = o.astype(o_ref.dtype)


def tail_forward(x_flat, tail):
    B = x_flat.shape[0]
    return pl.pallas_call(
        tail_kernel,
        out_shape=jax.ShapeDtypeStruct((B, 1024), jnp.float32),
    )(x_flat.astype(jnp.bfloat16), tail["w6"], tail["s6"], tail["t6"],
      tail["wf"], tail["sf"], tail["tf"])


# ----------------------------------------------------------------------------
# im2col for Conv2d(k=4, s=2, p=1); column order (kh, kw, cin).  Runs inside jit.
# `cin_pad` folds the channel pad (conv1: 3 -> 8) into the same jnp.pad as the spatial pad.
# ----------------------------------------------------------------------------
def im2col_s2k4p1(x_nhwc, cin_pad=0):
    B, H, W, C = x_nhwc.shape
    Ho, Wo = H // 2, W // 2
    xp = jnp.pad(x_nhwc, ((0, 0), (1, 1), (1, 1), (0, cin_pad)))
    Cp = C + cin_pad
    cols = [xp[:, kh:kh + 2 * Ho:2, kw:kw + 2 * Wo:2, :]
            for kh in range(4) for kw in range(4)]
    pat = jnp.stack(cols, axis=3)                  # (B, Ho, Wo, 16, Cp)
    return pat.reshape(B * Ho * Wo, 16 * Cp), Ho, Wo


def conv_bn_relu(x_nhwc, layer, cin_pad=0):
    B = x_nhwc.shape[0]
    X, Ho, Wo = im2col_s2k4p1(x_nhwc, cin_pad)
    Y = fused_matmul(X, layer["w"], layer["s"], layer["t"],
                     relu=True, out_dtype=jnp.bfloat16)
    return Y.reshape(B, Ho, Wo, layer["w"].shape[1])


# ----------------------------------------------------------------------------
# Parameter init (deterministic, synthetic) + one-time prep (permute/fold BN/cast bf16)
# ----------------------------------------------------------------------------
def init_params(key):
    keys = iter(jax.random.split(key, 64))
    p = {}

    # Synthetic VAE decoder: latent -> 3*64*64 image (BaseVAE.decode is abstract).
    p["vae_w"] = 0.05 * jax.random.normal(next(keys), (LATENT, 3 * IMG_HW * IMG_HW), jnp.float32)
    p["vae_b"] = 0.05 * jax.random.normal(next(keys), (3 * IMG_HW * IMG_HW,), jnp.float32)

    convs = []
    for i in range(len(FILTERS) - 1):
        cin, cout = FILTERS[i], FILTERS[i + 1]
        convs.append(dict(
            w=0.05 * jax.random.normal(next(keys), (cout, cin, 4, 4), jnp.float32),
            b=0.05 * jax.random.normal(next(keys), (cout,), jnp.float32),
            gamma=1.0 + 0.05 * jax.random.normal(next(keys), (cout,), jnp.float32),
            beta=0.05 * jax.random.normal(next(keys), (cout,), jnp.float32),
            mean=0.05 * jax.random.normal(next(keys), (cout,), jnp.float32),
            var=0.5 + jnp.abs(jax.random.normal(next(keys), (cout,), jnp.float32)),
        ))
    p["convs"] = convs

    p["fc_w"] = 0.05 * jax.random.normal(next(keys), (1024, FLAT), jnp.float32)   # (out, in)
    p["fc_b"] = 0.05 * jax.random.normal(next(keys), (1024,), jnp.float32)
    p["fc_gamma"] = 1.0 + 0.05 * jax.random.normal(next(keys), (1024,), jnp.float32)
    p["fc_beta"] = 0.05 * jax.random.normal(next(keys), (1024,), jnp.float32)
    p["fc_mean"] = 0.05 * jax.random.normal(next(keys), (1024,), jnp.float32)
    p["fc_var"] = 0.5 + jnp.abs(jax.random.normal(next(keys), (1024,), jnp.float32))
    return p


def _fold_bn(bias, gamma, beta, mean, var, eps):
    s = gamma / jnp.sqrt(var + eps)                # BatchNorm eval-mode (running stats)
    t = bias * s + (beta - mean * s)
    return s.astype(jnp.float32)[None, :], t.astype(jnp.float32)[None, :]


def prepare_params(p, eps=1e-5):
    """One-time weight prep: permute VAE columns to NHWC order, fold BN + biases into
    per-output-channel scale/shift, drop conv6's dead kernel taps, cast matmul operands
    to bf16.  Nothing here runs per forward call."""
    prep = {}

    # VAE decode: permute columns NCHW-flat -> NHWC-flat so the matmul output IS the
    # flattened NHWC image (removes the per-forward transpose).  K stays at its true 32.
    j = jnp.arange(3 * IMG_HW * IMG_HW)
    h, r = j // (IMG_HW * 3), j % (IMG_HW * 3)
    w_, c = r // 3, r % 3
    perm = c * (IMG_HW * IMG_HW) + h * IMG_HW + w_
    prep["vae_w"] = p["vae_w"][:, perm].astype(jnp.bfloat16)           # (32, 12288)
    prep["vae_s"] = jnp.ones((1, 3 * IMG_HW * IMG_HW), jnp.float32)
    prep["vae_t"] = p["vae_b"][perm].astype(jnp.float32)[None, :]

    # conv1..conv5: (Cout,Cin,kh,kw) -> (kh,kw,Cin,Cout) -> (16*Cin, Cout) matches im2col
    # column order.  conv1's Cin is zero-padded 3 -> 8 so its im2col K is exactly 128.
    convs = []
    for li, cp in enumerate(p["convs"][:5]):
        cout, cin = cp["w"].shape[0], cp["w"].shape[1]
        wt = jnp.transpose(cp["w"], (2, 3, 1, 0))                       # (kh, kw, cin, cout)
        if li == 0:
            wt = jnp.pad(wt, ((0, 0), (0, 0), (0, 8 - cin), (0, 0)))    # phantom-channel rows = 0
            cin = 8
        s, t = _fold_bn(cp["b"], cp["gamma"], cp["beta"], cp["mean"], cp["var"], eps)
        convs.append({"w": wt.reshape(16 * cin, cout).astype(jnp.bfloat16), "s": s, "t": t})
    prep["convs"] = convs

    # Tail: conv6 on a 2x2 map == Linear(4*256 -> 256) using only taps (kh,kw) in {1,2}^2
    # (all other taps multiply the zero border), rows in (h, w, cin) order; then fc.
    c6 = p["convs"][5]
    w6 = jnp.transpose(c6["w"][:, :, 1:3, 1:3], (2, 3, 1, 0)).reshape(4 * FLAT, FLAT)
    s6, t6 = _fold_bn(c6["b"], c6["gamma"], c6["beta"], c6["mean"], c6["var"], eps)
    sf, tf = _fold_bn(p["fc_b"], p["fc_gamma"], p["fc_beta"], p["fc_mean"], p["fc_var"], eps)
    prep["tail"] = {"w6": w6.astype(jnp.bfloat16), "s6": s6, "t6": t6,
                    "wf": p["fc_w"].T.astype(jnp.bfloat16), "sf": sf, "tf": tf}
    return prep


# ----------------------------------------------------------------------------
# AutoEncoderCelebA.forward == encode(x)
# ----------------------------------------------------------------------------
def autoencoder_encode(prep, z):
    B = z.shape[0]

    # vae.decode(x): synthetic linear decoder, emitted directly as flattened NHWC.
    # tm = B (=2) so the fp32 epilogue tile is tiny; tn=1024 -> grid (1, 12), both parallel.
    img = fused_matmul(z, prep["vae_w"], prep["vae_s"], prep["vae_t"],
                       relu=False, out_dtype=jnp.bfloat16, tn=1024)
    x = img.reshape(B, IMG_HW, IMG_HW, 3)          # contiguous reshape, no transpose

    # cnn_encoder: conv1..conv5 (im2col in XLA glue + fused matmul/BN/ReLU on the MXU).
    x = conv_bn_relu(x, prep["convs"][0], cin_pad=5)   # 64x64x(3->8) -> 32x32x64, K=128
    for layer in prep["convs"][1:]:
        x = conv_bn_relu(x, layer)                     # ... -> (B, 2, 2, 256)

    # conv6 + BN + ReLU + flatten(1) + fc_encoder + final flatten: one fused kernel.
    # (B,2,2,256) -> (B,1024) is a contiguous (h,w,c) flatten matching w6's row order.
    return tail_forward(x.reshape(B, 4 * FLAT), prep["tail"])


if __name__ == "__main__":
    key = jax.random.PRNGKey(0)
    pkey, xkey = jax.random.split(key)
    raw = init_params(pkey)
    prep = prepare_params(raw)                 # one-time weight prep (outside the jit)

    # Input to AutoEncoderCelebA.forward is the VAE latent code.
    x = jax.random.normal(xkey, (2, LATENT), jnp.float32)

    fwd = jax.jit(lambda z: autoencoder_encode(prep, z))   # weights constant-fold into the jit
    out = jax.block_until_ready(fwd(x))

    assert out.shape == (2, 1024), out.shape
    assert bool(jnp.all(jnp.isfinite(out)))
    print("KERNEL_OK")
</pallas_src>

<mosaic_0001>
module attributes {stable_mosaic.version = 11 : i64} {
  func.func @fused_matmul_kernel(%arg0: i32, %arg1: i32, %arg2: memref<2x32xbf16, #tpu.memory_space<vmem>>, %arg3: memref<32x1024xbf16, #tpu.memory_space<vmem>>, %arg4: memref<1x1024xf32, #tpu.memory_space<vmem>>, %arg5: memref<1x1024xf32, #tpu.memory_space<vmem>>, %arg6: memref<2x1024xbf16, #tpu.memory_space<vmem>>) attributes {dimension_semantics = [#tpu.dimension_semantics<parallel>, #tpu.dimension_semantics<parallel>], iteration_bounds = array<i64: 1, 12>, scalar_prefetch = 0 : i64, scratch_operands = 0 : i64, tpu.core_type = #tpu.core_type<tc>, window_params = [{transform_indices = @transform_0, window_bounds = array<i64: 2, 32>}, {transform_indices = @transform_1, window_bounds = array<i64: 32, 1024>}, {transform_indices = @transform_2, window_bounds = array<i64: 1, 1024>}, {transform_indices = @transform_3, window_bounds = array<i64: 1, 1024>}, {transform_indices = @transform_4, window_bounds = array<i64: 2, 1024>}]} {
    %c0 = arith.constant 0 : index
    %c0_0 = arith.constant 0 : index
    %0 = vector.load %arg2[%c0, %c0_0] : memref<2x32xbf16, #tpu.memory_space<vmem>>, vector<2x32xbf16>
    %c0_1 = arith.constant 0 : index
    %c0_2 = arith.constant 0 : index
    %1 = vector.load %arg3[%c0_1, %c0_2] : memref<32x1024xbf16, #tpu.memory_space<vmem>>, vector<32x1024xbf16>
    %cst = arith.constant dense<0.000000e+00> : vector<2x1024xf32>
    %2 = tpu.matmul %0, %1, %cst {dimension_numbers = #tpu.dot_dimension_numbers<[1], [0], [0], [1], [0, 0, 1, 1], [], []>} : vector<2x32xbf16>, vector<32x1024xbf16>, vector<2x1024xf32> -> vector<2x1024xf32>
    %c0_3 = arith.constant 0 : index
    %c0_4 = arith.constant 0 : index
    %3 = vector.load %arg4[%c0_3, %c0_4] : memref<1x1024xf32, #tpu.memory_space<vmem>>, vector<1x1024xf32>
    %4 = vector.broadcast %3 : vector<1x1024xf32> to vector<2x1024xf32>
    %5 = arith.mulf %2, %4 : vector<2x1024xf32>
    %c0_5 = arith.constant 0 : index
    %c0_6 = arith.constant 0 : index
    %6 = vector.load %arg5[%c0_5, %c0_6] : memref<1x1024xf32, #tpu.memory_space<vmem>>, vector<1x1024xf32>
    %7 = vector.broadcast %6 : vector<1x1024xf32> to vector<2x1024xf32>
    %8 = arith.addf %5, %7 : vector<2x1024xf32>
    %9 = arith.truncf %8 : vector<2x1024xf32> to vector<2x1024xbf16>
    %c0_7 = arith.constant 0 : index
    %c0_8 = arith.constant 0 : index
    %10 = vector.load %arg6[%c0_7, %c0_8] : memref<2x1024xbf16, #tpu.memory_space<vmem>>, vector<2x1024xbf16>
    tpu.vector_store %arg6[%c0_7, %c0_8], %9 {strides = array<i32>} : memref<2x1024xbf16, #tpu.memory_space<vmem>>, vector<2x1024xbf16>,
    return
  }
  func.func @transform_0(%arg0: i32, %arg1: i32) -> (i32, i32) {
    %c0_i32 = arith.constant 0 : i32
    %c0_i32_0 = arith.constant 0 : i32
    return %arg0, %c0_i32 : i32, i32
  }
  func.func @transform_1(%arg0: i32, %arg1: i32) -> (i32, i32) {
    %c0_i32 = arith.constant 0 : i32
    %c0_i32_0 = arith.constant 0 : i32
    return %c0_i32, %arg1 : i32, i32
  }
  func.func @transform_2(%arg0: i32, %arg1: i32) -> (i32, i32) {
    %c0_i32 = arith.constant 0 : i32
    %c0_i32_0 = arith.constant 0 : i32
    return %c0_i32, %arg1 : i32, i32
  }
  func.func @transform_3(%arg0: i32, %arg1: i32) -> (i32, i32) {
    %c0_i32 = arith.constant 0 : i32
    %c0_i32_0 = arith.constant 0 : i32
    return %c0_i32, %arg1 : i32, i32
  }
  func.func @transform_4(%arg0: i32, %arg1: i32) -> (i32, i32) {
    %c0_i32 = arith.constant 0 : i32
    return %arg0, %arg1 : i32, i32
  }
}

module attributes {stable_mosaic.version = 11 : i64} {
  func.func @fused_matmul_kernel(%arg0: i32, %arg1: i32, %arg2: memref<256x128xbf16, #tpu.memory_space<vmem>>, %arg3: memref<128x64xbf16, #tpu.memory_space<vmem>>, %arg4: memref<1x64xf32, #tpu.memory_space<vmem>>, %arg5: memref<1x64xf32, #tpu.memory_space<vmem>>, %arg6: memref<256x64xbf16, #tpu.memory_space<vmem>>) attributes {dimension_semantics = [#tpu.dimension_semantics<parallel>, #tpu.dimension_semantics<parallel>], iteration_bounds = array<i64: 8, 1>, scalar_prefetch = 0 : i64, scratch_operands = 0 : i64, tpu.core_type = #tpu.core_type<tc>, window_params = [{transform_indices = @transform_0, window_bounds = array<i64: 256, 128>}, {transform_indices = @transform_1, window_bounds = array<i64: 128, 64>}, {transform_indices = @transform_2, window_bounds = array<i64: 1, 64>}, {transform_indices = @transform_3, window_bounds = array<i64: 1, 64>}, {transform_indices = @transform_4, window_bounds = array<i64: 256, 64>}]} {
    %c0 = arith.constant 0 : index
    %c0_0 = arith.constant 0 : index
    %0 = vector.load %arg2[%c0, %c0_0] : memref<256x128xbf16, #tpu.memory_space<vmem>>, vector<256x128xbf16>
    %c0_1 = arith.constant 0 : index
    %c0_2 = arith.constant 0 : index
    %1 = vector.load %arg3[%c0_1, %c0_2] : memref<128x64xbf16, #tpu.memory_space<vmem>>, vector<128x64xbf16>
    %cst = arith.constant dense<0.000000e+00> : vector<256x64xf32>
    %2 = tpu.matmul %0, %1, %cst {dimension_numbers = #tpu.dot_dimension_numbers<[1], [0], [0], [1], [0, 0, 1, 1], [], []>} : vector<256x128xbf16>, vector<128x64xbf16>, vector<256x64xf32> -> vector<256x64xf32>
    %c0_3 = arith.constant 0 : index
    %c0_4 = arith.constant 0 : index
    %3 = vector.load %arg4[%c0_3, %c0_4] : memref<1x64xf32, #tpu.memory_space<vmem>>, vector<1x64xf32>
    %4 = vector.broadcast %3 : vector<1x64xf32> to vector<256x64xf32>
    %5 = arith.mulf %2, %4 : vector<256x64xf32>
    %c0_5 = arith.constant 0 : index
    %c0_6 = arith.constant 0 : index
    %6 = vector.load %arg5[%c0_5, %c0_6] : memref<1x64xf32, #tpu.memory_space<vmem>>, vector<1x64xf32>
    %7 = vector.broadcast %6 : vector<1x64xf32> to vector<256x64xf32>
    %8 = arith.addf %5, %7 : vector<256x64xf32>
    %cst_7 = arith.constant 0.000000e+00 : f32
    %9 = vector.broadcast %cst_7 : f32 to vector<256x64xf32>
    %10 = arith.maximumf %8, %9 : vector<256x64xf32>
    %11 = arith.truncf %10 : vector<256x64xf32> to vector<256x64xbf16>
    %c0_8 = arith.constant 0 : index
    %c0_9 = arith.constant 0 : index
    %12 = vector.load %arg6[%c0_8, %c0_9] : memref<256x64xbf16, #tpu.memory_space<vmem>>, vector<256x64xbf16>
    tpu.vector_store %arg6[%c0_8, %c0_9], %11 {strides = array<i32>} : memref<256x64xbf16, #tpu.memory_space<vmem>>, vector<256x64xbf16>,
    return
  }
  func.func @transform_0(%arg0: i32, %arg1: i32) -> (i32, i32) {
    %c0_i32 = arith.constant 0 : i32
    %c0_i32_0 = arith.constant 0 : i32
    return %arg0, %c0_i32 : i32, i32
  }
  func.func @transform_1(%arg0: i32, %arg1: i32) -> (i32, i32) {
    %c0_i32 = arith.constant 0 : i32
    %c0_i32_0 = arith.constant 0 : i32
    return %c0_i32, %arg1 : i32, i32
  }
  func.func @transform_2(%arg0: i32, %arg1: i32) -> (i32, i32) {
    %c0_i32 = arith.constant 0 : i32
    %c0_i32_0 = arith.constant 0 : i32
    return %c0_i32, %arg1 : i32, i32
  }
  func.func @transform_3(%arg0: i32, %arg1: i32) -> (i32, i32) {
    %c0_i32 = arith.constant 0 : i32
    %c0_i32_0 = arith.constant 0 : i32
    return %c0_i32, %arg1 : i32, i32
  }
  func.func @transform_4(%arg0: i32, %arg1: i32) -> (i32, i32) {
    %c0_i32 = arith.constant 0 : i32
    return %arg0, %arg1 : i32, i32
  }
}

module attributes {stable_mosaic.version = 11 : i64} {
  func.func @fused_matmul_kernel(%arg0: i32, %arg1: i32, %arg2: memref<256x1024xbf16, #tpu.memory_space<vmem>>, %arg3: memref<1024x64xbf16, #tpu.memory_space<vmem>>, %arg4: memref<1x64xf32, #tpu.memory_space<vmem>>, %arg5: memref<1x64xf32, #tpu.memory_space<vmem>>, %arg6: memref<256x64xbf16, #tpu.memory_space<vmem>>) attributes {dimension_semantics = [#tpu.dimension_semantics<parallel>, #tpu.dimension_semantics<parallel>], iteration_bounds = array<i64: 2, 1>, scalar_prefetch = 0 : i64, scratch_operands = 0 : i64, tpu.core_type = #tpu.core_type<tc>, window_params = [{transform_indices = @transform_0, window_bounds = array<i64: 256, 1024>}, {transform_indices = @transform_1, window_bounds = array<i64: 1024, 64>}, {transform_indices = @transform_2, window_bounds = array<i64: 1, 64>}, {transform_indices = @transform_3, window_bounds = array<i64: 1, 64>}, {transform_indices = @transform_4, window_bounds = array<i64: 256, 64>}]} {
    %c0 = arith.constant 0 : index
    %c0_0 = arith.constant 0 : index
    %0 = vector.load %arg2[%c0, %c0_0] : memref<256x1024xbf16, #tpu.memory_space<vmem>>, vector<256x1024xbf16>
    %c0_1 = arith.constant 0 : index
    %c0_2 = arith.constant 0 : index
    %1 = vector.load %arg3[%c0_1, %c0_2] : memref<1024x64xbf16, #tpu.memory_space<vmem>>, vector<1024x64xbf16>
    %cst = arith.constant dense<0.000000e+00> : vector<256x64xf32>
    %2 = tpu.matmul %0, %1, %cst {dimension_numbers = #tpu.dot_dimension_numbers<[1], [0], [0], [1], [0, 0, 1, 1], [], []>} : vector<256x1024xbf16>, vector<1024x64xbf16>, vector<256x64xf32> -> vector<256x64xf32>
    %c0_3 = arith.constant 0 : index
    %c0_4 = arith.constant 0 : index
    %3 = vector.load %arg4[%c0_3, %c0_4] : memref<1x64xf32, #tpu.memory_space<vmem>>, vector<1x64xf32>
    %4 = vector.broadcast %3 : vector<1x64xf32> to vector<256x64xf32>
    %5 = arith.mulf %2, %4 : vector<256x64xf32>
    %c0_5 = arith.constant 0 : index
    %c0_6 = arith.constant 0 : index
    %6 = vector.load %arg5[%c0_5, %c0_6] : memref<1x64xf32, #tpu.memory_space<vmem>>, vector<1x64xf32>
    %7 = vector.broadcast %6 : vector<1x64xf32> to vector<256x64xf32>
    %8 = arith.addf %5, %7 : vector<256x64xf32>
    %cst_7 = arith.constant 0.000000e+00 : f32
    %9 = vector.broadcast %cst_7 : f32 to vector<256x64xf32>
    %10 = arith.maximumf %8, %9 : vector<256x64xf32>
    %11 = arith.truncf %10 : vector<256x64xf32> to vector<256x64xbf16>
    %c0_8 = arith.constant 0 : index
    %c0_9 = arith.constant 0 : index
    %12 = vector.load %arg6[%c0_8, %c0_9] : memref<256x64xbf16, #tpu.memory_space<vmem>>, vector<256x64xbf16>
    tpu.vector_store %arg6[%c0_8, %c0_9], %11 {strides = array<i32>} : memref<256x64xbf16, #tpu.memory_space<vmem>>, vector<256x64xbf16>,
    return
  }
  func.func @transform_0(%arg0: i32, %arg1: i32) -> (i32, i32) {
    %c0_i32 = arith.constant 0 : i32
    %c0_i32_0 = arith.constant 0 : i32
    return %arg0, %c0_i32 : i32, i32
  }
  func.func @transform_1(%arg0: i32, %arg1: i32) -> (i32, i32) {
    %c0_i32 = arith.constant 0 : i32
    %c0_i32_0 = arith.constant 0 : i32
    return %c0_i32, %arg1 : i32, i32
  }
  func.func @transform_2(%arg0: i32, %arg1: i32) -> (i32, i32) {
    %c0_i32 = arith.constant 0 : i32
    %c0_i32_0 = arith.constant 0 : i32
    return %c0_i32, %arg1 : i32, i32
  }
  func.func @transform_3(%arg0: i32, %arg1: i32) -> (i32, i32) {
    %c0_i32 = arith.constant 0 : i32
    %c0_i32_0 = arith.constant 0 : i32
    return %c0_i32, %arg1 : i32, i32
  }
  func.func @transform_4(%arg0: i32, %arg1: i32) -> (i32, i32) {
    %c0_i32 = arith.constant 0 : i32
    return %arg0, %arg1 : i32, i32
  }
}

module attributes {stable_mosaic.version = 11 : i64} {
  func.func @fused_matmul_kernel(%arg0: i32, %arg1: i32, %arg2: memref<128x1024xbf16, #tpu.memory_space<vmem>>, %arg3: memref<1024x128xbf16, #tpu.memory_space<vmem>>, %arg4: memref<1x128xf32, #tpu.memory_space<vmem>>, %arg5: memref<1x128xf32, #tpu.memory_space<vmem>>, %arg6: memref<128x128xbf16, #tpu.memory_space<vmem>>) attributes {dimension_semantics = [#tpu.dimension_semantics<parallel>, #tpu.dimension_semantics<parallel>], iteration_bounds = array<i64: 1, 1>, scalar_prefetch = 0 : i64, scratch_operands = 0 : i64, tpu.core_type = #tpu.core_type<tc>, window_params = [{transform_indices = @transform_0, window_bounds = array<i64: 128, 1024>}, {transform_indices = @transform_1, window_bounds = array<i64: 1024, 128>}, {transform_indices = @transform_2, window_bounds = array<i64: 1, 128>}, {transform_indices = @transform_3, window_bounds = array<i64: 1, 128>}, {transform_indices = @transform_4, window_bounds = array<i64: 128, 128>}]} {
    %c0 = arith.constant 0 : index
    %c0_0 = arith.constant 0 : index
    %0 = vector.load %arg2[%c0, %c0_0] : memref<128x1024xbf16, #tpu.memory_space<vmem>>, vector<128x1024xbf16>
    %c0_1 = arith.constant 0 : index
    %c0_2 = arith.constant 0 : index
    %1 = vector.load %arg3[%c0_1, %c0_2] : memref<1024x128xbf16, #tpu.memory_space<vmem>>, vector<1024x128xbf16>
    %cst = arith.constant dense<0.000000e+00> : vector<128x128xf32>
    %2 = tpu.matmul %0, %1, %cst {dimension_numbers = #tpu.dot_dimension_numbers<[1], [0], [0], [1], [0, 0, 1, 1], [], []>} : vector<128x1024xbf16>, vector<1024x128xbf16>, vector<128x128xf32> -> vector<128x128xf32>
    %c0_3 = arith.constant 0 : index
    %c0_4 = arith.constant 0 : index
    %3 = vector.load %arg4[%c0_3, %c0_4] : memref<1x128xf32, #tpu.memory_space<vmem>>, vector<1x128xf32>
    %4 = vector.broadcast %3 : vector<1x128xf32> to vector<128x128xf32>
    %5 = arith.mulf %2, %4 : vector<128x128xf32>
    %c0_5 = arith.constant 0 : index
    %c0_6 = arith.constant 0 : index
    %6 = vector.load %arg5[%c0_5, %c0_6] : memref<1x128xf32, #tpu.memory_space<vmem>>, vector<1x128xf32>
    %7 = vector.broadcast %6 : vector<1x128xf32> to vector<128x128xf32>
    %8 = arith.addf %5, %7 : vector<128x128xf32>
    %cst_7 = arith.constant 0.000000e+00 : f32
    %9 = vector.broadcast %cst_7 : f32 to vector<128x128xf32>
    %10 = arith.maximumf %8, %9 : vector<128x128xf32>
    %11 = arith.truncf %10 : vector<128x128xf32> to vector<128x128xbf16>
    %c0_8 = arith.constant 0 : index
    %c0_9 = arith.constant 0 : index
    %12 = vector.load %arg6[%c0_8, %c0_9] : memref<128x128xbf16, #tpu.memory_space<vmem>>, vector<128x128xbf16>
    tpu.vector_store %arg6[%c0_8, %c0_9], %11 {strides = array<i32>} : memref<128x128xbf16, #tpu.memory_space<vmem>>, vector<128x128xbf16>,
    return
  }
  func.func @transform_0(%arg0: i32, %arg1: i32) -> (i32, i32) {
    %c0_i32 = arith.constant 0 : i32
    %c0_i32_0 = arith.constant 0 : i32
    return %arg0, %c0_i32 : i32, i32
  }
  func.func @transform_1(%arg0: i32, %arg1: i32) -> (i32, i32) {
    %c0_i32 = arith.constant 0 : i32
    %c0_i32_0 = arith.constant 0 : i32
    return %c0_i32, %arg1 : i32, i32
  }
  func.func @transform_2(%arg0: i32, %arg1: i32) -> (i32, i32) {
    %c0_i32 = arith.constant 0 : i32
    %c0_i32_0 = arith.constant 0 : i32
    return %c0_i32, %arg1 : i32, i32
  }
  func.func @transform_3(%arg0: i32, %arg1: i32) -> (i32, i32) {
    %c0_i32 = arith.constant 0 : i32
    %c0_i32_0 = arith.constant 0 : i32
    return %c0_i32, %arg1 : i32, i32
  }
  func.func @transform_4(%arg0: i32, %arg1: i32) -> (i32, i32) {
    %c0_i32 = arith.constant 0 : i32
    return %arg0, %arg1 : i32, i32
  }
}

module attributes {stable_mosaic.version = 11 : i64} {
  func.func @fused_matmul_kernel(%arg0: i32, %arg1: i32, %arg2: memref<32x2048xbf16, #tpu.memory_space<vmem>>, %arg3: memref<2048x128xbf16, #tpu.memory_space<vmem>>, %arg4: memref<1x128xf32, #tpu.memory_space<vmem>>, %arg5: memref<1x128xf32, #tpu.memory_space<vmem>>, %arg6: memref<32x128xbf16, #tpu.memory_space<vmem>>) attributes {dimension_semantics = [#tpu.dimension_semantics<parallel>, #tpu.dimension_semantics<parallel>], iteration_bounds = array<i64: 1, 1>, scalar_prefetch = 0 : i64, scratch_operands = 0 : i64, tpu.core_type = #tpu.core_type<tc>, window_params = [{transform_indices = @transform_0, window_bounds = array<i64: 32, 2048>}, {transform_indices = @transform_1, window_bounds = array<i64: 2048, 128>}, {transform_indices = @transform_2, window_bounds = array<i64: 1, 128>}, {transform_indices = @transform_3, window_bounds = array<i64: 1, 128>}, {transform_indices = @transform_4, window_bounds = array<i64: 32, 128>}]} {
    %c0 = arith.constant 0 : index
    %c0_0 = arith.constant 0 : index
    %0 = vector.load %arg2[%c0, %c0_0] : memref<32x2048xbf16, #tpu.memory_space<vmem>>, vector<32x2048xbf16>
    %c0_1 = arith.constant 0 : index
    %c0_2 = arith.constant 0 : index
    %1 = vector.load %arg3[%c0_1, %c0_2] : memref<2048x128xbf16, #tpu.memory_space<vmem>>, vector<2048x128xbf16>
    %cst = arith.constant dense<0.000000e+00> : vector<32x128xf32>
    %2 = tpu.matmul %0, %1, %cst {dimension_numbers = #tpu.dot_dimension_numbers<[1], [0], [0], [1], [0, 0, 1, 1], [], []>} : vector<32x2048xbf16>, vector<2048x128xbf16>, vector<32x128xf32> -> vector<32x128xf32>
    %c0_3 = arith.constant 0 : index
    %c0_4 = arith.constant 0 : index
    %3 = vector.load %arg4[%c0_3, %c0_4] : memref<1x128xf32, #tpu.memory_space<vmem>>, vector<1x128xf32>
    %4 = vector.broadcast %3 : vector<1x128xf32> to vector<32x128xf32>
    %5 = arith.mulf %2, %4 : vector<32x128xf32>
    %c0_5 = arith.constant 0 : index
    %c0_6 = arith.constant 0 : index
    %6 = vector.load %arg5[%c0_5, %c0_6] : memref<1x128xf32, #tpu.memory_space<vmem>>, vector<1x128xf32>
    %7 = vector.broadcast %6 : vector<1x128xf32> to vector<32x128xf32>
    %8 = arith.addf %5, %7 : vector<32x128xf32>
    %cst_7 = arith.constant 0.000000e+00 : f32
    %9 = vector.broadcast %cst_7 : f32 to vector<32x128xf32>
    %10 = arith.maximumf %8, %9 : vector<32x128xf32>
    %11 = arith.truncf %10 : vector<32x128xf32> to vector<32x128xbf16>
    %c0_8 = arith.constant 0 : index
    %c0_9 = arith.constant 0 : index
    %12 = vector.load %arg6[%c0_8, %c0_9] : memref<32x128xbf16, #tpu.memory_space<vmem>>, vector<32x128xbf16>
    tpu.vector_store %arg6[%c0_8, %c0_9], %11 {strides = array<i32>} : memref<32x128xbf16, #tpu.memory_space<vmem>>, vector<32x128xbf16>,
    return
  }
  func.func @transform_0(%arg0: i32, %arg1: i32) -> (i32, i32) {
    %c0_i32 = arith.constant 0 : i32
    %c0_i32_0 = arith.constant 0 : i32
    return %arg0, %c0_i32 : i32, i32
  }
  func.func @transform_1(%arg0: i32, %arg1: i32) -> (i32, i32) {
    %c0_i32 = arith.constant 0 : i32
    %c0_i32_0 = arith.constant 0 : i32
    return %c0_i32, %arg1 : i32, i32
  }
  func.func @transform_2(%arg0: i32, %arg1: i32) -> (i32, i32) {
    %c0_i32 = arith.constant 0 : i32
    %c0_i32_0 = arith.constant 0 : i32
    return %c0_i32, %arg1 : i32, i32
  }
  func.func @transform_3(%arg0: i32, %arg1: i32) -> (i32, i32) {
    %c0_i32 = arith.constant 0 : i32
    %c0_i32_0 = arith.constant 0 : i32
    return %c0_i32, %arg1 : i32, i32
  }
  func.func @transform_4(%arg0: i32, %arg1: i32) -> (i32, i32) {
    %c0_i32 = arith.constant 0 : i32
    return %arg0, %arg1 : i32, i32
  }
}

module attributes {stable_mosaic.version = 11 : i64} {
  func.func @fused_matmul_kernel(%arg0: i32, %arg1: i32, %arg2: memref<8x2048xbf16, #tpu.memory_space<vmem>>, %arg3: memref<2048x128xbf16, #tpu.memory_space<vmem>>, %arg4: memref<1x128xf32, #tpu.memory_space<vmem>>, %arg5: memref<1x128xf32, #tpu.memory_space<vmem>>, %arg6: memref<8x128xbf16, #tpu.memory_space<vmem>>) attributes {dimension_semantics = [#tpu.dimension_semantics<parallel>, #tpu.dimension_semantics<parallel>], iteration_bounds = array<i64: 1, 2>, scalar_prefetch = 0 : i64, scratch_operands = 0 : i64, tpu.core_type = #tpu.core_type<tc>, window_params = [{transform_indices = @transform_0, window_bounds = array<i64: 8, 2048>}, {transform_indices = @transform_1, window_bounds = array<i64: 2048, 128>}, {transform_indices = @transform_2, window_bounds = array<i64: 1, 128>}, {transform_indices = @transform_3, window_bounds = array<i64: 1, 128>}, {transform_indices = @transform_4, window_bounds = array<i64: 8, 128>}]} {
    %c0 = arith.constant 0 : index
    %c0_0 = arith.constant 0 : index
    %0 = vector.load %arg2[%c0, %c0_0] : memref<8x2048xbf16, #tpu.memory_space<vmem>>, vector<8x2048xbf16>
    %c0_1 = arith.constant 0 : index
    %c0_2 = arith.constant 0 : index
    %1 = vector.load %arg3[%c0_1, %c0_2] : memref<2048x128xbf16, #tpu.memory_space<vmem>>, vector<2048x128xbf16>
    %cst = arith.constant dense<0.000000e+00> : vector<8x128xf32>
    %2 = tpu.matmul %0, %1, %cst {dimension_numbers = #tpu.dot_dimension_numbers<[1], [0], [0], [1], [0, 0, 1, 1], [], []>} : vector<8x2048xbf16>, vector<2048x128xbf16>, vector<8x128xf32> -> vector<8x128xf32>
    %c0_3 = arith.constant 0 : index
    %c0_4 = arith.constant 0 : index
    %3 = vector.load %arg4[%c0_3, %c0_4] : memref<1x128xf32, #tpu.memory_space<vmem>>, vector<1x128xf32>
    %4 = vector.broadcast %3 : vector<1x128xf32> to vector<8x128xf32>
    %5 = arith.mulf %2, %4 : vector<8x128xf32>
    %c0_5 = arith.constant 0 : index
    %c0_6 = arith.constant 0 : index
    %6 = vector.load %arg5[%c0_5, %c0_6] : memref<1x128xf32, #tpu.memory_space<vmem>>, vector<1x128xf32>
    %7 = vector.broadcast %6 : vector<1x128xf32> to vector<8x128xf32>
    %8 = arith.addf %5, %7 : vector<8x128xf32>
    %cst_7 = arith.constant 0.000000e+00 : f32
    %9 = vector.broadcast %cst_7 : f32 to vector<8x128xf32>
    %10 = arith.maximumf %8, %9 : vector<8x128xf32>
    %11 = arith.truncf %10 : vector<8x128xf32> to vector<8x128xbf16>
    %c0_8 = arith.constant 0 : index
    %c0_9 = arith.constant 0 : index
    %12 = vector.load %arg6[%c0_8, %c0_9] : memref<8x128xbf16, #tpu.memory_space<vmem>>, vector<8x128xbf16>
    tpu.vector_store %arg6[%c0_8, %c0_9], %11 {strides = array<i32>} : memref<8x128xbf16, #tpu.memory_space<vmem>>, vector<8x128xbf16>,
    return
  }
  func.func @transform_0(%arg0: i32, %arg1: i32) -> (i32, i32) {
    %c0_i32 = arith.constant 0 : i32
    %c0_i32_0 = arith.constant 0 : i32
    return %arg0, %c0_i32 : i32, i32
  }
  func.func @transform_1(%arg0: i32, %arg1: i32) -> (i32, i32) {
    %c0_i32 = arith.constant 0 : i32
    %c0_i32_0 = arith.constant 0 : i32
    return %c0_i32, %arg1 : i32, i32
  }
  func.func @transform_2(%arg0: i32, %arg1: i32) -> (i32, i32) {
    %c0_i32 = arith.constant 0 : i32
    %c0_i32_0 = arith.constant 0 : i32
    return %c0_i32, %arg1 : i32, i32
  }
  func.func @transform_3(%arg0: i32, %arg1: i32) -> (i32, i32) {
    %c0_i32 = arith.constant 0 : i32
    %c0_i32_0 = arith.constant 0 : i32
    return %c0_i32, %arg1 : i32, i32
  }
  func.func @transform_4(%arg0: i32, %arg1: i32) -> (i32, i32) {
    %c0_i32 = arith.constant 0 : i32
    return %arg0, %arg1 : i32, i32
  }
}

module attributes {stable_mosaic.version = 11 : i64} {
  func.func @tail_kernel(%arg0: memref<2x1024xbf16, #tpu.memory_space<vmem>>, %arg1: memref<1024x256xbf16, #tpu.memory_space<vmem>>, %arg2: memref<1x256xf32, #tpu.memory_space<vmem>>, %arg3: memref<1x256xf32, #tpu.memory_space<vmem>>, %arg4: memref<256x1024xbf16, #tpu.memory_space<vmem>>, %arg5: memref<1x1024xf32, #tpu.memory_space<vmem>>, %arg6: memref<1x1024xf32, #tpu.memory_space<vmem>>, %arg7: memref<2x1024xf32, #tpu.memory_space<vmem>>) attributes {dimension_semantics = [], scalar_prefetch = 0 : i64, scratch_operands = 0 : i64, tpu.core_type = #tpu.core_type<tc>} {
    %c0 = arith.constant 0 : index
    %c0_0 = arith.constant 0 : index
    %0 = vector.load %arg0[%c0, %c0_0] : memref<2x1024xbf16, #tpu.memory_space<vmem>>, vector<2x1024xbf16>
    %c0_1 = arith.constant 0 : index
    %c0_2 = arith.constant 0 : index
    %1 = vector.load %arg1[%c0_1, %c0_2] : memref<1024x256xbf16, #tpu.memory_space<vmem>>, vector<1024x256xbf16>
    %cst = arith.constant dense<0.000000e+00> : vector<2x256xf32>
    %2 = tpu.matmul %0, %1, %cst {dimension_numbers = #tpu.dot_dimension_numbers<[1], [0], [0], [1], [0, 0, 1, 1], [], []>} : vector<2x1024xbf16>, vector<1024x256xbf16>, vector<2x256xf32> -> vector<2x256xf32>
    %c0_3 = arith.constant 0 : index
    %c0_4 = arith.constant 0 : index
    %3 = vector.load %arg2[%c0_3, %c0_4] : memref<1x256xf32, #tpu.memory_space<vmem>>, vector<1x256xf32>
    %4 = vector.broadcast %3 : vector<1x256xf32> to vector<2x256xf32>
    %5 = arith.mulf %2, %4 : vector<2x256xf32>
    %c0_5 = arith.constant 0 : index
    %c0_6 = arith.constant 0 : index
    %6 = vector.load %arg3[%c0_5, %c0_6] : memref<1x256xf32, #tpu.memory_space<vmem>>, vector<1x256xf32>
    %7 = vector.broadcast %6 : vector<1x256xf32> to vector<2x256xf32>
    %8 = arith.addf %5, %7 : vector<2x256xf32>
    %cst_7 = arith.constant 0.000000e+00 : f32
    %9 = vector.broadcast %cst_7 : f32 to vector<2x256xf32>
    %10 = arith.maximumf %8, %9 : vector<2x256xf32>
    %11 = arith.truncf %10 : vector<2x256xf32> to vector<2x256xbf16>
    %c0_8 = arith.constant 0 : index
    %c0_9 = arith.constant 0 : index
    %12 = vector.load %arg4[%c0_8, %c0_9] : memref<256x1024xbf16, #tpu.memory_space<vmem>>, vector<256x1024xbf16>
    %cst_10 = arith.constant dense<0.000000e+00> : vector<2x1024xf32>
    %13 = tpu.matmul %11, %12, %cst_10 {dimension_numbers = #tpu.dot_dimension_numbers<[1], [0], [0], [1], [0, 0, 1, 1], [], []>} : vector<2x256xbf16>, vector<256x1024xbf16>, vector<2x1024xf32> -> vector<2x1024xf32>
    %c0_11 = arith.constant 0 : index
    %c0_12 = arith.constant 0 : index
    %14 = vector.load %arg5[%c0_11, %c0_12] : memref<1x1024xf32, #tpu.memory_space<vmem>>, vector<1x1024xf32>
    %15 = vector.broadcast %14 : vector<1x1024xf32> to vector<2x1024xf32>
    %16 = arith.mulf %13, %15 : vector<2x1024xf32>
    %c0_13 = arith.constant 0 : index
    %c0_14 = arith.constant 0 : index
    %17 = vector.load %arg6[%c0_13, %c0_14] : memref<1x1024xf32, #tpu.memory_space<vmem>>, vector<1x1024xf32>
    %18 = vector.broadcast %17 : vector<1x1024xf32> to vector<2x1024xf32>
    %19 = arith.addf %16, %18 : vector<2x1024xf32>
    %cst_15 = arith.constant 0.000000e+00 : f32
    %20 = vector.broadcast %cst_15 : f32 to vector<2x1024xf32>
    %21 = arith.maximumf %19, %20 : vector<2x1024xf32>
    %c0_16 = arith.constant 0 : index
    %c0_17 = arith.constant 0 : index
    %22 = vector.load %arg7[%c0_16, %c0_17] : memref<2x1024xf32, #tpu.memory_space<vmem>>, vector<2x1024xf32>
    tpu.vector_store %arg7[%c0_16, %c0_17], %21 {strides = array<i32>} : memref<2x1024xf32, #tpu.memory_space<vmem>>, vector<2x1024xf32>,
    return
  }
}

</mosaic_0001>

<llo_original>
// kernel: _lambda_.7
$region0: #{_lambda_.7}
  #allocation0 [shape = 'u32[]', space=smem, size = 0x4, offset = 0x4, fixed_abs, tag = 'smem constant byte address 0x4 - core index']
  #allocation1 [shape = 'u32[144,128]{1,0:T(1,128)}', space=vmem, size = 0x12000, scoped, tag = 'internal scratch']
  %s0 = inlined_call_operand.vmem [shape: bf16[2,32], index: 0, kind: input, shape index: {}]
  %s1 = inlined_call_operand.hbm [shape: bf16[32,12288], index: 1, kind: input, shape index: {}]
  %s2 = inlined_call_operand.vmem [shape: f32[1,12288], index: 2, kind: input, shape index: {}]
  %s3 = inlined_call_operand.hbm [shape: f32[1,12288], index: 3, kind: input, shape index: {}]
  %s4 = inlined_call_operand.vmem [shape: bf16[2,12288], index: 4, kind: output, shape index: {}]
  %s5 = sld [smem:[#allocation0]]
  $region57: #{_lambda_.7} parent=0
    _
  %s7 = ssub.s32 1, %s5
  %s8 = scalar_select 0, %s7, %s5
  $region1: #{_lambda_.7} parent=0
    #allocation2 [shape = 'u8[131072]{0}', space=vmem, size = 0x20000, scoped, tag = 'input window, operand 1']
    #allocation3 [shape = 's32[2]{0}', space=sflag, size = 0x8, scoped, tag = 'scoped memory for _lambda_.7']
    #allocation4 [shape = 'u8[8192]{0}', space=vmem, size = 0x2000, scoped, tag = 'input window, operand 3']
    #allocation5 [shape = 's32[2]{0}', space=sflag, size = 0x8, scoped, tag = 'scoped memory for _lambda_.7']
    %9 = vsyncpa [#allocation3], 0
    %s10 = scalar_lea.sflag [#allocation3], 1
    %11 = vsyncpa %s10, 0
    %12 = vsyncpa [#allocation5], 0
    %s13 = scalar_lea.sflag [#allocation5], 1
    %14 = vsyncpa %s13, 0
    loop: start=0, step=1, limit=14
    $region2: #{_lambda_.7} parent=1 // loop_pre_header
      _
    $region3: #{_lambda_.7} parent=1 // loop_header
      %s16 = sphi 0, %s20
      %p17 = scmp.ge.s32.totalorder %s16, 14
      %s23 = sphi 0, %s35
      %s24 = sphi 0, %s31
      %s25 = sphi 0, %s23
      %s26 = sphi 0, %s24
      %s27 = sphi 0, %s25
      %s28 = sphi 0, %s26
      %s38 = sphi 0, %s40
      %s41 = sphi 0, %s38
      %s42 = sphi 0, %s41
      %s58 = sphi 0, %s42
      %s64 = sphi 0, %s66
      %s67 = sphi 0, %s64
      %s68 = sphi 0, %s67
      %s84 = sphi 0, %s68
      %s90 = sphi 0, %s92
      %s93 = sphi 0, %s90
      %s94 = sphi 0, %s93
      %s110 = sphi 0, %s94
      %s116 = sphi 0, %s118
      %s119 = sphi 0, %s116
      %s120 = sphi 0, %s119
      %s136 = sphi 0, %s120
      %s144 = sphi 0, %s146
      %s147 = sphi 0, %s144
      %s148 = sphi 0, %s147
      %s164 = sphi 0, %s148
    $region4: #{_lambda_.7} parent=1 // loop_header_branch
      %19 = sbr.rel (%p17) target = $region8
    $region5: #{_lambda_.7} parent=1 // loop_body
      %s21 = ssub.s32 %s16, 1
      %s22 = ssub.s32 %s16, 2
      %s29 = sadd.s32 1, %s24
      %p30 = scmp.ge.s32.totalorder %s29, 12
      %s31 = scalar_select %p30, 0, %s29
      %s32 = sadd.s32 1, %s23
      %s33 = scalar_select %p30, %s32, %s23
      %p34 = scmp.ge.s32.totalorder %s33, 1
      %s35 = scalar_select %p34, 0, %s33
      %s36 = ssub.s32 %s23, %s35
      %p37 = scmp.eq.s32.totalorder %s36, 0
      %s39 = sadd.s32 %s38, 1
      %s40 = scalar_select %p37, %s38, %s39
      %p43 = pneg %p37
      %p44 = scmp.eq.s32.totalorder %s16, 11
      %p45 = por %p43, %p44
      %p46 = scmp.ne.s32.totalorder %s38, %s41
      %p47 = scmp.eq.s32.totalorder %s16, 0
      %p48 = por %p46, %p47
      %p49 = scmp.ne.s32.totalorder %s38, %s41
      %p50 = scmp.eq.s32.totalorder %s21, 11
      %p51 = por %p49, %p50
      %p52 = scmp.ne.s32.totalorder %s41, %s42
      %p53 = scmp.eq.s32.totalorder %s21, 0
      %p54 = por %p52, %p53
      %p55 = scmp.ne.s32.totalorder %s41, %s42
      %p56 = scmp.eq.s32.totalorder %s22, 11
      %p57 = por %p55, %p56
      %p59 = scmp.ne.s32.totalorder %s42, %s58
      %p60 = scmp.eq.s32.totalorder %s22, 0
      %p61 = por %p59, %p60
      %s62 = ssub.s32 %s24, %s31
      %p63 = scmp.eq.s32.totalorder %s62, 0
      %s65 = sadd.s32 %s64, 1
      %s66 = scalar_select %p63, %s64, %s65
      %p69 = pneg %p63
      %p70 = scmp.eq.s32.totalorder %s16, 11
      %p71 = por %p69, %p70
      %p72 = scmp.ne.s32.totalorder %s64, %s67
      %p73 = scmp.eq.s32.totalorder %s16, 0
      %p74 = por %p72, %p73
      %p75 = scmp.ne.s32.totalorder %s64, %s67
      %p76 = scmp.eq.s32.totalorder %s21, 11
      %p77 = por %p75, %p76
      %p78 = scmp.ne.s32.totalorder %s67, %s68
      %p79 = scmp.eq.s32.totalorder %s21, 0
      %p80 = por %p78, %p79
      %p81 = scmp.ne.s32.totalorder %s67, %s68
      %p82 = scmp.eq.s32.totalorder %s22, 11
      %p83 = por %p81, %p82
      %p85 = scmp.ne.s32.totalorder %s68, %s84
      %p86 = scmp.eq.s32.totalorder %s22, 0
      %p87 = por %p85, %p86
      %s88 = ssub.s32 %s24, %s31
      %p89 = scmp.eq.s32.totalorder %s88, 0
      %s91 = sadd.s32 %s90, 1
      %s92 = scalar_select %p89, %s90, %s91
      %p95 = pneg %p89
      %p96 = scmp.eq.s32.totalorder %s16, 11
      %p97 = por %p95, %p96
      %p98 = scmp.ne.s32.totalorder %s90, %s93
      %p99 = scmp.eq.s32.totalorder %s16, 0
      %p100 = por %p98, %p99
      %p101 = scmp.ne.s32.totalorder %s90, %s93
      %p102 = scmp.eq.s32.totalorder %s21, 11
      %p103 = por %p101, %p102
      %p104 = scmp.ne.s32.totalorder %s93, %s94
      %p105 = scmp.eq.s32.totalorder %s21, 0
      %p106 = por %p104, %p105
      %p107 = scmp.ne.s32.totalorder %s93, %s94
      %p108 = scmp.eq.s32.totalorder %s22, 11
      %p109 = por %p107, %p108
      %p111 = scmp.ne.s32.totalorder %s94, %s110
      %p112 = scmp.eq.s32.totalorder %s22, 0
      %p113 = por %p111, %p112
      %s114 = ssub.s32 %s24, %s31
      %p115 = scmp.eq.s32.totalorder %s114, 0
      %s117 = sadd.s32 %s116, 1
      %s118 = scalar_select %p115, %s116, %s117
      %p121 = pneg %p115
      %p122 = scmp.eq.s32.totalorder %s16, 11
      %p123 = por %p121, %p122
      %p124 = scmp.ne.s32.totalorder %s116, %s119
      %p125 = scmp.eq.s32.totalorder %s16, 0
      %p126 = por %p124, %p125
      %p127 = scmp.ne.s32.totalorder %s116, %s119
      %p128 = scmp.eq.s32.totalorder %s21, 11
      %p129 = por %p127, %p128
      %p130 = scmp.ne.s32.totalorder %s119, %s120
      %p131 = scmp.eq.s32.totalorder %s21, 0
      %p132 = por %p130, %p131
      %p133 = scmp.ne.s32.totalorder %s119, %s120
      %p134 = scmp.eq.s32.totalorder %s22, 11
      %p135 = por %p133, %p134
      %p137 = scmp.ne.s32.totalorder %s120, %s136
      %p138 = scmp.eq.s32.totalorder %s22, 0
      %p139 = por %p137, %p138
      %s140 = ssub.s32 %s23, %s35
      %s141 = ssub.s32 %s24, %s31
      %s142 = sor.u32 %s140, %s141
      %p143 = scmp.eq.s32.totalorder %s142, 0
      %s145 = sadd.s32 %s144, 1
      %s146 = scalar_select %p143, %s144, %s145
      %p149 = pneg %p143
      %p150 = scmp.eq.s32.totalorder %s16, 11
      %p151 = por %p149, %p150
      %p152 = scmp.ne.s32.totalorder %s144, %s147
      %p153 = scmp.eq.s32.totalorder %s16, 0
      %p154 = por %p152, %p153
      %p155 = scmp.ne.s32.totalorder %s144, %s147
      %p156 = scmp.eq.s32.totalorder %s21, 11
      %p157 = por %p155, %p156
      %p158 = scmp.ne.s32.totalorder %s147, %s148
      %p159 = scmp.eq.s32.totalorder %s21, 0
      %p160 = por %p158, %p159
      %p161 = scmp.ne.s32.totalorder %s147, %s148
      %p162 = scmp.eq.s32.totalorder %s22, 11
      %p163 = por %p161, %p162
      %p165 = scmp.ne.s32.totalorder %s148, %s164
      %p166 = scmp.eq.s32.totalorder %s22, 0
      %p167 = por %p165, %p166
      %p168 = scmp.le.s32.totalorder 1, %s16
      %p169 = scmp.lt.s32.totalorder %s16, 13
      %p170 = pnand %p168, %p169
      %p171 = pneg %p170
      // Predicated region
      $region9: #{_lambda_.7} parent=5 // pred_check
        _
      $region10: #{_lambda_.7} parent=5 // pred_check_branch
        %173 = sbr.rel (%p170) target = $region12
      $region11: #{_lambda_.7} parent=5 // pred_region
        %s174 = ssub.s32 %s16, 1
        // Predicated region
        $region13: #{_lambda_.7} parent=11 // pred_check
          %p175 = pneg %p54
        $region14: #{_lambda_.7} parent=11 // pred_check_branch
          %177 = sbr.rel (%p175) target = $region16
        $region15: #{_lambda_.7} parent=11 // pred_region
          %p178 = scmp.lt.s32.totalorder %s25, 0
          %s179 = scalar_select %p178, %s25, 0
          %s180 = scalar_lea.vmem %s0, %s179
        $region16: #{_lambda_.7} parent=11 // pred_fallthru
          _
      $region12: #{_lambda_.7} parent=5 // pred_fallthru
        _
      %p181 = scmp.lt.s32.totalorder %s16, 12
      // Predicated region
      $region17: #{_lambda_.7} parent=5 // pred_check
        %p182 = pneg %p181
      $region18: #{_lambda_.7} parent=5 // pred_check_branch
        %184 = sbr.rel (%p182) target = $region20
      $region19: #{_lambda_.7} parent=5 // pred_region
        // Predicated region
        $region21: #{_lambda_.7} parent=19 // pred_check
          %p185 = pneg %p74
        $region22: #{_lambda_.7} parent=19 // pred_check_branch
          %187 = sbr.rel (%p185) target = $region24
        $region23: #{_lambda_.7} parent=19 // pred_region
          %s188 = sand.u32 %s64, 1
          %s189 = scalar_lea.sflag [#allocation3], %s188
          %s190 = sand.u32 %s64, 1
          %s191 = smul.addr %s190, 128
          %s192 = scalar_lea.vmem [#allocation2], %s191
          %s193 = smul.u32 8, %s24
          %s195 = ssub.s32 2048, 2048
          %196 = vsyncadd %s189, %s195
          %s197 = smul.addr %s193, 64
          %s198 = scalar_lea.hbm %s1, %s197
          %s199 = sshll.u32 %s192, 4
          %s200 = int_to_ptr.vmem [resolvable:$true] %s199
          %205 = dma.hbm_to_vmem [thread:$0]  %s198, 2048, %s200, %s189, 6144, 512, 32
        $region24: #{_lambda_.7} parent=19 // pred_fallthru
          _
        // Predicated region
        $region25: #{_lambda_.7} parent=19 // pred_check
          %p206 = pneg %p100
        $region26: #{_lambda_.7} parent=19 // pred_check_branch
          %208 = sbr.rel (%p206) target = $region28
        $region27: #{_lambda_.7} parent=19 // pred_region
          %s209 = smul.u32 8, %s24
          %p210 = scmp.lt.s32.totalorder %s209, 95
          %s211 = scalar_select %p210, %s209, 95
          %s212 = scalar_lea.vmem %s2, %s211
          %s213 = smul.u32 8, %s24
        $region28: #{_lambda_.7} parent=19 // pred_fallthru
          _
        // Predicated region
        $region29: #{_lambda_.7} parent=19 // pred_check
          %p214 = pneg %p126
        $region30: #{_lambda_.7} parent=19 // pred_check_branch
          %216 = sbr.rel (%p214) target = $region32
        $region31: #{_lambda_.7} parent=19 // pred_region
          %s217 = sand.u32 %s116, 1
          %s218 = scalar_lea.sflag [#allocation5], %s217
          %s219 = sand.u32 %s116, 1
          %s220 = smul.addr %s219, 8
          %s221 = scalar_lea.vmem [#allocation4], %s220
          %s222 = smul.u32 8, %s24
          %s224 = ssub.s32 128, 128
          %225 = vsyncadd %s218, %s224
          %s226 = smul.addr %s222, 16
          %s227 = scalar_lea.hbm %s3, %s226
          %s229 = sshll.u32 %s221, 4
          %s230 = int_to_ptr.vmem [resolvable:$true] %s229
          %232 = dma.hbm_to_vmem [thread:$0]  %s227, 128, %s230, %s218
        $region32: #{_lambda_.7} parent=19 // pred_fallthru
          _
      $region20: #{_lambda_.7} parent=5 // pred_fallthru
        _
      %p233 = scmp.le.s32.totalorder 1, %s16
      %p234 = scmp.lt.s32.totalorder %s16, 13
      %p235 = pnand %p233, %p234
      %p236 = pneg %p235
      // Predicated region
      $region33: #{_lambda_.7} parent=5 // pred_check
        _
      $region34: #{_lambda_.7} parent=5 // pred_check_branch
        %238 = sbr.rel (%p235) target = $region36
      $region35: #{_lambda_.7} parent=5 // pred_region
        %s239 = ssub.s32 %s16, 1
        %s240 = sand.u32 %s67, 1
        %s241 = scalar_lea.sflag [#allocation3], %s240
        %s242 = sand.u32 %s67, 1
        %s243 = smul.addr %s242, 128
        %s244 = scalar_lea.vmem [#allocation2], %s243
        // Predicated region
        $region37: #{_lambda_.7} parent=35 // pred_check
          %p245 = pneg %p80
        $region38: #{_lambda_.7} parent=35 // pred_check_branch
          %247 = sbr.rel (%p245) target = $region40
        $region39: #{_lambda_.7} parent=35 // pred_region
          %248 = dma.done %s241, 2048
        $region40: #{_lambda_.7} parent=35 // pred_fallthru
          _
        %s249 = sand.u32 %s119, 1
        %s250 = scalar_lea.sflag [#allocation5], %s249
        %s251 = sand.u32 %s119, 1
        %s252 = smul.addr %s251, 8
        %s253 = scalar_lea.vmem [#allocation4], %s252
        // Predicated region
        $region41: #{_lambda_.7} parent=35 // pred_check
          %p254 = pneg %p132
        $region42: #{_lambda_.7} parent=35 // pred_check_branch
          %256 = sbr.rel (%p254) target = $region44
        $region43: #{_lambda_.7} parent=35 // pred_region
          %257 = dma.done %s250, 128
        $region44: #{_lambda_.7} parent=35 // pred_fallthru
          _
        %p258 = scmp.lt.s32.totalorder %s25, 0
        %s259 = scalar_select %p258, %s25, 0
        %s260 = scalar_lea.vmem %s0, %s259
        %p261 = pneg %p54
        %p262 = pneg %p51
        %s263 = sand.u32 %s67, 1
        %s264 = scalar_lea.sflag [#allocation3], %s263
        %s265 = sand.u32 %s67, 1
        %s266 = smul.addr %s265, 128
        %s267 = scalar_lea.vmem [#allocation2], %s266
        %p268 = pneg %p80
        %p269 = pneg %p77
        %s270 = smul.u32 8, %s26
        %p271 = scmp.lt.s32.totalorder %s270, 95
        %s272 = scalar_select %p271, %s270, 95
        %s273 = scalar_lea.vmem %s2, %s272
        %p274 = pneg %p106
        %p275 = pneg %p103
        %s276 = sand.u32 %s119, 1
        %s277 = scalar_lea.sflag [#allocation5], %s276
        %s278 = sand.u32 %s119, 1
        %s279 = smul.addr %s278, 8
        %s280 = scalar_lea.vmem [#allocation4], %s279
        %p281 = pneg %p132
        %p282 = pneg %p129
        %p283 = pneg %p160
        %p284 = pneg %p157
        %s285 = smul.u32 8, %s26
        %p286 = scmp.lt.s32.totalorder %s25, 0
        %s287 = scalar_select %p286, %s25, 0
        %p288 = scmp.lt.s32.totalorder %s285, 95
        %s289 = scalar_select %p288, %s285, 95
        %s290 = smul.addr %s287, 96
        %s291 = sadd.s32 %s289, %s290
        %s292 = scalar_lea.vmem %s4, %s291
        %p293 = scmp.lt.s32.totalorder %s25, 0
        %s294 = scalar_select %p293, %s25, 0
        %s295 = scalar_lea.vmem %s0, %s294
        %s296 = smul.u32 8, %s26
        %s297 = smul.u32 8, %s26
        %p298 = scmp.lt.s32.totalorder %s297, 95
        %s299 = scalar_select %p298, %s297, 95
        %s300 = scalar_lea.vmem %s2, %s299
        %s301 = smul.u32 8, %s26
        %s302 = smul.u32 8, %s26
        %s303 = smul.u32 8, %s26
        %p304 = scmp.lt.s32.totalorder %s25, 0
        %s305 = scalar_select %p304, %s25, 0
        %p306 = scmp.lt.s32.totalorder %s303, 95
        %s307 = scalar_select %p306, %s303, 95
        %s308 = smul.addr %s305, 96
        %s309 = sadd.s32 %s307, %s308
        %s310 = scalar_lea.vmem %s4, %s309
        %s311 = smul.u32 8, %s26
        %v313 = vld [vmem:[%s295] sm:$0x1]
        %v314 = vld [vmem:[%s244] sm:$0xff]
        %v315 = vld [vmem:[%s244 + $0x8] sm:$0xff]
        %v316 = vld [vmem:[%s244 + $0x10] sm:$0xff]
        %v317 = vld [vmem:[%s244 + $0x18] sm:$0xff]
        %v318 = vld [vmem:[%s244 + $0x20] sm:$0xff]
        %v319 = vld [vmem:[%s244 + $0x28] sm:$0xff]
        %v320 = vld [vmem:[%s244 + $0x30] sm:$0xff]
        %v321 = vld [vmem:[%s244 + $0x38] sm:$0xff]
        %v322 = vld [vmem:[%s244 + $0x40] sm:$0xff]
        %v323 = vld [vmem:[%s244 + $0x48] sm:$0xff]
        %v324 = vld [vmem:[%s244 + $0x50] sm:$0xff]
        %v325 = vld [vmem:[%s244 + $0x58] sm:$0xff]
        %v326 = vld [vmem:[%s244 + $0x60] sm:$0xff]
        %v327 = vld [vmem:[%s244 + $0x68] sm:$0xff]
        %v328 = vld [vmem:[%s244 + $0x70] sm:$0xff]
        %v329 = vld [vmem:[%s244 + $0x78] sm:$0xff]
        %v346 = vunpack.c.l.b16 %v314
        %v347 = vunpack.c.h.b16 %v314
        %v348 = vunpack.c.l.b16 %v315
        %v349 = vunpack.c.h.b16 %v315
        %v350 = vunpack.c.l.b16 %v316
        %v351 = vunpack.c.h.b16 %v316
        %v352 = vunpack.c.l.b16 %v317
        %v353 = vunpack.c.h.b16 %v317
        %v354 = vunpack.c.l.b16 %v318
        %v355 = vunpack.c.h.b16 %v318
        %v356 = vunpack.c.l.b16 %v319
        %v357 = vunpack.c.h.b16 %v319
        %v358 = vunpack.c.l.b16 %v320
        %v359 = vunpack.c.h.b16 %v320
        %v360 = vunpack.c.l.b16 %v321
        %v361 = vunpack.c.h.b16 %v321
        %v362 = vunpack.c.l.b16 %v322
        %v363 = vunpack.c.h.b16 %v322
        %v364 = vunpack.c.l.b16 %v323
        %v365 = vunpack.c.h.b16 %v323
        %v366 = vunpack.c.l.b16 %v324
        %v367 = vunpack.c.h.b16 %v324
        %v368 = vunpack.c.l.b16 %v325
        %v369 = vunpack.c.h.b16 %v325
        %v370 = vunpack.c.l.b16 %v326
        %v371 = vunpack.c.h.b16 %v326
        %v372 = vunpack.c.l.b16 %v327
        %v373 = vunpack.c.h.b16 %v327
        %v374 = vunpack.c.l.b16 %v328
        %v375 = vunpack.c.h.b16 %v328
        %v376 = vunpack.c.l.b16 %v329
        %v377 = vunpack.c.h.b16 %v329
        %v378 = vpack.c.b16 %v354, %v346
        %v379 = vpack.c.b16 %v355, %v347
        %v380 = vpack.c.b16 %v356, %v348
        %v381 = vpack.c.b16 %v357, %v349
        %v382 = vpack.c.b16 %v358, %v350
        %v383 = vpack.c.b16 %v359, %v351
        %v384 = vpack.c.b16 %v360, %v352
        %v385 = vpack.c.b16 %v361, %v353
        %v386 = vpack.c.b16 %v370, %v362
        %v387 = vpack.c.b16 %v371, %v363
        %v388 = vpack.c.b16 %v372, %v364
        %v389 = vpack.c.b16 %v373, %v365
        %v390 = vpack.c.b16 %v374, %v366
        %v391 = vpack.c.b16 %v375, %v367
        %v392 = vpack.c.b16 %v376, %v368
        %v393 = vpack.c.b16 %v377, %v369
        %vm410 = vcmask 261120
        %v412 = vsel %vm410, %v313, 0
        %414 = vmatprep.subr.bf16.mxu0 0
        %415 = vmatpush1.bf16.msra.mxu0 0
        %416 = vmatprep.subr.bf16.mxu0 0
        %417 = vmatpush1.bf16.msra.mxu0 0
        %418 = vmatprep.subr.bf16.mxu0 0
        %419 = vmatpush1.bf16.msra.mxu0 0
        %420 = vmatprep.subr.bf16.mxu0 0
        %421 = vmatpush1.bf16.msra.mxu0 0
        %422 = vmatprep.subr.bf16.mxu0 0
        %423 = vmatpush1.bf16.msra.mxu0 0
        %424 = vmatprep.subr.bf16.mxu0 0
        %425 = vmatpush1.bf16.msra.mxu0 0
        %426 = vmatprep.subr.bf16.mxu0 %v387
        %427 = vmatpush1.bf16.msra.mxu0 %v386
        %428 = vmatprep.subr.bf16.mxu0 %v379
        %429 = vmatpush1.bf16.msra.mxu0 %v378
        %430 = vmatprep.subr.bf16.mxu0 0
        %431 = vmatpush2.bf16.msra.mxu0 0
        %432 = vmatprep.subr.bf16.mxu0 0
        %433 = vmatpush2.bf16.msra.mxu0 0
        %434 = vmatprep.subr.bf16.mxu0 0
        %435 = vmatpush2.bf16.msra.mxu0 0
        %436 = vmatprep.subr.bf16.mxu0 0
        %437 = vmatpush2.bf16.msra.mxu0 0
        %438 = vmatprep.subr.bf16.mxu0 0
        %439 = vmatpush2.bf16.msra.mxu0 0
        %440 = vmatprep.subr.bf16.mxu0 0
        %441 = vmatpush2.bf16.msra.mxu0 0
        %442 = vmatprep.subr.bf16.mxu0 0
        %443 = vmatpush2.bf16.msra.mxu0 0
        %444 = vmatprep.subr.bf16.mxu0 0
        %445 = vmatpush2.bf16.msra.mxu0 0
        %446 = vmatprep.mubr.bf16.mxu0 0
        %447 = vmatmul.mubr.bf16.gmra.mxu0 %v412
        %v448 = vpop.f32.mrf.mxu0
        %v449 = vadd.f32 0.0, %v448
        %v450 = vpop.f32.mrf.mxu0
        %v451 = vadd.f32 0.0, %v450
        %v452 = vpop.f32.mrf.mxu0
        %v453 = vpop.f32.mrf.mxu0
        %454 = vdwg.mxu0
        %455 = vmatprep.subr.bf16.mxu0 0
        %456 = vmatpush1.bf16.msra.mxu0 0
        %457 = vmatprep.subr.bf16.mxu0 0
        %458 = vmatpush1.bf16.msra.mxu0 0
        %459 = vmatprep.subr.bf16.mxu0 0
        %460 = vmatpush1.bf16.msra.mxu0 0
        %461 = vmatprep.subr.bf16.mxu0 0
        %462 = vmatpush1.bf16.msra.mxu0 0
        %463 = vmatprep.subr.bf16.mxu0 0
        %464 = vmatpush1.bf16.msra.mxu0 0
        %465 = vmatprep.subr.bf16.mxu0 0
        %466 = vmatpush1.bf16.msra.mxu0 0
        %467 = vmatprep.subr.bf16.mxu0 %v389
        %468 = vmatpush1.bf16.msra.mxu0 %v388
        %469 = vmatprep.subr.bf16.mxu0 %v381
        %470 = vmatpush1.bf16.msra.mxu0 %v380
        %471 = vmatprep.subr.bf16.mxu0 0
        %472 = vmatpush2.bf16.msra.mxu0 0
        %473 = vmatprep.subr.bf16.mxu0 0
        %474 = vmatpush2.bf16.msra.mxu0 0
        %475 = vmatprep.subr.bf16.mxu0 0
        %476 = vmatpush2.bf16.msra.mxu0 0
        %477 = vmatprep.subr.bf16.mxu0 0
        %478 = vmatpush2.bf16.msra.mxu0 0
        %479 = vmatprep.subr.bf16.mxu0 0
        %480 = vmatpush2.bf16.msra.mxu0 0
        %481 = vmatprep.subr.bf16.mxu0 0
        %482 = vmatpush2.bf16.msra.mxu0 0
        %483 = vmatprep.subr.bf16.mxu0 0
        %484 = vmatpush2.bf16.msra.mxu0 0
        %485 = vmatprep.subr.bf16.mxu0 0
        %486 = vmatpush2.bf16.msra.mxu0 0
        %487 = vmatprep.mubr.bf16.mxu0 0
        %488 = vmatmul.mubr.bf16.gmra.mxu0 %v412
        %v489 = vpop.f32.mrf.mxu0
        %v490 = vadd.f32 0.0, %v489
        %v491 = vpop.f32.mrf.mxu0
        %v492 = vadd.f32 0.0, %v491
        %v493 = vpop.f32.mrf.mxu0
        %v494 = vpop.f32.mrf.mxu0
        %495 = vdwg.mxu0
        %496 = vmatprep.subr.bf16.mxu0 0
        %497 = vmatpush1.bf16.msra.mxu0 0
        %498 = vmatprep.subr.bf16.mxu0 0
        %499 = vmatpush1.bf16.msra.mxu0 0
        %500 = vmatprep.subr.bf16.mxu0 0
        %501 = vmatpush1.bf16.msra.mxu0 0
        %502 = vmatprep.subr.bf16.mxu0 0
        %503 = vmatpush1.bf16.msra.mxu0 0
        %504 = vmatprep.subr.bf16.mxu0 0
        %505 = vmatpush1.bf16.msra.mxu0 0
        %506 = vmatprep.subr.bf16.mxu0 0
        %507 = vmatpush1.bf16.msra.mxu0 0
        %508 = vmatprep.subr.bf16.mxu0 %v391
        %509 = vmatpush1.bf16.msra.mxu0 %v390
        %510 = vmatprep.subr.bf16.mxu0 %v383
        %511 = vmatpush1.bf16.msra.mxu0 %v382
        %512 = vmatprep.subr.bf16.mxu0 0
        %513 = vmatpush2.bf16.msra.mxu0 0
        %514 = vmatprep.subr.bf16.mxu0 0
        %515 = vmatpush2.bf16.msra.mxu0 0
        %516 = vmatprep.subr.bf16.mxu0 0
        %517 = vmatpush2.bf16.msra.mxu0 0
        %518 = vmatprep.subr.bf16.mxu0 0
        %519 = vmatpush2.bf16.msra.mxu0 0
        %520 = vmatprep.subr.bf16.mxu0 0
        %521 = vmatpush2.bf16.msra.mxu0 0
        %522 = vmatprep.subr.bf16.mxu0 0
        %523 = vmatpush2.bf16.msra.mxu0 0
        %524 = vmatprep.subr.bf16.mxu0 0
        %525 = vmatpush2.bf16.msra.mxu0 0
        %526 = vmatprep.subr.bf16.mxu0 0
        %527 = vmatpush2.bf16.msra.mxu0 0
        %528 = vmatprep.mubr.bf16.mxu0 0
        %529 = vmatmul.mubr.bf16.gmra.mxu0 %v412
        %v530 = vpop.f32.mrf.mxu0
        %v531 = vadd.f32 0.0, %v530
        %v532 = vpop.f32.mrf.mxu0
        %v533 = vadd.f32 0.0, %v532
        %v534 = vpop.f32.mrf.mxu0
        %v535 = vpop.f32.mrf.mxu0
        %536 = vdwg.mxu0
        %537 = vmatprep.subr.bf16.mxu0 0
        %538 = vmatpush1.bf16.msra.mxu0 0
        %539 = vmatprep.subr.bf16.mxu0 0
        %540 = vmatpush1.bf16.msra.mxu0 0
        %541 = vmatprep.subr.bf16.mxu0 0
        %542 = vmatpush1.bf16.msra.mxu0 0
        %543 = vmatprep.subr.bf16.mxu0 0
        %544 = vmatpush1.bf16.msra.mxu0 0
        %545 = vmatprep.subr.bf16.mxu0 0
        %546 = vmatpush1.bf16.msra.mxu0 0
        %547 = vmatprep.subr.bf16.mxu0 0
        %548 = vmatpush1.bf16.msra.mxu0 0
        %549 = vmatprep.subr.bf16.mxu0 %v393
        %550 = vmatpush1.bf16.msra.mxu0 %v392
        %551 = vmatprep.subr.bf16.mxu0 %v385
        %552 = vmatpush1.bf16.msra.mxu0 %v384
        %553 = vmatprep.subr.bf16.mxu0 0
        %554 = vmatpush2.bf16.msra.mxu0 0
        %555 = vmatprep.subr.bf16.mxu0 0
        %556 = vmatpush2.bf16.msra.mxu0 0
        %557 = vmatprep.subr.bf16.mxu0 0
        %558 = vmatpush2.bf16.msra.mxu0 0
        %559 = vmatprep.subr.bf16.mxu0 0
        %560 = vmatpush2.bf16.msra.mxu0 0
        %561 = vmatprep.subr.bf16.mxu0 0
        %562 = vmatpush2.bf16.msra.mxu0 0
        %563 = vmatprep.subr.bf16.mxu0 0
        %564 = vmatpush2.bf16.msra.mxu0 0
        %565 = vmatprep.subr.bf16.mxu0 0
        %566 = vmatpush2.bf16.msra.mxu0 0
        %567 = vmatprep.subr.bf16.mxu0 0
        %568 = vmatpush2.bf16.msra.mxu0 0
        %569 = vmatprep.mubr.bf16.mxu0 0
        %570 = vmatmul.mubr.bf16.gmra.mxu0 %v412
        %v571 = vpop.f32.mrf.mxu0
        %v572 = vadd.f32 0.0, %v571
        %v573 = vpop.f32.mrf.mxu0
        %v574 = vadd.f32 0.0, %v573
        %v575 = vpop.f32.mrf.mxu0
        %v576 = vpop.f32.mrf.mxu0
        %577 = vdwg.mxu0
        %v578 = vld [vmem:[%s300] sm:$0xff]
        %v580 = vlaneseq
        %v581 = vshrl.u32 %v580, 7
        %v582 = vsub.s32 0, %v581
        %v583 = vrot.slane %v578, %v582
        %v584 = vlaneseq
        %v585 = vshrl.u32 %v584, 7
        %v586 = vsub.s32 1, %v585
        %v587 = vrot.slane %v578, %v586
        %v588 = vlaneseq
        %v589 = vshrl.u32 %v588, 7
        %v590 = vsub.s32 2, %v589
        %v591 = vrot.slane %v578, %v590
        %v592 = vlaneseq
        %v593 = vshrl.u32 %v592, 7
        %v594 = vsub.s32 3, %v593
        %v595 = vrot.slane %v578, %v594
        %v596 = vlaneseq
        %v597 = vshrl.u32 %v596, 7
        %v598 = vsub.s32 4, %v597
        %v599 = vrot.slane %v578, %v598
        %v600 = vlaneseq
        %v601 = vshrl.u32 %v600, 7
        %v602 = vsub.s32 5, %v601
        %v603 = vrot.slane %v578, %v602
        %v604 = vlaneseq
        %v605 = vshrl.u32 %v604, 7
        %v606 = vsub.s32 6, %v605
        %v607 = vrot.slane %v578, %v606
        %v608 = vlaneseq
        %v609 = vshrl.u32 %v608, 7
        %v610 = vsub.s32 7, %v609
        %v611 = vrot.slane %v578, %v610
        %v620 = vmul.f32 %v449, %v583
        %v621 = vmul.f32 %v451, %v587
        %v622 = vmul.f32 %v490, %v591
        %v623 = vmul.f32 %v492, %v595
        %v624 = vmul.f32 %v531, %v599
        %v625 = vmul.f32 %v533, %v603
        %v626 = vmul.f32 %v572, %v607
        %v627 = vmul.f32 %v574, %v611
        %v628 = vld [vmem:[%s253] sm:$0xff]
        %v630 = vlaneseq
        %v631 = vshrl.u32 %v630, 7
        %v632 = vsub.s32 0, %v631
        %v633 = vrot.slane %v628, %v632
        %v634 = vlaneseq
        %v635 = vshrl.u32 %v634, 7
        %v636 = vsub.s32 1, %v635
        %v637 = vrot.slane %v628, %v636
        %v638 = vlaneseq
        %v639 = vshrl.u32 %v638, 7
        %v640 = vsub.s32 2, %v639
        %v641 = vrot.slane %v628, %v640
        %v642 = vlaneseq
        %v643 = vshrl.u32 %v642, 7
        %v644 = vsub.s32 3, %v643
        %v645 = vrot.slane %v628, %v644
        %v646 = vlaneseq
        %v647 = vshrl.u32 %v646, 7
        %v648 = vsub.s32 4, %v647
        %v649 = vrot.slane %v628, %v648
        %v650 = vlaneseq
        %v651 = vshrl.u32 %v650, 7
        %v652 = vsub.s32 5, %v651
        %v653 = vrot.slane %v628, %v652
        %v654 = vlaneseq
        %v655 = vshrl.u32 %v654, 7
        %v656 = vsub.s32 6, %v655
        %v657 = vrot.slane %v628, %v656
        %v658 = vlaneseq
        %v659 = vshrl.u32 %v658, 7
        %v660 = vsub.s32 7, %v659
        %v661 = vrot.slane %v628, %v660
        %v670 = vadd.f32 %v620, %v633
        %v671 = vadd.f32 %v621, %v637
        %v672 = vadd.f32 %v622, %v641
        %v673 = vadd.f32 %v623, %v645
        %v674 = vadd.f32 %v624, %v649
        %v675 = vadd.f32 %v625, %v653
        %v676 = vadd.f32 %v626, %v657
        %v677 = vadd.f32 %v627, %v661
        %v678 = vpack.c.bf16 %v670, %v670
        %v679 = vpack.c.bf16 %v671, %v671
        %v680 = vpack.c.bf16 %v672, %v672
        %v681 = vpack.c.bf16 %v673, %v673
        %v682 = vpack.c.bf16 %v674, %v674
        %v683 = vpack.c.bf16 %v675, %v675
        %v684 = vpack.c.bf16 %v676, %v676
        %v685 = vpack.c.bf16 %v677, %v677
        %v694 = vcombine.low %v678, %v679
        %v695 = vcombine.low %v680, %v681
        %v696 = vcombine.low %v682, %v683
        %v697 = vcombine.low %v684, %v685
        %v699 = vunpack.c.l.s4 1966171168
        %v700 = vunpack.c.0.s8 %v699
        %v701 = vlaneseq
        %v702 = vshrl.u32 %v701, 7
        %v703 = vsub.s32 %v700, %v702
        %v704 = vrot.slane %v694, %v703
        %v706 = vunpack.c.l.s4 1966171168
        %v707 = vunpack.c.0.s8 %v706
        %v708 = vlaneseq
        %v709 = vshrl.u32 %v708, 7
        %v710 = vsub.s32 %v707, %v709
        %v711 = vrot.slane %v695, %v710
        %v713 = vunpack.c.l.s4 1966171168
        %v714 = vunpack.c.0.s8 %v713
        %v715 = vlaneseq
        %v716 = vshrl.u32 %v715, 7
        %v717 = vsub.s32 %v714, %v716
        %v718 = vrot.slane %v696, %v717
        %v720 = vunpack.c.l.s4 1966171168
        %v721 = vunpack.c.0.s8 %v720
        %v722 = vlaneseq
        %v723 = vshrl.u32 %v722, 7
        %v724 = vsub.s32 %v721, %v723
        %v725 = vrot.slane %v697, %v724
        %v726 = vcombine.low %v704, %v711
        %v727 = vcombine.low %v718, %v725
        %v729 = vunpack.c.l.s4 1966171168
        %v730 = vunpack.c.0.s8 %v729
        %v731 = vlaneseq
        %v732 = vshrl.u32 %v731, 7
        %v733 = vsub.s32 %v730, %v732
        %v734 = vrot.slane %v726, %v733
        %v736 = vunpack.c.l.s4 1966171168
        %v737 = vunpack.c.0.s8 %v736
        %v738 = vlaneseq
        %v739 = vshrl.u32 %v738, 7
        %v740 = vsub.s32 %v737, %v739
        %v741 = vrot.slane %v727, %v740
        %v742 = vcombine.low %v734, %v741
        %744 = vst [vmem:[%s310] sm:$0xff] %v742
        %s745 = smul.u32 8, %s26
        %p746 = scmp.lt.s32.totalorder %s25, 0
        %s747 = scalar_select %p746, %s25, 0
        %p748 = scmp.lt.s32.totalorder %s745, 95
        %s749 = scalar_select %p748, %s745, 95
        %s750 = smul.addr %s747, 96
        %s751 = sadd.s32 %s749, %s750
        %s752 = scalar_lea.vmem %s4, %s751
        // Predicated region
        $region45: #{_lambda_.7} parent=35 // pred_check
          %p753 = pneg %p157
        $region46: #{_lambda_.7} parent=35 // pred_check_branch
          %755 = sbr.rel (%p753) target = $region48
        $region47: #{_lambda_.7} parent=35 // pred_region
          %s756 = smul.u32 8, %s26
        $region48: #{_lambda_.7} parent=35 // pred_fallthru
          _
      $region36: #{_lambda_.7} parent=5 // pred_fallthru
        _
      %p757 = scmp.le.s32.totalorder 2, %s16
      // Predicated region
      $region49: #{_lambda_.7} parent=5 // pred_check
        %p758 = pneg %p757
      $region50: #{_lambda_.7} parent=5 // pred_check_branch
        %760 = sbr.rel (%p758) target = $region52
      $region51: #{_lambda_.7} parent=5 // pred_region
        %s761 = ssub.s32 %s16, 2
        // Predicated region
        $region53: #{_lambda_.7} parent=51 // pred_check
          %p762 = pneg %p163
        $region54: #{_lambda_.7} parent=51 // pred_check_branch
          %764 = sbr.rel (%p762) target = $region56
        $region55: #{_lambda_.7} parent=51 // pred_region
          %s765 = smul.u32 8, %s28
          %p766 = scmp.lt.s32.totalorder %s27, 0
          %s767 = scalar_select %p766, %s27, 0
          %p768 = scmp.lt.s32.totalorder %s765, 95
          %s769 = scalar_select %p768, %s765, 95
          %s770 = smul.addr %s767, 96
          %s771 = sadd.s32 %s769, %s770
          %s772 = scalar_lea.vmem %s4, %s771
        $region56: #{_lambda_.7} parent=51 // pred_fallthru
          _
      $region52: #{_lambda_.7} parent=5 // pred_fallthru
        _
    $region6: #{_lambda_.7} parent=1 // loop_footer
      %s20 = sadd.s32 1, %s16
    $region7: #{_lambda_.7} parent=1 // loop_footer_branch
      %15 = sbr.rel target = $region3
    $region8: #{_lambda_.7} parent=1 // loop_exit
      _
    %773 = vsyncpa [#allocation3], 1
    %s774 = scalar_lea.sflag [#allocation3], 1
    %775 = vsyncpa %s774, 1
    %776 = vsyncpa [#allocation5], 1
    %s777 = scalar_lea.sflag [#allocation5], 1
    %778 = vsyncpa %s777, 1

// kernel: _lambda_.8
$region0: #{_lambda_.8}
  #allocation0 [shape = 'u32[]', space=smem, size = 0x4, offset = 0x4, fixed_abs, tag = 'smem constant byte address 0x4 - core index']
  #allocation1 [shape = 'u32[144,128]{1,0:T(1,128)}', space=vmem, size = 0x12000, scoped, tag = 'internal scratch']
  %s0 = inlined_call_operand.vmem [shape: bf16[2048,128], index: 0, kind: input, shape index: {}]
  %s1 = inlined_call_operand.vmem [shape: bf16[128,64], index: 1, kind: input, shape index: {}]
  %s2 = inlined_call_operand.vmem [shape: f32[1,64], index: 2, kind: input, shape index: {}]
  %s3 = inlined_call_operand.vmem [shape: f32[1,64], index: 3, kind: input, shape index: {}]
  %s4 = inlined_call_operand.vmem [shape: bf16[2048,64], index: 4, kind: output, shape index: {}]
  %s5 = sld [smem:[#allocation0]]
  $region49: #{_lambda_.8} parent=0
    _
  %s7 = ssub.s32 1, %s5
  %s8 = scalar_select 0, %s7, %s5
  loop: start=0, step=1, limit=10
  $region2: #{_lambda_.8} parent=0 // loop_pre_header
    _
  $region3: #{_lambda_.8} parent=0 // loop_header
    %s10 = sphi 0, %s14
    %p11 = scmp.ge.s32.totalorder %s10, 10
    %s17 = sphi 0, %s29
    %s18 = sphi 0, %s25
    %s19 = sphi 0, %s17
    %s20 = sphi 0, %s18
    %s21 = sphi 0, %s19
    %s22 = sphi 0, %s20
    %s32 = sphi 0, %s34
    %s35 = sphi 0, %s32
    %s36 = sphi 0, %s35
    %s52 = sphi 0, %s36
    %s58 = sphi 0, %s60
    %s61 = sphi 0, %s58
    %s62 = sphi 0, %s61
    %s78 = sphi 0, %s62
    %s84 = sphi 0, %s86
    %s87 = sphi 0, %s84
    %s88 = sphi 0, %s87
    %s104 = sphi 0, %s88
    %s110 = sphi 0, %s112
    %s113 = sphi 0, %s110
    %s114 = sphi 0, %s113
    %s130 = sphi 0, %s114
    %s138 = sphi 0, %s140
    %s141 = sphi 0, %s138
    %s142 = sphi 0, %s141
    %s158 = sphi 0, %s142
  $region4: #{_lambda_.8} parent=0 // loop_header_branch
    %13 = sbr.rel (%p11) target = $region8
  $region5: #{_lambda_.8} parent=0 // loop_body
    %s15 = ssub.s32 %s10, 1
    %s16 = ssub.s32 %s10, 2
    %s23 = sadd.s32 1, %s18
    %p24 = scmp.ge.s32.totalorder %s23, 1
    %s25 = scalar_select %p24, 0, %s23
    %s26 = sadd.s32 1, %s17
    %s27 = scalar_select %p24, %s26, %s17
    %p28 = scmp.ge.s32.totalorder %s27, 8
    %s29 = scalar_select %p28, 0, %s27
    %s30 = ssub.s32 %s17, %s29
    %p31 = scmp.eq.s32.totalorder %s30, 0
    %s33 = sadd.s32 %s32, 1
    %s34 = scalar_select %p31, %s32, %s33
    %p37 = pneg %p31
    %p38 = scmp.eq.s32.totalorder %s10, 7
    %p39 = por %p37, %p38
    %p40 = scmp.ne.s32.totalorder %s32, %s35
    %p41 = scmp.eq.s32.totalorder %s10, 0
    %p42 = por %p40, %p41
    %p43 = scmp.ne.s32.totalorder %s32, %s35
    %p44 = scmp.eq.s32.totalorder %s15, 7
    %p45 = por %p43, %p44
    %p46 = scmp.ne.s32.totalorder %s35, %s36
    %p47 = scmp.eq.s32.totalorder %s15, 0
    %p48 = por %p46, %p47
    %p49 = scmp.ne.s32.totalorder %s35, %s36
    %p50 = scmp.eq.s32.totalorder %s16, 7
    %p51 = por %p49, %p50
    %p53 = scmp.ne.s32.totalorder %s36, %s52
    %p54 = scmp.eq.s32.totalorder %s16, 0
    %p55 = por %p53, %p54
    %s56 = ssub.s32 %s18, %s25
    %p57 = scmp.eq.s32.totalorder %s56, 0
    %s59 = sadd.s32 %s58, 1
    %s60 = scalar_select %p57, %s58, %s59
    %p63 = pneg %p57
    %p64 = scmp.eq.s32.totalorder %s10, 7
    %p65 = por %p63, %p64
    %p66 = scmp.ne.s32.totalorder %s58, %s61
    %p67 = scmp.eq.s32.totalorder %s10, 0
    %p68 = por %p66, %p67
    %p69 = scmp.ne.s32.totalorder %s58, %s61
    %p70 = scmp.eq.s32.totalorder %s15, 7
    %p71 = por %p69, %p70
    %p72 = scmp.ne.s32.totalorder %s61, %s62
    %p73 = scmp.eq.s32.totalorder %s15, 0
    %p74 = por %p72, %p73
    %p75 = scmp.ne.s32.totalorder %s61, %s62
    %p76 = scmp.eq.s32.totalorder %s16, 7
    %p77 = por %p75, %p76
    %p79 = scmp.ne.s32.totalorder %s62, %s78
    %p80 = scmp.eq.s32.totalorder %s16, 0
    %p81 = por %p79, %p80
    %s82 = ssub.s32 %s18, %s25
    %p83 = scmp.eq.s32.totalorder %s82, 0
    %s85 = sadd.s32 %s84, 1
    %s86 = scalar_select %p83, %s84, %s85
    %p89 = pneg %p83
    %p90 = scmp.eq.s32.totalorder %s10, 7
    %p91 = por %p89, %p90
    %p92 = scmp.ne.s32.totalorder %s84, %s87
    %p93 = scmp.eq.s32.totalorder %s10, 0
    %p94 = por %p92, %p93
    %p95 = scmp.ne.s32.totalorder %s84, %s87
    %p96 = scmp.eq.s32.totalorder %s15, 7
    %p97 = por %p95, %p96
    %p98 = scmp.ne.s32.totalorder %s87, %s88
    %p99 = scmp.eq.s32.totalorder %s15, 0
    %p100 = por %p98, %p99
    %p101 = scmp.ne.s32.totalorder %s87, %s88
    %p102 = scmp.eq.s32.totalorder %s16, 7
    %p103 = por %p101, %p102
    %p105 = scmp.ne.s32.totalorder %s88, %s104
    %p106 = scmp.eq.s32.totalorder %s16, 0
    %p107 = por %p105, %p106
    %s108 = ssub.s32 %s18, %s25
    %p109 = scmp.eq.s32.totalorder %s108, 0
    %s111 = sadd.s32 %s110, 1
    %s112 = scalar_select %p109, %s110, %s111
    %p115 = pneg %p109
    %p116 = scmp.eq.s32.totalorder %s10, 7
    %p117 = por %p115, %p116
    %p118 = scmp.ne.s32.totalorder %s110, %s113
    %p119 = scmp.eq.s32.totalorder %s10, 0
    %p120 = por %p118, %p119
    %p121 = scmp.ne.s32.totalorder %s110, %s113
    %p122 = scmp.eq.s32.totalorder %s15, 7
    %p123 = por %p121, %p122
    %p124 = scmp.ne.s32.totalorder %s113, %s114
    %p125 = scmp.eq.s32.totalorder %s15, 0
    %p126 = por %p124, %p125
    %p127 = scmp.ne.s32.totalorder %s113, %s114
    %p128 = scmp.eq.s32.totalorder %s16, 7
    %p129 = por %p127, %p128
    %p131 = scmp.ne.s32.totalorder %s114, %s130
    %p132 = scmp.eq.s32.totalorder %s16, 0
    %p133 = por %p131, %p132
    %s134 = ssub.s32 %s17, %s29
    %s135 = ssub.s32 %s18, %s25
    %s136 = sor.u32 %s134, %s135
    %p137 = scmp.eq.s32.totalorder %s136, 0
    %s139 = sadd.s32 %s138, 1
    %s140 = scalar_select %p137, %s138, %s139
    %p143 = pneg %p137
    %p144 = scmp.eq.s32.totalorder %s10, 7
    %p145 = por %p143, %p144
    %p146 = scmp.ne.s32.totalorder %s138, %s141
    %p147 = scmp.eq.s32.totalorder %s10, 0
    %p148 = por %p146, %p147
    %p149 = scmp.ne.s32.totalorder %s138, %s141
    %p150 = scmp.eq.s32.totalorder %s15, 7
    %p151 = por %p149, %p150
    %p152 = scmp.ne.s32.totalorder %s141, %s142
    %p153 = scmp.eq.s32.totalorder %s15, 0
    %p154 = por %p152, %p153
    %p155 = scmp.ne.s32.totalorder %s141, %s142
    %p156 = scmp.eq.s32.totalorder %s16, 7
    %p157 = por %p155, %p156
    %p159 = scmp.ne.s32.totalorder %s142, %s158
    %p160 = scmp.eq.s32.totalorder %s16, 0
    %p161 = por %p159, %p160
    %p162 = scmp.le.s32.totalorder 1, %s10
    %p163 = scmp.lt.s32.totalorder %s10, 9
    %p164 = pnand %p162, %p163
    %p165 = pneg %p164
    // Predicated region
    $region9: #{_lambda_.8} parent=5 // pred_check
      _
    $region10: #{_lambda_.8} parent=5 // pred_check_branch
      %167 = sbr.rel (%p164) target = $region12
    $region11: #{_lambda_.8} parent=5 // pred_region
      %s168 = ssub.s32 %s10, 1
      // Predicated region
      $region13: #{_lambda_.8} parent=11 // pred_check
        %p169 = pneg %p74
      $region14: #{_lambda_.8} parent=11 // pred_check_branch
        %171 = sbr.rel (%p169) target = $region16
      $region15: #{_lambda_.8} parent=11 // pred_region
        %p172 = scmp.lt.s32.totalorder %s20, 0
        %s173 = scalar_select %p172, %s20, 0
        %s174 = smul.addr %s173, 4
        %s175 = scalar_lea.vmem %s1, %s174
      $region16: #{_lambda_.8} parent=11 // pred_fallthru
        _
      // Predicated region
      $region17: #{_lambda_.8} parent=11 // pred_check
        %p176 = pneg %p100
      $region18: #{_lambda_.8} parent=11 // pred_check_branch
        %178 = sbr.rel (%p176) target = $region20
      $region19: #{_lambda_.8} parent=11 // pred_region
        %p179 = scmp.lt.s32.totalorder %s20, 0
        %s180 = scalar_select %p179, %s20, 0
        %s181 = scalar_lea.vmem %s2, %s180
      $region20: #{_lambda_.8} parent=11 // pred_fallthru
        _
      // Predicated region
      $region21: #{_lambda_.8} parent=11 // pred_check
        %p182 = pneg %p126
      $region22: #{_lambda_.8} parent=11 // pred_check_branch
        %184 = sbr.rel (%p182) target = $region24
      $region23: #{_lambda_.8} parent=11 // pred_region
        %p185 = scmp.lt.s32.totalorder %s20, 0
        %s186 = scalar_select %p185, %s20, 0
        %s187 = scalar_lea.vmem %s3, %s186
      $region24: #{_lambda_.8} parent=11 // pred_fallthru
        _
    $region12: #{_lambda_.8} parent=5 // pred_fallthru
      _
    %p188 = scmp.lt.s32.totalorder %s10, 8
    // Predicated region
    $region25: #{_lambda_.8} parent=5 // pred_check
      %p189 = pneg %p188
    $region26: #{_lambda_.8} parent=5 // pred_check_branch
      %191 = sbr.rel (%p189) target = $region28
    $region27: #{_lambda_.8} parent=5 // pred_region
      // Predicated region
      $region29: #{_lambda_.8} parent=27 // pred_check
        %p192 = pneg %p42
      $region30: #{_lambda_.8} parent=27 // pred_check_branch
        %194 = sbr.rel (%p192) target = $region32
      $region31: #{_lambda_.8} parent=27 // pred_region
        %s195 = smul.u32 32, %s17
        %p196 = scmp.lt.s32.totalorder %s195, 255
        %s197 = scalar_select %p196, %s195, 255
        %s198 = smul.addr %s197, 4
        %s199 = scalar_lea.vmem %s0, %s198
        %s200 = smul.u32 32, %s17
      $region32: #{_lambda_.8} parent=27 // pred_fallthru
        _
    $region28: #{_lambda_.8} parent=5 // pred_fallthru
      _
    %p201 = scmp.le.s32.totalorder 1, %s10
    %p202 = scmp.lt.s32.totalorder %s10, 9
    %p203 = pnand %p201, %p202
    %p204 = pneg %p203
    // Predicated region
    $region33: #{_lambda_.8} parent=5 // pred_check
      _
    $region34: #{_lambda_.8} parent=5 // pred_check_branch
      %206 = sbr.rel (%p203) target = $region36
    $region35: #{_lambda_.8} parent=5 // pred_region
      %s207 = ssub.s32 %s10, 1
      %s208 = smul.u32 32, %s19
      %p209 = scmp.lt.s32.totalorder %s208, 255
      %s210 = scalar_select %p209, %s208, 255
      %s211 = smul.addr %s210, 4
      %s212 = scalar_lea.vmem %s0, %s211
      %p213 = pneg %p48
      %p214 = pneg %p45
      %p215 = scmp.lt.s32.totalorder %s20, 0
      %s216 = scalar_select %p215, %s20, 0
      %s217 = smul.addr %s216, 4
      %s218 = scalar_lea.vmem %s1, %s217
      %p219 = pneg %p74
      %p220 = pneg %p71
      %p221 = scmp.lt.s32.totalorder %s20, 0
      %s222 = scalar_select %p221, %s20, 0
      %s223 = scalar_lea.vmem %s2, %s222
      %p224 = pneg %p100
      %p225 = pneg %p97
      %p226 = scmp.lt.s32.totalorder %s20, 0
      %s227 = scalar_select %p226, %s20, 0
      %s228 = scalar_lea.vmem %s3, %s227
      %p229 = pneg %p126
      %p230 = pneg %p123
      %p231 = pneg %p154
      %p232 = pneg %p151
      %s233 = smul.u32 32, %s19
      %p234 = scmp.lt.s32.totalorder %s233, 255
      %s235 = scalar_select %p234, %s233, 255
      %p236 = scmp.lt.s32.totalorder %s20, 0
      %s237 = scalar_select %p236, %s20, 0
      %s238 = sadd.s32 %s237, %s235
      %s239 = smul.addr %s238, 4
      %s240 = scalar_lea.vmem %s4, %s239
      %s241 = smul.u32 32, %s19
      %p242 = scmp.lt.s32.totalorder %s241, 255
      %s243 = scalar_select %p242, %s241, 255
      %s244 = smul.addr %s243, 4
      %s245 = scalar_lea.vmem %s0, %s244
      %s246 = smul.u32 32, %s19
      %p247 = scmp.lt.s32.totalorder %s20, 0
      %s248 = scalar_select %p247, %s20, 0
      %s249 = smul.addr %s248, 4
      %s250 = scalar_lea.vmem %s1, %s249
      %p251 = scmp.lt.s32.totalorder %s20, 0
      %s252 = scalar_select %p251, %s20, 0
      %s253 = scalar_lea.vmem %s2, %s252
      %p254 = scmp.lt.s32.totalorder %s20, 0
      %s255 = scalar_select %p254, %s20, 0
      %s256 = scalar_lea.vmem %s3, %s255
      %s257 = smul.u32 32, %s19
      %p258 = scmp.lt.s32.totalorder %s257, 255
      %s259 = scalar_select %p258, %s257, 255
      %p260 = scmp.lt.s32.totalorder %s20, 0
      %s261 = scalar_select %p260, %s20, 0
      %s262 = sadd.s32 %s261, %s259
      %s263 = smul.addr %s262, 4
      %s264 = scalar_lea.vmem %s4, %s263
      %s265 = smul.u32 32, %s19
      %v267 = vld [vmem:[%s245] sm:$0xf]
      %v268 = vld [vmem:[%s245 + $0x4] sm:$0xf]
      %v269 = vld [vmem:[%s245 + $0x8] sm:$0xf]
      %v270 = vld [vmem:[%s245 + $0xc] sm:$0xf]
      %v271 = vld [vmem:[%s245 + $0x10] sm:$0xf]
      %v272 = vld [vmem:[%s245 + $0x14] sm:$0xf]
      %v273 = vld [vmem:[%s245 + $0x18] sm:$0xf]
      %v274 = vld [vmem:[%s245 + $0x1c] sm:$0xf]
      %v275 = vld [vmem:[%s245 + $0x20] sm:$0xf]
      %v276 = vld [vmem:[%s245 + $0x24] sm:$0xf]
      %v277 = vld [vmem:[%s245 + $0x28] sm:$0xf]
      %v278 = vld [vmem:[%s245 + $0x2c] sm:$0xf]
      %v279 = vld [vmem:[%s245 + $0x30] sm:$0xf]
      %v280 = vld [vmem:[%s245 + $0x34] sm:$0xf]
      %v281 = vld [vmem:[%s245 + $0x38] sm:$0xf]
      %v282 = vld [vmem:[%s245 + $0x3c] sm:$0xf]
      %v283 = vld [vmem:[%s245 + $0x40] sm:$0xf]
      %v284 = vld [vmem:[%s245 + $0x44] sm:$0xf]
      %v285 = vld [vmem:[%s245 + $0x48] sm:$0xf]
      %v286 = vld [vmem:[%s245 + $0x4c] sm:$0xf]
      %v287 = vld [vmem:[%s245 + $0x50] sm:$0xf]
      %v288 = vld [vmem:[%s245 + $0x54] sm:$0xf]
      %v289 = vld [vmem:[%s245 + $0x58] sm:$0xf]
      %v290 = vld [vmem:[%s245 + $0x5c] sm:$0xf]
      %v291 = vld [vmem:[%s245 + $0x60] sm:$0xf]
      %v292 = vld [vmem:[%s245 + $0x64] sm:$0xf]
      %v293 = vld [vmem:[%s245 + $0x68] sm:$0xf]
      %v294 = vld [vmem:[%s245 + $0x6c] sm:$0xf]
      %v295 = vld [vmem:[%s245 + $0x70] sm:$0xf]
      %v296 = vld [vmem:[%s245 + $0x74] sm:$0xf]
      %v297 = vld [vmem:[%s245 + $0x78] sm:$0xf]
      %v298 = vld [vmem:[%s245 + $0x7c] sm:$0xf]
      %v299 = vld [vmem:[%s250] sm:$0xf]
      %v300 = vld [vmem:[%s250 + $0x4] sm:$0xf]
      %v301 = vld [vmem:[%s250 + $0x8] sm:$0xf]
      %v302 = vld [vmem:[%s250 + $0xc] sm:$0xf]
      %v303 = vld [vmem:[%s250 + $0x10] sm:$0xf]
      %v304 = vld [vmem:[%s250 + $0x14] sm:$0xf]
      %v305 = vld [vmem:[%s250 + $0x18] sm:$0xf]
      %v306 = vld [vmem:[%s250 + $0x1c] sm:$0xf]
      %v307 = vld [vmem:[%s250 + $0x20] sm:$0xf]
      %v308 = vld [vmem:[%s250 + $0x24] sm:$0xf]
      %v309 = vld [vmem:[%s250 + $0x28] sm:$0xf]
      %v310 = vld [vmem:[%s250 + $0x2c] sm:$0xf]
      %v311 = vld [vmem:[%s250 + $0x30] sm:$0xf]
      %v312 = vld [vmem:[%s250 + $0x34] sm:$0xf]
      %v313 = vld [vmem:[%s250 + $0x38] sm:$0xf]
      %v314 = vld [vmem:[%s250 + $0x3c] sm:$0xf]
      %v347 = vunpack.c.l.b16 %v267
      %v348 = vunpack.c.l.b16 %v268
      %v349 = vunpack.c.l.b16 %v269
      %v350 = vunpack.c.l.b16 %v270
      %v351 = vunpack.c.l.b16 %v271
      %v352 = vunpack.c.l.b16 %v272
      %v353 = vunpack.c.l.b16 %v273
      %v354 = vunpack.c.l.b16 %v274
      %v355 = vunpack.c.l.b16 %v275
      %v356 = vunpack.c.l.b16 %v276
      %v357 = vunpack.c.l.b16 %v277
      %v358 = vunpack.c.l.b16 %v278
      %v359 = vunpack.c.l.b16 %v279
      %v360 = vunpack.c.l.b16 %v280
      %v361 = vunpack.c.l.b16 %v281
      %v362 = vunpack.c.l.b16 %v282
      %v363 = vunpack.c.l.b16 %v283
      %v364 = vunpack.c.l.b16 %v284
      %v365 = vunpack.c.l.b16 %v285
      %v366 = vunpack.c.l.b16 %v286
      %v367 = vunpack.c.l.b16 %v287
      %v368 = vunpack.c.l.b16 %v288
      %v369 = vunpack.c.l.b16 %v289
      %v370 = vunpack.c.l.b16 %v290
      %v371 = vunpack.c.l.b16 %v291
      %v372 = vunpack.c.l.b16 %v292
      %v373 = vunpack.c.l.b16 %v293
      %v374 = vunpack.c.l.b16 %v294
      %v375 = vunpack.c.l.b16 %v295
      %v376 = vunpack.c.l.b16 %v296
      %v377 = vunpack.c.l.b16 %v297
      %v378 = vunpack.c.l.b16 %v298
      %v379 = vpack.c.b16 %v348, %v347
      %v380 = vpack.c.b16 %v350, %v349
      %v381 = vpack.c.b16 %v352, %v351
      %v382 = vpack.c.b16 %v354, %v353
      %v383 = vpack.c.b16 %v356, %v355
      %v384 = vpack.c.b16 %v358, %v357
      %v385 = vpack.c.b16 %v360, %v359
      %v386 = vpack.c.b16 %v362, %v361
      %v387 = vpack.c.b16 %v364, %v363
      %v388 = vpack.c.b16 %v366, %v365
      %v389 = vpack.c.b16 %v368, %v367
      %v390 = vpack.c.b16 %v370, %v369
      %v391 = vpack.c.b16 %v372, %v371
      %v392 = vpack.c.b16 %v374, %v373
      %v393 = vpack.c.b16 %v376, %v375
      %v394 = vpack.c.b16 %v378, %v377
      %v427 = vunpack.c.l.b16 %v299
      %v428 = vunpack.c.l.b16 %v300
      %v429 = vunpack.c.l.b16 %v301
      %v430 = vunpack.c.l.b16 %v302
      %v431 = vunpack.c.l.b16 %v303
      %v432 = vunpack.c.l.b16 %v304
      %v433 = vunpack.c.l.b16 %v305
      %v434 = vunpack.c.l.b16 %v306
      %v435 = vunpack.c.l.b16 %v307
      %v436 = vunpack.c.l.b16 %v308
      %v437 = vunpack.c.l.b16 %v309
      %v438 = vunpack.c.l.b16 %v310
      %v439 = vunpack.c.l.b16 %v311
      %v440 = vunpack.c.l.b16 %v312
      %v441 = vunpack.c.l.b16 %v313
      %v442 = vunpack.c.l.b16 %v314
      %v443 = vpack.c.b16 %v428, %v427
      %v444 = vpack.c.b16 %v430, %v429
      %v445 = vpack.c.b16 %v432, %v431
      %v446 = vpack.c.b16 %v434, %v433
      %v447 = vpack.c.b16 %v436, %v435
      %v448 = vpack.c.b16 %v438, %v437
      %v449 = vpack.c.b16 %v440, %v439
      %v450 = vpack.c.b16 %v442, %v441
      %459 = vmatprep.subr.bf16.mxu0 0
      %460 = vmatpush1.bf16.msra.mxu0 %v450
      %461 = vmatprep.subr.bf16.mxu0 0
      %462 = vmatpush1.bf16.msra.mxu0 %v449
      %463 = vmatprep.subr.bf16.mxu0 0
      %464 = vmatpush1.bf16.msra.mxu0 %v448
      %465 = vmatprep.subr.bf16.mxu0 0
      %466 = vmatpush1.bf16.msra.mxu0 %v447
      %467 = vmatprep.subr.bf16.mxu0 0
      %468 = vmatpush1.bf16.msra.mxu0 %v446
      %469 = vmatprep.subr.bf16.mxu0 0
      %470 = vmatpush1.bf16.msra.mxu0 %v445
      %471 = vmatprep.subr.bf16.mxu0 0
      %472 = vmatpush1.bf16.msra.mxu0 %v444
      %473 = vmatprep.subr.bf16.mxu0 0
      %474 = vmatpush1.bf16.msra.mxu0 %v443
      %475 = vmatprep.subr.bf16.mxu0 0
      %476 = vmatpush2.bf16.msra.mxu0 0
      %477 = vmatprep.subr.bf16.mxu0 0
      %478 = vmatpush2.bf16.msra.mxu0 0
      %479 = vmatprep.subr.bf16.mxu0 0
      %480 = vmatpush2.bf16.msra.mxu0 0
      %481 = vmatprep.subr.bf16.mxu0 0
      %482 = vmatpush2.bf16.msra.mxu0 0
      %483 = vmatprep.subr.bf16.mxu0 0
      %484 = vmatpush2.bf16.msra.mxu0 0
      %485 = vmatprep.subr.bf16.mxu0 0
      %486 = vmatpush2.bf16.msra.mxu0 0
      %487 = vmatprep.subr.bf16.mxu0 0
      %488 = vmatpush2.bf16.msra.mxu0 0
      %489 = vmatprep.subr.bf16.mxu0 0
      %490 = vmatpush2.bf16.msra.mxu0 0
      %491 = vmatprep.mubr.bf16.mxu0 0
      %492 = vmatmul.mubr.bf16.gmra.mxu0 %v379
      %v493 = vpop.f32.mrf.mxu0
      %v494 = vadd.f32 0.0, %v493
      %v495 = vpop.f32.mrf.mxu0
      %v496 = vpop.f32.mrf.mxu0
      %v497 = vadd.f32 0.0, %v496
      %v498 = vpop.f32.mrf.mxu0
      %499 = vmatprep.mubr.bf16.mxu0 0
      %500 = vmatmul.mubr.bf16.gmra.mxu0 %v380
      %v501 = vpop.f32.mrf.mxu0
      %v502 = vadd.f32 0.0, %v501
      %v503 = vpop.f32.mrf.mxu0
      %v504 = vpop.f32.mrf.mxu0
      %v505 = vadd.f32 0.0, %v504
      %v506 = vpop.f32.mrf.mxu0
      %507 = vmatprep.mubr.bf16.mxu0 0
      %508 = vmatmul.mubr.bf16.gmra.mxu0 %v381
      %v509 = vpop.f32.mrf.mxu0
      %v510 = vadd.f32 0.0, %v509
      %v511 = vpop.f32.mrf.mxu0
      %v512 = vpop.f32.mrf.mxu0
      %v513 = vadd.f32 0.0, %v512
      %v514 = vpop.f32.mrf.mxu0
      %515 = vmatprep.mubr.bf16.mxu0 0
      %516 = vmatmul.mubr.bf16.gmra.mxu0 %v382
      %v517 = vpop.f32.mrf.mxu0
      %v518 = vadd.f32 0.0, %v517
      %v519 = vpop.f32.mrf.mxu0
      %v520 = vpop.f32.mrf.mxu0
      %v521 = vadd.f32 0.0, %v520
      %v522 = vpop.f32.mrf.mxu0
      %523 = vmatprep.mubr.bf16.mxu0 0
      %524 = vmatmul.mubr.bf16.gmra.mxu0 %v383
      %v525 = vpop.f32.mrf.mxu0
      %v526 = vadd.f32 0.0, %v525
      %v527 = vpop.f32.mrf.mxu0
      %v528 = vpop.f32.mrf.mxu0
      %v529 = vadd.f32 0.0, %v528
      %v530 = vpop.f32.mrf.mxu0
      %531 = vmatprep.mubr.bf16.mxu0 0
      %532 = vmatmul.mubr.bf16.gmra.mxu0 %v384
      %v533 = vpop.f32.mrf.mxu0
      %v534 = vadd.f32 0.0, %v533
      %v535 = vpop.f32.mrf.mxu0
      %v536 = vpop.f32.mrf.mxu0
      %v537 = vadd.f32 0.0, %v536
      %v538 = vpop.f32.mrf.mxu0
      %539 = vmatprep.mubr.bf16.mxu0 0
      %540 = vmatmul.mubr.bf16.gmra.mxu0 %v385
      %v541 = vpop.f32.mrf.mxu0
      %v542 = vadd.f32 0.0, %v541
      %v543 = vpop.f32.mrf.mxu0
      %v544 = vpop.f32.mrf.mxu0
      %v545 = vadd.f32 0.0, %v544
      %v546 = vpop.f32.mrf.mxu0
      %547 = vmatprep.mubr.bf16.mxu0 0
      %548 = vmatmul.mubr.bf16.gmra.mxu0 %v386
      %v549 = vpop.f32.mrf.mxu0
      %v550 = vadd.f32 0.0, %v549
      %v551 = vpop.f32.mrf.mxu0
      %v552 = vpop.f32.mrf.mxu0
      %v553 = vadd.f32 0.0, %v552
      %v554 = vpop.f32.mrf.mxu0
      %555 = vmatprep.mubr.bf16.mxu0 0
      %556 = vmatmul.mubr.bf16.gmra.mxu0 %v387
      %v557 = vpop.f32.mrf.mxu0
      %v558 = vadd.f32 0.0, %v557
      %v559 = vpop.f32.mrf.mxu0
      %v560 = vpop.f32.mrf.mxu0
      %v561 = vadd.f32 0.0, %v560
      %v562 = vpop.f32.mrf.mxu0
      %563 = vmatprep.mubr.bf16.mxu0 0
      %564 = vmatmul.mubr.bf16.gmra.mxu0 %v388
      %v565 = vpop.f32.mrf.mxu0
      %v566 = vadd.f32 0.0, %v565
      %v567 = vpop.f32.mrf.mxu0
      %v568 = vpop.f32.mrf.mxu0
      %v569 = vadd.f32 0.0, %v568
      %v570 = vpop.f32.mrf.mxu0
      %571 = vmatprep.mubr.bf16.mxu0 0
      %572 = vmatmul.mubr.bf16.gmra.mxu0 %v389
      %v573 = vpop.f32.mrf.mxu0
      %v574 = vadd.f32 0.0, %v573
      %v575 = vpop.f32.mrf.mxu0
      %v576 = vpop.f32.mrf.mxu0
      %v577 = vadd.f32 0.0, %v576
      %v578 = vpop.f32.mrf.mxu0
      %579 = vmatprep.mubr.bf16.mxu0 0
      %580 = vmatmul.mubr.bf16.gmra.mxu0 %v390
      %v581 = vpop.f32.mrf.mxu0
      %v582 = vadd.f32 0.0, %v581
      %v583 = vpop.f32.mrf.mxu0
      %v584 = vpop.f32.mrf.mxu0
      %v585 = vadd.f32 0.0, %v584
      %v586 = vpop.f32.mrf.mxu0
      %587 = vmatprep.mubr.bf16.mxu0 0
      %588 = vmatmul.mubr.bf16.gmra.mxu0 %v391
      %v589 = vpop.f32.mrf.mxu0
      %v590 = vadd.f32 0.0, %v589
      %v591 = vpop.f32.mrf.mxu0
      %v592 = vpop.f32.mrf.mxu0
      %v593 = vadd.f32 0.0, %v592
      %v594 = vpop.f32.mrf.mxu0
      %595 = vmatprep.mubr.bf16.mxu0 0
      %596 = vmatmul.mubr.bf16.gmra.mxu0 %v392
      %v597 = vpop.f32.mrf.mxu0
      %v598 = vadd.f32 0.0, %v597
      %v599 = vpop.f32.mrf.mxu0
      %v600 = vpop.f32.mrf.mxu0
      %v601 = vadd.f32 0.0, %v600
      %v602 = vpop.f32.mrf.mxu0
      %603 = vmatprep.mubr.bf16.mxu0 0
      %604 = vmatmul.mubr.bf16.gmra.mxu0 %v393
      %v605 = vpop.f32.mrf.mxu0
      %v606 = vadd.f32 0.0, %v605
      %v607 = vpop.f32.mrf.mxu0
      %v608 = vpop.f32.mrf.mxu0
      %v609 = vadd.f32 0.0, %v608
      %v610 = vpop.f32.mrf.mxu0
      %611 = vmatprep.mubr.bf16.mxu0 0
      %612 = vmatmul.mubr.bf16.gmra.mxu0 %v394
      %v613 = vpop.f32.mrf.mxu0
      %v614 = vadd.f32 0.0, %v613
      %v615 = vpop.f32.mrf.mxu0
      %v616 = vpop.f32.mrf.mxu0
      %v617 = vadd.f32 0.0, %v616
      %v618 = vpop.f32.mrf.mxu0
      %619 = vdwg.mxu0
      %v620 = vld [vmem:[%s253] sm:$0x1]
      %v622 = vlaneseq
      %v623 = vshrl.u32 %v622, 7
      %v624 = vsub.s32 0, %v623
      %v625 = vrot.slane %v620, %v624
      %v627 = vmul.f32 %v494, %v625
      %v628 = vmul.f32 %v497, %v625
      %v629 = vmul.f32 %v502, %v625
      %v630 = vmul.f32 %v505, %v625
      %v631 = vmul.f32 %v510, %v625
      %v632 = vmul.f32 %v513, %v625
      %v633 = vmul.f32 %v518, %v625
      %v634 = vmul.f32 %v521, %v625
      %v635 = vmul.f32 %v526, %v625
      %v636 = vmul.f32 %v529, %v625
      %v637 = vmul.f32 %v534, %v625
      %v638 = vmul.f32 %v537, %v625
      %v639 = vmul.f32 %v542, %v625
      %v640 = vmul.f32 %v545, %v625
      %v641 = vmul.f32 %v550, %v625
      %v642 = vmul.f32 %v553, %v625
      %v643 = vmul.f32 %v558, %v625
      %v644 = vmul.f32 %v561, %v625
      %v645 = vmul.f32 %v566, %v625
      %v646 = vmul.f32 %v569, %v625
      %v647 = vmul.f32 %v574, %v625
      %v648 = vmul.f32 %v577, %v625
      %v649 = vmul.f32 %v582, %v625
      %v650 = vmul.f32 %v585, %v625
      %v651 = vmul.f32 %v590, %v625
      %v652 = vmul.f32 %v593, %v625
      %v653 = vmul.f32 %v598, %v625
      %v654 = vmul.f32 %v601, %v625
      %v655 = vmul.f32 %v606, %v625
      %v656 = vmul.f32 %v609, %v625
      %v657 = vmul.f32 %v614, %v625
      %v658 = vmul.f32 %v617, %v625
      %v659 = vld [vmem:[%s256] sm:$0x1]
      %v661 = vlaneseq
      %v662 = vshrl.u32 %v661, 7
      %v663 = vsub.s32 0, %v662
      %v664 = vrot.slane %v659, %v663
      %v666 = vadd.f32 %v627, %v664
      %v667 = vadd.f32 %v628, %v664
      %v668 = vadd.f32 %v629, %v664
      %v669 = vadd.f32 %v630, %v664
      %v670 = vadd.f32 %v631, %v664
      %v671 = vadd.f32 %v632, %v664
      %v672 = vadd.f32 %v633, %v664
      %v673 = vadd.f32 %v634, %v664
      %v674 = vadd.f32 %v635, %v664
      %v675 = vadd.f32 %v636, %v664
      %v676 = vadd.f32 %v637, %v664
      %v677 = vadd.f32 %v638, %v664
      %v678 = vadd.f32 %v639, %v664
      %v679 = vadd.f32 %v640, %v664
      %v680 = vadd.f32 %v641, %v664
      %v681 = vadd.f32 %v642, %v664
      %v682 = vadd.f32 %v643, %v664
      %v683 = vadd.f32 %v644, %v664
      %v684 = vadd.f32 %v645, %v664
      %v685 = vadd.f32 %v646, %v664
      %v686 = vadd.f32 %v647, %v664
      %v687 = vadd.f32 %v648, %v664
      %v688 = vadd.f32 %v649, %v664
      %v689 = vadd.f32 %v650, %v664
      %v690 = vadd.f32 %v651, %v664
      %v691 = vadd.f32 %v652, %v664
      %v692 = vadd.f32 %v653, %v664
      %v693 = vadd.f32 %v654, %v664
      %v694 = vadd.f32 %v655, %v664
      %v695 = vadd.f32 %v656, %v664
      %v696 = vadd.f32 %v657, %v664
      %v697 = vadd.f32 %v658, %v664
      %v698 = vmax.f32 %v666, 0.0
      %v699 = vmax.f32 %v667, 0.0
      %v700 = vmax.f32 %v668, 0.0
      %v701 = vmax.f32 %v669, 0.0
      %v702 = vmax.f32 %v670, 0.0
      %v703 = vmax.f32 %v671, 0.0
      %v704 = vmax.f32 %v672, 0.0
      %v705 = vmax.f32 %v673, 0.0
      %v706 = vmax.f32 %v674, 0.0
      %v707 = vmax.f32 %v675, 0.0
      %v708 = vmax.f32 %v676, 0.0
      %v709 = vmax.f32 %v677, 0.0
      %v710 = vmax.f32 %v678, 0.0
      %v711 = vmax.f32 %v679, 0.0
      %v712 = vmax.f32 %v680, 0.0
      %v713 = vmax.f32 %v681, 0.0
      %v714 = vmax.f32 %v682, 0.0
      %v715 = vmax.f32 %v683, 0.0
      %v716 = vmax.f32 %v684, 0.0
      %v717 = vmax.f32 %v685, 0.0
      %v718 = vmax.f32 %v686, 0.0
      %v719 = vmax.f32 %v687, 0.0
      %v720 = vmax.f32 %v688, 0.0
      %v721 = vmax.f32 %v689, 0.0
      %v722 = vmax.f32 %v690, 0.0
      %v723 = vmax.f32 %v691, 0.0
      %v724 = vmax.f32 %v692, 0.0
      %v725 = vmax.f32 %v693, 0.0
      %v726 = vmax.f32 %v694, 0.0
      %v727 = vmax.f32 %v695, 0.0
      %v728 = vmax.f32 %v696, 0.0
      %v729 = vmax.f32 %v697, 0.0
      %v730 = vpack.c.bf16 %v699, %v698
      %v731 = vpack.c.bf16 %v701, %v700
      %v732 = vpack.c.bf16 %v703, %v702
      %v733 = vpack.c.bf16 %v705, %v704
      %v734 = vpack.c.bf16 %v707, %v706
      %v735 = vpack.c.bf16 %v709, %v708
      %v736 = vpack.c.bf16 %v711, %v710
      %v737 = vpack.c.bf16 %v713, %v712
      %v738 = vpack.c.bf16 %v715, %v714
      %v739 = vpack.c.bf16 %v717, %v716
      %v740 = vpack.c.bf16 %v719, %v718
      %v741 = vpack.c.bf16 %v721, %v720
      %v742 = vpack.c.bf16 %v723, %v722
      %v743 = vpack.c.bf16 %v725, %v724
      %v744 = vpack.c.bf16 %v727, %v726
      %v745 = vpack.c.bf16 %v729, %v728
      %v762 = vunpack.c.l.b16 %v730
      %v763 = vunpack.c.h.b16 %v730
      %v764 = vunpack.c.l.b16 %v731
      %v765 = vunpack.c.h.b16 %v731
      %v766 = vunpack.c.l.b16 %v732
      %v767 = vunpack.c.h.b16 %v732
      %v768 = vunpack.c.l.b16 %v733
      %v769 = vunpack.c.h.b16 %v733
      %v770 = vunpack.c.l.b16 %v734
      %v771 = vunpack.c.h.b16 %v734
      %v772 = vunpack.c.l.b16 %v735
      %v773 = vunpack.c.h.b16 %v735
      %v774 = vunpack.c.l.b16 %v736
      %v775 = vunpack.c.h.b16 %v736
      %v776 = vunpack.c.l.b16 %v737
      %v777 = vunpack.c.h.b16 %v737
      %v778 = vunpack.c.l.b16 %v738
      %v779 = vunpack.c.h.b16 %v738
      %v780 = vunpack.c.l.b16 %v739
      %v781 = vunpack.c.h.b16 %v739
      %v782 = vunpack.c.l.b16 %v740
      %v783 = vunpack.c.h.b16 %v740
      %v784 = vunpack.c.l.b16 %v741
      %v785 = vunpack.c.h.b16 %v741
      %v786 = vunpack.c.l.b16 %v742
      %v787 = vunpack.c.h.b16 %v742
      %v788 = vunpack.c.l.b16 %v743
      %v789 = vunpack.c.h.b16 %v743
      %v790 = vunpack.c.l.b16 %v744
      %v791 = vunpack.c.h.b16 %v744
      %v792 = vunpack.c.l.b16 %v745
      %v793 = vunpack.c.h.b16 %v745
      %v794 = vpack.c.b16 %v762, %v762
      %v795 = vpack.c.b16 %v763, %v763
      %v796 = vpack.c.b16 %v764, %v764
      %v797 = vpack.c.b16 %v765, %v765
      %v798 = vpack.c.b16 %v766, %v766
      %v799 = vpack.c.b16 %v767, %v767
      %v800 = vpack.c.b16 %v768, %v768
      %v801 = vpack.c.b16 %v769, %v769
      %v802 = vpack.c.b16 %v770, %v770
      %v803 = vpack.c.b16 %v771, %v771
      %v804 = vpack.c.b16 %v772, %v772
      %v805 = vpack.c.b16 %v773, %v773
      %v806 = vpack.c.b16 %v774, %v774
      %v807 = vpack.c.b16 %v775, %v775
      %v808 = vpack.c.b16 %v776, %v776
      %v809 = vpack.c.b16 %v777, %v777
      %v810 = vpack.c.b16 %v778, %v778
      %v811 = vpack.c.b16 %v779, %v779
      %v812 = vpack.c.b16 %v780, %v780
      %v813 = vpack.c.b16 %v781, %v781
      %v814 = vpack.c.b16 %v782, %v782
      %v815 = vpack.c.b16 %v783, %v783
      %v816 = vpack.c.b16 %v784, %v784
      %v817 = vpack.c.b16 %v785, %v785
      %v818 = vpack.c.b16 %v786, %v786
      %v819 = vpack.c.b16 %v787, %v787
      %v820 = vpack.c.b16 %v788, %v788
      %v821 = vpack.c.b16 %v789, %v789
      %v822 = vpack.c.b16 %v790, %v790
      %v823 = vpack.c.b16 %v791, %v791
      %v824 = vpack.c.b16 %v792, %v792
      %v825 = vpack.c.b16 %v793, %v793
      %vm858 = vcmask 519168
      %859 = vst.msk [vmem:[%s264] sm:$0xf] %vm858, %v794
      %860 = vst.msk [vmem:[%s264 + $0x4] sm:$0xf] %vm858, %v795
      %861 = vst.msk [vmem:[%s264 + $0x8] sm:$0xf] %vm858, %v796
      %862 = vst.msk [vmem:[%s264 + $0xc] sm:$0xf] %vm858, %v797
      %863 = vst.msk [vmem:[%s264 + $0x10] sm:$0xf] %vm858, %v798
      %864 = vst.msk [vmem:[%s264 + $0x14] sm:$0xf] %vm858, %v799
      %865 = vst.msk [vmem:[%s264 + $0x18] sm:$0xf] %vm858, %v800
      %866 = vst.msk [vmem:[%s264 + $0x1c] sm:$0xf] %vm858, %v801
      %867 = vst.msk [vmem:[%s264 + $0x20] sm:$0xf] %vm858, %v802
      %868 = vst.msk [vmem:[%s264 + $0x24] sm:$0xf] %vm858, %v803
      %869 = vst.msk [vmem:[%s264 + $0x28] sm:$0xf] %vm858, %v804
      %870 = vst.msk [vmem:[%s264 + $0x2c] sm:$0xf] %vm858, %v805
      %871 = vst.msk [vmem:[%s264 + $0x30] sm:$0xf] %vm858, %v806
      %872 = vst.msk [vmem:[%s264 + $0x34] sm:$0xf] %vm858, %v807
      %873 = vst.msk [vmem:[%s264 + $0x38] sm:$0xf] %vm858, %v808
      %874 = vst.msk [vmem:[%s264 + $0x3c] sm:$0xf] %vm858, %v809
      %875 = vst.msk [vmem:[%s264 + $0x40] sm:$0xf] %vm858, %v810
      %876 = vst.msk [vmem:[%s264 + $0x44] sm:$0xf] %vm858, %v811
      %877 = vst.msk [vmem:[%s264 + $0x48] sm:$0xf] %vm858, %v812
      %878 = vst.msk [vmem:[%s264 + $0x4c] sm:$0xf] %vm858, %v813
      %879 = vst.msk [vmem:[%s264 + $0x50] sm:$0xf] %vm858, %v814
      %880 = vst.msk [vmem:[%s264 + $0x54] sm:$0xf] %vm858, %v815
      %881 = vst.msk [vmem:[%s264 + $0x58] sm:$0xf] %vm858, %v816
      %882 = vst.msk [vmem:[%s264 + $0x5c] sm:$0xf] %vm858, %v817
      %883 = vst.msk [vmem:[%s264 + $0x60] sm:$0xf] %vm858, %v818
      %884 = vst.msk [vmem:[%s264 + $0x64] sm:$0xf] %vm858, %v819
      %885 = vst.msk [vmem:[%s264 + $0x68] sm:$0xf] %vm858, %v820
      %886 = vst.msk [vmem:[%s264 + $0x6c] sm:$0xf] %vm858, %v821
      %887 = vst.msk [vmem:[%s264 + $0x70] sm:$0xf] %vm858, %v822
      %888 = vst.msk [vmem:[%s264 + $0x74] sm:$0xf] %vm858, %v823
      %889 = vst.msk [vmem:[%s264 + $0x78] sm:$0xf] %vm858, %v824
      %890 = vst.msk [vmem:[%s264 + $0x7c] sm:$0xf] %vm858, %v825
      %s891 = smul.u32 32, %s19
      %p892 = scmp.lt.s32.totalorder %s891, 255
      %s893 = scalar_select %p892, %s891, 255
      %p894 = scmp.lt.s32.totalorder %s20, 0
      %s895 = scalar_select %p894, %s20, 0
      %s896 = sadd.s32 %s895, %s893
      %s897 = smul.addr %s896, 4
      %s898 = scalar_lea.vmem %s4, %s897
      // Predicated region
      $region37: #{_lambda_.8} parent=35 // pred_check
        %p899 = pneg %p151
      $region38: #{_lambda_.8} parent=35 // pred_check_branch
        %901 = sbr.rel (%p899) target = $region40
      $region39: #{_lambda_.8} parent=35 // pred_region
        %s902 = smul.u32 32, %s19
      $region40: #{_lambda_.8} parent=35 // pred_fallthru
        _
    $region36: #{_lambda_.8} parent=5 // pred_fallthru
      _
    %p903 = scmp.le.s32.totalorder 2, %s10
    // Predicated region
    $region41: #{_lambda_.8} parent=5 // pred_check
      %p904 = pneg %p903
    $region42: #{_lambda_.8} parent=5 // pred_check_branch
      %906 = sbr.rel (%p904) target = $region44
    $region43: #{_lambda_.8} parent=5 // pred_region
      %s907 = ssub.s32 %s10, 2
      // Predicated region
      $region45: #{_lambda_.8} parent=43 // pred_check
        %p908 = pneg %p157
      $region46: #{_lambda_.8} parent=43 // pred_check_branch
        %910 = sbr.rel (%p908) target = $region48
      $region47: #{_lambda_.8} parent=43 // pred_region
        %s911 = smul.u32 32, %s21
        %p912 = scmp.lt.s32.totalorder %s911, 255
        %s913 = scalar_select %p912, %s911, 255
        %p914 = scmp.lt.s32.totalorder %s22, 0
        %s915 = scalar_select %p914, %s22, 0
        %s916 = sadd.s32 %s915, %s913
        %s917 = smul.addr %s916, 4
        %s918 = scalar_lea.vmem %s4, %s917
      $region48: #{_lambda_.8} parent=43 // pred_fallthru
        _
    $region44: #{_lambda_.8} parent=5 // pred_fallthru
      _
  $region6: #{_lambda_.8} parent=0 // loop_footer
    %s14 = sadd.s32 1, %s10
  $region7: #{_lambda_.8} parent=0 // loop_footer_branch
    %9 = sbr.rel target = $region3
  $region8: #{_lambda_.8} parent=0 // loop_exit
    _

// kernel: _lambda_.9
$region0: #{_lambda_.9}
  #allocation0 [shape = 'u32[]', space=smem, size = 0x4, offset = 0x4, fixed_abs, tag = 'smem constant byte address 0x4 - core index']
  #allocation1 [shape = 'u32[144,128]{1,0:T(1,128)}', space=vmem, size = 0x12000, scoped, tag = 'internal scratch']
  %s0 = inlined_call_operand.vmem [shape: bf16[512,1024], index: 0, kind: input, shape index: {}]
  %s1 = inlined_call_operand.vmem [shape: bf16[1024,64], index: 1, kind: input, shape index: {}]
  %s2 = inlined_call_operand.vmem [shape: f32[1,64], index: 2, kind: input, shape index: {}]
  %s3 = inlined_call_operand.vmem [shape: f32[1,64], index: 3, kind: input, shape index: {}]
  %s4 = inlined_call_operand.vmem [shape: bf16[512,64], index: 4, kind: output, shape index: {}]
  %s5 = sld [smem:[#allocation0]]
  $region49: #{_lambda_.9} parent=0
    _
  %s7 = ssub.s32 1, %s5
  %s8 = scalar_select 0, %s7, %s5
  loop: start=0, step=1, limit=4
  $region2: #{_lambda_.9} parent=0 // loop_pre_header
    _
  $region3: #{_lambda_.9} parent=0 // loop_header
    %s10 = sphi 0, %s14
    %p11 = scmp.ge.s32.totalorder %s10, 4
    %s17 = sphi 0, %s29
    %s18 = sphi 0, %s25
    %s19 = sphi 0, %s17
    %s20 = sphi 0, %s18
    %s21 = sphi 0, %s19
    %s22 = sphi 0, %s20
    %s32 = sphi 0, %s34
    %s35 = sphi 0, %s32
    %s36 = sphi 0, %s35
    %s52 = sphi 0, %s36
    %s58 = sphi 0, %s60
    %s61 = sphi 0, %s58
    %s62 = sphi 0, %s61
    %s78 = sphi 0, %s62
    %s84 = sphi 0, %s86
    %s87 = sphi 0, %s84
    %s88 = sphi 0, %s87
    %s104 = sphi 0, %s88
    %s110 = sphi 0, %s112
    %s113 = sphi 0, %s110
    %s114 = sphi 0, %s113
    %s130 = sphi 0, %s114
    %s138 = sphi 0, %s140
    %s141 = sphi 0, %s138
    %s142 = sphi 0, %s141
    %s158 = sphi 0, %s142
  $region4: #{_lambda_.9} parent=0 // loop_header_branch
    %13 = sbr.rel (%p11) target = $region8
  $region5: #{_lambda_.9} parent=0 // loop_body
    %s15 = ssub.s32 %s10, 1
    %s16 = ssub.s32 %s10, 2
    %s23 = sadd.s32 1, %s18
    %p24 = scmp.ge.s32.totalorder %s23, 1
    %s25 = scalar_select %p24, 0, %s23
    %s26 = sadd.s32 1, %s17
    %s27 = scalar_select %p24, %s26, %s17
    %p28 = scmp.ge.s32.totalorder %s27, 2
    %s29 = scalar_select %p28, 0, %s27
    %s30 = ssub.s32 %s17, %s29
    %p31 = scmp.eq.s32.totalorder %s30, 0
    %s33 = sadd.s32 %s32, 1
    %s34 = scalar_select %p31, %s32, %s33
    %p37 = pneg %p31
    %p38 = scmp.eq.s32.totalorder %s10, 1
    %p39 = por %p37, %p38
    %p40 = scmp.ne.s32.totalorder %s32, %s35
    %p41 = scmp.eq.s32.totalorder %s10, 0
    %p42 = por %p40, %p41
    %p43 = scmp.ne.s32.totalorder %s32, %s35
    %p44 = scmp.eq.s32.totalorder %s15, 1
    %p45 = por %p43, %p44
    %p46 = scmp.ne.s32.totalorder %s35, %s36
    %p47 = scmp.eq.s32.totalorder %s15, 0
    %p48 = por %p46, %p47
    %p49 = scmp.ne.s32.totalorder %s35, %s36
    %p50 = scmp.eq.s32.totalorder %s16, 1
    %p51 = por %p49, %p50
    %p53 = scmp.ne.s32.totalorder %s36, %s52
    %p54 = scmp.eq.s32.totalorder %s16, 0
    %p55 = por %p53, %p54
    %s56 = ssub.s32 %s18, %s25
    %p57 = scmp.eq.s32.totalorder %s56, 0
    %s59 = sadd.s32 %s58, 1
    %s60 = scalar_select %p57, %s58, %s59
    %p63 = pneg %p57
    %p64 = scmp.eq.s32.totalorder %s10, 1
    %p65 = por %p63, %p64
    %p66 = scmp.ne.s32.totalorder %s58, %s61
    %p67 = scmp.eq.s32.totalorder %s10, 0
    %p68 = por %p66, %p67
    %p69 = scmp.ne.s32.totalorder %s58, %s61
    %p70 = scmp.eq.s32.totalorder %s15, 1
    %p71 = por %p69, %p70
    %p72 = scmp.ne.s32.totalorder %s61, %s62
    %p73 = scmp.eq.s32.totalorder %s15, 0
    %p74 = por %p72, %p73
    %p75 = scmp.ne.s32.totalorder %s61, %s62
    %p76 = scmp.eq.s32.totalorder %s16, 1
    %p77 = por %p75, %p76
    %p79 = scmp.ne.s32.totalorder %s62, %s78
    %p80 = scmp.eq.s32.totalorder %s16, 0
    %p81 = por %p79, %p80
    %s82 = ssub.s32 %s18, %s25
    %p83 = scmp.eq.s32.totalorder %s82, 0
    %s85 = sadd.s32 %s84, 1
    %s86 = scalar_select %p83, %s84, %s85
    %p89 = pneg %p83
    %p90 = scmp.eq.s32.totalorder %s10, 1
    %p91 = por %p89, %p90
    %p92 = scmp.ne.s32.totalorder %s84, %s87
    %p93 = scmp.eq.s32.totalorder %s10, 0
    %p94 = por %p92, %p93
    %p95 = scmp.ne.s32.totalorder %s84, %s87
    %p96 = scmp.eq.s32.totalorder %s15, 1
    %p97 = por %p95, %p96
    %p98 = scmp.ne.s32.totalorder %s87, %s88
    %p99 = scmp.eq.s32.totalorder %s15, 0
    %p100 = por %p98, %p99
    %p101 = scmp.ne.s32.totalorder %s87, %s88
    %p102 = scmp.eq.s32.totalorder %s16, 1
    %p103 = por %p101, %p102
    %p105 = scmp.ne.s32.totalorder %s88, %s104
    %p106 = scmp.eq.s32.totalorder %s16, 0
    %p107 = por %p105, %p106
    %s108 = ssub.s32 %s18, %s25
    %p109 = scmp.eq.s32.totalorder %s108, 0
    %s111 = sadd.s32 %s110, 1
    %s112 = scalar_select %p109, %s110, %s111
    %p115 = pneg %p109
    %p116 = scmp.eq.s32.totalorder %s10, 1
    %p117 = por %p115, %p116
    %p118 = scmp.ne.s32.totalorder %s110, %s113
    %p119 = scmp.eq.s32.totalorder %s10, 0
    %p120 = por %p118, %p119
    %p121 = scmp.ne.s32.totalorder %s110, %s113
    %p122 = scmp.eq.s32.totalorder %s15, 1
    %p123 = por %p121, %p122
    %p124 = scmp.ne.s32.totalorder %s113, %s114
    %p125 = scmp.eq.s32.totalorder %s15, 0
    %p126 = por %p124, %p125
    %p127 = scmp.ne.s32.totalorder %s113, %s114
    %p128 = scmp.eq.s32.totalorder %s16, 1
    %p129 = por %p127, %p128
    %p131 = scmp.ne.s32.totalorder %s114, %s130
    %p132 = scmp.eq.s32.totalorder %s16, 0
    %p133 = por %p131, %p132
    %s134 = ssub.s32 %s17, %s29
    %s135 = ssub.s32 %s18, %s25
    %s136 = sor.u32 %s134, %s135
    %p137 = scmp.eq.s32.totalorder %s136, 0
    %s139 = sadd.s32 %s138, 1
    %s140 = scalar_select %p137, %s138, %s139
    %p143 = pneg %p137
    %p144 = scmp.eq.s32.totalorder %s10, 1
    %p145 = por %p143, %p144
    %p146 = scmp.ne.s32.totalorder %s138, %s141
    %p147 = scmp.eq.s32.totalorder %s10, 0
    %p148 = por %p146, %p147
    %p149 = scmp.ne.s32.totalorder %s138, %s141
    %p150 = scmp.eq.s32.totalorder %s15, 1
    %p151 = por %p149, %p150
    %p152 = scmp.ne.s32.totalorder %s141, %s142
    %p153 = scmp.eq.s32.totalorder %s15, 0
    %p154 = por %p152, %p153
    %p155 = scmp.ne.s32.totalorder %s141, %s142
    %p156 = scmp.eq.s32.totalorder %s16, 1
    %p157 = por %p155, %p156
    %p159 = scmp.ne.s32.totalorder %s142, %s158
    %p160 = scmp.eq.s32.totalorder %s16, 0
    %p161 = por %p159, %p160
    %p162 = scmp.le.s32.totalorder 1, %s10
    %p163 = scmp.lt.s32.totalorder %s10, 3
    %p164 = pnand %p162, %p163
    %p165 = pneg %p164
    // Predicated region
    $region9: #{_lambda_.9} parent=5 // pred_check
      _
    $region10: #{_lambda_.9} parent=5 // pred_check_branch
      %167 = sbr.rel (%p164) target = $region12
    $region11: #{_lambda_.9} parent=5 // pred_region
      %s168 = ssub.s32 %s10, 1
      // Predicated region
      $region13: #{_lambda_.9} parent=11 // pred_check
        %p169 = pneg %p74
      $region14: #{_lambda_.9} parent=11 // pred_check_branch
        %171 = sbr.rel (%p169) target = $region16
      $region15: #{_lambda_.9} parent=11 // pred_region
        %p172 = scmp.lt.s32.totalorder %s20, 0
        %s173 = scalar_select %p172, %s20, 0
        %s174 = smul.addr %s173, 4
        %s175 = scalar_lea.vmem %s1, %s174
      $region16: #{_lambda_.9} parent=11 // pred_fallthru
        _
      // Predicated region
      $region17: #{_lambda_.9} parent=11 // pred_check
        %p176 = pneg %p100
      $region18: #{_lambda_.9} parent=11 // pred_check_branch
        %178 = sbr.rel (%p176) target = $region20
      $region19: #{_lambda_.9} parent=11 // pred_region
        %p179 = scmp.lt.s32.totalorder %s20, 0
        %s180 = scalar_select %p179, %s20, 0
        %s181 = scalar_lea.vmem %s2, %s180
      $region20: #{_lambda_.9} parent=11 // pred_fallthru
        _
      // Predicated region
      $region21: #{_lambda_.9} parent=11 // pred_check
        %p182 = pneg %p126
      $region22: #{_lambda_.9} parent=11 // pred_check_branch
        %184 = sbr.rel (%p182) target = $region24
      $region23: #{_lambda_.9} parent=11 // pred_region
        %p185 = scmp.lt.s32.totalorder %s20, 0
        %s186 = scalar_select %p185, %s20, 0
        %s187 = scalar_lea.vmem %s3, %s186
      $region24: #{_lambda_.9} parent=11 // pred_fallthru
        _
    $region12: #{_lambda_.9} parent=5 // pred_fallthru
      _
    %p188 = scmp.lt.s32.totalorder %s10, 2
    // Predicated region
    $region25: #{_lambda_.9} parent=5 // pred_check
      %p189 = pneg %p188
    $region26: #{_lambda_.9} parent=5 // pred_check_branch
      %191 = sbr.rel (%p189) target = $region28
    $region27: #{_lambda_.9} parent=5 // pred_region
      // Predicated region
      $region29: #{_lambda_.9} parent=27 // pred_check
        %p192 = pneg %p42
      $region30: #{_lambda_.9} parent=27 // pred_check_branch
        %194 = sbr.rel (%p192) target = $region32
      $region31: #{_lambda_.9} parent=27 // pred_region
        %s195 = smul.u32 32, %s17
        %p196 = scmp.lt.s32.totalorder %s195, 63
        %s197 = scalar_select %p196, %s195, 63
        %s198 = smul.addr %s197, 8
        %s199 = smul.addr %s198, 4
        %s200 = scalar_lea.vmem %s0, %s199
        %s201 = smul.u32 32, %s17
      $region32: #{_lambda_.9} parent=27 // pred_fallthru
        _
    $region28: #{_lambda_.9} parent=5 // pred_fallthru
      _
    %p202 = scmp.le.s32.totalorder 1, %s10
    %p203 = scmp.lt.s32.totalorder %s10, 3
    %p204 = pnand %p202, %p203
    %p205 = pneg %p204
    // Predicated region
    $region33: #{_lambda_.9} parent=5 // pred_check
      _
    $region34: #{_lambda_.9} parent=5 // pred_check_branch
      %207 = sbr.rel (%p204) target = $region36
    $region35: #{_lambda_.9} parent=5 // pred_region
      %s208 = ssub.s32 %s10, 1
      %s209 = smul.u32 32, %s19
      %p210 = scmp.lt.s32.totalorder %s209, 63
      %s211 = scalar_select %p210, %s209, 63
      %s212 = smul.addr %s211, 8
      %s213 = smul.addr %s212, 4
      %s214 = scalar_lea.vmem %s0, %s213
      %p215 = pneg %p48
      %p216 = pneg %p45
      %p217 = scmp.lt.s32.totalorder %s20, 0
      %s218 = scalar_select %p217, %s20, 0
      %s219 = smul.addr %s218, 4
      %s220 = scalar_lea.vmem %s1, %s219
      %p221 = pneg %p74
      %p222 = pneg %p71
      %p223 = scmp.lt.s32.totalorder %s20, 0
      %s224 = scalar_select %p223, %s20, 0
      %s225 = scalar_lea.vmem %s2, %s224
      %p226 = pneg %p100
      %p227 = pneg %p97
      %p228 = scmp.lt.s32.totalorder %s20, 0
      %s229 = scalar_select %p228, %s20, 0
      %s230 = scalar_lea.vmem %s3, %s229
      %p231 = pneg %p126
      %p232 = pneg %p123
      %p233 = pneg %p154
      %p234 = pneg %p151
      %s235 = smul.u32 32, %s19
      %p236 = scmp.lt.s32.totalorder %s235, 63
      %s237 = scalar_select %p236, %s235, 63
      %p238 = scmp.lt.s32.totalorder %s20, 0
      %s239 = scalar_select %p238, %s20, 0
      %s240 = sadd.s32 %s239, %s237
      %s241 = smul.addr %s240, 4
      %s242 = scalar_lea.vmem %s4, %s241
      %s243 = smul.u32 32, %s19
      %p244 = scmp.lt.s32.totalorder %s243, 63
      %s245 = scalar_select %p244, %s243, 63
      %s246 = smul.addr %s245, 8
      %s247 = smul.addr %s246, 4
      %s248 = scalar_lea.vmem %s0, %s247
      %s249 = smul.u32 32, %s19
      %p250 = scmp.lt.s32.totalorder %s20, 0
      %s251 = scalar_select %p250, %s20, 0
      %s252 = smul.addr %s251, 4
      %s253 = scalar_lea.vmem %s1, %s252
      %p254 = scmp.lt.s32.totalorder %s20, 0
      %s255 = scalar_select %p254, %s20, 0
      %s256 = scalar_lea.vmem %s2, %s255
      %p257 = scmp.lt.s32.totalorder %s20, 0
      %s258 = scalar_select %p257, %s20, 0
      %s259 = scalar_lea.vmem %s3, %s258
      %s260 = smul.u32 32, %s19
      %p261 = scmp.lt.s32.totalorder %s260, 63
      %s262 = scalar_select %p261, %s260, 63
      %p263 = scmp.lt.s32.totalorder %s20, 0
      %s264 = scalar_select %p263, %s20, 0
      %s265 = sadd.s32 %s264, %s262
      %s266 = smul.addr %s265, 4
      %s267 = scalar_lea.vmem %s4, %s266
      %s268 = smul.u32 32, %s19
      %v270 = vld [vmem:[%s248] sm:$0xff]
      %v271 = vld [vmem:[%s248 + $0x8] sm:$0xff]
      %v272 = vld [vmem:[%s248 + $0x10] sm:$0xff]
      %v273 = vld [vmem:[%s248 + $0x18] sm:$0xff]
      %v274 = vld [vmem:[%s248 + $0x20] sm:$0xff]
      %v275 = vld [vmem:[%s248 + $0x28] sm:$0xff]
      %v276 = vld [vmem:[%s248 + $0x30] sm:$0xff]
      %v277 = vld [vmem:[%s248 + $0x38] sm:$0xff]
      %v278 = vld [vmem:[%s248 + $0x40] sm:$0xff]
      %v279 = vld [vmem:[%s248 + $0x48] sm:$0xff]
      %v280 = vld [vmem:[%s248 + $0x50] sm:$0xff]
      %v281 = vld [vmem:[%s248 + $0x58] sm:$0xff]
      %v282 = vld [vmem:[%s248 + $0x60] sm:$0xff]
      %v283 = vld [vmem:[%s248 + $0x68] sm:$0xff]
      %v284 = vld [vmem:[%s248 + $0x70] sm:$0xff]
      %v285 = vld [vmem:[%s248 + $0x78] sm:$0xff]
      %v286 = vld [vmem:[%s248 + $0x80] sm:$0xff]
      %v287 = vld [vmem:[%s248 + $0x88] sm:$0xff]
      %v288 = vld [vmem:[%s248 + $0x90] sm:$0xff]
      %v289 = vld [vmem:[%s248 + $0x98] sm:$0xff]
      %v290 = vld [vmem:[%s248 + $0xa0] sm:$0xff]
      %v291 = vld [vmem:[%s248 + $0xa8] sm:$0xff]
      %v292 = vld [vmem:[%s248 + $0xb0] sm:$0xff]
      %v293 = vld [vmem:[%s248 + $0xb8] sm:$0xff]
      %v294 = vld [vmem:[%s248 + $0xc0] sm:$0xff]
      %v295 = vld [vmem:[%s248 + $0xc8] sm:$0xff]
      %v296 = vld [vmem:[%s248 + $0xd0] sm:$0xff]
      %v297 = vld [vmem:[%s248 + $0xd8] sm:$0xff]
      %v298 = vld [vmem:[%s248 + $0xe0] sm:$0xff]
      %v299 = vld [vmem:[%s248 + $0xe8] sm:$0xff]
      %v300 = vld [vmem:[%s248 + $0xf0] sm:$0xff]
      %v301 = vld [vmem:[%s248 + $0xf8] sm:$0xff]
      %v302 = vld [vmem:[%s248 + $0x100] sm:$0xff]
      %v303 = vld [vmem:[%s248 + $0x108] sm:$0xff]
      %v304 = vld [vmem:[%s248 + $0x110] sm:$0xff]
      %v305 = vld [vmem:[%s248 + $0x118] sm:$0xff]
      %v306 = vld [vmem:[%s248 + $0x120] sm:$0xff]
      %v307 = vld [vmem:[%s248 + $0x128] sm:$0xff]
      %v308 = vld [vmem:[%s248 + $0x130] sm:$0xff]
      %v309 = vld [vmem:[%s248 + $0x138] sm:$0xff]
      %v310 = vld [vmem:[%s248 + $0x140] sm:$0xff]
      %v311 = vld [vmem:[%s248 + $0x148] sm:$0xff]
      %v312 = vld [vmem:[%s248 + $0x150] sm:$0xff]
      %v313 = vld [vmem:[%s248 + $0x158] sm:$0xff]
      %v314 = vld [vmem:[%s248 + $0x160] sm:$0xff]
      %v315 = vld [vmem:[%s248 + $0x168] sm:$0xff]
      %v316 = vld [vmem:[%s248 + $0x170] sm:$0xff]
      %v317 = vld [vmem:[%s248 + $0x178] sm:$0xff]
      %v318 = vld [vmem:[%s248 + $0x180] sm:$0xff]
      %v319 = vld [vmem:[%s248 + $0x188] sm:$0xff]
      %v320 = vld [vmem:[%s248 + $0x190] sm:$0xff]
      %v321 = vld [vmem:[%s248 + $0x198] sm:$0xff]
      %v322 = vld [vmem:[%s248 + $0x1a0] sm:$0xff]
      %v323 = vld [vmem:[%s248 + $0x1a8] sm:$0xff]
      %v324 = vld [vmem:[%s248 + $0x1b0] sm:$0xff]
      %v325 = vld [vmem:[%s248 + $0x1b8] sm:$0xff]
      %v326 = vld [vmem:[%s248 + $0x1c0] sm:$0xff]
      %v327 = vld [vmem:[%s248 + $0x1c8] sm:$0xff]
      %v328 = vld [vmem:[%s248 + $0x1d0] sm:$0xff]
      %v329 = vld [vmem:[%s248 + $0x1d8] sm:$0xff]
      %v330 = vld [vmem:[%s248 + $0x1e0] sm:$0xff]
      %v331 = vld [vmem:[%s248 + $0x1e8] sm:$0xff]
      %v332 = vld [vmem:[%s248 + $0x1f0] sm:$0xff]
      %v333 = vld [vmem:[%s248 + $0x1f8] sm:$0xff]
      %v334 = vld [vmem:[%s248 + $0x200] sm:$0xff]
      %v335 = vld [vmem:[%s248 + $0x208] sm:$0xff]
      %v336 = vld [vmem:[%s248 + $0x210] sm:$0xff]
      %v337 = vld [vmem:[%s248 + $0x218] sm:$0xff]
      %v338 = vld [vmem:[%s248 + $0x220] sm:$0xff]
      %v339 = vld [vmem:[%s248 + $0x228] sm:$0xff]
      %v340 = vld [vmem:[%s248 + $0x230] sm:$0xff]
      %v341 = vld [vmem:[%s248 + $0x238] sm:$0xff]
      %v342 = vld [vmem:[%s248 + $0x240] sm:$0xff]
      %v343 = vld [vmem:[%s248 + $0x248] sm:$0xff]
      %v344 = vld [vmem:[%s248 + $0x250] sm:$0xff]
      %v345 = vld [vmem:[%s248 + $0x258] sm:$0xff]
      %v346 = vld [vmem:[%s248 + $0x260] sm:$0xff]
      %v347 = vld [vmem:[%s248 + $0x268] sm:$0xff]
      %v348 = vld [vmem:[%s248 + $0x270] sm:$0xff]
      %v349 = vld [vmem:[%s248 + $0x278] sm:$0xff]
      %v350 = vld [vmem:[%s248 + $0x280] sm:$0xff]
      %v351 = vld [vmem:[%s248 + $0x288] sm:$0xff]
      %v352 = vld [vmem:[%s248 + $0x290] sm:$0xff]
      %v353 = vld [vmem:[%s248 + $0x298] sm:$0xff]
      %v354 = vld [vmem:[%s248 + $0x2a0] sm:$0xff]
      %v355 = vld [vmem:[%s248 + $0x2a8] sm:$0xff]
      %v356 = vld [vmem:[%s248 + $0x2b0] sm:$0xff]
      %v357 = vld [vmem:[%s248 + $0x2b8] sm:$0xff]
      %v358 = vld [vmem:[%s248 + $0x2c0] sm:$0xff]
      %v359 = vld [vmem:[%s248 + $0x2c8] sm:$0xff]
      %v360 = vld [vmem:[%s248 + $0x2d0] sm:$0xff]
      %v361 = vld [vmem:[%s248 + $0x2d8] sm:$0xff]
      %v362 = vld [vmem:[%s248 + $0x2e0] sm:$0xff]
      %v363 = vld [vmem:[%s248 + $0x2e8] sm:$0xff]
      %v364 = vld [vmem:[%s248 + $0x2f0] sm:$0xff]
      %v365 = vld [vmem:[%s248 + $0x2f8] sm:$0xff]
      %v366 = vld [vmem:[%s248 + $0x300] sm:$0xff]
      %v367 = vld [vmem:[%s248 + $0x308] sm:$0xff]
      %v368 = vld [vmem:[%s248 + $0x310] sm:$0xff]
      %v369 = vld [vmem:[%s248 + $0x318] sm:$0xff]
      %v370 = vld [vmem:[%s248 + $0x320] sm:$0xff]
      %v371 = vld [vmem:[%s248 + $0x328] sm:$0xff]
      %v372 = vld [vmem:[%s248 + $0x330] sm:$0xff]
      %v373 = vld [vmem:[%s248 + $0x338] sm:$0xff]
      %v374 = vld [vmem:[%s248 + $0x340] sm:$0xff]
      %v375 = vld [vmem:[%s248 + $0x348] sm:$0xff]
      %v376 = vld [vmem:[%s248 + $0x350] sm:$0xff]
      %v377 = vld [vmem:[%s248 + $0x358] sm:$0xff]
      %v378 = vld [vmem:[%s248 + $0x360] sm:$0xff]
      %v379 = vld [vmem:[%s248 + $0x368] sm:$0xff]
      %v380 = vld [vmem:[%s248 + $0x370] sm:$0xff]
      %v381 = vld [vmem:[%s248 + $0x378] sm:$0xff]
      %v382 = vld [vmem:[%s248 + $0x380] sm:$0xff]
      %v383 = vld [vmem:[%s248 + $0x388] sm:$0xff]
      %v384 = vld [vmem:[%s248 + $0x390] sm:$0xff]
      %v385 = vld [vmem:[%s248 + $0x398] sm:$0xff]
      %v386 = vld [vmem:[%s248 + $0x3a0] sm:$0xff]
      %v387 = vld [vmem:[%s248 + $0x3a8] sm:$0xff]
      %v388 = vld [vmem:[%s248 + $0x3b0] sm:$0xff]
      %v389 = vld [vmem:[%s248 + $0x3b8] sm:$0xff]
      %v390 = vld [vmem:[%s248 + $0x3c0] sm:$0xff]
      %v391 = vld [vmem:[%s248 + $0x3c8] sm:$0xff]
      %v392 = vld [vmem:[%s248 + $0x3d0] sm:$0xff]
      %v393 = vld [vmem:[%s248 + $0x3d8] sm:$0xff]
      %v394 = vld [vmem:[%s248 + $0x3e0] sm:$0xff]
      %v395 = vld [vmem:[%s248 + $0x3e8] sm:$0xff]
      %v396 = vld [vmem:[%s248 + $0x3f0] sm:$0xff]
      %v397 = vld [vmem:[%s248 + $0x3f8] sm:$0xff]
      %v398 = vld [vmem:[%s253] sm:$0xf]
      %v399 = vld [vmem:[%s253 + $0x4] sm:$0xf]
      %v400 = vld [vmem:[%s253 + $0x8] sm:$0xf]
      %v401 = vld [vmem:[%s253 + $0xc] sm:$0xf]
      %v402 = vld [vmem:[%s253 + $0x10] sm:$0xf]
      %v403 = vld [vmem:[%s253 + $0x14] sm:$0xf]
      %v404 = vld [vmem:[%s253 + $0x18] sm:$0xf]
      %v405 = vld [vmem:[%s253 + $0x1c] sm:$0xf]
      %v406 = vld [vmem:[%s253 + $0x20] sm:$0xf]
      %v407 = vld [vmem:[%s253 + $0x24] sm:$0xf]
      %v408 = vld [vmem:[%s253 + $0x28] sm:$0xf]
      %v409 = vld [vmem:[%s253 + $0x2c] sm:$0xf]
      %v410 = vld [vmem:[%s253 + $0x30] sm:$0xf]
      %v411 = vld [vmem:[%s253 + $0x34] sm:$0xf]
      %v412 = vld [vmem:[%s253 + $0x38] sm:$0xf]
      %v413 = vld [vmem:[%s253 + $0x3c] sm:$0xf]
      %v414 = vld [vmem:[%s253 + $0x40] sm:$0xf]
      %v415 = vld [vmem:[%s253 + $0x44] sm:$0xf]
      %v416 = vld [vmem:[%s253 + $0x48] sm:$0xf]
      %v417 = vld [vmem:[%s253 + $0x4c] sm:$0xf]
      %v418 = vld [vmem:[%s253 + $0x50] sm:$0xf]
      %v419 = vld [vmem:[%s253 + $0x54] sm:$0xf]
      %v420 = vld [vmem:[%s253 + $0x58] sm:$0xf]
      %v421 = vld [vmem:[%s253 + $0x5c] sm:$0xf]
      %v422 = vld [vmem:[%s253 + $0x60] sm:$0xf]
      %v423 = vld [vmem:[%s253 + $0x64] sm:$0xf]
      %v424 = vld [vmem:[%s253 + $0x68] sm:$0xf]
      %v425 = vld [vmem:[%s253 + $0x6c] sm:$0xf]
      %v426 = vld [vmem:[%s253 + $0x70] sm:$0xf]
      %v427 = vld [vmem:[%s253 + $0x74] sm:$0xf]
      %v428 = vld [vmem:[%s253 + $0x78] sm:$0xf]
      %v429 = vld [vmem:[%s253 + $0x7c] sm:$0xf]
      %v430 = vld [vmem:[%s253 + $0x80] sm:$0xf]
      %v431 = vld [vmem:[%s253 + $0x84] sm:$0xf]
      %v432 = vld [vmem:[%s253 + $0x88] sm:$0xf]
      %v433 = vld [vmem:[%s253 + $0x8c] sm:$0xf]
      %v434 = vld [vmem:[%s253 + $0x90] sm:$0xf]
      %v435 = vld [vmem:[%s253 + $0x94] sm:$0xf]
      %v436 = vld [vmem:[%s253 + $0x98] sm:$0xf]
      %v437 = vld [vmem:[%s253 + $0x9c] sm:$0xf]
      %v438 = vld [vmem:[%s253 + $0xa0] sm:$0xf]
      %v439 = vld [vmem:[%s253 + $0xa4] sm:$0xf]
      %v440 = vld [vmem:[%s253 + $0xa8] sm:$0xf]
      %v441 = vld [vmem:[%s253 + $0xac] sm:$0xf]
      %v442 = vld [vmem:[%s253 + $0xb0] sm:$0xf]
      %v443 = vld [vmem:[%s253 + $0xb4] sm:$0xf]
      %v444 = vld [vmem:[%s253 + $0xb8] sm:$0xf]
      %v445 = vld [vmem:[%s253 + $0xbc] sm:$0xf]
      %v446 = vld [vmem:[%s253 + $0xc0] sm:$0xf]
      %v447 = vld [vmem:[%s253 + $0xc4] sm:$0xf]
      %v448 = vld [vmem:[%s253 + $0xc8] sm:$0xf]
      %v449 = vld [vmem:[%s253 + $0xcc] sm:$0xf]
      %v450 = vld [vmem:[%s253 + $0xd0] sm:$0xf]
      %v451 = vld [vmem:[%s253 + $0xd4] sm:$0xf]
      %v452 = vld [vmem:[%s253 + $0xd8] sm:$0xf]
      %v453 = vld [vmem:[%s253 + $0xdc] sm:$0xf]
      %v454 = vld [vmem:[%s253 + $0xe0] sm:$0xf]
      %v455 = vld [vmem:[%s253 + $0xe4] sm:$0xf]
      %v456 = vld [vmem:[%s253 + $0xe8] sm:$0xf]
      %v457 = vld [vmem:[%s253 + $0xec] sm:$0xf]
      %v458 = vld [vmem:[%s253 + $0xf0] sm:$0xf]
      %v459 = vld [vmem:[%s253 + $0xf4] sm:$0xf]
      %v460 = vld [vmem:[%s253 + $0xf8] sm:$0xf]
      %v461 = vld [vmem:[%s253 + $0xfc] sm:$0xf]
      %v462 = vld [vmem:[%s253 + $0x100] sm:$0xf]
      %v463 = vld [vmem:[%s253 + $0x104] sm:$0xf]
      %v464 = vld [vmem:[%s253 + $0x108] sm:$0xf]
      %v465 = vld [vmem:[%s253 + $0x10c] sm:$0xf]
      %v466 = vld [vmem:[%s253 + $0x110] sm:$0xf]
      %v467 = vld [vmem:[%s253 + $0x114] sm:$0xf]
      %v468 = vld [vmem:[%s253 + $0x118] sm:$0xf]
      %v469 = vld [vmem:[%s253 + $0x11c] sm:$0xf]
      %v470 = vld [vmem:[%s253 + $0x120] sm:$0xf]
      %v471 = vld [vmem:[%s253 + $0x124] sm:$0xf]
      %v472 = vld [vmem:[%s253 + $0x128] sm:$0xf]
      %v473 = vld [vmem:[%s253 + $0x12c] sm:$0xf]
      %v474 = vld [vmem:[%s253 + $0x130] sm:$0xf]
      %v475 = vld [vmem:[%s253 + $0x134] sm:$0xf]
      %v476 = vld [vmem:[%s253 + $0x138] sm:$0xf]
      %v477 = vld [vmem:[%s253 + $0x13c] sm:$0xf]
      %v478 = vld [vmem:[%s253 + $0x140] sm:$0xf]
      %v479 = vld [vmem:[%s253 + $0x144] sm:$0xf]
      %v480 = vld [vmem:[%s253 + $0x148] sm:$0xf]
      %v481 = vld [vmem:[%s253 + $0x14c] sm:$0xf]
      %v482 = vld [vmem:[%s253 + $0x150] sm:$0xf]
      %v483 = vld [vmem:[%s253 + $0x154] sm:$0xf]
      %v484 = vld [vmem:[%s253 + $0x158] sm:$0xf]
      %v485 = vld [vmem:[%s253 + $0x15c] sm:$0xf]
      %v486 = vld [vmem:[%s253 + $0x160] sm:$0xf]
      %v487 = vld [vmem:[%s253 + $0x164] sm:$0xf]
      %v488 = vld [vmem:[%s253 + $0x168] sm:$0xf]
      %v489 = vld [vmem:[%s253 + $0x16c] sm:$0xf]
      %v490 = vld [vmem:[%s253 + $0x170] sm:$0xf]
      %v491 = vld [vmem:[%s253 + $0x174] sm:$0xf]
      %v492 = vld [vmem:[%s253 + $0x178] sm:$0xf]
      %v493 = vld [vmem:[%s253 + $0x17c] sm:$0xf]
      %v494 = vld [vmem:[%s253 + $0x180] sm:$0xf]
      %v495 = vld [vmem:[%s253 + $0x184] sm:$0xf]
      %v496 = vld [vmem:[%s253 + $0x188] sm:$0xf]
      %v497 = vld [vmem:[%s253 + $0x18c] sm:$0xf]
      %v498 = vld [vmem:[%s253 + $0x190] sm:$0xf]
      %v499 = vld [vmem:[%s253 + $0x194] sm:$0xf]
      %v500 = vld [vmem:[%s253 + $0x198] sm:$0xf]
      %v501 = vld [vmem:[%s253 + $0x19c] sm:$0xf]
      %v502 = vld [vmem:[%s253 + $0x1a0] sm:$0xf]
      %v503 = vld [vmem:[%s253 + $0x1a4] sm:$0xf]
      %v504 = vld [vmem:[%s253 + $0x1a8] sm:$0xf]
      %v505 = vld [vmem:[%s253 + $0x1ac] sm:$0xf]
      %v506 = vld [vmem:[%s253 + $0x1b0] sm:$0xf]
      %v507 = vld [vmem:[%s253 + $0x1b4] sm:$0xf]
      %v508 = vld [vmem:[%s253 + $0x1b8] sm:$0xf]
      %v509 = vld [vmem:[%s253 + $0x1bc] sm:$0xf]
      %v510 = vld [vmem:[%s253 + $0x1c0] sm:$0xf]
      %v511 = vld [vmem:[%s253 + $0x1c4] sm:$0xf]
      %v512 = vld [vmem:[%s253 + $0x1c8] sm:$0xf]
      %v513 = vld [vmem:[%s253 + $0x1cc] sm:$0xf]
      %v514 = vld [vmem:[%s253 + $0x1d0] sm:$0xf]
      %v515 = vld [vmem:[%s253 + $0x1d4] sm:$0xf]
      %v516 = vld [vmem:[%s253 + $0x1d8] sm:$0xf]
      %v517 = vld [vmem:[%s253 + $0x1dc] sm:$0xf]
      %v518 = vld [vmem:[%s253 + $0x1e0] sm:$0xf]
      %v519 = vld [vmem:[%s253 + $0x1e4] sm:$0xf]
      %v520 = vld [vmem:[%s253 + $0x1e8] sm:$0xf]
      %v521 = vld [vmem:[%s253 + $0x1ec] sm:$0xf]
      %v522 = vld [vmem:[%s253 + $0x1f0] sm:$0xf]
      %v523 = vld [vmem:[%s253 + $0x1f4] sm:$0xf]
      %v524 = vld [vmem:[%s253 + $0x1f8] sm:$0xf]
      %v525 = vld [vmem:[%s253 + $0x1fc] sm:$0xf]
      %v654 = vunpack.c.l.b16 %v270
      %v655 = vunpack.c.h.b16 %v270
      %v656 = vunpack.c.l.b16 %v271
      %v657 = vunpack.c.h.b16 %v271
      %v658 = vunpack.c.l.b16 %v272
      %v659 = vunpack.c.h.b16 %v272
      %v660 = vunpack.c.l.b16 %v273
      %v661 = vunpack.c.h.b16 %v273
      %v662 = vunpack.c.l.b16 %v274
      %v663 = vunpack.c.h.b16 %v274
      %v664 = vunpack.c.l.b16 %v275
      %v665 = vunpack.c.h.b16 %v275
      %v666 = vunpack.c.l.b16 %v276
      %v667 = vunpack.c.h.b16 %v276
      %v668 = vunpack.c.l.b16 %v277
      %v669 = vunpack.c.h.b16 %v277
      %v670 = vunpack.c.l.b16 %v278
      %v671 = vunpack.c.h.b16 %v278
      %v672 = vunpack.c.l.b16 %v279
      %v673 = vunpack.c.h.b16 %v279
      %v674 = vunpack.c.l.b16 %v280
      %v675 = vunpack.c.h.b16 %v280
      %v676 = vunpack.c.l.b16 %v281
      %v677 = vunpack.c.h.b16 %v281
      %v678 = vunpack.c.l.b16 %v282
      %v679 = vunpack.c.h.b16 %v282
      %v680 = vunpack.c.l.b16 %v283
      %v681 = vunpack.c.h.b16 %v283
      %v682 = vunpack.c.l.b16 %v284
      %v683 = vunpack.c.h.b16 %v284
      %v684 = vunpack.c.l.b16 %v285
      %v685 = vunpack.c.h.b16 %v285
      %v686 = vunpack.c.l.b16 %v286
      %v687 = vunpack.c.h.b16 %v286
      %v688 = vunpack.c.l.b16 %v287
      %v689 = vunpack.c.h.b16 %v287
      %v690 = vunpack.c.l.b16 %v288
      %v691 = vunpack.c.h.b16 %v288
      %v692 = vunpack.c.l.b16 %v289
      %v693 = vunpack.c.h.b16 %v289
      %v694 = vunpack.c.l.b16 %v290
      %v695 = vunpack.c.h.b16 %v290
      %v696 = vunpack.c.l.b16 %v291
      %v697 = vunpack.c.h.b16 %v291
      %v698 = vunpack.c.l.b16 %v292
      %v699 = vunpack.c.h.b16 %v292
      %v700 = vunpack.c.l.b16 %v293
      %v701 = vunpack.c.h.b16 %v293
      %v702 = vunpack.c.l.b16 %v294
      %v703 = vunpack.c.h.b16 %v294
      %v704 = vunpack.c.l.b16 %v295
      %v705 = vunpack.c.h.b16 %v295
      %v706 = vunpack.c.l.b16 %v296
      %v707 = vunpack.c.h.b16 %v296
      %v708 = vunpack.c.l.b16 %v297
      %v709 = vunpack.c.h.b16 %v297
      %v710 = vunpack.c.l.b16 %v298
      %v711 = vunpack.c.h.b16 %v298
      %v712 = vunpack.c.l.b16 %v299
      %v713 = vunpack.c.h.b16 %v299
      %v714 = vunpack.c.l.b16 %v300
      %v715 = vunpack.c.h.b16 %v300
      %v716 = vunpack.c.l.b16 %v301
      %v717 = vunpack.c.h.b16 %v301
      %v718 = vunpack.c.l.b16 %v302
      %v719 = vunpack.c.h.b16 %v302
      %v720 = vunpack.c.l.b16 %v303
      %v721 = vunpack.c.h.b16 %v303
      %v722 = vunpack.c.l.b16 %v304
      %v723 = vunpack.c.h.b16 %v304
      %v724 = vunpack.c.l.b16 %v305
      %v725 = vunpack.c.h.b16 %v305
      %v726 = vunpack.c.l.b16 %v306
      %v727 = vunpack.c.h.b16 %v306
      %v728 = vunpack.c.l.b16 %v307
      %v729 = vunpack.c.h.b16 %v307
      %v730 = vunpack.c.l.b16 %v308
      %v731 = vunpack.c.h.b16 %v308
      %v732 = vunpack.c.l.b16 %v309
      %v733 = vunpack.c.h.b16 %v309
      %v734 = vunpack.c.l.b16 %v310
      %v735 = vunpack.c.h.b16 %v310
      %v736 = vunpack.c.l.b16 %v311
      %v737 = vunpack.c.h.b16 %v311
      %v738 = vunpack.c.l.b16 %v312
      %v739 = vunpack.c.h.b16 %v312
      %v740 = vunpack.c.l.b16 %v313
      %v741 = vunpack.c.h.b16 %v313
      %v742 = vunpack.c.l.b16 %v314
      %v743 = vunpack.c.h.b16 %v314
      %v744 = vunpack.c.l.b16 %v315
      %v745 = vunpack.c.h.b16 %v315
      %v746 = vunpack.c.l.b16 %v316
      %v747 = vunpack.c.h.b16 %v316
      %v748 = vunpack.c.l.b16 %v317
      %v749 = vunpack.c.h.b16 %v317
      %v750 = vunpack.c.l.b16 %v318
      %v751 = vunpack.c.h.b16 %v318
      %v752 = vunpack.c.l.b16 %v319
      %v753 = vunpack.c.h.b16 %v319
      %v754 = vunpack.c.l.b16 %v320
      %v755 = vunpack.c.h.b16 %v320
      %v756 = vunpack.c.l.b16 %v321
      %v757 = vunpack.c.h.b16 %v321
      %v758 = vunpack.c.l.b16 %v322
      %v759 = vunpack.c.h.b16 %v322
      %v760 = vunpack.c.l.b16 %v323
      %v761 = vunpack.c.h.b16 %v323
      %v762 = vunpack.c.l.b16 %v324
      %v763 = vunpack.c.h.b16 %v324
      %v764 = vunpack.c.l.b16 %v325
      %v765 = vunpack.c.h.b16 %v325
      %v766 = vunpack.c.l.b16 %v326
      %v767 = vunpack.c.h.b16 %v326
      %v768 = vunpack.c.l.b16 %v327
      %v769 = vunpack.c.h.b16 %v327
      %v770 = vunpack.c.l.b16 %v328
      %v771 = vunpack.c.h.b16 %v328
      %v772 = vunpack.c.l.b16 %v329
      %v773 = vunpack.c.h.b16 %v329
      %v774 = vunpack.c.l.b16 %v330
      %v775 = vunpack.c.h.b16 %v330
      %v776 = vunpack.c.l.b16 %v331
      %v777 = vunpack.c.h.b16 %v331
      %v778 = vunpack.c.l.b16 %v332
      %v779 = vunpack.c.h.b16 %v332
      %v780 = vunpack.c.l.b16 %v333
      %v781 = vunpack.c.h.b16 %v333
      %v782 = vunpack.c.l.b16 %v334
      %v783 = vunpack.c.h.b16 %v334
      %v784 = vunpack.c.l.b16 %v335
      %v785 = vunpack.c.h.b16 %v335
      %v786 = vunpack.c.l.b16 %v336
      %v787 = vunpack.c.h.b16 %v336
      %v788 = vunpack.c.l.b16 %v337
      %v789 = vunpack.c.h.b16 %v337
      %v790 = vunpack.c.l.b16 %v338
      %v791 = vunpack.c.h.b16 %v338
      %v792 = vunpack.c.l.b16 %v339
      %v793 = vunpack.c.h.b16 %v339
      %v794 = vunpack.c.l.b16 %v340
      %v795 = vunpack.c.h.b16 %v340
      %v796 = vunpack.c.l.b16 %v341
      %v797 = vunpack.c.h.b16 %v341
      %v798 = vunpack.c.l.b16 %v342
      %v799 = vunpack.c.h.b16 %v342
      %v800 = vunpack.c.l.b16 %v343
      %v801 = vunpack.c.h.b16 %v343
      %v802 = vunpack.c.l.b16 %v344
      %v803 = vunpack.c.h.b16 %v344
      %v804 = vunpack.c.l.b16 %v345
      %v805 = vunpack.c.h.b16 %v345
      %v806 = vunpack.c.l.b16 %v346
      %v807 = vunpack.c.h.b16 %v346
      %v808 = vunpack.c.l.b16 %v347
      %v809 = vunpack.c.h.b16 %v347
      %v810 = vunpack.c.l.b16 %v348
      %v811 = vunpack.c.h.b16 %v348
      %v812 = vunpack.c.l.b16 %v349
      %v813 = vunpack.c.h.b16 %v349
      %v814 = vunpack.c.l.b16 %v350
      %v815 = vunpack.c.h.b16 %v350
      %v816 = vunpack.c.l.b16 %v351
      %v817 = vunpack.c.h.b16 %v351
      %v818 = vunpack.c.l.b16 %v352
      %v819 = vunpack.c.h.b16 %v352
      %v820 = vunpack.c.l.b16 %v353
      %v821 = vunpack.c.h.b16 %v353
      %v822 = vunpack.c.l.b16 %v354
      %v823 = vunpack.c.h.b16 %v354
      %v824 = vunpack.c.l.b16 %v355
      %v825 = vunpack.c.h.b16 %v355
      %v826 = vunpack.c.l.b16 %v356
      %v827 = vunpack.c.h.b16 %v356
      %v828 = vunpack.c.l.b16 %v357
      %v829 = vunpack.c.h.b16 %v357
      %v830 = vunpack.c.l.b16 %v358
      %v831 = vunpack.c.h.b16 %v358
      %v832 = vunpack.c.l.b16 %v359
      %v833 = vunpack.c.h.b16 %v359
      %v834 = vunpack.c.l.b16 %v360
      %v835 = vunpack.c.h.b16 %v360
      %v836 = vunpack.c.l.b16 %v361
      %v837 = vunpack.c.h.b16 %v361
      %v838 = vunpack.c.l.b16 %v362
      %v839 = vunpack.c.h.b16 %v362
      %v840 = vunpack.c.l.b16 %v363
      %v841 = vunpack.c.h.b16 %v363
      %v842 = vunpack.c.l.b16 %v364
      %v843 = vunpack.c.h.b16 %v364
      %v844 = vunpack.c.l.b16 %v365
      %v845 = vunpack.c.h.b16 %v365
      %v846 = vunpack.c.l.b16 %v366
      %v847 = vunpack.c.h.b16 %v366
      %v848 = vunpack.c.l.b16 %v367
      %v849 = vunpack.c.h.b16 %v367
      %v850 = vunpack.c.l.b16 %v368
      %v851 = vunpack.c.h.b16 %v368
      %v852 = vunpack.c.l.b16 %v369
      %v853 = vunpack.c.h.b16 %v369
      %v854 = vunpack.c.l.b16 %v370
      %v855 = vunpack.c.h.b16 %v370
      %v856 = vunpack.c.l.b16 %v371
      %v857 = vunpack.c.h.b16 %v371
      %v858 = vunpack.c.l.b16 %v372
      %v859 = vunpack.c.h.b16 %v372
      %v860 = vunpack.c.l.b16 %v373
      %v861 = vunpack.c.h.b16 %v373
      %v862 = vunpack.c.l.b16 %v374
      %v863 = vunpack.c.h.b16 %v374
      %v864 = vunpack.c.l.b16 %v375
      %v865 = vunpack.c.h.b16 %v375
      %v866 = vunpack.c.l.b16 %v376
      %v867 = vunpack.c.h.b16 %v376
      %v868 = vunpack.c.l.b16 %v377
      %v869 = vunpack.c.h.b16 %v377
      %v870 = vunpack.c.l.b16 %v378
      %v871 = vunpack.c.h.b16 %v378
      %v872 = vunpack.c.l.b16 %v379
      %v873 = vunpack.c.h.b16 %v379
      %v874 = vunpack.c.l.b16 %v380
      %v875 = vunpack.c.h.b16 %v380
      %v876 = vunpack.c.l.b16 %v381
      %v877 = vunpack.c.h.b16 %v381
      %v878 = vunpack.c.l.b16 %v382
      %v879 = vunpack.c.h.b16 %v382
      %v880 = vunpack.c.l.b16 %v383
      %v881 = vunpack.c.h.b16 %v383
      %v882 = vunpack.c.l.b16 %v384
      %v883 = vunpack.c.h.b16 %v384
      %v884 = vunpack.c.l.b16 %v385
      %v885 = vunpack.c.h.b16 %v385
      %v886 = vunpack.c.l.b16 %v386
      %v887 = vunpack.c.h.b16 %v386
      %v888 = vunpack.c.l.b16 %v387
      %v889 = vunpack.c.h.b16 %v387
      %v890 = vunpack.c.l.b16 %v388
      %v891 = vunpack.c.h.b16 %v388
      %v892 = vunpack.c.l.b16 %v389
      %v893 = vunpack.c.h.b16 %v389
      %v894 = vunpack.c.l.b16 %v390
      %v895 = vunpack.c.h.b16 %v390
      %v896 = vunpack.c.l.b16 %v391
      %v897 = vunpack.c.h.b16 %v391
      %v898 = vunpack.c.l.b16 %v392
      %v899 = vunpack.c.h.b16 %v392
      %v900 = vunpack.c.l.b16 %v393
      %v901 = vunpack.c.h.b16 %v393
      %v902 = vunpack.c.l.b16 %v394
      %v903 = vunpack.c.h.b16 %v394
      %v904 = vunpack.c.l.b16 %v395
      %v905 = vunpack.c.h.b16 %v395
      %v906 = vunpack.c.l.b16 %v396
      %v907 = vunpack.c.h.b16 %v396
      %v908 = vunpack.c.l.b16 %v397
      %v909 = vunpack.c.h.b16 %v397
      %v910 = vpack.c.b16 %v662, %v654
      %v911 = vpack.c.b16 %v663, %v655
      %v912 = vpack.c.b16 %v664, %v656
      %v913 = vpack.c.b16 %v665, %v657
      %v914 = vpack.c.b16 %v666, %v658
      %v915 = vpack.c.b16 %v667, %v659
      %v916 = vpack.c.b16 %v668, %v660
      %v917 = vpack.c.b16 %v669, %v661
      %v918 = vpack.c.b16 %v678, %v670
      %v919 = vpack.c.b16 %v679, %v671
      %v920 = vpack.c.b16 %v680, %v672
      %v921 = vpack.c.b16 %v681, %v673
      %v922 = vpack.c.b16 %v682, %v674
      %v923 = vpack.c.b16 %v683, %v675
      %v924 = vpack.c.b16 %v684, %v676
      %v925 = vpack.c.b16 %v685, %v677
      %v926 = vpack.c.b16 %v694, %v686
      %v927 = vpack.c.b16 %v695, %v687
      %v928 = vpack.c.b16 %v696, %v688
      %v929 = vpack.c.b16 %v697, %v689
      %v930 = vpack.c.b16 %v698, %v690
      %v931 = vpack.c.b16 %v699, %v691
      %v932 = vpack.c.b16 %v700, %v692
      %v933 = vpack.c.b16 %v701, %v693
      %v934 = vpack.c.b16 %v710, %v702
      %v935 = vpack.c.b16 %v711, %v703
      %v936 = vpack.c.b16 %v712, %v704
      %v937 = vpack.c.b16 %v713, %v705
      %v938 = vpack.c.b16 %v714, %v706
      %v939 = vpack.c.b16 %v715, %v707
      %v940 = vpack.c.b16 %v716, %v708
      %v941 = vpack.c.b16 %v717, %v709
      %v942 = vpack.c.b16 %v726, %v718
      %v943 = vpack.c.b16 %v727, %v719
      %v944 = vpack.c.b16 %v728, %v720
      %v945 = vpack.c.b16 %v729, %v721
      %v946 = vpack.c.b16 %v730, %v722
      %v947 = vpack.c.b16 %v731, %v723
      %v948 = vpack.c.b16 %v732, %v724
      %v949 = vpack.c.b16 %v733, %v725
      %v950 = vpack.c.b16 %v742, %v734
      %v951 = vpack.c.b16 %v743, %v735
      %v952 = vpack.c.b16 %v744, %v736
      %v953 = vpack.c.b16 %v745, %v737
      %v954 = vpack.c.b16 %v746, %v738
      %v955 = vpack.c.b16 %v747, %v739
      %v956 = vpack.c.b16 %v748, %v740
      %v957 = vpack.c.b16 %v749, %v741
      %v958 = vpack.c.b16 %v758, %v750
      %v959 = vpack.c.b16 %v759, %v751
      %v960 = vpack.c.b16 %v760, %v752
      %v961 = vpack.c.b16 %v761, %v753
      %v962 = vpack.c.b16 %v762, %v754
      %v963 = vpack.c.b16 %v763, %v755
      %v964 = vpack.c.b16 %v764, %v756
      %v965 = vpack.c.b16 %v765, %v757
      %v966 = vpack.c.b16 %v774, %v766
      %v967 = vpack.c.b16 %v775, %v767
      %v968 = vpack.c.b16 %v776, %v768
      %v969 = vpack.c.b16 %v777, %v769
      %v970 = vpack.c.b16 %v778, %v770
      %v971 = vpack.c.b16 %v779, %v771
      %v972 = vpack.c.b16 %v780, %v772
      %v973 = vpack.c.b16 %v781, %v773
      %v974 = vpack.c.b16 %v790, %v782
      %v975 = vpack.c.b16 %v791, %v783
      %v976 = vpack.c.b16 %v792, %v784
      %v977 = vpack.c.b16 %v793, %v785
      %v978 = vpack.c.b16 %v794, %v786
      %v979 = vpack.c.b16 %v795, %v787
      %v980 = vpack.c.b16 %v796, %v788
      %v981 = vpack.c.b16 %v797, %v789
      %v982 = vpack.c.b16 %v806, %v798
      %v983 = vpack.c.b16 %v807, %v799
      %v984 = vpack.c.b16 %v808, %v800
      %v985 = vpack.c.b16 %v809, %v801
      %v986 = vpack.c.b16 %v810, %v802
      %v987 = vpack.c.b16 %v811, %v803
      %v988 = vpack.c.b16 %v812, %v804
      %v989 = vpack.c.b16 %v813, %v805
      %v990 = vpack.c.b16 %v822, %v814
      %v991 = vpack.c.b16 %v823, %v815
      %v992 = vpack.c.b16 %v824, %v816
      %v993 = vpack.c.b16 %v825, %v817
      %v994 = vpack.c.b16 %v826, %v818
      %v995 = vpack.c.b16 %v827, %v819
      %v996 = vpack.c.b16 %v828, %v820
      %v997 = vpack.c.b16 %v829, %v821
      %v998 = vpack.c.b16 %v838, %v830
      %v999 = vpack.c.b16 %v839, %v831
      %v1000 = vpack.c.b16 %v840, %v832
      %v1001 = vpack.c.b16 %v841, %v833
      %v1002 = vpack.c.b16 %v842, %v834
      %v1003 = vpack.c.b16 %v843, %v835
      %v1004 = vpack.c.b16 %v844, %v836
      %v1005 = vpack.c.b16 %v845, %v837
      %v1006 = vpack.c.b16 %v854, %v846
      %v1007 = vpack.c.b16 %v855, %v847
      %v1008 = vpack.c.b16 %v856, %v848
      %v1009 = vpack.c.b16 %v857, %v849
      %v1010 = vpack.c.b16 %v858, %v850
      %v1011 = vpack.c.b16 %v859, %v851
      %v1012 = vpack.c.b16 %v860, %v852
      %v1013 = vpack.c.b16 %v861, %v853
      %v1014 = vpack.c.b16 %v870, %v862
      %v1015 = vpack.c.b16 %v871, %v863
      %v1016 = vpack.c.b16 %v872, %v864
      %v1017 = vpack.c.b16 %v873, %v865
      %v1018 = vpack.c.b16 %v874, %v866
      %v1019 = vpack.c.b16 %v875, %v867
      %v1020 = vpack.c.b16 %v876, %v868
      %v1021 = vpack.c.b16 %v877, %v869
      %v1022 = vpack.c.b16 %v886, %v878
      %v1023 = vpack.c.b16 %v887, %v879
      %v1024 = vpack.c.b16 %v888, %v880
      %v1025 = vpack.c.b16 %v889, %v881
      %v1026 = vpack.c.b16 %v890, %v882
      %v1027 = vpack.c.b16 %v891, %v883
      %v1028 = vpack.c.b16 %v892, %v884
      %v1029 = vpack.c.b16 %v893, %v885
      %v1030 = vpack.c.b16 %v902, %v894
      %v1031 = vpack.c.b16 %v903, %v895
      %v1032 = vpack.c.b16 %v904, %v896
      %v1033 = vpack.c.b16 %v905, %v897
      %v1034 = vpack.c.b16 %v906, %v898
      %v1035 = vpack.c.b16 %v907, %v899
      %v1036 = vpack.c.b16 %v908, %v900
      %v1037 = vpack.c.b16 %v909, %v901
      %v1294 = vunpack.c.l.b16 %v398
      %v1295 = vunpack.c.l.b16 %v399
      %v1296 = vunpack.c.l.b16 %v400
      %v1297 = vunpack.c.l.b16 %v401
      %v1298 = vunpack.c.l.b16 %v402
      %v1299 = vunpack.c.l.b16 %v403
      %v1300 = vunpack.c.l.b16 %v404
      %v1301 = vunpack.c.l.b16 %v405
      %v1302 = vunpack.c.l.b16 %v406
      %v1303 = vunpack.c.l.b16 %v407
      %v1304 = vunpack.c.l.b16 %v408
      %v1305 = vunpack.c.l.b16 %v409
      %v1306 = vunpack.c.l.b16 %v410
      %v1307 = vunpack.c.l.b16 %v411
      %v1308 = vunpack.c.l.b16 %v412
      %v1309 = vunpack.c.l.b16 %v413
      %v1310 = vunpack.c.l.b16 %v414
      %v1311 = vunpack.c.l.b16 %v415
      %v1312 = vunpack.c.l.b16 %v416
      %v1313 = vunpack.c.l.b16 %v417
      %v1314 = vunpack.c.l.b16 %v418
      %v1315 = vunpack.c.l.b16 %v419
      %v1316 = vunpack.c.l.b16 %v420
      %v1317 = vunpack.c.l.b16 %v421
      %v1318 = vunpack.c.l.b16 %v422
      %v1319 = vunpack.c.l.b16 %v423
      %v1320 = vunpack.c.l.b16 %v424
      %v1321 = vunpack.c.l.b16 %v425
      %v1322 = vunpack.c.l.b16 %v426
      %v1323 = vunpack.c.l.b16 %v427
      %v1324 = vunpack.c.l.b16 %v428
      %v1325 = vunpack.c.l.b16 %v429
      %v1326 = vunpack.c.l.b16 %v430
      %v1327 = vunpack.c.l.b16 %v431
      %v1328 = vunpack.c.l.b16 %v432
      %v1329 = vunpack.c.l.b16 %v433
      %v1330 = vunpack.c.l.b16 %v434
      %v1331 = vunpack.c.l.b16 %v435
      %v1332 = vunpack.c.l.b16 %v436
      %v1333 = vunpack.c.l.b16 %v437
      %v1334 = vunpack.c.l.b16 %v438
      %v1335 = vunpack.c.l.b16 %v439
      %v1336 = vunpack.c.l.b16 %v440
      %v1337 = vunpack.c.l.b16 %v441
      %v1338 = vunpack.c.l.b16 %v442
      %v1339 = vunpack.c.l.b16 %v443
      %v1340 = vunpack.c.l.b16 %v444
      %v1341 = vunpack.c.l.b16 %v445
      %v1342 = vunpack.c.l.b16 %v446
      %v1343 = vunpack.c.l.b16 %v447
      %v1344 = vunpack.c.l.b16 %v448
      %v1345 = vunpack.c.l.b16 %v449
      %v1346 = vunpack.c.l.b16 %v450
      %v1347 = vunpack.c.l.b16 %v451
      %v1348 = vunpack.c.l.b16 %v452
      %v1349 = vunpack.c.l.b16 %v453
      %v1350 = vunpack.c.l.b16 %v454
      %v1351 = vunpack.c.l.b16 %v455
      %v1352 = vunpack.c.l.b16 %v456
      %v1353 = vunpack.c.l.b16 %v457
      %v1354 = vunpack.c.l.b16 %v458
      %v1355 = vunpack.c.l.b16 %v459
      %v1356 = vunpack.c.l.b16 %v460
      %v1357 = vunpack.c.l.b16 %v461
      %v1358 = vunpack.c.l.b16 %v462
      %v1359 = vunpack.c.l.b16 %v463
      %v1360 = vunpack.c.l.b16 %v464
      %v1361 = vunpack.c.l.b16 %v465
      %v1362 = vunpack.c.l.b16 %v466
      %v1363 = vunpack.c.l.b16 %v467
      %v1364 = vunpack.c.l.b16 %v468
      %v1365 = vunpack.c.l.b16 %v469
      %v1366 = vunpack.c.l.b16 %v470
      %v1367 = vunpack.c.l.b16 %v471
      %v1368 = vunpack.c.l.b16 %v472
      %v1369 = vunpack.c.l.b16 %v473
      %v1370 = vunpack.c.l.b16 %v474
      %v1371 = vunpack.c.l.b16 %v475
      %v1372 = vunpack.c.l.b16 %v476
      %v1373 = vunpack.c.l.b16 %v477
      %v1374 = vunpack.c.l.b16 %v478
      %v1375 = vunpack.c.l.b16 %v479
      %v1376 = vunpack.c.l.b16 %v480
      %v1377 = vunpack.c.l.b16 %v481
      %v1378 = vunpack.c.l.b16 %v482
      %v1379 = vunpack.c.l.b16 %v483
      %v1380 = vunpack.c.l.b16 %v484
      %v1381 = vunpack.c.l.b16 %v485
      %v1382 = vunpack.c.l.b16 %v486
      %v1383 = vunpack.c.l.b16 %v487
      %v1384 = vunpack.c.l.b16 %v488
      %v1385 = vunpack.c.l.b16 %v489
      %v1386 = vunpack.c.l.b16 %v490
      %v1387 = vunpack.c.l.b16 %v491
      %v1388 = vunpack.c.l.b16 %v492
      %v1389 = vunpack.c.l.b16 %v493
      %v1390 = vunpack.c.l.b16 %v494
      %v1391 = vunpack.c.l.b16 %v495
      %v1392 = vunpack.c.l.b16 %v496
      %v1393 = vunpack.c.l.b16 %v497
      %v1394 = vunpack.c.l.b16 %v498
      %v1395 = vunpack.c.l.b16 %v499
      %v1396 = vunpack.c.l.b16 %v500
      %v1397 = vunpack.c.l.b16 %v501
      %v1398 = vunpack.c.l.b16 %v502
      %v1399 = vunpack.c.l.b16 %v503
      %v1400 = vunpack.c.l.b16 %v504
      %v1401 = vunpack.c.l.b16 %v505
      %v1402 = vunpack.c.l.b16 %v506
      %v1403 = vunpack.c.l.b16 %v507
      %v1404 = vunpack.c.l.b16 %v508
      %v1405 = vunpack.c.l.b16 %v509
      %v1406 = vunpack.c.l.b16 %v510
      %v1407 = vunpack.c.l.b16 %v511
      %v1408 = vunpack.c.l.b16 %v512
      %v1409 = vunpack.c.l.b16 %v513
      %v1410 = vunpack.c.l.b16 %v514
      %v1411 = vunpack.c.l.b16 %v515
      %v1412 = vunpack.c.l.b16 %v516
      %v1413 = vunpack.c.l.b16 %v517
      %v1414 = vunpack.c.l.b16 %v518
      %v1415 = vunpack.c.l.b16 %v519
      %v1416 = vunpack.c.l.b16 %v520
      %v1417 = vunpack.c.l.b16 %v521
      %v1418 = vunpack.c.l.b16 %v522
      %v1419 = vunpack.c.l.b16 %v523
      %v1420 = vunpack.c.l.b16 %v524
      %v1421 = vunpack.c.l.b16 %v525
      %v1422 = vpack.c.b16 %v1295, %v1294
      %v1423 = vpack.c.b16 %v1297, %v1296
      %v1424 = vpack.c.b16 %v1299, %v1298
      %v1425 = vpack.c.b16 %v1301, %v1300
      %v1426 = vpack.c.b16 %v1303, %v1302
      %v1427 = vpack.c.b16 %v1305, %v1304
      %v1428 = vpack.c.b16 %v1307, %v1306
      %v1429 = vpack.c.b16 %v1309, %v1308
      %v1430 = vpack.c.b16 %v1311, %v1310
      %v1431 = vpack.c.b16 %v1313, %v1312
      %v1432 = vpack.c.b16 %v1315, %v1314
      %v1433 = vpack.c.b16 %v1317, %v1316
      %v1434 = vpack.c.b16 %v1319, %v1318
      %v1435 = vpack.c.b16 %v1321, %v1320
      %v1436 = vpack.c.b16 %v1323, %v1322
      %v1437 = vpack.c.b16 %v1325, %v1324
      %v1438 = vpack.c.b16 %v1327, %v1326
      %v1439 = vpack.c.b16 %v1329, %v1328
      %v1440 = vpack.c.b16 %v1331, %v1330
      %v1441 = vpack.c.b16 %v1333, %v1332
      %v1442 = vpack.c.b16 %v1335, %v1334
      %v1443 = vpack.c.b16 %v1337, %v1336
      %v1444 = vpack.c.b16 %v1339, %v1338
      %v1445 = vpack.c.b16 %v1341, %v1340
      %v1446 = vpack.c.b16 %v1343, %v1342
      %v1447 = vpack.c.b16 %v1345, %v1344
      %v1448 = vpack.c.b16 %v1347, %v1346
      %v1449 = vpack.c.b16 %v1349, %v1348
      %v1450 = vpack.c.b16 %v1351, %v1350
      %v1451 = vpack.c.b16 %v1353, %v1352
      %v1452 = vpack.c.b16 %v1355, %v1354
      %v1453 = vpack.c.b16 %v1357, %v1356
      %v1454 = vpack.c.b16 %v1359, %v1358
      %v1455 = vpack.c.b16 %v1361, %v1360
      %v1456 = vpack.c.b16 %v1363, %v1362
      %v1457 = vpack.c.b16 %v1365, %v1364
      %v1458 = vpack.c.b16 %v1367, %v1366
      %v1459 = vpack.c.b16 %v1369, %v1368
      %v1460 = vpack.c.b16 %v1371, %v1370
      %v1461 = vpack.c.b16 %v1373, %v1372
      %v1462 = vpack.c.b16 %v1375, %v1374
      %v1463 = vpack.c.b16 %v1377, %v1376
      %v1464 = vpack.c.b16 %v1379, %v1378
      %v1465 = vpack.c.b16 %v1381, %v1380
      %v1466 = vpack.c.b16 %v1383, %v1382
      %v1467 = vpack.c.b16 %v1385, %v1384
      %v1468 = vpack.c.b16 %v1387, %v1386
      %v1469 = vpack.c.b16 %v1389, %v1388
      %v1470 = vpack.c.b16 %v1391, %v1390
      %v1471 = vpack.c.b16 %v1393, %v1392
      %v1472 = vpack.c.b16 %v1395, %v1394
      %v1473 = vpack.c.b16 %v1397, %v1396
      %v1474 = vpack.c.b16 %v1399, %v1398
      %v1475 = vpack.c.b16 %v1401, %v1400
      %v1476 = vpack.c.b16 %v1403, %v1402
      %v1477 = vpack.c.b16 %v1405, %v1404
      %v1478 = vpack.c.b16 %v1407, %v1406
      %v1479 = vpack.c.b16 %v1409, %v1408
      %v1480 = vpack.c.b16 %v1411, %v1410
      %v1481 = vpack.c.b16 %v1413, %v1412
      %v1482 = vpack.c.b16 %v1415, %v1414
      %v1483 = vpack.c.b16 %v1417, %v1416
      %v1484 = vpack.c.b16 %v1419, %v1418
      %v1485 = vpack.c.b16 %v1421, %v1420
      %1550 = vmatprep.subr.bf16.mxu0 0
      %1551 = vmatpush1.bf16.msra.mxu0 %v1429
      %1552 = vmatprep.subr.bf16.mxu0 0
      %1553 = vmatpush1.bf16.msra.mxu0 %v1428
      %1554 = vmatprep.subr.bf16.mxu0 0
      %1555 = vmatpush1.bf16.msra.mxu0 %v1427
      %1556 = vmatprep.subr.bf16.mxu0 0
      %1557 = vmatpush1.bf16.msra.mxu0 %v1426
      %1558 = vmatprep.subr.bf16.mxu0 0
      %1559 = vmatpush1.bf16.msra.mxu0 %v1425
      %1560 = vmatprep.subr.bf16.mxu0 0
      %1561 = vmatpush1.bf16.msra.mxu0 %v1424
      %1562 = vmatprep.subr.bf16.mxu0 0
      %1563 = vmatpush1.bf16.msra.mxu0 %v1423
      %1564 = vmatprep.subr.bf16.mxu0 0
      %1565 = vmatpush1.bf16.msra.mxu0 %v1422
      %1566 = vmatprep.subr.bf16.mxu0 0
      %1567 = vmatpush2.bf16.msra.mxu0 %v1437
      %1568 = vmatprep.subr.bf16.mxu0 0
      %1569 = vmatpush2.bf16.msra.mxu0 %v1436
      %1570 = vmatprep.subr.bf16.mxu0 0
      %1571 = vmatpush2.bf16.msra.mxu0 %v1435
      %1572 = vmatprep.subr.bf16.mxu0 0
      %1573 = vmatpush2.bf16.msra.mxu0 %v1434
      %1574 = vmatprep.subr.bf16.mxu0 0
      %1575 = vmatpush2.bf16.msra.mxu0 %v1433
      %1576 = vmatprep.subr.bf16.mxu0 0
      %1577 = vmatpush2.bf16.msra.mxu0 %v1432
      %1578 = vmatprep.subr.bf16.mxu0 0
      %1579 = vmatpush2.bf16.msra.mxu0 %v1431
      %1580 = vmatprep.subr.bf16.mxu0 0
      %1581 = vmatpush2.bf16.msra.mxu0 %v1430
      %1582 = vmatprep.mubr.bf16.mxu0 %v911
      %1583 = vmatmul.mubr.bf16.gmra.mxu0 %v910
      %v1584 = vpop.f32.mrf.mxu0
      %v1585 = vadd.f32 0.0, %v1584
      %v1586 = vpop.f32.mrf.mxu0
      %v1587 = vpop.f32.mrf.mxu0
      %v1588 = vadd.f32 0.0, %v1587
      %v1589 = vpop.f32.mrf.mxu0
      %1590 = vmatprep.mubr.bf16.mxu0 %v919
      %1591 = vmatmul.mubr.bf16.gmra.mxu0 %v918
      %v1592 = vpop.f32.mrf.mxu0
      %v1593 = vadd.f32 0.0, %v1592
      %v1594 = vpop.f32.mrf.mxu0
      %v1595 = vpop.f32.mrf.mxu0
      %v1596 = vadd.f32 0.0, %v1595
      %v1597 = vpop.f32.mrf.mxu0
      %1598 = vmatprep.mubr.bf16.mxu0 %v927
      %1599 = vmatmul.mubr.bf16.gmra.mxu0 %v926
      %v1600 = vpop.f32.mrf.mxu0
      %v1601 = vadd.f32 0.0, %v1600
      %v1602 = vpop.f32.mrf.mxu0
      %v1603 = vpop.f32.mrf.mxu0
      %v1604 = vadd.f32 0.0, %v1603
      %v1605 = vpop.f32.mrf.mxu0
      %1606 = vmatprep.mubr.bf16.mxu0 %v935
      %1607 = vmatmul.mubr.bf16.gmra.mxu0 %v934
      %v1608 = vpop.f32.mrf.mxu0
      %v1609 = vadd.f32 0.0, %v1608
      %v1610 = vpop.f32.mrf.mxu0
      %v1611 = vpop.f32.mrf.mxu0
      %v1612 = vadd.f32 0.0, %v1611
      %v1613 = vpop.f32.mrf.mxu0
      %1614 = vmatprep.mubr.bf16.mxu0 %v943
      %1615 = vmatmul.mubr.bf16.gmra.mxu0 %v942
      %v1616 = vpop.f32.mrf.mxu0
      %v1617 = vadd.f32 0.0, %v1616
      %v1618 = vpop.f32.mrf.mxu0
      %v1619 = vpop.f32.mrf.mxu0
      %v1620 = vadd.f32 0.0, %v1619
      %v1621 = vpop.f32.mrf.mxu0
      %1622 = vmatprep.mubr.bf16.mxu0 %v951
      %1623 = vmatmul.mubr.bf16.gmra.mxu0 %v950
      %v1624 = vpop.f32.mrf.mxu0
      %v1625 = vadd.f32 0.0, %v1624
      %v1626 = vpop.f32.mrf.mxu0
      %v1627 = vpop.f32.mrf.mxu0
      %v1628 = vadd.f32 0.0, %v1627
      %v1629 = vpop.f32.mrf.mxu0
      %1630 = vmatprep.mubr.bf16.mxu0 %v959
      %1631 = vmatmul.mubr.bf16.gmra.mxu0 %v958
      %v1632 = vpop.f32.mrf.mxu0
      %v1633 = vadd.f32 0.0, %v1632
      %v1634 = vpop.f32.mrf.mxu0
      %v1635 = vpop.f32.mrf.mxu0
      %v1636 = vadd.f32 0.0, %v1635
      %v1637 = vpop.f32.mrf.mxu0
      %1638 = vmatprep.mubr.bf16.mxu0 %v967
      %1639 = vmatmul.mubr.bf16.gmra.mxu0 %v966
      %v1640 = vpop.f32.mrf.mxu0
      %v1641 = vadd.f32 0.0, %v1640
      %v1642 = vpop.f32.mrf.mxu0
      %v1643 = vpop.f32.mrf.mxu0
      %v1644 = vadd.f32 0.0, %v1643
      %v1645 = vpop.f32.mrf.mxu0
      %1646 = vmatprep.mubr.bf16.mxu0 %v975
      %1647 = vmatmul.mubr.bf16.gmra.mxu0 %v974
      %v1648 = vpop.f32.mrf.mxu0
      %v1649 = vadd.f32 0.0, %v1648
      %v1650 = vpop.f32.mrf.mxu0
      %v1651 = vpop.f32.mrf.mxu0
      %v1652 = vadd.f32 0.0, %v1651
      %v1653 = vpop.f32.mrf.mxu0
      %1654 = vmatprep.mubr.bf16.mxu0 %v983
      %1655 = vmatmul.mubr.bf16.gmra.mxu0 %v982
      %v1656 = vpop.f32.mrf.mxu0
      %v1657 = vadd.f32 0.0, %v1656
      %v1658 = vpop.f32.mrf.mxu0
      %v1659 = vpop.f32.mrf.mxu0
      %v1660 = vadd.f32 0.0, %v1659
      %v1661 = vpop.f32.mrf.mxu0
      %1662 = vmatprep.mubr.bf16.mxu0 %v991
      %1663 = vmatmul.mubr.bf16.gmra.mxu0 %v990
      %v1664 = vpop.f32.mrf.mxu0
      %v1665 = vadd.f32 0.0, %v1664
      %v1666 = vpop.f32.mrf.mxu0
      %v1667 = vpop.f32.mrf.mxu0
      %v1668 = vadd.f32 0.0, %v1667
      %v1669 = vpop.f32.mrf.mxu0
      %1670 = vmatprep.mubr.bf16.mxu0 %v999
      %1671 = vmatmul.mubr.bf16.gmra.mxu0 %v998
      %v1672 = vpop.f32.mrf.mxu0
      %v1673 = vadd.f32 0.0, %v1672
      %v1674 = vpop.f32.mrf.mxu0
      %v1675 = vpop.f32.mrf.mxu0
      %v1676 = vadd.f32 0.0, %v1675
      %v1677 = vpop.f32.mrf.mxu0
      %1678 = vmatprep.mubr.bf16.mxu0 %v1007
      %1679 = vmatmul.mubr.bf16.gmra.mxu0 %v1006
      %v1680 = vpop.f32.mrf.mxu0
      %v1681 = vadd.f32 0.0, %v1680
      %v1682 = vpop.f32.mrf.mxu0
      %v1683 = vpop.f32.mrf.mxu0
      %v1684 = vadd.f32 0.0, %v1683
      %v1685 = vpop.f32.mrf.mxu0
      %1686 = vmatprep.mubr.bf16.mxu0 %v1015
      %1687 = vmatmul.mubr.bf16.gmra.mxu0 %v1014
      %v1688 = vpop.f32.mrf.mxu0
      %v1689 = vadd.f32 0.0, %v1688
      %v1690 = vpop.f32.mrf.mxu0
      %v1691 = vpop.f32.mrf.mxu0
      %v1692 = vadd.f32 0.0, %v1691
      %v1693 = vpop.f32.mrf.mxu0
      %1694 = vmatprep.mubr.bf16.mxu0 %v1023
      %1695 = vmatmul.mubr.bf16.gmra.mxu0 %v1022
      %v1696 = vpop.f32.mrf.mxu0
      %v1697 = vadd.f32 0.0, %v1696
      %v1698 = vpop.f32.mrf.mxu0
      %v1699 = vpop.f32.mrf.mxu0
      %v1700 = vadd.f32 0.0, %v1699
      %v1701 = vpop.f32.mrf.mxu0
      %1702 = vmatprep.mubr.bf16.mxu0 %v1031
      %1703 = vmatmul.mubr.bf16.gmra.mxu0 %v1030
      %v1704 = vpop.f32.mrf.mxu0
      %v1705 = vadd.f32 0.0, %v1704
      %v1706 = vpop.f32.mrf.mxu0
      %v1707 = vpop.f32.mrf.mxu0
      %v1708 = vadd.f32 0.0, %v1707
      %v1709 = vpop.f32.mrf.mxu0
      %1710 = vdwg.mxu0
      %1711 = vmatprep.subr.bf16.mxu0 0
      %1712 = vmatpush1.bf16.msra.mxu0 %v1445
      %1713 = vmatprep.subr.bf16.mxu0 0
      %1714 = vmatpush1.bf16.msra.mxu0 %v1444
      %1715 = vmatprep.subr.bf16.mxu0 0
      %1716 = vmatpush1.bf16.msra.mxu0 %v1443
      %1717 = vmatprep.subr.bf16.mxu0 0
      %1718 = vmatpush1.bf16.msra.mxu0 %v1442
      %1719 = vmatprep.subr.bf16.mxu0 0
      %1720 = vmatpush1.bf16.msra.mxu0 %v1441
      %1721 = vmatprep.subr.bf16.mxu0 0
      %1722 = vmatpush1.bf16.msra.mxu0 %v1440
      %1723 = vmatprep.subr.bf16.mxu0 0
      %1724 = vmatpush1.bf16.msra.mxu0 %v1439
      %1725 = vmatprep.subr.bf16.mxu0 0
      %1726 = vmatpush1.bf16.msra.mxu0 %v1438
      %1727 = vmatprep.subr.bf16.mxu0 0
      %1728 = vmatpush2.bf16.msra.mxu0 %v1453
      %1729 = vmatprep.subr.bf16.mxu0 0
      %1730 = vmatpush2.bf16.msra.mxu0 %v1452
      %1731 = vmatprep.subr.bf16.mxu0 0
      %1732 = vmatpush2.bf16.msra.mxu0 %v1451
      %1733 = vmatprep.subr.bf16.mxu0 0
      %1734 = vmatpush2.bf16.msra.mxu0 %v1450
      %1735 = vmatprep.subr.bf16.mxu0 0
      %1736 = vmatpush2.bf16.msra.mxu0 %v1449
      %1737 = vmatprep.subr.bf16.mxu0 0
      %1738 = vmatpush2.bf16.msra.mxu0 %v1448
      %1739 = vmatprep.subr.bf16.mxu0 0
      %1740 = vmatpush2.bf16.msra.mxu0 %v1447
      %1741 = vmatprep.subr.bf16.mxu0 0
      %1742 = vmatpush2.bf16.msra.mxu0 %v1446
      %1743 = vmatprep.mubr.bf16.mxu0 %v913
      %1744 = vmatmul.mubr.bf16.gmra.mxu0 %v912
      %v1745 = vpop.f32.mrf.mxu0
      %v1746 = vadd.f32 %v1585, %v1745
      %v1747 = vpop.f32.mrf.mxu0
      %v1748 = vpop.f32.mrf.mxu0
      %v1749 = vadd.f32 %v1588, %v1748
      %v1750 = vpop.f32.mrf.mxu0
      %1751 = vmatprep.mubr.bf16.mxu0 %v921
      %1752 = vmatmul.mubr.bf16.gmra.mxu0 %v920
      %v1753 = vpop.f32.mrf.mxu0
      %v1754 = vadd.f32 %v1593, %v1753
      %v1755 = vpop.f32.mrf.mxu0
      %v1756 = vpop.f32.mrf.mxu0
      %v1757 = vadd.f32 %v1596, %v1756
      %v1758 = vpop.f32.mrf.mxu0
      %1759 = vmatprep.mubr.bf16.mxu0 %v929
      %1760 = vmatmul.mubr.bf16.gmra.mxu0 %v928
      %v1761 = vpop.f32.mrf.mxu0
      %v1762 = vadd.f32 %v1601, %v1761
      %v1763 = vpop.f32.mrf.mxu0
      %v1764 = vpop.f32.mrf.mxu0
      %v1765 = vadd.f32 %v1604, %v1764
      %v1766 = vpop.f32.mrf.mxu0
      %1767 = vmatprep.mubr.bf16.mxu0 %v937
      %1768 = vmatmul.mubr.bf16.gmra.mxu0 %v936
      %v1769 = vpop.f32.mrf.mxu0
      %v1770 = vadd.f32 %v1609, %v1769
      %v1771 = vpop.f32.mrf.mxu0
      %v1772 = vpop.f32.mrf.mxu0
      %v1773 = vadd.f32 %v1612, %v1772
      %v1774 = vpop.f32.mrf.mxu0
      %1775 = vmatprep.mubr.bf16.mxu0 %v945
      %1776 = vmatmul.mubr.bf16.gmra.mxu0 %v944
      %v1777 = vpop.f32.mrf.mxu0
      %v1778 = vadd.f32 %v1617, %v1777
      %v1779 = vpop.f32.mrf.mxu0
      %v1780 = vpop.f32.mrf.mxu0
      %v1781 = vadd.f32 %v1620, %v1780
      %v1782 = vpop.f32.mrf.mxu0
      %1783 = vmatprep.mubr.bf16.mxu0 %v953
      %1784 = vmatmul.mubr.bf16.gmra.mxu0 %v952
      %v1785 = vpop.f32.mrf.mxu0
      %v1786 = vadd.f32 %v1625, %v1785
      %v1787 = vpop.f32.mrf.mxu0
      %v1788 = vpop.f32.mrf.mxu0
      %v1789 = vadd.f32 %v1628, %v1788
      %v1790 = vpop.f32.mrf.mxu0
      %1791 = vmatprep.mubr.bf16.mxu0 %v961
      %1792 = vmatmul.mubr.bf16.gmra.mxu0 %v960
      %v1793 = vpop.f32.mrf.mxu0
      %v1794 = vadd.f32 %v1633, %v1793
      %v1795 = vpop.f32.mrf.mxu0
      %v1796 = vpop.f32.mrf.mxu0
      %v1797 = vadd.f32 %v1636, %v1796
      %v1798 = vpop.f32.mrf.mxu0
      %1799 = vmatprep.mubr.bf16.mxu0 %v969
      %1800 = vmatmul.mubr.bf16.gmra.mxu0 %v968
      %v1801 = vpop.f32.mrf.mxu0
      %v1802 = vadd.f32 %v1641, %v1801
      %v1803 = vpop.f32.mrf.mxu0
      %v1804 = vpop.f32.mrf.mxu0
      %v1805 = vadd.f32 %v1644, %v1804
      %v1806 = vpop.f32.mrf.mxu0
      %1807 = vmatprep.mubr.bf16.mxu0 %v977
      %1808 = vmatmul.mubr.bf16.gmra.mxu0 %v976
      %v1809 = vpop.f32.mrf.mxu0
      %v1810 = vadd.f32 %v1649, %v1809
      %v1811 = vpop.f32.mrf.mxu0
      %v1812 = vpop.f32.mrf.mxu0
      %v1813 = vadd.f32 %v1652, %v1812
      %v1814 = vpop.f32.mrf.mxu0
      %1815 = vmatprep.mubr.bf16.mxu0 %v985
      %1816 = vmatmul.mubr.bf16.gmra.mxu0 %v984
      %v1817 = vpop.f32.mrf.mxu0
      %v1818 = vadd.f32 %v1657, %v1817
      %v1819 = vpop.f32.mrf.mxu0
      %v1820 = vpop.f32.mrf.mxu0
      %v1821 = vadd.f32 %v1660, %v1820
      %v1822 = vpop.f32.mrf.mxu0
      %1823 = vmatprep.mubr.bf16.mxu0 %v993
      %1824 = vmatmul.mubr.bf16.gmra.mxu0 %v992
      %v1825 = vpop.f32.mrf.mxu0
      %v1826 = vadd.f32 %v1665, %v1825
      %v1827 = vpop.f32.mrf.mxu0
      %v1828 = vpop.f32.mrf.mxu0
      %v1829 = vadd.f32 %v1668, %v1828
      %v1830 = vpop.f32.mrf.mxu0
      %1831 = vmatprep.mubr.bf16.mxu0 %v1001
      %1832 = vmatmul.mubr.bf16.gmra.mxu0 %v1000
      %v1833 = vpop.f32.mrf.mxu0
      %v1834 = vadd.f32 %v1673, %v1833
      %v1835 = vpop.f32.mrf.mxu0
      %v1836 = vpop.f32.mrf.mxu0
      %v1837 = vadd.f32 %v1676, %v1836
      %v1838 = vpop.f32.mrf.mxu0
      %1839 = vmatprep.mubr.bf16.mxu0 %v1009
      %1840 = vmatmul.mubr.bf16.gmra.mxu0 %v1008
      %v1841 = vpop.f32.mrf.mxu0
      %v1842 = vadd.f32 %v1681, %v1841
      %v1843 = vpop.f32.mrf.mxu0
      %v1844 = vpop.f32.mrf.mxu0
      %v1845 = vadd.f32 %v1684, %v1844
      %v1846 = vpop.f32.mrf.mxu0
      %1847 = vmatprep.mubr.bf16.mxu0 %v1017
      %1848 = vmatmul.mubr.bf16.gmra.mxu0 %v1016
      %v1849 = vpop.f32.mrf.mxu0
      %v1850 = vadd.f32 %v1689, %v1849
      %v1851 = vpop.f32.mrf.mxu0
      %v1852 = vpop.f32.mrf.mxu0
      %v1853 = vadd.f32 %v1692, %v1852
      %v1854 = vpop.f32.mrf.mxu0
      %1855 = vmatprep.mubr.bf16.mxu0 %v1025
      %1856 = vmatmul.mubr.bf16.gmra.mxu0 %v1024
      %v1857 = vpop.f32.mrf.mxu0
      %v1858 = vadd.f32 %v1697, %v1857
      %v1859 = vpop.f32.mrf.mxu0
      %v1860 = vpop.f32.mrf.mxu0
      %v1861 = vadd.f32 %v1700, %v1860
      %v1862 = vpop.f32.mrf.mxu0
      %1863 = vmatprep.mubr.bf16.mxu0 %v1033
      %1864 = vmatmul.mubr.bf16.gmra.mxu0 %v1032
      %v1865 = vpop.f32.mrf.mxu0
      %v1866 = vadd.f32 %v1705, %v1865
      %v1867 = vpop.f32.mrf.mxu0
      %v1868 = vpop.f32.mrf.mxu0
      %v1869 = vadd.f32 %v1708, %v1868
      %v1870 = vpop.f32.mrf.mxu0
      %1871 = vdwg.mxu0
      %1872 = vmatprep.subr.bf16.mxu0 0
      %1873 = vmatpush1.bf16.msra.mxu0 %v1461
      %1874 = vmatprep.subr.bf16.mxu0 0
      %1875 = vmatpush1.bf16.msra.mxu0 %v1460
      %1876 = vmatprep.subr.bf16.mxu0 0
      %1877 = vmatpush1.bf16.msra.mxu0 %v1459
      %1878 = vmatprep.subr.bf16.mxu0 0
      %1879 = vmatpush1.bf16.msra.mxu0 %v1458
      %1880 = vmatprep.subr.bf16.mxu0 0
      %1881 = vmatpush1.bf16.msra.mxu0 %v1457
      %1882 = vmatprep.subr.bf16.mxu0 0
      %1883 = vmatpush1.bf16.msra.mxu0 %v1456
      %1884 = vmatprep.subr.bf16.mxu0 0
      %1885 = vmatpush1.bf16.msra.mxu0 %v1455
      %1886 = vmatprep.subr.bf16.mxu0 0
      %1887 = vmatpush1.bf16.msra.mxu0 %v1454
      %1888 = vmatprep.subr.bf16.mxu0 0
      %1889 = vmatpush2.bf16.msra.mxu0 %v1469
      %1890 = vmatprep.subr.bf16.mxu0 0
      %1891 = vmatpush2.bf16.msra.mxu0 %v1468
      %1892 = vmatprep.subr.bf16.mxu0 0
      %1893 = vmatpush2.bf16.msra.mxu0 %v1467
      %1894 = vmatprep.subr.bf16.mxu0 0
      %1895 = vmatpush2.bf16.msra.mxu0 %v1466
      %1896 = vmatprep.subr.bf16.mxu0 0
      %1897 = vmatpush2.bf16.msra.mxu0 %v1465
      %1898 = vmatprep.subr.bf16.mxu0 0
      %1899 = vmatpush2.bf16.msra.mxu0 %v1464
      %1900 = vmatprep.subr.bf16.mxu0 0
      %1901 = vmatpush2.bf16.msra.mxu0 %v1463
      %1902 = vmatprep.subr.bf16.mxu0 0
      %1903 = vmatpush2.bf16.msra.mxu0 %v1462
      %1904 = vmatprep.mubr.bf16.mxu0 %v915
      %1905 = vmatmul.mubr.bf16.gmra.mxu0 %v914
      %v1906 = vpop.f32.mrf.mxu0
      %v1907 = vadd.f32 %v1746, %v1906
      %v1908 = vpop.f32.mrf.mxu0
      %v1909 = vpop.f32.mrf.mxu0
      %v1910 = vadd.f32 %v1749, %v1909
      %v1911 = vpop.f32.mrf.mxu0
      %1912 = vmatprep.mubr.bf16.mxu0 %v923
      %1913 = vmatmul.mubr.bf16.gmra.mxu0 %v922
      %v1914 = vpop.f32.mrf.mxu0
      %v1915 = vadd.f32 %v1754, %v1914
      %v1916 = vpop.f32.mrf.mxu0
      %v1917 = vpop.f32.mrf.mxu0
      %v1918 = vadd.f32 %v1757, %v1917
      %v1919 = vpop.f32.mrf.mxu0
      %1920 = vmatprep.mubr.bf16.mxu0 %v931
      %1921 = vmatmul.mubr.bf16.gmra.mxu0 %v930
      %v1922 = vpop.f32.mrf.mxu0
      %v1923 = vadd.f32 %v1762, %v1922
      %v1924 = vpop.f32.mrf.mxu0
      %v1925 = vpop.f32.mrf.mxu0
      %v1926 = vadd.f32 %v1765, %v1925
      %v1927 = vpop.f32.mrf.mxu0
      %1928 = vmatprep.mubr.bf16.mxu0 %v939
      %1929 = vmatmul.mubr.bf16.gmra.mxu0 %v938
      %v1930 = vpop.f32.mrf.mxu0
      %v1931 = vadd.f32 %v1770, %v1930
      %v1932 = vpop.f32.mrf.mxu0
      %v1933 = vpop.f32.mrf.mxu0
      %v1934 = vadd.f32 %v1773, %v1933
      %v1935 = vpop.f32.mrf.mxu0
      %1936 = vmatprep.mubr.bf16.mxu0 %v947
      %1937 = vmatmul.mubr.bf16.gmra.mxu0 %v946
      %v1938 = vpop.f32.mrf.mxu0
      %v1939 = vadd.f32 %v1778, %v1938
      %v1940 = vpop.f32.mrf.mxu0
      %v1941 = vpop.f32.mrf.mxu0
      %v1942 = vadd.f32 %v1781, %v1941
      %v1943 = vpop.f32.mrf.mxu0
      %1944 = vmatprep.mubr.bf16.mxu0 %v955
      %1945 = vmatmul.mubr.bf16.gmra.mxu0 %v954
      %v1946 = vpop.f32.mrf.mxu0
      %v1947 = vadd.f32 %v1786, %v1946
      %v1948 = vpop.f32.mrf.mxu0
      %v1949 = vpop.f32.mrf.mxu0
      %v1950 = vadd.f32 %v1789, %v1949
      %v1951 = vpop.f32.mrf.mxu0
      %1952 = vmatprep.mubr.bf16.mxu0 %v963
      %1953 = vmatmul.mubr.bf16.gmra.mxu0 %v962
      %v1954 = vpop.f32.mrf.mxu0
      %v1955 = vadd.f32 %v1794, %v1954
      %v1956 = vpop.f32.mrf.mxu0
      %v1957 = vpop.f32.mrf.mxu0
      %v1958 = vadd.f32 %v1797, %v1957
      %v1959 = vpop.f32.mrf.mxu0
      %1960 = vmatprep.mubr.bf16.mxu0 %v971
      %1961 = vmatmul.mubr.bf16.gmra.mxu0 %v970
      %v1962 = vpop.f32.mrf.mxu0
      %v1963 = vadd.f32 %v1802, %v1962
      %v1964 = vpop.f32.mrf.mxu0
      %v1965 = vpop.f32.mrf.mxu0
      %v1966 = vadd.f32 %v1805, %v1965
      %v1967 = vpop.f32.mrf.mxu0
      %1968 = vmatprep.mubr.bf16.mxu0 %v979
      %1969 = vmatmul.mubr.bf16.gmra.mxu0 %v978
      %v1970 = vpop.f32.mrf.mxu0
      %v1971 = vadd.f32 %v1810, %v1970
      %v1972 = vpop.f32.mrf.mxu0
      %v1973 = vpop.f32.mrf.mxu0
      %v1974 = vadd.f32 %v1813, %v1973
      %v1975 = vpop.f32.mrf.mxu0
      %1976 = vmatprep.mubr.bf16.mxu0 %v987
      %1977 = vmatmul.mubr.bf16.gmra.mxu0 %v986
      %v1978 = vpop.f32.mrf.mxu0
      %v1979 = vadd.f32 %v1818, %v1978
      %v1980 = vpop.f32.mrf.mxu0
      %v1981 = vpop.f32.mrf.mxu0
      %v1982 = vadd.f32 %v1821, %v1981
      %v1983 = vpop.f32.mrf.mxu0
      %1984 = vmatprep.mubr.bf16.mxu0 %v995
      %1985 = vmatmul.mubr.bf16.gmra.mxu0 %v994
      %v1986 = vpop.f32.mrf.mxu0
      %v1987 = vadd.f32 %v1826, %v1986
      %v1988 = vpop.f32.mrf.mxu0
      %v1989 = vpop.f32.mrf.mxu0
      %v1990 = vadd.f32 %v1829, %v1989
      %v1991 = vpop.f32.mrf.mxu0
      %1992 = vmatprep.mubr.bf16.mxu0 %v1003
      %1993 = vmatmul.mubr.bf16.gmra.mxu0 %v1002
      %v1994 = vpop.f32.mrf.mxu0
      %v1995 = vadd.f32 %v1834, %v1994
      %v1996 = vpop.f32.mrf.mxu0
      %v1997 = vpop.f32.mrf.mxu0
      %v1998 = vadd.f32 %v1837, %v1997
      %v1999 = vpop.f32.mrf.mxu0
      %2000 = vmatprep.mubr.bf16.mxu0 %v1011
      %2001 = vmatmul.mubr.bf16.gmra.mxu0 %v1010
      %v2002 = vpop.f32.mrf.mxu0
      %v2003 = vadd.f32 %v1842, %v2002
      %v2004 = vpop.f32.mrf.mxu0
      %v2005 = vpop.f32.mrf.mxu0
      %v2006 = vadd.f32 %v1845, %v2005
      %v2007 = vpop.f32.mrf.mxu0
      %2008 = vmatprep.mubr.bf16.mxu0 %v1019
      %2009 = vmatmul.mubr.bf16.gmra.mxu0 %v1018
      %v2010 = vpop.f32.mrf.mxu0
      %v2011 = vadd.f32 %v1850, %v2010
      %v2012 = vpop.f32.mrf.mxu0
      %v2013 = vpop.f32.mrf.mxu0
      %v2014 = vadd.f32 %v1853, %v2013
      %v2015 = vpop.f32.mrf.mxu0
      %2016 = vmatprep.mubr.bf16.mxu0 %v1027
      %2017 = vmatmul.mubr.bf16.gmra.mxu0 %v1026
      %v2018 = vpop.f32.mrf.mxu0
      %v2019 = vadd.f32 %v1858, %v2018
      %v2020 = vpop.f32.mrf.mxu0
      %v2021 = vpop.f32.mrf.mxu0
      %v2022 = vadd.f32 %v1861, %v2021
      %v2023 = vpop.f32.mrf.mxu0
      %2024 = vmatprep.mubr.bf16.mxu0 %v1035
      %2025 = vmatmul.mubr.bf16.gmra.mxu0 %v1034
      %v2026 = vpop.f32.mrf.mxu0
      %v2027 = vadd.f32 %v1866, %v2026
      %v2028 = vpop.f32.mrf.mxu0
      %v2029 = vpop.f32.mrf.mxu0
      %v2030 = vadd.f32 %v1869, %v2029
      %v2031 = vpop.f32.mrf.mxu0
      %2032 = vdwg.mxu0
      %2033 = vmatprep.subr.bf16.mxu0 0
      %2034 = vmatpush1.bf16.msra.mxu0 %v1477
      %2035 = vmatprep.subr.bf16.mxu0 0
      %2036 = vmatpush1.bf16.msra.mxu0 %v1476
      %2037 = vmatprep.subr.bf16.mxu0 0
      %2038 = vmatpush1.bf16.msra.mxu0 %v1475
      %2039 = vmatprep.subr.bf16.mxu0 0
      %2040 = vmatpush1.bf16.msra.mxu0 %v1474
      %2041 = vmatprep.subr.bf16.mxu0 0
      %2042 = vmatpush1.bf16.msra.mxu0 %v1473
      %2043 = vmatprep.subr.bf16.mxu0 0
      %2044 = vmatpush1.bf16.msra.mxu0 %v1472
      %2045 = vmatprep.subr.bf16.mxu0 0
      %2046 = vmatpush1.bf16.msra.mxu0 %v1471
      %2047 = vmatprep.subr.bf16.mxu0 0
      %2048 = vmatpush1.bf16.msra.mxu0 %v1470
      %2049 = vmatprep.subr.bf16.mxu0 0
      %2050 = vmatpush2.bf16.msra.mxu0 %v1485
      %2051 = vmatprep.subr.bf16.mxu0 0
      %2052 = vmatpush2.bf16.msra.mxu0 %v1484
      %2053 = vmatprep.subr.bf16.mxu0 0
      %2054 = vmatpush2.bf16.msra.mxu0 %v1483
      %2055 = vmatprep.subr.bf16.mxu0 0
      %2056 = vmatpush2.bf16.msra.mxu0 %v1482
      %2057 = vmatprep.subr.bf16.mxu0 0
      %2058 = vmatpush2.bf16.msra.mxu0 %v1481
      %2059 = vmatprep.subr.bf16.mxu0 0
      %2060 = vmatpush2.bf16.msra.mxu0 %v1480
      %2061 = vmatprep.subr.bf16.mxu0 0
      %2062 = vmatpush2.bf16.msra.mxu0 %v1479
      %2063 = vmatprep.subr.bf16.mxu0 0
      %2064 = vmatpush2.bf16.msra.mxu0 %v1478
      %2065 = vmatprep.mubr.bf16.mxu0 %v917
      %2066 = vmatmul.mubr.bf16.gmra.mxu0 %v916
      %v2067 = vpop.f32.mrf.mxu0
      %v2068 = vadd.f32 %v1907, %v2067
      %v2069 = vpop.f32.mrf.mxu0
      %v2070 = vpop.f32.mrf.mxu0
      %v2071 = vadd.f32 %v1910, %v2070
      %v2072 = vpop.f32.mrf.mxu0
      %2073 = vmatprep.mubr.bf16.mxu0 %v925
      %2074 = vmatmul.mubr.bf16.gmra.mxu0 %v924
      %v2075 = vpop.f32.mrf.mxu0
      %v2076 = vadd.f32 %v1915, %v2075
      %v2077 = vpop.f32.mrf.mxu0
      %v2078 = vpop.f32.mrf.mxu0
      %v2079 = vadd.f32 %v1918, %v2078
      %v2080 = vpop.f32.mrf.mxu0
      %2081 = vmatprep.mubr.bf16.mxu0 %v933
      %2082 = vmatmul.mubr.bf16.gmra.mxu0 %v932
      %v2083 = vpop.f32.mrf.mxu0
      %v2084 = vadd.f32 %v1923, %v2083
      %v2085 = vpop.f32.mrf.mxu0
      %v2086 = vpop.f32.mrf.mxu0
      %v2087 = vadd.f32 %v1926, %v2086
      %v2088 = vpop.f32.mrf.mxu0
      %2089 = vmatprep.mubr.bf16.mxu0 %v941
      %2090 = vmatmul.mubr.bf16.gmra.mxu0 %v940
      %v2091 = vpop.f32.mrf.mxu0
      %v2092 = vadd.f32 %v1931, %v2091
      %v2093 = vpop.f32.mrf.mxu0
      %v2094 = vpop.f32.mrf.mxu0
      %v2095 = vadd.f32 %v1934, %v2094
      %v2096 = vpop.f32.mrf.mxu0
      %2097 = vmatprep.mubr.bf16.mxu0 %v949
      %2098 = vmatmul.mubr.bf16.gmra.mxu0 %v948
      %v2099 = vpop.f32.mrf.mxu0
      %v2100 = vadd.f32 %v1939, %v2099
      %v2101 = vpop.f32.mrf.mxu0
      %v2102 = vpop.f32.mrf.mxu0
      %v2103 = vadd.f32 %v1942, %v2102
      %v2104 = vpop.f32.mrf.mxu0
      %2105 = vmatprep.mubr.bf16.mxu0 %v957
      %2106 = vmatmul.mubr.bf16.gmra.mxu0 %v956
      %v2107 = vpop.f32.mrf.mxu0
      %v2108 = vadd.f32 %v1947, %v2107
      %v2109 = vpop.f32.mrf.mxu0
      %v2110 = vpop.f32.mrf.mxu0
      %v2111 = vadd.f32 %v1950, %v2110
      %v2112 = vpop.f32.mrf.mxu0
      %2113 = vmatprep.mubr.bf16.mxu0 %v965
      %2114 = vmatmul.mubr.bf16.gmra.mxu0 %v964
      %v2115 = vpop.f32.mrf.mxu0
      %v2116 = vadd.f32 %v1955, %v2115
      %v2117 = vpop.f32.mrf.mxu0
      %v2118 = vpop.f32.mrf.mxu0
      %v2119 = vadd.f32 %v1958, %v2118
      %v2120 = vpop.f32.mrf.mxu0
      %2121 = vmatprep.mubr.bf16.mxu0 %v973
      %2122 = vmatmul.mubr.bf16.gmra.mxu0 %v972
      %v2123 = vpop.f32.mrf.mxu0
      %v2124 = vadd.f32 %v1963, %v2123
      %v2125 = vpop.f32.mrf.mxu0
      %v2126 = vpop.f32.mrf.mxu0
      %v2127 = vadd.f32 %v1966, %v2126
      %v2128 = vpop.f32.mrf.mxu0
      %2129 = vmatprep.mubr.bf16.mxu0 %v981
      %2130 = vmatmul.mubr.bf16.gmra.mxu0 %v980
      %v2131 = vpop.f32.mrf.mxu0
      %v2132 = vadd.f32 %v1971, %v2131
      %v2133 = vpop.f32.mrf.mxu0
      %v2134 = vpop.f32.mrf.mxu0
      %v2135 = vadd.f32 %v1974, %v2134
      %v2136 = vpop.f32.mrf.mxu0
      %2137 = vmatprep.mubr.bf16.mxu0 %v989
      %2138 = vmatmul.mubr.bf16.gmra.mxu0 %v988
      %v2139 = vpop.f32.mrf.mxu0
      %v2140 = vadd.f32 %v1979, %v2139
      %v2141 = vpop.f32.mrf.mxu0
      %v2142 = vpop.f32.mrf.mxu0
      %v2143 = vadd.f32 %v1982, %v2142
      %v2144 = vpop.f32.mrf.mxu0
      %2145 = vmatprep.mubr.bf16.mxu0 %v997
      %2146 = vmatmul.mubr.bf16.gmra.mxu0 %v996
      %v2147 = vpop.f32.mrf.mxu0
      %v2148 = vadd.f32 %v1987, %v2147
      %v2149 = vpop.f32.mrf.mxu0
      %v2150 = vpop.f32.mrf.mxu0
      %v2151 = vadd.f32 %v1990, %v2150
      %v2152 = vpop.f32.mrf.mxu0
      %2153 = vmatprep.mubr.bf16.mxu0 %v1005
      %2154 = vmatmul.mubr.bf16.gmra.mxu0 %v1004
      %v2155 = vpop.f32.mrf.mxu0
      %v2156 = vadd.f32 %v1995, %v2155
      %v2157 = vpop.f32.mrf.mxu0
      %v2158 = vpop.f32.mrf.mxu0
      %v2159 = vadd.f32 %v1998, %v2158
      %v2160 = vpop.f32.mrf.mxu0
      %2161 = vmatprep.mubr.bf16.mxu0 %v1013
      %2162 = vmatmul.mubr.bf16.gmra.mxu0 %v1012
      %v2163 = vpop.f32.mrf.mxu0
      %v2164 = vadd.f32 %v2003, %v2163
      %v2165 = vpop.f32.mrf.mxu0
      %v2166 = vpop.f32.mrf.mxu0
      %v2167 = vadd.f32 %v2006, %v2166
      %v2168 = vpop.f32.mrf.mxu0
      %2169 = vmatprep.mubr.bf16.mxu0 %v1021
      %2170 = vmatmul.mubr.bf16.gmra.mxu0 %v1020
      %v2171 = vpop.f32.mrf.mxu0
      %v2172 = vadd.f32 %v2011, %v2171
      %v2173 = vpop.f32.mrf.mxu0
      %v2174 = vpop.f32.mrf.mxu0
      %v2175 = vadd.f32 %v2014, %v2174
      %v2176 = vpop.f32.mrf.mxu0
      %2177 = vmatprep.mubr.bf16.mxu0 %v1029
      %2178 = vmatmul.mubr.bf16.gmra.mxu0 %v1028
      %v2179 = vpop.f32.mrf.mxu0
      %v2180 = vadd.f32 %v2019, %v2179
      %v2181 = vpop.f32.mrf.mxu0
      %v2182 = vpop.f32.mrf.mxu0
      %v2183 = vadd.f32 %v2022, %v2182
      %v2184 = vpop.f32.mrf.mxu0
      %2185 = vmatprep.mubr.bf16.mxu0 %v1037
      %2186 = vmatmul.mubr.bf16.gmra.mxu0 %v1036
      %v2187 = vpop.f32.mrf.mxu0
      %v2188 = vadd.f32 %v2027, %v2187
      %v2189 = vpop.f32.mrf.mxu0
      %v2190 = vpop.f32.mrf.mxu0
      %v2191 = vadd.f32 %v2030, %v2190
      %v2192 = vpop.f32.mrf.mxu0
      %2193 = vdwg.mxu0
      %v2194 = vld [vmem:[%s256] sm:$0x1]
      %v2196 = vlaneseq
      %v2197 = vshrl.u32 %v2196, 7
      %v2198 = vsub.s32 0, %v2197
      %v2199 = vrot.slane %v2194, %v2198
      %v2201 = vmul.f32 %v2068, %v2199
      %v2202 = vmul.f32 %v2071, %v2199
      %v2203 = vmul.f32 %v2076, %v2199
      %v2204 = vmul.f32 %v2079, %v2199
      %v2205 = vmul.f32 %v2084, %v2199
      %v2206 = vmul.f32 %v2087, %v2199
      %v2207 = vmul.f32 %v2092, %v2199
      %v2208 = vmul.f32 %v2095, %v2199
      %v2209 = vmul.f32 %v2100, %v2199
      %v2210 = vmul.f32 %v2103, %v2199
      %v2211 = vmul.f32 %v2108, %v2199
      %v2212 = vmul.f32 %v2111, %v2199
      %v2213 = vmul.f32 %v2116, %v2199
      %v2214 = vmul.f32 %v2119, %v2199
      %v2215 = vmul.f32 %v2124, %v2199
      %v2216 = vmul.f32 %v2127, %v2199
      %v2217 = vmul.f32 %v2132, %v2199
      %v2218 = vmul.f32 %v2135, %v2199
      %v2219 = vmul.f32 %v2140, %v2199
      %v2220 = vmul.f32 %v2143, %v2199
      %v2221 = vmul.f32 %v2148, %v2199
      %v2222 = vmul.f32 %v2151, %v2199
      %v2223 = vmul.f32 %v2156, %v2199
      %v2224 = vmul.f32 %v2159, %v2199
      %v2225 = vmul.f32 %v2164, %v2199
      %v2226 = vmul.f32 %v2167, %v2199
      %v2227 = vmul.f32 %v2172, %v2199
      %v2228 = vmul.f32 %v2175, %v2199
      %v2229 = vmul.f32 %v2180, %v2199
      %v2230 = vmul.f32 %v2183, %v2199
      %v2231 = vmul.f32 %v2188, %v2199
      %v2232 = vmul.f32 %v2191, %v2199
      %v2233 = vld [vmem:[%s259] sm:$0x1]
      %v2235 = vlaneseq
      %v2236 = vshrl.u32 %v2235, 7
      %v2237 = vsub.s32 0, %v2236
      %v2238 = vrot.slane %v2233, %v2237
      %v2240 = vadd.f32 %v2201, %v2238
      %v2241 = vadd.f32 %v2202, %v2238
      %v2242 = vadd.f32 %v2203, %v2238
      %v2243 = vadd.f32 %v2204, %v2238
      %v2244 = vadd.f32 %v2205, %v2238
      %v2245 = vadd.f32 %v2206, %v2238
      %v2246 = vadd.f32 %v2207, %v2238
      %v2247 = vadd.f32 %v2208, %v2238
      %v2248 = vadd.f32 %v2209, %v2238
      %v2249 = vadd.f32 %v2210, %v2238
      %v2250 = vadd.f32 %v2211, %v2238
      %v2251 = vadd.f32 %v2212, %v2238
      %v2252 = vadd.f32 %v2213, %v2238
      %v2253 = vadd.f32 %v2214, %v2238
      %v2254 = vadd.f32 %v2215, %v2238
      %v2255 = vadd.f32 %v2216, %v2238
      %v2256 = vadd.f32 %v2217, %v2238
      %v2257 = vadd.f32 %v2218, %v2238
      %v2258 = vadd.f32 %v2219, %v2238
      %v2259 = vadd.f32 %v2220, %v2238
      %v2260 = vadd.f32 %v2221, %v2238
      %v2261 = vadd.f32 %v2222, %v2238
      %v2262 = vadd.f32 %v2223, %v2238
      %v2263 = vadd.f32 %v2224, %v2238
      %v2264 = vadd.f32 %v2225, %v2238
      %v2265 = vadd.f32 %v2226, %v2238
      %v2266 = vadd.f32 %v2227, %v2238
      %v2267 = vadd.f32 %v2228, %v2238
      %v2268 = vadd.f32 %v2229, %v2238
      %v2269 = vadd.f32 %v2230, %v2238
      %v2270 = vadd.f32 %v2231, %v2238
      %v2271 = vadd.f32 %v2232, %v2238
      %v2272 = vmax.f32 %v2240, 0.0
      %v2273 = vmax.f32 %v2241, 0.0
      %v2274 = vmax.f32 %v2242, 0.0
      %v2275 = vmax.f32 %v2243, 0.0
      %v2276 = vmax.f32 %v2244, 0.0
      %v2277 = vmax.f32 %v2245, 0.0
      %v2278 = vmax.f32 %v2246, 0.0
      %v2279 = vmax.f32 %v2247, 0.0
      %v2280 = vmax.f32 %v2248, 0.0
      %v2281 = vmax.f32 %v2249, 0.0
      %v2282 = vmax.f32 %v2250, 0.0
      %v2283 = vmax.f32 %v2251, 0.0
      %v2284 = vmax.f32 %v2252, 0.0
      %v2285 = vmax.f32 %v2253, 0.0
      %v2286 = vmax.f32 %v2254, 0.0
      %v2287 = vmax.f32 %v2255, 0.0
      %v2288 = vmax.f32 %v2256, 0.0
      %v2289 = vmax.f32 %v2257, 0.0
      %v2290 = vmax.f32 %v2258, 0.0
      %v2291 = vmax.f32 %v2259, 0.0
      %v2292 = vmax.f32 %v2260, 0.0
      %v2293 = vmax.f32 %v2261, 0.0
      %v2294 = vmax.f32 %v2262, 0.0
      %v2295 = vmax.f32 %v2263, 0.0
      %v2296 = vmax.f32 %v2264, 0.0
      %v2297 = vmax.f32 %v2265, 0.0
      %v2298 = vmax.f32 %v2266, 0.0
      %v2299 = vmax.f32 %v2267, 0.0
      %v2300 = vmax.f32 %v2268, 0.0
      %v2301 = vmax.f32 %v2269, 0.0
      %v2302 = vmax.f32 %v2270, 0.0
      %v2303 = vmax.f32 %v2271, 0.0
      %v2304 = vpack.c.bf16 %v2273, %v2272
      %v2305 = vpack.c.bf16 %v2275, %v2274
      %v2306 = vpack.c.bf16 %v2277, %v2276
      %v2307 = vpack.c.bf16 %v2279, %v2278
      %v2308 = vpack.c.bf16 %v2281, %v2280
      %v2309 = vpack.c.bf16 %v2283, %v2282
      %v2310 = vpack.c.bf16 %v2285, %v2284
      %v2311 = vpack.c.bf16 %v2287, %v2286
      %v2312 = vpack.c.bf16 %v2289, %v2288
      %v2313 = vpack.c.bf16 %v2291, %v2290
      %v2314 = vpack.c.bf16 %v2293, %v2292
      %v2315 = vpack.c.bf16 %v2295, %v2294
      %v2316 = vpack.c.bf16 %v2297, %v2296
      %v2317 = vpack.c.bf16 %v2299, %v2298
      %v2318 = vpack.c.bf16 %v2301, %v2300
      %v2319 = vpack.c.bf16 %v2303, %v2302
      %v2336 = vunpack.c.l.b16 %v2304
      %v2337 = vunpack.c.h.b16 %v2304
      %v2338 = vunpack.c.l.b16 %v2305
      %v2339 = vunpack.c.h.b16 %v2305
      %v2340 = vunpack.c.l.b16 %v2306
      %v2341 = vunpack.c.h.b16 %v2306
      %v2342 = vunpack.c.l.b16 %v2307
      %v2343 = vunpack.c.h.b16 %v2307
      %v2344 = vunpack.c.l.b16 %v2308
      %v2345 = vunpack.c.h.b16 %v2308
      %v2346 = vunpack.c.l.b16 %v2309
      %v2347 = vunpack.c.h.b16 %v2309
      %v2348 = vunpack.c.l.b16 %v2310
      %v2349 = vunpack.c.h.b16 %v2310
      %v2350 = vunpack.c.l.b16 %v2311
      %v2351 = vunpack.c.h.b16 %v2311
      %v2352 = vunpack.c.l.b16 %v2312
      %v2353 = vunpack.c.h.b16 %v2312
      %v2354 = vunpack.c.l.b16 %v2313
      %v2355 = vunpack.c.h.b16 %v2313
      %v2356 = vunpack.c.l.b16 %v2314
      %v2357 = vunpack.c.h.b16 %v2314
      %v2358 = vunpack.c.l.b16 %v2315
      %v2359 = vunpack.c.h.b16 %v2315
      %v2360 = vunpack.c.l.b16 %v2316
      %v2361 = vunpack.c.h.b16 %v2316
      %v2362 = vunpack.c.l.b16 %v2317
      %v2363 = vunpack.c.h.b16 %v2317
      %v2364 = vunpack.c.l.b16 %v2318
      %v2365 = vunpack.c.h.b16 %v2318
      %v2366 = vunpack.c.l.b16 %v2319
      %v2367 = vunpack.c.h.b16 %v2319
      %v2368 = vpack.c.b16 %v2336, %v2336
      %v2369 = vpack.c.b16 %v2337, %v2337
      %v2370 = vpack.c.b16 %v2338, %v2338
      %v2371 = vpack.c.b16 %v2339, %v2339
      %v2372 = vpack.c.b16 %v2340, %v2340
      %v2373 = vpack.c.b16 %v2341, %v2341
      %v2374 = vpack.c.b16 %v2342, %v2342
      %v2375 = vpack.c.b16 %v2343, %v2343
      %v2376 = vpack.c.b16 %v2344, %v2344
      %v2377 = vpack.c.b16 %v2345, %v2345
      %v2378 = vpack.c.b16 %v2346, %v2346
      %v2379 = vpack.c.b16 %v2347, %v2347
      %v2380 = vpack.c.b16 %v2348, %v2348
      %v2381 = vpack.c.b16 %v2349, %v2349
      %v2382 = vpack.c.b16 %v2350, %v2350
      %v2383 = vpack.c.b16 %v2351, %v2351
      %v2384 = vpack.c.b16 %v2352, %v2352
      %v2385 = vpack.c.b16 %v2353, %v2353
      %v2386 = vpack.c.b16 %v2354, %v2354
      %v2387 = vpack.c.b16 %v2355, %v2355
      %v2388 = vpack.c.b16 %v2356, %v2356
      %v2389 = vpack.c.b16 %v2357, %v2357
      %v2390 = vpack.c.b16 %v2358, %v2358
      %v2391 = vpack.c.b16 %v2359, %v2359
      %v2392 = vpack.c.b16 %v2360, %v2360
      %v2393 = vpack.c.b16 %v2361, %v2361
      %v2394 = vpack.c.b16 %v2362, %v2362
      %v2395 = vpack.c.b16 %v2363, %v2363
      %v2396 = vpack.c.b16 %v2364, %v2364
      %v2397 = vpack.c.b16 %v2365, %v2365
      %v2398 = vpack.c.b16 %v2366, %v2366
      %v2399 = vpack.c.b16 %v2367, %v2367
      %vm2432 = vcmask 519168
      %2433 = vst.msk [vmem:[%s267] sm:$0xf] %vm2432, %v2368
      %2434 = vst.msk [vmem:[%s267 + $0x4] sm:$0xf] %vm2432, %v2369
      %2435 = vst.msk [vmem:[%s267 + $0x8] sm:$0xf] %vm2432, %v2370
      %2436 = vst.msk [vmem:[%s267 + $0xc] sm:$0xf] %vm2432, %v2371
      %2437 = vst.msk [vmem:[%s267 + $0x10] sm:$0xf] %vm2432, %v2372
      %2438 = vst.msk [vmem:[%s267 + $0x14] sm:$0xf] %vm2432, %v2373
      %2439 = vst.msk [vmem:[%s267 + $0x18] sm:$0xf] %vm2432, %v2374
      %2440 = vst.msk [vmem:[%s267 + $0x1c] sm:$0xf] %vm2432, %v2375
      %2441 = vst.msk [vmem:[%s267 + $0x20] sm:$0xf] %vm2432, %v2376
      %2442 = vst.msk [vmem:[%s267 + $0x24] sm:$0xf] %vm2432, %v2377
      %2443 = vst.msk [vmem:[%s267 + $0x28] sm:$0xf] %vm2432, %v2378
      %2444 = vst.msk [vmem:[%s267 + $0x2c] sm:$0xf] %vm2432, %v2379
      %2445 = vst.msk [vmem:[%s267 + $0x30] sm:$0xf] %vm2432, %v2380
      %2446 = vst.msk [vmem:[%s267 + $0x34] sm:$0xf] %vm2432, %v2381
      %2447 = vst.msk [vmem:[%s267 + $0x38] sm:$0xf] %vm2432, %v2382
      %2448 = vst.msk [vmem:[%s267 + $0x3c] sm:$0xf] %vm2432, %v2383
      %2449 = vst.msk [vmem:[%s267 + $0x40] sm:$0xf] %vm2432, %v2384
      %2450 = vst.msk [vmem:[%s267 + $0x44] sm:$0xf] %vm2432, %v2385
      %2451 = vst.msk [vmem:[%s267 + $0x48] sm:$0xf] %vm2432, %v2386
      %2452 = vst.msk [vmem:[%s267 + $0x4c] sm:$0xf] %vm2432, %v2387
      %2453 = vst.msk [vmem:[%s267 + $0x50] sm:$0xf] %vm2432, %v2388
      %2454 = vst.msk [vmem:[%s267 + $0x54] sm:$0xf] %vm2432, %v2389
      %2455 = vst.msk [vmem:[%s267 + $0x58] sm:$0xf] %vm2432, %v2390
      %2456 = vst.msk [vmem:[%s267 + $0x5c] sm:$0xf] %vm2432, %v2391
      %2457 = vst.msk [vmem:[%s267 + $0x60] sm:$0xf] %vm2432, %v2392
      %2458 = vst.msk [vmem:[%s267 + $0x64] sm:$0xf] %vm2432, %v2393
      %2459 = vst.msk [vmem:[%s267 + $0x68] sm:$0xf] %vm2432, %v2394
      %2460 = vst.msk [vmem:[%s267 + $0x6c] sm:$0xf] %vm2432, %v2395
      %2461 = vst.msk [vmem:[%s267 + $0x70] sm:$0xf] %vm2432, %v2396
      %2462 = vst.msk [vmem:[%s267 + $0x74] sm:$0xf] %vm2432, %v2397
      %2463 = vst.msk [vmem:[%s267 + $0x78] sm:$0xf] %vm2432, %v2398
      %2464 = vst.msk [vmem:[%s267 + $0x7c] sm:$0xf] %vm2432, %v2399
      %s2465 = smul.u32 32, %s19
      %p2466 = scmp.lt.s32.totalorder %s2465, 63
      %s2467 = scalar_select %p2466, %s2465, 63
      %p2468 = scmp.lt.s32.totalorder %s20, 0
      %s2469 = scalar_select %p2468, %s20, 0
      %s2470 = sadd.s32 %s2469, %s2467
      %s2471 = smul.addr %s2470, 4
      %s2472 = scalar_lea.vmem %s4, %s2471
      // Predicated region
      $region37: #{_lambda_.9} parent=35 // pred_check
        %p2473 = pneg %p151
      $region38: #{_lambda_.9} parent=35 // pred_check_branch
        %2475 = sbr.rel (%p2473) target = $region40
      $region39: #{_lambda_.9} parent=35 // pred_region
        %s2476 = smul.u32 32, %s19
      $region40: #{_lambda_.9} parent=35 // pred_fallthru
        _
    $region36: #{_lambda_.9} parent=5 // pred_fallthru
      _
    %p2477 = scmp.le.s32.totalorder 2, %s10
    // Predicated region
    $region41: #{_lambda_.9} parent=5 // pred_check
      %p2478 = pneg %p2477
    $region42: #{_lambda_.9} parent=5 // pred_check_branch
      %2480 = sbr.rel (%p2478) target = $region44
    $region43: #{_lambda_.9} parent=5 // pred_region
      %s2481 = ssub.s32 %s10, 2
      // Predicated region
      $region45: #{_lambda_.9} parent=43 // pred_check
        %p2482 = pneg %p157
      $region46: #{_lambda_.9} parent=43 // pred_check_branch
        %2484 = sbr.rel (%p2482) target = $region48
      $region47: #{_lambda_.9} parent=43 // pred_region
        %s2485 = smul.u32 32, %s21
        %p2486 = scmp.lt.s32.totalorder %s2485, 63
        %s2487 = scalar_select %p2486, %s2485, 63
        %p2488 = scmp.lt.s32.totalorder %s22, 0
        %s2489 = scalar_select %p2488, %s22, 0
        %s2490 = sadd.s32 %s2489, %s2487
        %s2491 = smul.addr %s2490, 4
        %s2492 = scalar_lea.vmem %s4, %s2491
      $region48: #{_lambda_.9} parent=43 // pred_fallthru
        _
    $region44: #{_lambda_.9} parent=5 // pred_fallthru
      _
  $region6: #{_lambda_.9} parent=0 // loop_footer
    %s14 = sadd.s32 1, %s10
  $region7: #{_lambda_.9} parent=0 // loop_footer_branch
    %9 = sbr.rel target = $region3
  $region8: #{_lambda_.9} parent=0 // loop_exit
    _

// kernel: _lambda_.10
$region0: #{_lambda_.10}
  #allocation0 [shape = 'u32[]', space=smem, size = 0x4, offset = 0x4, fixed_abs, tag = 'smem constant byte address 0x4 - core index']
  #allocation1 [shape = 'u32[144,128]{1,0:T(1,128)}', space=vmem, size = 0x12000, scoped, tag = 'internal scratch']
  %s0 = inlined_call_operand.vmem [shape: bf16[128,1024], index: 0, kind: input, shape index: {}]
  %s1 = inlined_call_operand.vmem [shape: bf16[1024,128], index: 1, kind: input, shape index: {}]
  %s2 = inlined_call_operand.vmem [shape: f32[1,128], index: 2, kind: input, shape index: {}]
  %s3 = inlined_call_operand.vmem [shape: f32[1,128], index: 3, kind: input, shape index: {}]
  %s4 = inlined_call_operand.vmem [shape: bf16[128,128], index: 4, kind: output, shape index: {}]
  %s5 = sld [smem:[#allocation0]]
  $region26: #{_lambda_.10} parent=0
    _
  %s7 = ssub.s32 1, %s5
  %s8 = scalar_select 0, %s7, %s5
  // Predicated region
  $region2: #{_lambda_.10} parent=0 // pred_check
    _
  $region3: #{_lambda_.10} parent=0 // pred_check_branch
    %10 = sbr.rel (0) target = $region5
  $region4: #{_lambda_.10} parent=0 // pred_region
    _
  $region5: #{_lambda_.10} parent=0 // pred_fallthru
    _
  // Predicated region
  $region6: #{_lambda_.10} parent=0 // pred_check
    _
  $region7: #{_lambda_.10} parent=0 // pred_check_branch
    %12 = sbr.rel (0) target = $region9
  $region8: #{_lambda_.10} parent=0 // pred_region
    _
  $region9: #{_lambda_.10} parent=0 // pred_fallthru
    _
  // Predicated region
  $region10: #{_lambda_.10} parent=0 // pred_check
    _
  $region11: #{_lambda_.10} parent=0 // pred_check_branch
    %14 = sbr.rel (0) target = $region13
  $region12: #{_lambda_.10} parent=0 // pred_region
    _
  $region13: #{_lambda_.10} parent=0 // pred_fallthru
    _
  // Predicated region
  $region14: #{_lambda_.10} parent=0 // pred_check
    _
  $region15: #{_lambda_.10} parent=0 // pred_check_branch
    %16 = sbr.rel (0) target = $region17
  $region16: #{_lambda_.10} parent=0 // pred_region
    _
  $region17: #{_lambda_.10} parent=0 // pred_fallthru
    _
  %v18 = vld [vmem:[%s0] sm:$0xff]
  %v19 = vld [vmem:[%s0 + $0x8] sm:$0xff]
  %v20 = vld [vmem:[%s0 + $0x10] sm:$0xff]
  %v21 = vld [vmem:[%s0 + $0x18] sm:$0xff]
  %v22 = vld [vmem:[%s0 + $0x20] sm:$0xff]
  %v23 = vld [vmem:[%s0 + $0x28] sm:$0xff]
  %v24 = vld [vmem:[%s0 + $0x30] sm:$0xff]
  %v25 = vld [vmem:[%s0 + $0x38] sm:$0xff]
  %v26 = vld [vmem:[%s0 + $0x40] sm:$0xff]
  %v27 = vld [vmem:[%s0 + $0x48] sm:$0xff]
  %v28 = vld [vmem:[%s0 + $0x50] sm:$0xff]
  %v29 = vld [vmem:[%s0 + $0x58] sm:$0xff]
  %v30 = vld [vmem:[%s0 + $0x60] sm:$0xff]
  %v31 = vld [vmem:[%s0 + $0x68] sm:$0xff]
  %v32 = vld [vmem:[%s0 + $0x70] sm:$0xff]
  %v33 = vld [vmem:[%s0 + $0x78] sm:$0xff]
  %v34 = vld [vmem:[%s0 + $0x80] sm:$0xff]
  %v35 = vld [vmem:[%s0 + $0x88] sm:$0xff]
  %v36 = vld [vmem:[%s0 + $0x90] sm:$0xff]
  %v37 = vld [vmem:[%s0 + $0x98] sm:$0xff]
  %v38 = vld [vmem:[%s0 + $0xa0] sm:$0xff]
  %v39 = vld [vmem:[%s0 + $0xa8] sm:$0xff]
  %v40 = vld [vmem:[%s0 + $0xb0] sm:$0xff]
  %v41 = vld [vmem:[%s0 + $0xb8] sm:$0xff]
  %v42 = vld [vmem:[%s0 + $0xc0] sm:$0xff]
  %v43 = vld [vmem:[%s0 + $0xc8] sm:$0xff]
  %v44 = vld [vmem:[%s0 + $0xd0] sm:$0xff]
  %v45 = vld [vmem:[%s0 + $0xd8] sm:$0xff]
  %v46 = vld [vmem:[%s0 + $0xe0] sm:$0xff]
  %v47 = vld [vmem:[%s0 + $0xe8] sm:$0xff]
  %v48 = vld [vmem:[%s0 + $0xf0] sm:$0xff]
  %v49 = vld [vmem:[%s0 + $0xf8] sm:$0xff]
  %v50 = vld [vmem:[%s0 + $0x100] sm:$0xff]
  %v51 = vld [vmem:[%s0 + $0x108] sm:$0xff]
  %v52 = vld [vmem:[%s0 + $0x110] sm:$0xff]
  %v53 = vld [vmem:[%s0 + $0x118] sm:$0xff]
  %v54 = vld [vmem:[%s0 + $0x120] sm:$0xff]
  %v55 = vld [vmem:[%s0 + $0x128] sm:$0xff]
  %v56 = vld [vmem:[%s0 + $0x130] sm:$0xff]
  %v57 = vld [vmem:[%s0 + $0x138] sm:$0xff]
  %v58 = vld [vmem:[%s0 + $0x140] sm:$0xff]
  %v59 = vld [vmem:[%s0 + $0x148] sm:$0xff]
  %v60 = vld [vmem:[%s0 + $0x150] sm:$0xff]
  %v61 = vld [vmem:[%s0 + $0x158] sm:$0xff]
  %v62 = vld [vmem:[%s0 + $0x160] sm:$0xff]
  %v63 = vld [vmem:[%s0 + $0x168] sm:$0xff]
  %v64 = vld [vmem:[%s0 + $0x170] sm:$0xff]
  %v65 = vld [vmem:[%s0 + $0x178] sm:$0xff]
  %v66 = vld [vmem:[%s0 + $0x180] sm:$0xff]
  %v67 = vld [vmem:[%s0 + $0x188] sm:$0xff]
  %v68 = vld [vmem:[%s0 + $0x190] sm:$0xff]
  %v69 = vld [vmem:[%s0 + $0x198] sm:$0xff]
  %v70 = vld [vmem:[%s0 + $0x1a0] sm:$0xff]
  %v71 = vld [vmem:[%s0 + $0x1a8] sm:$0xff]
  %v72 = vld [vmem:[%s0 + $0x1b0] sm:$0xff]
  %v73 = vld [vmem:[%s0 + $0x1b8] sm:$0xff]
  %v74 = vld [vmem:[%s0 + $0x1c0] sm:$0xff]
  %v75 = vld [vmem:[%s0 + $0x1c8] sm:$0xff]
  %v76 = vld [vmem:[%s0 + $0x1d0] sm:$0xff]
  %v77 = vld [vmem:[%s0 + $0x1d8] sm:$0xff]
  %v78 = vld [vmem:[%s0 + $0x1e0] sm:$0xff]
  %v79 = vld [vmem:[%s0 + $0x1e8] sm:$0xff]
  %v80 = vld [vmem:[%s0 + $0x1f0] sm:$0xff]
  %v81 = vld [vmem:[%s0 + $0x1f8] sm:$0xff]
  %v82 = vld [vmem:[%s1] sm:$0xf]
  %v83 = vld [vmem:[%s1 + $0x4] sm:$0xf]
  %v84 = vld [vmem:[%s1 + $0x8] sm:$0xf]
  %v85 = vld [vmem:[%s1 + $0xc] sm:$0xf]
  %v86 = vld [vmem:[%s1 + $0x10] sm:$0xf]
  %v87 = vld [vmem:[%s1 + $0x14] sm:$0xf]
  %v88 = vld [vmem:[%s1 + $0x18] sm:$0xf]
  %v89 = vld [vmem:[%s1 + $0x1c] sm:$0xf]
  %v90 = vld [vmem:[%s1 + $0x20] sm:$0xf]
  %v91 = vld [vmem:[%s1 + $0x24] sm:$0xf]
  %v92 = vld [vmem:[%s1 + $0x28] sm:$0xf]
  %v93 = vld [vmem:[%s1 + $0x2c] sm:$0xf]
  %v94 = vld [vmem:[%s1 + $0x30] sm:$0xf]
  %v95 = vld [vmem:[%s1 + $0x34] sm:$0xf]
  %v96 = vld [vmem:[%s1 + $0x38] sm:$0xf]
  %v97 = vld [vmem:[%s1 + $0x3c] sm:$0xf]
  %v98 = vld [vmem:[%s1 + $0x40] sm:$0xf]
  %v99 = vld [vmem:[%s1 + $0x44] sm:$0xf]
  %v100 = vld [vmem:[%s1 + $0x48] sm:$0xf]
  %v101 = vld [vmem:[%s1 + $0x4c] sm:$0xf]
  %v102 = vld [vmem:[%s1 + $0x50] sm:$0xf]
  %v103 = vld [vmem:[%s1 + $0x54] sm:$0xf]
  %v104 = vld [vmem:[%s1 + $0x58] sm:$0xf]
  %v105 = vld [vmem:[%s1 + $0x5c] sm:$0xf]
  %v106 = vld [vmem:[%s1 + $0x60] sm:$0xf]
  %v107 = vld [vmem:[%s1 + $0x64] sm:$0xf]
  %v108 = vld [vmem:[%s1 + $0x68] sm:$0xf]
  %v109 = vld [vmem:[%s1 + $0x6c] sm:$0xf]
  %v110 = vld [vmem:[%s1 + $0x70] sm:$0xf]
  %v111 = vld [vmem:[%s1 + $0x74] sm:$0xf]
  %v112 = vld [vmem:[%s1 + $0x78] sm:$0xf]
  %v113 = vld [vmem:[%s1 + $0x7c] sm:$0xf]
  %v114 = vld [vmem:[%s1 + $0x80] sm:$0xf]
  %v115 = vld [vmem:[%s1 + $0x84] sm:$0xf]
  %v116 = vld [vmem:[%s1 + $0x88] sm:$0xf]
  %v117 = vld [vmem:[%s1 + $0x8c] sm:$0xf]
  %v118 = vld [vmem:[%s1 + $0x90] sm:$0xf]
  %v119 = vld [vmem:[%s1 + $0x94] sm:$0xf]
  %v120 = vld [vmem:[%s1 + $0x98] sm:$0xf]
  %v121 = vld [vmem:[%s1 + $0x9c] sm:$0xf]
  %v122 = vld [vmem:[%s1 + $0xa0] sm:$0xf]
  %v123 = vld [vmem:[%s1 + $0xa4] sm:$0xf]
  %v124 = vld [vmem:[%s1 + $0xa8] sm:$0xf]
  %v125 = vld [vmem:[%s1 + $0xac] sm:$0xf]
  %v126 = vld [vmem:[%s1 + $0xb0] sm:$0xf]
  %v127 = vld [vmem:[%s1 + $0xb4] sm:$0xf]
  %v128 = vld [vmem:[%s1 + $0xb8] sm:$0xf]
  %v129 = vld [vmem:[%s1 + $0xbc] sm:$0xf]
  %v130 = vld [vmem:[%s1 + $0xc0] sm:$0xf]
  %v131 = vld [vmem:[%s1 + $0xc4] sm:$0xf]
  %v132 = vld [vmem:[%s1 + $0xc8] sm:$0xf]
  %v133 = vld [vmem:[%s1 + $0xcc] sm:$0xf]
  %v134 = vld [vmem:[%s1 + $0xd0] sm:$0xf]
  %v135 = vld [vmem:[%s1 + $0xd4] sm:$0xf]
  %v136 = vld [vmem:[%s1 + $0xd8] sm:$0xf]
  %v137 = vld [vmem:[%s1 + $0xdc] sm:$0xf]
  %v138 = vld [vmem:[%s1 + $0xe0] sm:$0xf]
  %v139 = vld [vmem:[%s1 + $0xe4] sm:$0xf]
  %v140 = vld [vmem:[%s1 + $0xe8] sm:$0xf]
  %v141 = vld [vmem:[%s1 + $0xec] sm:$0xf]
  %v142 = vld [vmem:[%s1 + $0xf0] sm:$0xf]
  %v143 = vld [vmem:[%s1 + $0xf4] sm:$0xf]
  %v144 = vld [vmem:[%s1 + $0xf8] sm:$0xf]
  %v145 = vld [vmem:[%s1 + $0xfc] sm:$0xf]
  %v146 = vld [vmem:[%s1 + $0x100] sm:$0xf]
  %v147 = vld [vmem:[%s1 + $0x104] sm:$0xf]
  %v148 = vld [vmem:[%s1 + $0x108] sm:$0xf]
  %v149 = vld [vmem:[%s1 + $0x10c] sm:$0xf]
  %v150 = vld [vmem:[%s1 + $0x110] sm:$0xf]
  %v151 = vld [vmem:[%s1 + $0x114] sm:$0xf]
  %v152 = vld [vmem:[%s1 + $0x118] sm:$0xf]
  %v153 = vld [vmem:[%s1 + $0x11c] sm:$0xf]
  %v154 = vld [vmem:[%s1 + $0x120] sm:$0xf]
  %v155 = vld [vmem:[%s1 + $0x124] sm:$0xf]
  %v156 = vld [vmem:[%s1 + $0x128] sm:$0xf]
  %v157 = vld [vmem:[%s1 + $0x12c] sm:$0xf]
  %v158 = vld [vmem:[%s1 + $0x130] sm:$0xf]
  %v159 = vld [vmem:[%s1 + $0x134] sm:$0xf]
  %v160 = vld [vmem:[%s1 + $0x138] sm:$0xf]
  %v161 = vld [vmem:[%s1 + $0x13c] sm:$0xf]
  %v162 = vld [vmem:[%s1 + $0x140] sm:$0xf]
  %v163 = vld [vmem:[%s1 + $0x144] sm:$0xf]
  %v164 = vld [vmem:[%s1 + $0x148] sm:$0xf]
  %v165 = vld [vmem:[%s1 + $0x14c] sm:$0xf]
  %v166 = vld [vmem:[%s1 + $0x150] sm:$0xf]
  %v167 = vld [vmem:[%s1 + $0x154] sm:$0xf]
  %v168 = vld [vmem:[%s1 + $0x158] sm:$0xf]
  %v169 = vld [vmem:[%s1 + $0x15c] sm:$0xf]
  %v170 = vld [vmem:[%s1 + $0x160] sm:$0xf]
  %v171 = vld [vmem:[%s1 + $0x164] sm:$0xf]
  %v172 = vld [vmem:[%s1 + $0x168] sm:$0xf]
  %v173 = vld [vmem:[%s1 + $0x16c] sm:$0xf]
  %v174 = vld [vmem:[%s1 + $0x170] sm:$0xf]
  %v175 = vld [vmem:[%s1 + $0x174] sm:$0xf]
  %v176 = vld [vmem:[%s1 + $0x178] sm:$0xf]
  %v177 = vld [vmem:[%s1 + $0x17c] sm:$0xf]
  %v178 = vld [vmem:[%s1 + $0x180] sm:$0xf]
  %v179 = vld [vmem:[%s1 + $0x184] sm:$0xf]
  %v180 = vld [vmem:[%s1 + $0x188] sm:$0xf]
  %v181 = vld [vmem:[%s1 + $0x18c] sm:$0xf]
  %v182 = vld [vmem:[%s1 + $0x190] sm:$0xf]
  %v183 = vld [vmem:[%s1 + $0x194] sm:$0xf]
  %v184 = vld [vmem:[%s1 + $0x198] sm:$0xf]
  %v185 = vld [vmem:[%s1 + $0x19c] sm:$0xf]
  %v186 = vld [vmem:[%s1 + $0x1a0] sm:$0xf]
  %v187 = vld [vmem:[%s1 + $0x1a4] sm:$0xf]
  %v188 = vld [vmem:[%s1 + $0x1a8] sm:$0xf]
  %v189 = vld [vmem:[%s1 + $0x1ac] sm:$0xf]
  %v190 = vld [vmem:[%s1 + $0x1b0] sm:$0xf]
  %v191 = vld [vmem:[%s1 + $0x1b4] sm:$0xf]
  %v192 = vld [vmem:[%s1 + $0x1b8] sm:$0xf]
  %v193 = vld [vmem:[%s1 + $0x1bc] sm:$0xf]
  %v194 = vld [vmem:[%s1 + $0x1c0] sm:$0xf]
  %v195 = vld [vmem:[%s1 + $0x1c4] sm:$0xf]
  %v196 = vld [vmem:[%s1 + $0x1c8] sm:$0xf]
  %v197 = vld [vmem:[%s1 + $0x1cc] sm:$0xf]
  %v198 = vld [vmem:[%s1 + $0x1d0] sm:$0xf]
  %v199 = vld [vmem:[%s1 + $0x1d4] sm:$0xf]
  %v200 = vld [vmem:[%s1 + $0x1d8] sm:$0xf]
  %v201 = vld [vmem:[%s1 + $0x1dc] sm:$0xf]
  %v202 = vld [vmem:[%s1 + $0x1e0] sm:$0xf]
  %v203 = vld [vmem:[%s1 + $0x1e4] sm:$0xf]
  %v204 = vld [vmem:[%s1 + $0x1e8] sm:$0xf]
  %v205 = vld [vmem:[%s1 + $0x1ec] sm:$0xf]
  %v206 = vld [vmem:[%s1 + $0x1f0] sm:$0xf]
  %v207 = vld [vmem:[%s1 + $0x1f4] sm:$0xf]
  %v208 = vld [vmem:[%s1 + $0x1f8] sm:$0xf]
  %v209 = vld [vmem:[%s1 + $0x1fc] sm:$0xf]
  %v274 = vunpack.c.l.b16 %v18
  %v275 = vunpack.c.h.b16 %v18
  %v276 = vunpack.c.l.b16 %v19
  %v277 = vunpack.c.h.b16 %v19
  %v278 = vunpack.c.l.b16 %v20
  %v279 = vunpack.c.h.b16 %v20
  %v280 = vunpack.c.l.b16 %v21
  %v281 = vunpack.c.h.b16 %v21
  %v282 = vunpack.c.l.b16 %v22
  %v283 = vunpack.c.h.b16 %v22
  %v284 = vunpack.c.l.b16 %v23
  %v285 = vunpack.c.h.b16 %v23
  %v286 = vunpack.c.l.b16 %v24
  %v287 = vunpack.c.h.b16 %v24
  %v288 = vunpack.c.l.b16 %v25
  %v289 = vunpack.c.h.b16 %v25
  %v290 = vunpack.c.l.b16 %v26
  %v291 = vunpack.c.h.b16 %v26
  %v292 = vunpack.c.l.b16 %v27
  %v293 = vunpack.c.h.b16 %v27
  %v294 = vunpack.c.l.b16 %v28
  %v295 = vunpack.c.h.b16 %v28
  %v296 = vunpack.c.l.b16 %v29
  %v297 = vunpack.c.h.b16 %v29
  %v298 = vunpack.c.l.b16 %v30
  %v299 = vunpack.c.h.b16 %v30
  %v300 = vunpack.c.l.b16 %v31
  %v301 = vunpack.c.h.b16 %v31
  %v302 = vunpack.c.l.b16 %v32
  %v303 = vunpack.c.h.b16 %v32
  %v304 = vunpack.c.l.b16 %v33
  %v305 = vunpack.c.h.b16 %v33
  %v306 = vunpack.c.l.b16 %v34
  %v307 = vunpack.c.h.b16 %v34
  %v308 = vunpack.c.l.b16 %v35
  %v309 = vunpack.c.h.b16 %v35
  %v310 = vunpack.c.l.b16 %v36
  %v311 = vunpack.c.h.b16 %v36
  %v312 = vunpack.c.l.b16 %v37
  %v313 = vunpack.c.h.b16 %v37
  %v314 = vunpack.c.l.b16 %v38
  %v315 = vunpack.c.h.b16 %v38
  %v316 = vunpack.c.l.b16 %v39
  %v317 = vunpack.c.h.b16 %v39
  %v318 = vunpack.c.l.b16 %v40
  %v319 = vunpack.c.h.b16 %v40
  %v320 = vunpack.c.l.b16 %v41
  %v321 = vunpack.c.h.b16 %v41
  %v322 = vunpack.c.l.b16 %v42
  %v323 = vunpack.c.h.b16 %v42
  %v324 = vunpack.c.l.b16 %v43
  %v325 = vunpack.c.h.b16 %v43
  %v326 = vunpack.c.l.b16 %v44
  %v327 = vunpack.c.h.b16 %v44
  %v328 = vunpack.c.l.b16 %v45
  %v329 = vunpack.c.h.b16 %v45
  %v330 = vunpack.c.l.b16 %v46
  %v331 = vunpack.c.h.b16 %v46
  %v332 = vunpack.c.l.b16 %v47
  %v333 = vunpack.c.h.b16 %v47
  %v334 = vunpack.c.l.b16 %v48
  %v335 = vunpack.c.h.b16 %v48
  %v336 = vunpack.c.l.b16 %v49
  %v337 = vunpack.c.h.b16 %v49
  %v338 = vunpack.c.l.b16 %v50
  %v339 = vunpack.c.h.b16 %v50
  %v340 = vunpack.c.l.b16 %v51
  %v341 = vunpack.c.h.b16 %v51
  %v342 = vunpack.c.l.b16 %v52
  %v343 = vunpack.c.h.b16 %v52
  %v344 = vunpack.c.l.b16 %v53
  %v345 = vunpack.c.h.b16 %v53
  %v346 = vunpack.c.l.b16 %v54
  %v347 = vunpack.c.h.b16 %v54
  %v348 = vunpack.c.l.b16 %v55
  %v349 = vunpack.c.h.b16 %v55
  %v350 = vunpack.c.l.b16 %v56
  %v351 = vunpack.c.h.b16 %v56
  %v352 = vunpack.c.l.b16 %v57
  %v353 = vunpack.c.h.b16 %v57
  %v354 = vunpack.c.l.b16 %v58
  %v355 = vunpack.c.h.b16 %v58
  %v356 = vunpack.c.l.b16 %v59
  %v357 = vunpack.c.h.b16 %v59
  %v358 = vunpack.c.l.b16 %v60
  %v359 = vunpack.c.h.b16 %v60
  %v360 = vunpack.c.l.b16 %v61
  %v361 = vunpack.c.h.b16 %v61
  %v362 = vunpack.c.l.b16 %v62
  %v363 = vunpack.c.h.b16 %v62
  %v364 = vunpack.c.l.b16 %v63
  %v365 = vunpack.c.h.b16 %v63
  %v366 = vunpack.c.l.b16 %v64
  %v367 = vunpack.c.h.b16 %v64
  %v368 = vunpack.c.l.b16 %v65
  %v369 = vunpack.c.h.b16 %v65
  %v370 = vunpack.c.l.b16 %v66
  %v371 = vunpack.c.h.b16 %v66
  %v372 = vunpack.c.l.b16 %v67
  %v373 = vunpack.c.h.b16 %v67
  %v374 = vunpack.c.l.b16 %v68
  %v375 = vunpack.c.h.b16 %v68
  %v376 = vunpack.c.l.b16 %v69
  %v377 = vunpack.c.h.b16 %v69
  %v378 = vunpack.c.l.b16 %v70
  %v379 = vunpack.c.h.b16 %v70
  %v380 = vunpack.c.l.b16 %v71
  %v381 = vunpack.c.h.b16 %v71
  %v382 = vunpack.c.l.b16 %v72
  %v383 = vunpack.c.h.b16 %v72
  %v384 = vunpack.c.l.b16 %v73
  %v385 = vunpack.c.h.b16 %v73
  %v386 = vunpack.c.l.b16 %v74
  %v387 = vunpack.c.h.b16 %v74
  %v388 = vunpack.c.l.b16 %v75
  %v389 = vunpack.c.h.b16 %v75
  %v390 = vunpack.c.l.b16 %v76
  %v391 = vunpack.c.h.b16 %v76
  %v392 = vunpack.c.l.b16 %v77
  %v393 = vunpack.c.h.b16 %v77
  %v394 = vunpack.c.l.b16 %v78
  %v395 = vunpack.c.h.b16 %v78
  %v396 = vunpack.c.l.b16 %v79
  %v397 = vunpack.c.h.b16 %v79
  %v398 = vunpack.c.l.b16 %v80
  %v399 = vunpack.c.h.b16 %v80
  %v400 = vunpack.c.l.b16 %v81
  %v401 = vunpack.c.h.b16 %v81
  %v402 = vpack.c.b16 %v282, %v274
  %v403 = vpack.c.b16 %v283, %v275
  %v404 = vpack.c.b16 %v284, %v276
  %v405 = vpack.c.b16 %v285, %v277
  %v406 = vpack.c.b16 %v286, %v278
  %v407 = vpack.c.b16 %v287, %v279
  %v408 = vpack.c.b16 %v288, %v280
  %v409 = vpack.c.b16 %v289, %v281
  %v410 = vpack.c.b16 %v298, %v290
  %v411 = vpack.c.b16 %v299, %v291
  %v412 = vpack.c.b16 %v300, %v292
  %v413 = vpack.c.b16 %v301, %v293
  %v414 = vpack.c.b16 %v302, %v294
  %v415 = vpack.c.b16 %v303, %v295
  %v416 = vpack.c.b16 %v304, %v296
  %v417 = vpack.c.b16 %v305, %v297
  %v418 = vpack.c.b16 %v314, %v306
  %v419 = vpack.c.b16 %v315, %v307
  %v420 = vpack.c.b16 %v316, %v308
  %v421 = vpack.c.b16 %v317, %v309
  %v422 = vpack.c.b16 %v318, %v310
  %v423 = vpack.c.b16 %v319, %v311
  %v424 = vpack.c.b16 %v320, %v312
  %v425 = vpack.c.b16 %v321, %v313
  %v426 = vpack.c.b16 %v330, %v322
  %v427 = vpack.c.b16 %v331, %v323
  %v428 = vpack.c.b16 %v332, %v324
  %v429 = vpack.c.b16 %v333, %v325
  %v430 = vpack.c.b16 %v334, %v326
  %v431 = vpack.c.b16 %v335, %v327
  %v432 = vpack.c.b16 %v336, %v328
  %v433 = vpack.c.b16 %v337, %v329
  %v434 = vpack.c.b16 %v346, %v338
  %v435 = vpack.c.b16 %v347, %v339
  %v436 = vpack.c.b16 %v348, %v340
  %v437 = vpack.c.b16 %v349, %v341
  %v438 = vpack.c.b16 %v350, %v342
  %v439 = vpack.c.b16 %v351, %v343
  %v440 = vpack.c.b16 %v352, %v344
  %v441 = vpack.c.b16 %v353, %v345
  %v442 = vpack.c.b16 %v362, %v354
  %v443 = vpack.c.b16 %v363, %v355
  %v444 = vpack.c.b16 %v364, %v356
  %v445 = vpack.c.b16 %v365, %v357
  %v446 = vpack.c.b16 %v366, %v358
  %v447 = vpack.c.b16 %v367, %v359
  %v448 = vpack.c.b16 %v368, %v360
  %v449 = vpack.c.b16 %v369, %v361
  %v450 = vpack.c.b16 %v378, %v370
  %v451 = vpack.c.b16 %v379, %v371
  %v452 = vpack.c.b16 %v380, %v372
  %v453 = vpack.c.b16 %v381, %v373
  %v454 = vpack.c.b16 %v382, %v374
  %v455 = vpack.c.b16 %v383, %v375
  %v456 = vpack.c.b16 %v384, %v376
  %v457 = vpack.c.b16 %v385, %v377
  %v458 = vpack.c.b16 %v394, %v386
  %v459 = vpack.c.b16 %v395, %v387
  %v460 = vpack.c.b16 %v396, %v388
  %v461 = vpack.c.b16 %v397, %v389
  %v462 = vpack.c.b16 %v398, %v390
  %v463 = vpack.c.b16 %v399, %v391
  %v464 = vpack.c.b16 %v400, %v392
  %v465 = vpack.c.b16 %v401, %v393
  %v658 = vunpack.c.l.b16 %v82
  %v659 = vunpack.c.l.b16 %v83
  %v660 = vunpack.c.l.b16 %v84
  %v661 = vunpack.c.l.b16 %v85
  %v662 = vunpack.c.l.b16 %v86
  %v663 = vunpack.c.l.b16 %v87
  %v664 = vunpack.c.l.b16 %v88
  %v665 = vunpack.c.l.b16 %v89
  %v666 = vunpack.c.l.b16 %v90
  %v667 = vunpack.c.l.b16 %v91
  %v668 = vunpack.c.l.b16 %v92
  %v669 = vunpack.c.l.b16 %v93
  %v670 = vunpack.c.l.b16 %v94
  %v671 = vunpack.c.l.b16 %v95
  %v672 = vunpack.c.l.b16 %v96
  %v673 = vunpack.c.l.b16 %v97
  %v674 = vunpack.c.l.b16 %v98
  %v675 = vunpack.c.l.b16 %v99
  %v676 = vunpack.c.l.b16 %v100
  %v677 = vunpack.c.l.b16 %v101
  %v678 = vunpack.c.l.b16 %v102
  %v679 = vunpack.c.l.b16 %v103
  %v680 = vunpack.c.l.b16 %v104
  %v681 = vunpack.c.l.b16 %v105
  %v682 = vunpack.c.l.b16 %v106
  %v683 = vunpack.c.l.b16 %v107
  %v684 = vunpack.c.l.b16 %v108
  %v685 = vunpack.c.l.b16 %v109
  %v686 = vunpack.c.l.b16 %v110
  %v687 = vunpack.c.l.b16 %v111
  %v688 = vunpack.c.l.b16 %v112
  %v689 = vunpack.c.l.b16 %v113
  %v690 = vunpack.c.l.b16 %v114
  %v691 = vunpack.c.l.b16 %v115
  %v692 = vunpack.c.l.b16 %v116
  %v693 = vunpack.c.l.b16 %v117
  %v694 = vunpack.c.l.b16 %v118
  %v695 = vunpack.c.l.b16 %v119
  %v696 = vunpack.c.l.b16 %v120
  %v697 = vunpack.c.l.b16 %v121
  %v698 = vunpack.c.l.b16 %v122
  %v699 = vunpack.c.l.b16 %v123
  %v700 = vunpack.c.l.b16 %v124
  %v701 = vunpack.c.l.b16 %v125
  %v702 = vunpack.c.l.b16 %v126
  %v703 = vunpack.c.l.b16 %v127
  %v704 = vunpack.c.l.b16 %v128
  %v705 = vunpack.c.l.b16 %v129
  %v706 = vunpack.c.l.b16 %v130
  %v707 = vunpack.c.l.b16 %v131
  %v708 = vunpack.c.l.b16 %v132
  %v709 = vunpack.c.l.b16 %v133
  %v710 = vunpack.c.l.b16 %v134
  %v711 = vunpack.c.l.b16 %v135
  %v712 = vunpack.c.l.b16 %v136
  %v713 = vunpack.c.l.b16 %v137
  %v714 = vunpack.c.l.b16 %v138
  %v715 = vunpack.c.l.b16 %v139
  %v716 = vunpack.c.l.b16 %v140
  %v717 = vunpack.c.l.b16 %v141
  %v718 = vunpack.c.l.b16 %v142
  %v719 = vunpack.c.l.b16 %v143
  %v720 = vunpack.c.l.b16 %v144
  %v721 = vunpack.c.l.b16 %v145
  %v722 = vunpack.c.l.b16 %v146
  %v723 = vunpack.c.l.b16 %v147
  %v724 = vunpack.c.l.b16 %v148
  %v725 = vunpack.c.l.b16 %v149
  %v726 = vunpack.c.l.b16 %v150
  %v727 = vunpack.c.l.b16 %v151
  %v728 = vunpack.c.l.b16 %v152
  %v729 = vunpack.c.l.b16 %v153
  %v730 = vunpack.c.l.b16 %v154
  %v731 = vunpack.c.l.b16 %v155
  %v732 = vunpack.c.l.b16 %v156
  %v733 = vunpack.c.l.b16 %v157
  %v734 = vunpack.c.l.b16 %v158
  %v735 = vunpack.c.l.b16 %v159
  %v736 = vunpack.c.l.b16 %v160
  %v737 = vunpack.c.l.b16 %v161
  %v738 = vunpack.c.l.b16 %v162
  %v739 = vunpack.c.l.b16 %v163
  %v740 = vunpack.c.l.b16 %v164
  %v741 = vunpack.c.l.b16 %v165
  %v742 = vunpack.c.l.b16 %v166
  %v743 = vunpack.c.l.b16 %v167
  %v744 = vunpack.c.l.b16 %v168
  %v745 = vunpack.c.l.b16 %v169
  %v746 = vunpack.c.l.b16 %v170
  %v747 = vunpack.c.l.b16 %v171
  %v748 = vunpack.c.l.b16 %v172
  %v749 = vunpack.c.l.b16 %v173
  %v750 = vunpack.c.l.b16 %v174
  %v751 = vunpack.c.l.b16 %v175
  %v752 = vunpack.c.l.b16 %v176
  %v753 = vunpack.c.l.b16 %v177
  %v754 = vunpack.c.l.b16 %v178
  %v755 = vunpack.c.l.b16 %v179
  %v756 = vunpack.c.l.b16 %v180
  %v757 = vunpack.c.l.b16 %v181
  %v758 = vunpack.c.l.b16 %v182
  %v759 = vunpack.c.l.b16 %v183
  %v760 = vunpack.c.l.b16 %v184
  %v761 = vunpack.c.l.b16 %v185
  %v762 = vunpack.c.l.b16 %v186
  %v763 = vunpack.c.l.b16 %v187
  %v764 = vunpack.c.l.b16 %v188
  %v765 = vunpack.c.l.b16 %v189
  %v766 = vunpack.c.l.b16 %v190
  %v767 = vunpack.c.l.b16 %v191
  %v768 = vunpack.c.l.b16 %v192
  %v769 = vunpack.c.l.b16 %v193
  %v770 = vunpack.c.l.b16 %v194
  %v771 = vunpack.c.l.b16 %v195
  %v772 = vunpack.c.l.b16 %v196
  %v773 = vunpack.c.l.b16 %v197
  %v774 = vunpack.c.l.b16 %v198
  %v775 = vunpack.c.l.b16 %v199
  %v776 = vunpack.c.l.b16 %v200
  %v777 = vunpack.c.l.b16 %v201
  %v778 = vunpack.c.l.b16 %v202
  %v779 = vunpack.c.l.b16 %v203
  %v780 = vunpack.c.l.b16 %v204
  %v781 = vunpack.c.l.b16 %v205
  %v782 = vunpack.c.l.b16 %v206
  %v783 = vunpack.c.l.b16 %v207
  %v784 = vunpack.c.l.b16 %v208
  %v785 = vunpack.c.l.b16 %v209
  %v786 = vpack.c.b16 %v659, %v658
  %v787 = vpack.c.b16 %v661, %v660
  %v788 = vpack.c.b16 %v663, %v662
  %v789 = vpack.c.b16 %v665, %v664
  %v790 = vpack.c.b16 %v667, %v666
  %v791 = vpack.c.b16 %v669, %v668
  %v792 = vpack.c.b16 %v671, %v670
  %v793 = vpack.c.b16 %v673, %v672
  %v794 = vpack.c.b16 %v675, %v674
  %v795 = vpack.c.b16 %v677, %v676
  %v796 = vpack.c.b16 %v679, %v678
  %v797 = vpack.c.b16 %v681, %v680
  %v798 = vpack.c.b16 %v683, %v682
  %v799 = vpack.c.b16 %v685, %v684
  %v800 = vpack.c.b16 %v687, %v686
  %v801 = vpack.c.b16 %v689, %v688
  %v802 = vpack.c.b16 %v691, %v690
  %v803 = vpack.c.b16 %v693, %v692
  %v804 = vpack.c.b16 %v695, %v694
  %v805 = vpack.c.b16 %v697, %v696
  %v806 = vpack.c.b16 %v699, %v698
  %v807 = vpack.c.b16 %v701, %v700
  %v808 = vpack.c.b16 %v703, %v702
  %v809 = vpack.c.b16 %v705, %v704
  %v810 = vpack.c.b16 %v707, %v706
  %v811 = vpack.c.b16 %v709, %v708
  %v812 = vpack.c.b16 %v711, %v710
  %v813 = vpack.c.b16 %v713, %v712
  %v814 = vpack.c.b16 %v715, %v714
  %v815 = vpack.c.b16 %v717, %v716
  %v816 = vpack.c.b16 %v719, %v718
  %v817 = vpack.c.b16 %v721, %v720
  %v818 = vpack.c.b16 %v723, %v722
  %v819 = vpack.c.b16 %v725, %v724
  %v820 = vpack.c.b16 %v727, %v726
  %v821 = vpack.c.b16 %v729, %v728
  %v822 = vpack.c.b16 %v731, %v730
  %v823 = vpack.c.b16 %v733, %v732
  %v824 = vpack.c.b16 %v735, %v734
  %v825 = vpack.c.b16 %v737, %v736
  %v826 = vpack.c.b16 %v739, %v738
  %v827 = vpack.c.b16 %v741, %v740
  %v828 = vpack.c.b16 %v743, %v742
  %v829 = vpack.c.b16 %v745, %v744
  %v830 = vpack.c.b16 %v747, %v746
  %v831 = vpack.c.b16 %v749, %v748
  %v832 = vpack.c.b16 %v751, %v750
  %v833 = vpack.c.b16 %v753, %v752
  %v834 = vpack.c.b16 %v755, %v754
  %v835 = vpack.c.b16 %v757, %v756
  %v836 = vpack.c.b16 %v759, %v758
  %v837 = vpack.c.b16 %v761, %v760
  %v838 = vpack.c.b16 %v763, %v762
  %v839 = vpack.c.b16 %v765, %v764
  %v840 = vpack.c.b16 %v767, %v766
  %v841 = vpack.c.b16 %v769, %v768
  %v842 = vpack.c.b16 %v771, %v770
  %v843 = vpack.c.b16 %v773, %v772
  %v844 = vpack.c.b16 %v775, %v774
  %v845 = vpack.c.b16 %v777, %v776
  %v846 = vpack.c.b16 %v779, %v778
  %v847 = vpack.c.b16 %v781, %v780
  %v848 = vpack.c.b16 %v783, %v782
  %v849 = vpack.c.b16 %v785, %v784
  %914 = vmatprep.subr.bf16.mxu0 0
  %915 = vmatpush1.bf16.msra.mxu0 %v793
  %916 = vmatprep.subr.bf16.mxu0 0
  %917 = vmatpush1.bf16.msra.mxu0 %v792
  %918 = vmatprep.subr.bf16.mxu0 0
  %919 = vmatpush1.bf16.msra.mxu0 %v791
  %920 = vmatprep.subr.bf16.mxu0 0
  %921 = vmatpush1.bf16.msra.mxu0 %v790
  %922 = vmatprep.subr.bf16.mxu0 0
  %923 = vmatpush1.bf16.msra.mxu0 %v789
  %924 = vmatprep.subr.bf16.mxu0 0
  %925 = vmatpush1.bf16.msra.mxu0 %v788
  %926 = vmatprep.subr.bf16.mxu0 0
  %927 = vmatpush1.bf16.msra.mxu0 %v787
  %928 = vmatprep.subr.bf16.mxu0 0
  %929 = vmatpush1.bf16.msra.mxu0 %v786
  %930 = vmatprep.subr.bf16.mxu0 0
  %931 = vmatpush2.bf16.msra.mxu0 %v801
  %932 = vmatprep.subr.bf16.mxu0 0
  %933 = vmatpush2.bf16.msra.mxu0 %v800
  %934 = vmatprep.subr.bf16.mxu0 0
  %935 = vmatpush2.bf16.msra.mxu0 %v799
  %936 = vmatprep.subr.bf16.mxu0 0
  %937 = vmatpush2.bf16.msra.mxu0 %v798
  %938 = vmatprep.subr.bf16.mxu0 0
  %939 = vmatpush2.bf16.msra.mxu0 %v797
  %940 = vmatprep.subr.bf16.mxu0 0
  %941 = vmatpush2.bf16.msra.mxu0 %v796
  %942 = vmatprep.subr.bf16.mxu0 0
  %943 = vmatpush2.bf16.msra.mxu0 %v795
  %944 = vmatprep.subr.bf16.mxu0 0
  %945 = vmatpush2.bf16.msra.mxu0 %v794
  %946 = vmatprep.mubr.bf16.mxu0 %v403
  %947 = vmatmul.mubr.bf16.gmra.mxu0 %v402
  %v948 = vpop.f32.mrf.mxu0
  %v949 = vadd.f32 0.0, %v948
  %v950 = vpop.f32.mrf.mxu0
  %v951 = vpop.f32.mrf.mxu0
  %v952 = vadd.f32 0.0, %v951
  %v953 = vpop.f32.mrf.mxu0
  %954 = vmatprep.mubr.bf16.mxu0 %v411
  %955 = vmatmul.mubr.bf16.gmra.mxu0 %v410
  %v956 = vpop.f32.mrf.mxu0
  %v957 = vadd.f32 0.0, %v956
  %v958 = vpop.f32.mrf.mxu0
  %v959 = vpop.f32.mrf.mxu0
  %v960 = vadd.f32 0.0, %v959
  %v961 = vpop.f32.mrf.mxu0
  %962 = vmatprep.mubr.bf16.mxu0 %v419
  %963 = vmatmul.mubr.bf16.gmra.mxu0 %v418
  %v964 = vpop.f32.mrf.mxu0
  %v965 = vadd.f32 0.0, %v964
  %v966 = vpop.f32.mrf.mxu0
  %v967 = vpop.f32.mrf.mxu0
  %v968 = vadd.f32 0.0, %v967
  %v969 = vpop.f32.mrf.mxu0
  %970 = vmatprep.mubr.bf16.mxu0 %v427
  %971 = vmatmul.mubr.bf16.gmra.mxu0 %v426
  %v972 = vpop.f32.mrf.mxu0
  %v973 = vadd.f32 0.0, %v972
  %v974 = vpop.f32.mrf.mxu0
  %v975 = vpop.f32.mrf.mxu0
  %v976 = vadd.f32 0.0, %v975
  %v977 = vpop.f32.mrf.mxu0
  %978 = vmatprep.mubr.bf16.mxu0 %v435
  %979 = vmatmul.mubr.bf16.gmra.mxu0 %v434
  %v980 = vpop.f32.mrf.mxu0
  %v981 = vadd.f32 0.0, %v980
  %v982 = vpop.f32.mrf.mxu0
  %v983 = vpop.f32.mrf.mxu0
  %v984 = vadd.f32 0.0, %v983
  %v985 = vpop.f32.mrf.mxu0
  %986 = vmatprep.mubr.bf16.mxu0 %v443
  %987 = vmatmul.mubr.bf16.gmra.mxu0 %v442
  %v988 = vpop.f32.mrf.mxu0
  %v989 = vadd.f32 0.0, %v988
  %v990 = vpop.f32.mrf.mxu0
  %v991 = vpop.f32.mrf.mxu0
  %v992 = vadd.f32 0.0, %v991
  %v993 = vpop.f32.mrf.mxu0
  %994 = vmatprep.mubr.bf16.mxu0 %v451
  %995 = vmatmul.mubr.bf16.gmra.mxu0 %v450
  %v996 = vpop.f32.mrf.mxu0
  %v997 = vadd.f32 0.0, %v996
  %v998 = vpop.f32.mrf.mxu0
  %v999 = vpop.f32.mrf.mxu0
  %v1000 = vadd.f32 0.0, %v999
  %v1001 = vpop.f32.mrf.mxu0
  %1002 = vmatprep.mubr.bf16.mxu0 %v459
  %1003 = vmatmul.mubr.bf16.gmra.mxu0 %v458
  %v1004 = vpop.f32.mrf.mxu0
  %v1005 = vadd.f32 0.0, %v1004
  %v1006 = vpop.f32.mrf.mxu0
  %v1007 = vpop.f32.mrf.mxu0
  %v1008 = vadd.f32 0.0, %v1007
  %v1009 = vpop.f32.mrf.mxu0
  %1010 = vdwg.mxu0
  %1011 = vmatprep.subr.bf16.mxu0 0
  %1012 = vmatpush1.bf16.msra.mxu0 %v809
  %1013 = vmatprep.subr.bf16.mxu0 0
  %1014 = vmatpush1.bf16.msra.mxu0 %v808
  %1015 = vmatprep.subr.bf16.mxu0 0
  %1016 = vmatpush1.bf16.msra.mxu0 %v807
  %1017 = vmatprep.subr.bf16.mxu0 0
  %1018 = vmatpush1.bf16.msra.mxu0 %v806
  %1019 = vmatprep.subr.bf16.mxu0 0
  %1020 = vmatpush1.bf16.msra.mxu0 %v805
  %1021 = vmatprep.subr.bf16.mxu0 0
  %1022 = vmatpush1.bf16.msra.mxu0 %v804
  %1023 = vmatprep.subr.bf16.mxu0 0
  %1024 = vmatpush1.bf16.msra.mxu0 %v803
  %1025 = vmatprep.subr.bf16.mxu0 0
  %1026 = vmatpush1.bf16.msra.mxu0 %v802
  %1027 = vmatprep.subr.bf16.mxu0 0
  %1028 = vmatpush2.bf16.msra.mxu0 %v817
  %1029 = vmatprep.subr.bf16.mxu0 0
  %1030 = vmatpush2.bf16.msra.mxu0 %v816
  %1031 = vmatprep.subr.bf16.mxu0 0
  %1032 = vmatpush2.bf16.msra.mxu0 %v815
  %1033 = vmatprep.subr.bf16.mxu0 0
  %1034 = vmatpush2.bf16.msra.mxu0 %v814
  %1035 = vmatprep.subr.bf16.mxu0 0
  %1036 = vmatpush2.bf16.msra.mxu0 %v813
  %1037 = vmatprep.subr.bf16.mxu0 0
  %1038 = vmatpush2.bf16.msra.mxu0 %v812
  %1039 = vmatprep.subr.bf16.mxu0 0
  %1040 = vmatpush2.bf16.msra.mxu0 %v811
  %1041 = vmatprep.subr.bf16.mxu0 0
  %1042 = vmatpush2.bf16.msra.mxu0 %v810
  %1043 = vmatprep.mubr.bf16.mxu0 %v405
  %1044 = vmatmul.mubr.bf16.gmra.mxu0 %v404
  %v1045 = vpop.f32.mrf.mxu0
  %v1046 = vadd.f32 %v949, %v1045
  %v1047 = vpop.f32.mrf.mxu0
  %v1048 = vpop.f32.mrf.mxu0
  %v1049 = vadd.f32 %v952, %v1048
  %v1050 = vpop.f32.mrf.mxu0
  %1051 = vmatprep.mubr.bf16.mxu0 %v413
  %1052 = vmatmul.mubr.bf16.gmra.mxu0 %v412
  %v1053 = vpop.f32.mrf.mxu0
  %v1054 = vadd.f32 %v957, %v1053
  %v1055 = vpop.f32.mrf.mxu0
  %v1056 = vpop.f32.mrf.mxu0
  %v1057 = vadd.f32 %v960, %v1056
  %v1058 = vpop.f32.mrf.mxu0
  %1059 = vmatprep.mubr.bf16.mxu0 %v421
  %1060 = vmatmul.mubr.bf16.gmra.mxu0 %v420
  %v1061 = vpop.f32.mrf.mxu0
  %v1062 = vadd.f32 %v965, %v1061
  %v1063 = vpop.f32.mrf.mxu0
  %v1064 = vpop.f32.mrf.mxu0
  %v1065 = vadd.f32 %v968, %v1064
  %v1066 = vpop.f32.mrf.mxu0
  %1067 = vmatprep.mubr.bf16.mxu0 %v429
  %1068 = vmatmul.mubr.bf16.gmra.mxu0 %v428
  %v1069 = vpop.f32.mrf.mxu0
  %v1070 = vadd.f32 %v973, %v1069
  %v1071 = vpop.f32.mrf.mxu0
  %v1072 = vpop.f32.mrf.mxu0
  %v1073 = vadd.f32 %v976, %v1072
  %v1074 = vpop.f32.mrf.mxu0
  %1075 = vmatprep.mubr.bf16.mxu0 %v437
  %1076 = vmatmul.mubr.bf16.gmra.mxu0 %v436
  %v1077 = vpop.f32.mrf.mxu0
  %v1078 = vadd.f32 %v981, %v1077
  %v1079 = vpop.f32.mrf.mxu0
  %v1080 = vpop.f32.mrf.mxu0
  %v1081 = vadd.f32 %v984, %v1080
  %v1082 = vpop.f32.mrf.mxu0
  %1083 = vmatprep.mubr.bf16.mxu0 %v445
  %1084 = vmatmul.mubr.bf16.gmra.mxu0 %v444
  %v1085 = vpop.f32.mrf.mxu0
  %v1086 = vadd.f32 %v989, %v1085
  %v1087 = vpop.f32.mrf.mxu0
  %v1088 = vpop.f32.mrf.mxu0
  %v1089 = vadd.f32 %v992, %v1088
  %v1090 = vpop.f32.mrf.mxu0
  %1091 = vmatprep.mubr.bf16.mxu0 %v453
  %1092 = vmatmul.mubr.bf16.gmra.mxu0 %v452
  %v1093 = vpop.f32.mrf.mxu0
  %v1094 = vadd.f32 %v997, %v1093
  %v1095 = vpop.f32.mrf.mxu0
  %v1096 = vpop.f32.mrf.mxu0
  %v1097 = vadd.f32 %v1000, %v1096
  %v1098 = vpop.f32.mrf.mxu0
  %1099 = vmatprep.mubr.bf16.mxu0 %v461
  %1100 = vmatmul.mubr.bf16.gmra.mxu0 %v460
  %v1101 = vpop.f32.mrf.mxu0
  %v1102 = vadd.f32 %v1005, %v1101
  %v1103 = vpop.f32.mrf.mxu0
  %v1104 = vpop.f32.mrf.mxu0
  %v1105 = vadd.f32 %v1008, %v1104
  %v1106 = vpop.f32.mrf.mxu0
  %1107 = vdwg.mxu0
  %1108 = vmatprep.subr.bf16.mxu0 0
  %1109 = vmatpush1.bf16.msra.mxu0 %v825
  %1110 = vmatprep.subr.bf16.mxu0 0
  %1111 = vmatpush1.bf16.msra.mxu0 %v824
  %1112 = vmatprep.subr.bf16.mxu0 0
  %1113 = vmatpush1.bf16.msra.mxu0 %v823
  %1114 = vmatprep.subr.bf16.mxu0 0
  %1115 = vmatpush1.bf16.msra.mxu0 %v822
  %1116 = vmatprep.subr.bf16.mxu0 0
  %1117 = vmatpush1.bf16.msra.mxu0 %v821
  %1118 = vmatprep.subr.bf16.mxu0 0
  %1119 = vmatpush1.bf16.msra.mxu0 %v820
  %1120 = vmatprep.subr.bf16.mxu0 0
  %1121 = vmatpush1.bf16.msra.mxu0 %v819
  %1122 = vmatprep.subr.bf16.mxu0 0
  %1123 = vmatpush1.bf16.msra.mxu0 %v818
  %1124 = vmatprep.subr.bf16.mxu0 0
  %1125 = vmatpush2.bf16.msra.mxu0 %v833
  %1126 = vmatprep.subr.bf16.mxu0 0
  %1127 = vmatpush2.bf16.msra.mxu0 %v832
  %1128 = vmatprep.subr.bf16.mxu0 0
  %1129 = vmatpush2.bf16.msra.mxu0 %v831
  %1130 = vmatprep.subr.bf16.mxu0 0
  %1131 = vmatpush2.bf16.msra.mxu0 %v830
  %1132 = vmatprep.subr.bf16.mxu0 0
  %1133 = vmatpush2.bf16.msra.mxu0 %v829
  %1134 = vmatprep.subr.bf16.mxu0 0
  %1135 = vmatpush2.bf16.msra.mxu0 %v828
  %1136 = vmatprep.subr.bf16.mxu0 0
  %1137 = vmatpush2.bf16.msra.mxu0 %v827
  %1138 = vmatprep.subr.bf16.mxu0 0
  %1139 = vmatpush2.bf16.msra.mxu0 %v826
  %1140 = vmatprep.mubr.bf16.mxu0 %v407
  %1141 = vmatmul.mubr.bf16.gmra.mxu0 %v406
  %v1142 = vpop.f32.mrf.mxu0
  %v1143 = vadd.f32 %v1046, %v1142
  %v1144 = vpop.f32.mrf.mxu0
  %v1145 = vpop.f32.mrf.mxu0
  %v1146 = vadd.f32 %v1049, %v1145
  %v1147 = vpop.f32.mrf.mxu0
  %1148 = vmatprep.mubr.bf16.mxu0 %v415
  %1149 = vmatmul.mubr.bf16.gmra.mxu0 %v414
  %v1150 = vpop.f32.mrf.mxu0
  %v1151 = vadd.f32 %v1054, %v1150
  %v1152 = vpop.f32.mrf.mxu0
  %v1153 = vpop.f32.mrf.mxu0
  %v1154 = vadd.f32 %v1057, %v1153
  %v1155 = vpop.f32.mrf.mxu0
  %1156 = vmatprep.mubr.bf16.mxu0 %v423
  %1157 = vmatmul.mubr.bf16.gmra.mxu0 %v422
  %v1158 = vpop.f32.mrf.mxu0
  %v1159 = vadd.f32 %v1062, %v1158
  %v1160 = vpop.f32.mrf.mxu0
  %v1161 = vpop.f32.mrf.mxu0
  %v1162 = vadd.f32 %v1065, %v1161
  %v1163 = vpop.f32.mrf.mxu0
  %1164 = vmatprep.mubr.bf16.mxu0 %v431
  %1165 = vmatmul.mubr.bf16.gmra.mxu0 %v430
  %v1166 = vpop.f32.mrf.mxu0
  %v1167 = vadd.f32 %v1070, %v1166
  %v1168 = vpop.f32.mrf.mxu0
  %v1169 = vpop.f32.mrf.mxu0
  %v1170 = vadd.f32 %v1073, %v1169
  %v1171 = vpop.f32.mrf.mxu0
  %1172 = vmatprep.mubr.bf16.mxu0 %v439
  %1173 = vmatmul.mubr.bf16.gmra.mxu0 %v438
  %v1174 = vpop.f32.mrf.mxu0
  %v1175 = vadd.f32 %v1078, %v1174
  %v1176 = vpop.f32.mrf.mxu0
  %v1177 = vpop.f32.mrf.mxu0
  %v1178 = vadd.f32 %v1081, %v1177
  %v1179 = vpop.f32.mrf.mxu0
  %1180 = vmatprep.mubr.bf16.mxu0 %v447
  %1181 = vmatmul.mubr.bf16.gmra.mxu0 %v446
  %v1182 = vpop.f32.mrf.mxu0
  %v1183 = vadd.f32 %v1086, %v1182
  %v1184 = vpop.f32.mrf.mxu0
  %v1185 = vpop.f32.mrf.mxu0
  %v1186 = vadd.f32 %v1089, %v1185
  %v1187 = vpop.f32.mrf.mxu0
  %1188 = vmatprep.mubr.bf16.mxu0 %v455
  %1189 = vmatmul.mubr.bf16.gmra.mxu0 %v454
  %v1190 = vpop.f32.mrf.mxu0
  %v1191 = vadd.f32 %v1094, %v1190
  %v1192 = vpop.f32.mrf.mxu0
  %v1193 = vpop.f32.mrf.mxu0
  %v1194 = vadd.f32 %v1097, %v1193
  %v1195 = vpop.f32.mrf.mxu0
  %1196 = vmatprep.mubr.bf16.mxu0 %v463
  %1197 = vmatmul.mubr.bf16.gmra.mxu0 %v462
  %v1198 = vpop.f32.mrf.mxu0
  %v1199 = vadd.f32 %v1102, %v1198
  %v1200 = vpop.f32.mrf.mxu0
  %v1201 = vpop.f32.mrf.mxu0
  %v1202 = vadd.f32 %v1105, %v1201
  %v1203 = vpop.f32.mrf.mxu0
  %1204 = vdwg.mxu0
  %1205 = vmatprep.subr.bf16.mxu0 0
  %1206 = vmatpush1.bf16.msra.mxu0 %v841
  %1207 = vmatprep.subr.bf16.mxu0 0
  %1208 = vmatpush1.bf16.msra.mxu0 %v840
  %1209 = vmatprep.subr.bf16.mxu0 0
  %1210 = vmatpush1.bf16.msra.mxu0 %v839
  %1211 = vmatprep.subr.bf16.mxu0 0
  %1212 = vmatpush1.bf16.msra.mxu0 %v838
  %1213 = vmatprep.subr.bf16.mxu0 0
  %1214 = vmatpush1.bf16.msra.mxu0 %v837
  %1215 = vmatprep.subr.bf16.mxu0 0
  %1216 = vmatpush1.bf16.msra.mxu0 %v836
  %1217 = vmatprep.subr.bf16.mxu0 0
  %1218 = vmatpush1.bf16.msra.mxu0 %v835
  %1219 = vmatprep.subr.bf16.mxu0 0
  %1220 = vmatpush1.bf16.msra.mxu0 %v834
  %1221 = vmatprep.subr.bf16.mxu0 0
  %1222 = vmatpush2.bf16.msra.mxu0 %v849
  %1223 = vmatprep.subr.bf16.mxu0 0
  %1224 = vmatpush2.bf16.msra.mxu0 %v848
  %1225 = vmatprep.subr.bf16.mxu0 0
  %1226 = vmatpush2.bf16.msra.mxu0 %v847
  %1227 = vmatprep.subr.bf16.mxu0 0
  %1228 = vmatpush2.bf16.msra.mxu0 %v846
  %1229 = vmatprep.subr.bf16.mxu0 0
  %1230 = vmatpush2.bf16.msra.mxu0 %v845
  %1231 = vmatprep.subr.bf16.mxu0 0
  %1232 = vmatpush2.bf16.msra.mxu0 %v844
  %1233 = vmatprep.subr.bf16.mxu0 0
  %1234 = vmatpush2.bf16.msra.mxu0 %v843
  %1235 = vmatprep.subr.bf16.mxu0 0
  %1236 = vmatpush2.bf16.msra.mxu0 %v842
  %1237 = vmatprep.mubr.bf16.mxu0 %v409
  %1238 = vmatmul.mubr.bf16.gmra.mxu0 %v408
  %v1239 = vpop.f32.mrf.mxu0
  %v1240 = vadd.f32 %v1143, %v1239
  %v1241 = vpop.f32.mrf.mxu0
  %v1242 = vpop.f32.mrf.mxu0
  %v1243 = vadd.f32 %v1146, %v1242
  %v1244 = vpop.f32.mrf.mxu0
  %1245 = vmatprep.mubr.bf16.mxu0 %v417
  %1246 = vmatmul.mubr.bf16.gmra.mxu0 %v416
  %v1247 = vpop.f32.mrf.mxu0
  %v1248 = vadd.f32 %v1151, %v1247
  %v1249 = vpop.f32.mrf.mxu0
  %v1250 = vpop.f32.mrf.mxu0
  %v1251 = vadd.f32 %v1154, %v1250
  %v1252 = vpop.f32.mrf.mxu0
  %1253 = vmatprep.mubr.bf16.mxu0 %v425
  %1254 = vmatmul.mubr.bf16.gmra.mxu0 %v424
  %v1255 = vpop.f32.mrf.mxu0
  %v1256 = vadd.f32 %v1159, %v1255
  %v1257 = vpop.f32.mrf.mxu0
  %v1258 = vpop.f32.mrf.mxu0
  %v1259 = vadd.f32 %v1162, %v1258
  %v1260 = vpop.f32.mrf.mxu0
  %1261 = vmatprep.mubr.bf16.mxu0 %v433
  %1262 = vmatmul.mubr.bf16.gmra.mxu0 %v432
  %v1263 = vpop.f32.mrf.mxu0
  %v1264 = vadd.f32 %v1167, %v1263
  %v1265 = vpop.f32.mrf.mxu0
  %v1266 = vpop.f32.mrf.mxu0
  %v1267 = vadd.f32 %v1170, %v1266
  %v1268 = vpop.f32.mrf.mxu0
  %1269 = vmatprep.mubr.bf16.mxu0 %v441
  %1270 = vmatmul.mubr.bf16.gmra.mxu0 %v440
  %v1271 = vpop.f32.mrf.mxu0
  %v1272 = vadd.f32 %v1175, %v1271
  %v1273 = vpop.f32.mrf.mxu0
  %v1274 = vpop.f32.mrf.mxu0
  %v1275 = vadd.f32 %v1178, %v1274
  %v1276 = vpop.f32.mrf.mxu0
  %1277 = vmatprep.mubr.bf16.mxu0 %v449
  %1278 = vmatmul.mubr.bf16.gmra.mxu0 %v448
  %v1279 = vpop.f32.mrf.mxu0
  %v1280 = vadd.f32 %v1183, %v1279
  %v1281 = vpop.f32.mrf.mxu0
  %v1282 = vpop.f32.mrf.mxu0
  %v1283 = vadd.f32 %v1186, %v1282
  %v1284 = vpop.f32.mrf.mxu0
  %1285 = vmatprep.mubr.bf16.mxu0 %v457
  %1286 = vmatmul.mubr.bf16.gmra.mxu0 %v456
  %v1287 = vpop.f32.mrf.mxu0
  %v1288 = vadd.f32 %v1191, %v1287
  %v1289 = vpop.f32.mrf.mxu0
  %v1290 = vpop.f32.mrf.mxu0
  %v1291 = vadd.f32 %v1194, %v1290
  %v1292 = vpop.f32.mrf.mxu0
  %1293 = vmatprep.mubr.bf16.mxu0 %v465
  %1294 = vmatmul.mubr.bf16.gmra.mxu0 %v464
  %v1295 = vpop.f32.mrf.mxu0
  %v1296 = vadd.f32 %v1199, %v1295
  %v1297 = vpop.f32.mrf.mxu0
  %v1298 = vpop.f32.mrf.mxu0
  %v1299 = vadd.f32 %v1202, %v1298
  %v1300 = vpop.f32.mrf.mxu0
  %1301 = vdwg.mxu0
  %v1302 = vld [vmem:[%s2] sm:$0x1]
  %v1304 = vlaneseq
  %v1305 = vshrl.u32 %v1304, 7
  %v1306 = vsub.s32 0, %v1305
  %v1307 = vrot.slane %v1302, %v1306
  %v1309 = vmul.f32 %v1240, %v1307
  %v1310 = vmul.f32 %v1243, %v1307
  %v1311 = vmul.f32 %v1248, %v1307
  %v1312 = vmul.f32 %v1251, %v1307
  %v1313 = vmul.f32 %v1256, %v1307
  %v1314 = vmul.f32 %v1259, %v1307
  %v1315 = vmul.f32 %v1264, %v1307
  %v1316 = vmul.f32 %v1267, %v1307
  %v1317 = vmul.f32 %v1272, %v1307
  %v1318 = vmul.f32 %v1275, %v1307
  %v1319 = vmul.f32 %v1280, %v1307
  %v1320 = vmul.f32 %v1283, %v1307
  %v1321 = vmul.f32 %v1288, %v1307
  %v1322 = vmul.f32 %v1291, %v1307
  %v1323 = vmul.f32 %v1296, %v1307
  %v1324 = vmul.f32 %v1299, %v1307
  %v1325 = vld [vmem:[%s3] sm:$0x1]
  %v1327 = vlaneseq
  %v1328 = vshrl.u32 %v1327, 7
  %v1329 = vsub.s32 0, %v1328
  %v1330 = vrot.slane %v1325, %v1329
  %v1332 = vadd.f32 %v1309, %v1330
  %v1333 = vadd.f32 %v1310, %v1330
  %v1334 = vadd.f32 %v1311, %v1330
  %v1335 = vadd.f32 %v1312, %v1330
  %v1336 = vadd.f32 %v1313, %v1330
  %v1337 = vadd.f32 %v1314, %v1330
  %v1338 = vadd.f32 %v1315, %v1330
  %v1339 = vadd.f32 %v1316, %v1330
  %v1340 = vadd.f32 %v1317, %v1330
  %v1341 = vadd.f32 %v1318, %v1330
  %v1342 = vadd.f32 %v1319, %v1330
  %v1343 = vadd.f32 %v1320, %v1330
  %v1344 = vadd.f32 %v1321, %v1330
  %v1345 = vadd.f32 %v1322, %v1330
  %v1346 = vadd.f32 %v1323, %v1330
  %v1347 = vadd.f32 %v1324, %v1330
  %v1348 = vmax.f32 %v1332, 0.0
  %v1349 = vmax.f32 %v1333, 0.0
  %v1350 = vmax.f32 %v1334, 0.0
  %v1351 = vmax.f32 %v1335, 0.0
  %v1352 = vmax.f32 %v1336, 0.0
  %v1353 = vmax.f32 %v1337, 0.0
  %v1354 = vmax.f32 %v1338, 0.0
  %v1355 = vmax.f32 %v1339, 0.0
  %v1356 = vmax.f32 %v1340, 0.0
  %v1357 = vmax.f32 %v1341, 0.0
  %v1358 = vmax.f32 %v1342, 0.0
  %v1359 = vmax.f32 %v1343, 0.0
  %v1360 = vmax.f32 %v1344, 0.0
  %v1361 = vmax.f32 %v1345, 0.0
  %v1362 = vmax.f32 %v1346, 0.0
  %v1363 = vmax.f32 %v1347, 0.0
  %v1364 = vpack.c.bf16 %v1349, %v1348
  %v1365 = vpack.c.bf16 %v1351, %v1350
  %v1366 = vpack.c.bf16 %v1353, %v1352
  %v1367 = vpack.c.bf16 %v1355, %v1354
  %v1368 = vpack.c.bf16 %v1357, %v1356
  %v1369 = vpack.c.bf16 %v1359, %v1358
  %v1370 = vpack.c.bf16 %v1361, %v1360
  %v1371 = vpack.c.bf16 %v1363, %v1362
  %v1380 = vunpack.c.l.b16 %v1364
  %v1381 = vunpack.c.h.b16 %v1364
  %v1382 = vunpack.c.l.b16 %v1365
  %v1383 = vunpack.c.h.b16 %v1365
  %v1384 = vunpack.c.l.b16 %v1366
  %v1385 = vunpack.c.h.b16 %v1366
  %v1386 = vunpack.c.l.b16 %v1367
  %v1387 = vunpack.c.h.b16 %v1367
  %v1388 = vunpack.c.l.b16 %v1368
  %v1389 = vunpack.c.h.b16 %v1368
  %v1390 = vunpack.c.l.b16 %v1369
  %v1391 = vunpack.c.h.b16 %v1369
  %v1392 = vunpack.c.l.b16 %v1370
  %v1393 = vunpack.c.h.b16 %v1370
  %v1394 = vunpack.c.l.b16 %v1371
  %v1395 = vunpack.c.h.b16 %v1371
  %v1396 = vpack.c.b16 %v1380, %v1380
  %v1397 = vpack.c.b16 %v1381, %v1381
  %v1398 = vpack.c.b16 %v1382, %v1382
  %v1399 = vpack.c.b16 %v1383, %v1383
  %v1400 = vpack.c.b16 %v1384, %v1384
  %v1401 = vpack.c.b16 %v1385, %v1385
  %v1402 = vpack.c.b16 %v1386, %v1386
  %v1403 = vpack.c.b16 %v1387, %v1387
  %v1404 = vpack.c.b16 %v1388, %v1388
  %v1405 = vpack.c.b16 %v1389, %v1389
  %v1406 = vpack.c.b16 %v1390, %v1390
  %v1407 = vpack.c.b16 %v1391, %v1391
  %v1408 = vpack.c.b16 %v1392, %v1392
  %v1409 = vpack.c.b16 %v1393, %v1393
  %v1410 = vpack.c.b16 %v1394, %v1394
  %v1411 = vpack.c.b16 %v1395, %v1395
  %1428 = vst [vmem:[%s4] sm:$0xf] %v1396
  %1429 = vst [vmem:[%s4 + $0x4] sm:$0xf] %v1397
  %1430 = vst [vmem:[%s4 + $0x8] sm:$0xf] %v1398
  %1431 = vst [vmem:[%s4 + $0xc] sm:$0xf] %v1399
  %1432 = vst [vmem:[%s4 + $0x10] sm:$0xf] %v1400
  %1433 = vst [vmem:[%s4 + $0x14] sm:$0xf] %v1401
  %1434 = vst [vmem:[%s4 + $0x18] sm:$0xf] %v1402
  %1435 = vst [vmem:[%s4 + $0x1c] sm:$0xf] %v1403
  %1436 = vst [vmem:[%s4 + $0x20] sm:$0xf] %v1404
  %1437 = vst [vmem:[%s4 + $0x24] sm:$0xf] %v1405
  %1438 = vst [vmem:[%s4 + $0x28] sm:$0xf] %v1406
  %1439 = vst [vmem:[%s4 + $0x2c] sm:$0xf] %v1407
  %1440 = vst [vmem:[%s4 + $0x30] sm:$0xf] %v1408
  %1441 = vst [vmem:[%s4 + $0x34] sm:$0xf] %v1409
  %1442 = vst [vmem:[%s4 + $0x38] sm:$0xf] %v1410
  %1443 = vst [vmem:[%s4 + $0x3c] sm:$0xf] %v1411
  // Predicated region
  $region18: #{_lambda_.10} parent=0 // pred_check
    _
  $region19: #{_lambda_.10} parent=0 // pred_check_branch
    %1445 = sbr.rel (0) target = $region21
  $region20: #{_lambda_.10} parent=0 // pred_region
    _
  $region21: #{_lambda_.10} parent=0 // pred_fallthru
    _
  // Predicated region
  $region22: #{_lambda_.10} parent=0 // pred_check
    _
  $region23: #{_lambda_.10} parent=0 // pred_check_branch
    %1447 = sbr.rel (0) target = $region25
  $region24: #{_lambda_.10} parent=0 // pred_region
    _
  $region25: #{_lambda_.10} parent=0 // pred_fallthru
    _

// kernel: _lambda_.11
$region0: #{_lambda_.11}
  #allocation0 [shape = 'u32[]', space=smem, size = 0x4, offset = 0x4, fixed_abs, tag = 'smem constant byte address 0x4 - core index']
  #allocation1 [shape = 'u32[144,128]{1,0:T(1,128)}', space=vmem, size = 0x12000, scoped, tag = 'internal scratch']
  %s0 = inlined_call_operand.vmem [shape: bf16[32,2048], index: 0, kind: input, shape index: {}]
  %s1 = inlined_call_operand.vmem [shape: bf16[2048,128], index: 1, kind: input, shape index: {}]
  %s2 = inlined_call_operand.vmem [shape: f32[1,128], index: 2, kind: input, shape index: {}]
  %s3 = inlined_call_operand.vmem [shape: f32[1,128], index: 3, kind: input, shape index: {}]
  %s4 = inlined_call_operand.vmem [shape: bf16[32,128], index: 4, kind: output, shape index: {}]
  %s5 = sld [smem:[#allocation0]]
  $region26: #{_lambda_.11} parent=0
    _
  %s7 = ssub.s32 1, %s5
  %s8 = scalar_select 0, %s7, %s5
  // Predicated region
  $region2: #{_lambda_.11} parent=0 // pred_check
    _
  $region3: #{_lambda_.11} parent=0 // pred_check_branch
    %10 = sbr.rel (0) target = $region5
  $region4: #{_lambda_.11} parent=0 // pred_region
    _
  $region5: #{_lambda_.11} parent=0 // pred_fallthru
    _
  // Predicated region
  $region6: #{_lambda_.11} parent=0 // pred_check
    _
  $region7: #{_lambda_.11} parent=0 // pred_check_branch
    %12 = sbr.rel (0) target = $region9
  $region8: #{_lambda_.11} parent=0 // pred_region
    _
  $region9: #{_lambda_.11} parent=0 // pred_fallthru
    _
  // Predicated region
  $region10: #{_lambda_.11} parent=0 // pred_check
    _
  $region11: #{_lambda_.11} parent=0 // pred_check_branch
    %14 = sbr.rel (0) target = $region13
  $region12: #{_lambda_.11} parent=0 // pred_region
    _
  $region13: #{_lambda_.11} parent=0 // pred_fallthru
    _
  // Predicated region
  $region14: #{_lambda_.11} parent=0 // pred_check
    _
  $region15: #{_lambda_.11} parent=0 // pred_check_branch
    %16 = sbr.rel (0) target = $region17
  $region16: #{_lambda_.11} parent=0 // pred_region
    _
  $region17: #{_lambda_.11} parent=0 // pred_fallthru
    _
  %v18 = vld [vmem:[%s0] sm:$0xff]
  %v19 = vld [vmem:[%s0 + $0x8] sm:$0xff]
  %v20 = vld [vmem:[%s0 + $0x10] sm:$0xff]
  %v21 = vld [vmem:[%s0 + $0x18] sm:$0xff]
  %v22 = vld [vmem:[%s0 + $0x20] sm:$0xff]
  %v23 = vld [vmem:[%s0 + $0x28] sm:$0xff]
  %v24 = vld [vmem:[%s0 + $0x30] sm:$0xff]
  %v25 = vld [vmem:[%s0 + $0x38] sm:$0xff]
  %v26 = vld [vmem:[%s0 + $0x40] sm:$0xff]
  %v27 = vld [vmem:[%s0 + $0x48] sm:$0xff]
  %v28 = vld [vmem:[%s0 + $0x50] sm:$0xff]
  %v29 = vld [vmem:[%s0 + $0x58] sm:$0xff]
  %v30 = vld [vmem:[%s0 + $0x60] sm:$0xff]
  %v31 = vld [vmem:[%s0 + $0x68] sm:$0xff]
  %v32 = vld [vmem:[%s0 + $0x70] sm:$0xff]
  %v33 = vld [vmem:[%s0 + $0x78] sm:$0xff]
  %v34 = vld [vmem:[%s0 + $0x80] sm:$0xff]
  %v35 = vld [vmem:[%s0 + $0x88] sm:$0xff]
  %v36 = vld [vmem:[%s0 + $0x90] sm:$0xff]
  %v37 = vld [vmem:[%s0 + $0x98] sm:$0xff]
  %v38 = vld [vmem:[%s0 + $0xa0] sm:$0xff]
  %v39 = vld [vmem:[%s0 + $0xa8] sm:$0xff]
  %v40 = vld [vmem:[%s0 + $0xb0] sm:$0xff]
  %v41 = vld [vmem:[%s0 + $0xb8] sm:$0xff]
  %v42 = vld [vmem:[%s0 + $0xc0] sm:$0xff]
  %v43 = vld [vmem:[%s0 + $0xc8] sm:$0xff]
  %v44 = vld [vmem:[%s0 + $0xd0] sm:$0xff]
  %v45 = vld [vmem:[%s0 + $0xd8] sm:$0xff]
  %v46 = vld [vmem:[%s0 + $0xe0] sm:$0xff]
  %v47 = vld [vmem:[%s0 + $0xe8] sm:$0xff]
  %v48 = vld [vmem:[%s0 + $0xf0] sm:$0xff]
  %v49 = vld [vmem:[%s0 + $0xf8] sm:$0xff]
  %v50 = vld [vmem:[%s1] sm:$0xf]
  %v51 = vld [vmem:[%s1 + $0x4] sm:$0xf]
  %v52 = vld [vmem:[%s1 + $0x8] sm:$0xf]
  %v53 = vld [vmem:[%s1 + $0xc] sm:$0xf]
  %v54 = vld [vmem:[%s1 + $0x10] sm:$0xf]
  %v55 = vld [vmem:[%s1 + $0x14] sm:$0xf]
  %v56 = vld [vmem:[%s1 + $0x18] sm:$0xf]
  %v57 = vld [vmem:[%s1 + $0x1c] sm:$0xf]
  %v58 = vld [vmem:[%s1 + $0x20] sm:$0xf]
  %v59 = vld [vmem:[%s1 + $0x24] sm:$0xf]
  %v60 = vld [vmem:[%s1 + $0x28] sm:$0xf]
  %v61 = vld [vmem:[%s1 + $0x2c] sm:$0xf]
  %v62 = vld [vmem:[%s1 + $0x30] sm:$0xf]
  %v63 = vld [vmem:[%s1 + $0x34] sm:$0xf]
  %v64 = vld [vmem:[%s1 + $0x38] sm:$0xf]
  %v65 = vld [vmem:[%s1 + $0x3c] sm:$0xf]
  %v66 = vld [vmem:[%s1 + $0x40] sm:$0xf]
  %v67 = vld [vmem:[%s1 + $0x44] sm:$0xf]
  %v68 = vld [vmem:[%s1 + $0x48] sm:$0xf]
  %v69 = vld [vmem:[%s1 + $0x4c] sm:$0xf]
  %v70 = vld [vmem:[%s1 + $0x50] sm:$0xf]
  %v71 = vld [vmem:[%s1 + $0x54] sm:$0xf]
  %v72 = vld [vmem:[%s1 + $0x58] sm:$0xf]
  %v73 = vld [vmem:[%s1 + $0x5c] sm:$0xf]
  %v74 = vld [vmem:[%s1 + $0x60] sm:$0xf]
  %v75 = vld [vmem:[%s1 + $0x64] sm:$0xf]
  %v76 = vld [vmem:[%s1 + $0x68] sm:$0xf]
  %v77 = vld [vmem:[%s1 + $0x6c] sm:$0xf]
  %v78 = vld [vmem:[%s1 + $0x70] sm:$0xf]
  %v79 = vld [vmem:[%s1 + $0x74] sm:$0xf]
  %v80 = vld [vmem:[%s1 + $0x78] sm:$0xf]
  %v81 = vld [vmem:[%s1 + $0x7c] sm:$0xf]
  %v82 = vld [vmem:[%s1 + $0x80] sm:$0xf]
  %v83 = vld [vmem:[%s1 + $0x84] sm:$0xf]
  %v84 = vld [vmem:[%s1 + $0x88] sm:$0xf]
  %v85 = vld [vmem:[%s1 + $0x8c] sm:$0xf]
  %v86 = vld [vmem:[%s1 + $0x90] sm:$0xf]
  %v87 = vld [vmem:[%s1 + $0x94] sm:$0xf]
  %v88 = vld [vmem:[%s1 + $0x98] sm:$0xf]
  %v89 = vld [vmem:[%s1 + $0x9c] sm:$0xf]
  %v90 = vld [vmem:[%s1 + $0xa0] sm:$0xf]
  %v91 = vld [vmem:[%s1 + $0xa4] sm:$0xf]
  %v92 = vld [vmem:[%s1 + $0xa8] sm:$0xf]
  %v93 = vld [vmem:[%s1 + $0xac] sm:$0xf]
  %v94 = vld [vmem:[%s1 + $0xb0] sm:$0xf]
  %v95 = vld [vmem:[%s1 + $0xb4] sm:$0xf]
  %v96 = vld [vmem:[%s1 + $0xb8] sm:$0xf]
  %v97 = vld [vmem:[%s1 + $0xbc] sm:$0xf]
  %v98 = vld [vmem:[%s1 + $0xc0] sm:$0xf]
  %v99 = vld [vmem:[%s1 + $0xc4] sm:$0xf]
  %v100 = vld [vmem:[%s1 + $0xc8] sm:$0xf]
  %v101 = vld [vmem:[%s1 + $0xcc] sm:$0xf]
  %v102 = vld [vmem:[%s1 + $0xd0] sm:$0xf]
  %v103 = vld [vmem:[%s1 + $0xd4] sm:$0xf]
  %v104 = vld [vmem:[%s1 + $0xd8] sm:$0xf]
  %v105 = vld [vmem:[%s1 + $0xdc] sm:$0xf]
  %v106 = vld [vmem:[%s1 + $0xe0] sm:$0xf]
  %v107 = vld [vmem:[%s1 + $0xe4] sm:$0xf]
  %v108 = vld [vmem:[%s1 + $0xe8] sm:$0xf]
  %v109 = vld [vmem:[%s1 + $0xec] sm:$0xf]
  %v110 = vld [vmem:[%s1 + $0xf0] sm:$0xf]
  %v111 = vld [vmem:[%s1 + $0xf4] sm:$0xf]
  %v112 = vld [vmem:[%s1 + $0xf8] sm:$0xf]
  %v113 = vld [vmem:[%s1 + $0xfc] sm:$0xf]
  %v114 = vld [vmem:[%s1 + $0x100] sm:$0xf]
  %v115 = vld [vmem:[%s1 + $0x104] sm:$0xf]
  %v116 = vld [vmem:[%s1 + $0x108] sm:$0xf]
  %v117 = vld [vmem:[%s1 + $0x10c] sm:$0xf]
  %v118 = vld [vmem:[%s1 + $0x110] sm:$0xf]
  %v119 = vld [vmem:[%s1 + $0x114] sm:$0xf]
  %v120 = vld [vmem:[%s1 + $0x118] sm:$0xf]
  %v121 = vld [vmem:[%s1 + $0x11c] sm:$0xf]
  %v122 = vld [vmem:[%s1 + $0x120] sm:$0xf]
  %v123 = vld [vmem:[%s1 + $0x124] sm:$0xf]
  %v124 = vld [vmem:[%s1 + $0x128] sm:$0xf]
  %v125 = vld [vmem:[%s1 + $0x12c] sm:$0xf]
  %v126 = vld [vmem:[%s1 + $0x130] sm:$0xf]
  %v127 = vld [vmem:[%s1 + $0x134] sm:$0xf]
  %v128 = vld [vmem:[%s1 + $0x138] sm:$0xf]
  %v129 = vld [vmem:[%s1 + $0x13c] sm:$0xf]
  %v130 = vld [vmem:[%s1 + $0x140] sm:$0xf]
  %v131 = vld [vmem:[%s1 + $0x144] sm:$0xf]
  %v132 = vld [vmem:[%s1 + $0x148] sm:$0xf]
  %v133 = vld [vmem:[%s1 + $0x14c] sm:$0xf]
  %v134 = vld [vmem:[%s1 + $0x150] sm:$0xf]
  %v135 = vld [vmem:[%s1 + $0x154] sm:$0xf]
  %v136 = vld [vmem:[%s1 + $0x158] sm:$0xf]
  %v137 = vld [vmem:[%s1 + $0x15c] sm:$0xf]
  %v138 = vld [vmem:[%s1 + $0x160] sm:$0xf]
  %v139 = vld [vmem:[%s1 + $0x164] sm:$0xf]
  %v140 = vld [vmem:[%s1 + $0x168] sm:$0xf]
  %v141 = vld [vmem:[%s1 + $0x16c] sm:$0xf]
  %v142 = vld [vmem:[%s1 + $0x170] sm:$0xf]
  %v143 = vld [vmem:[%s1 + $0x174] sm:$0xf]
  %v144 = vld [vmem:[%s1 + $0x178] sm:$0xf]
  %v145 = vld [vmem:[%s1 + $0x17c] sm:$0xf]
  %v146 = vld [vmem:[%s1 + $0x180] sm:$0xf]
  %v147 = vld [vmem:[%s1 + $0x184] sm:$0xf]
  %v148 = vld [vmem:[%s1 + $0x188] sm:$0xf]
  %v149 = vld [vmem:[%s1 + $0x18c] sm:$0xf]
  %v150 = vld [vmem:[%s1 + $0x190] sm:$0xf]
  %v151 = vld [vmem:[%s1 + $0x194] sm:$0xf]
  %v152 = vld [vmem:[%s1 + $0x198] sm:$0xf]
  %v153 = vld [vmem:[%s1 + $0x19c] sm:$0xf]
  %v154 = vld [vmem:[%s1 + $0x1a0] sm:$0xf]
  %v155 = vld [vmem:[%s1 + $0x1a4] sm:$0xf]
  %v156 = vld [vmem:[%s1 + $0x1a8] sm:$0xf]
  %v157 = vld [vmem:[%s1 + $0x1ac] sm:$0xf]
  %v158 = vld [vmem:[%s1 + $0x1b0] sm:$0xf]
  %v159 = vld [vmem:[%s1 + $0x1b4] sm:$0xf]
  %v160 = vld [vmem:[%s1 + $0x1b8] sm:$0xf]
  %v161 = vld [vmem:[%s1 + $0x1bc] sm:$0xf]
  %v162 = vld [vmem:[%s1 + $0x1c0] sm:$0xf]
  %v163 = vld [vmem:[%s1 + $0x1c4] sm:$0xf]
  %v164 = vld [vmem:[%s1 + $0x1c8] sm:$0xf]
  %v165 = vld [vmem:[%s1 + $0x1cc] sm:$0xf]
  %v166 = vld [vmem:[%s1 + $0x1d0] sm:$0xf]
  %v167 = vld [vmem:[%s1 + $0x1d4] sm:$0xf]
  %v168 = vld [vmem:[%s1 + $0x1d8] sm:$0xf]
  %v169 = vld [vmem:[%s1 + $0x1dc] sm:$0xf]
  %v170 = vld [vmem:[%s1 + $0x1e0] sm:$0xf]
  %v171 = vld [vmem:[%s1 + $0x1e4] sm:$0xf]
  %v172 = vld [vmem:[%s1 + $0x1e8] sm:$0xf]
  %v173 = vld [vmem:[%s1 + $0x1ec] sm:$0xf]
  %v174 = vld [vmem:[%s1 + $0x1f0] sm:$0xf]
  %v175 = vld [vmem:[%s1 + $0x1f4] sm:$0xf]
  %v176 = vld [vmem:[%s1 + $0x1f8] sm:$0xf]
  %v177 = vld [vmem:[%s1 + $0x1fc] sm:$0xf]
  %v178 = vld [vmem:[%s1 + $0x200] sm:$0xf]
  %v179 = vld [vmem:[%s1 + $0x204] sm:$0xf]
  %v180 = vld [vmem:[%s1 + $0x208] sm:$0xf]
  %v181 = vld [vmem:[%s1 + $0x20c] sm:$0xf]
  %v182 = vld [vmem:[%s1 + $0x210] sm:$0xf]
  %v183 = vld [vmem:[%s1 + $0x214] sm:$0xf]
  %v184 = vld [vmem:[%s1 + $0x218] sm:$0xf]
  %v185 = vld [vmem:[%s1 + $0x21c] sm:$0xf]
  %v186 = vld [vmem:[%s1 + $0x220] sm:$0xf]
  %v187 = vld [vmem:[%s1 + $0x224] sm:$0xf]
  %v188 = vld [vmem:[%s1 + $0x228] sm:$0xf]
  %v189 = vld [vmem:[%s1 + $0x22c] sm:$0xf]
  %v190 = vld [vmem:[%s1 + $0x230] sm:$0xf]
  %v191 = vld [vmem:[%s1 + $0x234] sm:$0xf]
  %v192 = vld [vmem:[%s1 + $0x238] sm:$0xf]
  %v193 = vld [vmem:[%s1 + $0x23c] sm:$0xf]
  %v194 = vld [vmem:[%s1 + $0x240] sm:$0xf]
  %v195 = vld [vmem:[%s1 + $0x244] sm:$0xf]
  %v196 = vld [vmem:[%s1 + $0x248] sm:$0xf]
  %v197 = vld [vmem:[%s1 + $0x24c] sm:$0xf]
  %v198 = vld [vmem:[%s1 + $0x250] sm:$0xf]
  %v199 = vld [vmem:[%s1 + $0x254] sm:$0xf]
  %v200 = vld [vmem:[%s1 + $0x258] sm:$0xf]
  %v201 = vld [vmem:[%s1 + $0x25c] sm:$0xf]
  %v202 = vld [vmem:[%s1 + $0x260] sm:$0xf]
  %v203 = vld [vmem:[%s1 + $0x264] sm:$0xf]
  %v204 = vld [vmem:[%s1 + $0x268] sm:$0xf]
  %v205 = vld [vmem:[%s1 + $0x26c] sm:$0xf]
  %v206 = vld [vmem:[%s1 + $0x270] sm:$0xf]
  %v207 = vld [vmem:[%s1 + $0x274] sm:$0xf]
  %v208 = vld [vmem:[%s1 + $0x278] sm:$0xf]
  %v209 = vld [vmem:[%s1 + $0x27c] sm:$0xf]
  %v210 = vld [vmem:[%s1 + $0x280] sm:$0xf]
  %v211 = vld [vmem:[%s1 + $0x284] sm:$0xf]
  %v212 = vld [vmem:[%s1 + $0x288] sm:$0xf]
  %v213 = vld [vmem:[%s1 + $0x28c] sm:$0xf]
  %v214 = vld [vmem:[%s1 + $0x290] sm:$0xf]
  %v215 = vld [vmem:[%s1 + $0x294] sm:$0xf]
  %v216 = vld [vmem:[%s1 + $0x298] sm:$0xf]
  %v217 = vld [vmem:[%s1 + $0x29c] sm:$0xf]
  %v218 = vld [vmem:[%s1 + $0x2a0] sm:$0xf]
  %v219 = vld [vmem:[%s1 + $0x2a4] sm:$0xf]
  %v220 = vld [vmem:[%s1 + $0x2a8] sm:$0xf]
  %v221 = vld [vmem:[%s1 + $0x2ac] sm:$0xf]
  %v222 = vld [vmem:[%s1 + $0x2b0] sm:$0xf]
  %v223 = vld [vmem:[%s1 + $0x2b4] sm:$0xf]
  %v224 = vld [vmem:[%s1 + $0x2b8] sm:$0xf]
  %v225 = vld [vmem:[%s1 + $0x2bc] sm:$0xf]
  %v226 = vld [vmem:[%s1 + $0x2c0] sm:$0xf]
  %v227 = vld [vmem:[%s1 + $0x2c4] sm:$0xf]
  %v228 = vld [vmem:[%s1 + $0x2c8] sm:$0xf]
  %v229 = vld [vmem:[%s1 + $0x2cc] sm:$0xf]
  %v230 = vld [vmem:[%s1 + $0x2d0] sm:$0xf]
  %v231 = vld [vmem:[%s1 + $0x2d4] sm:$0xf]
  %v232 = vld [vmem:[%s1 + $0x2d8] sm:$0xf]
  %v233 = vld [vmem:[%s1 + $0x2dc] sm:$0xf]
  %v234 = vld [vmem:[%s1 + $0x2e0] sm:$0xf]
  %v235 = vld [vmem:[%s1 + $0x2e4] sm:$0xf]
  %v236 = vld [vmem:[%s1 + $0x2e8] sm:$0xf]
  %v237 = vld [vmem:[%s1 + $0x2ec] sm:$0xf]
  %v238 = vld [vmem:[%s1 + $0x2f0] sm:$0xf]
  %v239 = vld [vmem:[%s1 + $0x2f4] sm:$0xf]
  %v240 = vld [vmem:[%s1 + $0x2f8] sm:$0xf]
  %v241 = vld [vmem:[%s1 + $0x2fc] sm:$0xf]
  %v242 = vld [vmem:[%s1 + $0x300] sm:$0xf]
  %v243 = vld [vmem:[%s1 + $0x304] sm:$0xf]
  %v244 = vld [vmem:[%s1 + $0x308] sm:$0xf]
  %v245 = vld [vmem:[%s1 + $0x30c] sm:$0xf]
  %v246 = vld [vmem:[%s1 + $0x310] sm:$0xf]
  %v247 = vld [vmem:[%s1 + $0x314] sm:$0xf]
  %v248 = vld [vmem:[%s1 + $0x318] sm:$0xf]
  %v249 = vld [vmem:[%s1 + $0x31c] sm:$0xf]
  %v250 = vld [vmem:[%s1 + $0x320] sm:$0xf]
  %v251 = vld [vmem:[%s1 + $0x324] sm:$0xf]
  %v252 = vld [vmem:[%s1 + $0x328] sm:$0xf]
  %v253 = vld [vmem:[%s1 + $0x32c] sm:$0xf]
  %v254 = vld [vmem:[%s1 + $0x330] sm:$0xf]
  %v255 = vld [vmem:[%s1 + $0x334] sm:$0xf]
  %v256 = vld [vmem:[%s1 + $0x338] sm:$0xf]
  %v257 = vld [vmem:[%s1 + $0x33c] sm:$0xf]
  %v258 = vld [vmem:[%s1 + $0x340] sm:$0xf]
  %v259 = vld [vmem:[%s1 + $0x344] sm:$0xf]
  %v260 = vld [vmem:[%s1 + $0x348] sm:$0xf]
  %v261 = vld [vmem:[%s1 + $0x34c] sm:$0xf]
  %v262 = vld [vmem:[%s1 + $0x350] sm:$0xf]
  %v263 = vld [vmem:[%s1 + $0x354] sm:$0xf]
  %v264 = vld [vmem:[%s1 + $0x358] sm:$0xf]
  %v265 = vld [vmem:[%s1 + $0x35c] sm:$0xf]
  %v266 = vld [vmem:[%s1 + $0x360] sm:$0xf]
  %v267 = vld [vmem:[%s1 + $0x364] sm:$0xf]
  %v268 = vld [vmem:[%s1 + $0x368] sm:$0xf]
  %v269 = vld [vmem:[%s1 + $0x36c] sm:$0xf]
  %v270 = vld [vmem:[%s1 + $0x370] sm:$0xf]
  %v271 = vld [vmem:[%s1 + $0x374] sm:$0xf]
  %v272 = vld [vmem:[%s1 + $0x378] sm:$0xf]
  %v273 = vld [vmem:[%s1 + $0x37c] sm:$0xf]
  %v274 = vld [vmem:[%s1 + $0x380] sm:$0xf]
  %v275 = vld [vmem:[%s1 + $0x384] sm:$0xf]
  %v276 = vld [vmem:[%s1 + $0x388] sm:$0xf]
  %v277 = vld [vmem:[%s1 + $0x38c] sm:$0xf]
  %v278 = vld [vmem:[%s1 + $0x390] sm:$0xf]
  %v279 = vld [vmem:[%s1 + $0x394] sm:$0xf]
  %v280 = vld [vmem:[%s1 + $0x398] sm:$0xf]
  %v281 = vld [vmem:[%s1 + $0x39c] sm:$0xf]
  %v282 = vld [vmem:[%s1 + $0x3a0] sm:$0xf]
  %v283 = vld [vmem:[%s1 + $0x3a4] sm:$0xf]
  %v284 = vld [vmem:[%s1 + $0x3a8] sm:$0xf]
  %v285 = vld [vmem:[%s1 + $0x3ac] sm:$0xf]
  %v286 = vld [vmem:[%s1 + $0x3b0] sm:$0xf]
  %v287 = vld [vmem:[%s1 + $0x3b4] sm:$0xf]
  %v288 = vld [vmem:[%s1 + $0x3b8] sm:$0xf]
  %v289 = vld [vmem:[%s1 + $0x3bc] sm:$0xf]
  %v290 = vld [vmem:[%s1 + $0x3c0] sm:$0xf]
  %v291 = vld [vmem:[%s1 + $0x3c4] sm:$0xf]
  %v292 = vld [vmem:[%s1 + $0x3c8] sm:$0xf]
  %v293 = vld [vmem:[%s1 + $0x3cc] sm:$0xf]
  %v294 = vld [vmem:[%s1 + $0x3d0] sm:$0xf]
  %v295 = vld [vmem:[%s1 + $0x3d4] sm:$0xf]
  %v296 = vld [vmem:[%s1 + $0x3d8] sm:$0xf]
  %v297 = vld [vmem:[%s1 + $0x3dc] sm:$0xf]
  %v298 = vld [vmem:[%s1 + $0x3e0] sm:$0xf]
  %v299 = vld [vmem:[%s1 + $0x3e4] sm:$0xf]
  %v300 = vld [vmem:[%s1 + $0x3e8] sm:$0xf]
  %v301 = vld [vmem:[%s1 + $0x3ec] sm:$0xf]
  %v302 = vld [vmem:[%s1 + $0x3f0] sm:$0xf]
  %v303 = vld [vmem:[%s1 + $0x3f4] sm:$0xf]
  %v304 = vld [vmem:[%s1 + $0x3f8] sm:$0xf]
  %v305 = vld [vmem:[%s1 + $0x3fc] sm:$0xf]
  %v338 = vunpack.c.l.b16 %v18
  %v339 = vunpack.c.h.b16 %v18
  %v340 = vunpack.c.l.b16 %v19
  %v341 = vunpack.c.h.b16 %v19
  %v342 = vunpack.c.l.b16 %v20
  %v343 = vunpack.c.h.b16 %v20
  %v344 = vunpack.c.l.b16 %v21
  %v345 = vunpack.c.h.b16 %v21
  %v346 = vunpack.c.l.b16 %v22
  %v347 = vunpack.c.h.b16 %v22
  %v348 = vunpack.c.l.b16 %v23
  %v349 = vunpack.c.h.b16 %v23
  %v350 = vunpack.c.l.b16 %v24
  %v351 = vunpack.c.h.b16 %v24
  %v352 = vunpack.c.l.b16 %v25
  %v353 = vunpack.c.h.b16 %v25
  %v354 = vunpack.c.l.b16 %v26
  %v355 = vunpack.c.h.b16 %v26
  %v356 = vunpack.c.l.b16 %v27
  %v357 = vunpack.c.h.b16 %v27
  %v358 = vunpack.c.l.b16 %v28
  %v359 = vunpack.c.h.b16 %v28
  %v360 = vunpack.c.l.b16 %v29
  %v361 = vunpack.c.h.b16 %v29
  %v362 = vunpack.c.l.b16 %v30
  %v363 = vunpack.c.h.b16 %v30
  %v364 = vunpack.c.l.b16 %v31
  %v365 = vunpack.c.h.b16 %v31
  %v366 = vunpack.c.l.b16 %v32
  %v367 = vunpack.c.h.b16 %v32
  %v368 = vunpack.c.l.b16 %v33
  %v369 = vunpack.c.h.b16 %v33
  %v370 = vunpack.c.l.b16 %v34
  %v371 = vunpack.c.h.b16 %v34
  %v372 = vunpack.c.l.b16 %v35
  %v373 = vunpack.c.h.b16 %v35
  %v374 = vunpack.c.l.b16 %v36
  %v375 = vunpack.c.h.b16 %v36
  %v376 = vunpack.c.l.b16 %v37
  %v377 = vunpack.c.h.b16 %v37
  %v378 = vunpack.c.l.b16 %v38
  %v379 = vunpack.c.h.b16 %v38
  %v380 = vunpack.c.l.b16 %v39
  %v381 = vunpack.c.h.b16 %v39
  %v382 = vunpack.c.l.b16 %v40
  %v383 = vunpack.c.h.b16 %v40
  %v384 = vunpack.c.l.b16 %v41
  %v385 = vunpack.c.h.b16 %v41
  %v386 = vunpack.c.l.b16 %v42
  %v387 = vunpack.c.h.b16 %v42
  %v388 = vunpack.c.l.b16 %v43
  %v389 = vunpack.c.h.b16 %v43
  %v390 = vunpack.c.l.b16 %v44
  %v391 = vunpack.c.h.b16 %v44
  %v392 = vunpack.c.l.b16 %v45
  %v393 = vunpack.c.h.b16 %v45
  %v394 = vunpack.c.l.b16 %v46
  %v395 = vunpack.c.h.b16 %v46
  %v396 = vunpack.c.l.b16 %v47
  %v397 = vunpack.c.h.b16 %v47
  %v398 = vunpack.c.l.b16 %v48
  %v399 = vunpack.c.h.b16 %v48
  %v400 = vunpack.c.l.b16 %v49
  %v401 = vunpack.c.h.b16 %v49
  %v402 = vpack.c.b16 %v354, %v338
  %v403 = vpack.c.b16 %v355, %v339
  %v404 = vpack.c.b16 %v356, %v340
  %v405 = vpack.c.b16 %v357, %v341
  %v406 = vpack.c.b16 %v358, %v342
  %v407 = vpack.c.b16 %v359, %v343
  %v408 = vpack.c.b16 %v360, %v344
  %v409 = vpack.c.b16 %v361, %v345
  %v410 = vpack.c.b16 %v362, %v346
  %v411 = vpack.c.b16 %v363, %v347
  %v412 = vpack.c.b16 %v364, %v348
  %v413 = vpack.c.b16 %v365, %v349
  %v414 = vpack.c.b16 %v366, %v350
  %v415 = vpack.c.b16 %v367, %v351
  %v416 = vpack.c.b16 %v368, %v352
  %v417 = vpack.c.b16 %v369, %v353
  %v418 = vpack.c.b16 %v386, %v370
  %v419 = vpack.c.b16 %v387, %v371
  %v420 = vpack.c.b16 %v388, %v372
  %v421 = vpack.c.b16 %v389, %v373
  %v422 = vpack.c.b16 %v390, %v374
  %v423 = vpack.c.b16 %v391, %v375
  %v424 = vpack.c.b16 %v392, %v376
  %v425 = vpack.c.b16 %v393, %v377
  %v426 = vpack.c.b16 %v394, %v378
  %v427 = vpack.c.b16 %v395, %v379
  %v428 = vpack.c.b16 %v396, %v380
  %v429 = vpack.c.b16 %v397, %v381
  %v430 = vpack.c.b16 %v398, %v382
  %v431 = vpack.c.b16 %v399, %v383
  %v432 = vpack.c.b16 %v400, %v384
  %v433 = vpack.c.b16 %v401, %v385
  %v722 = vunpack.c.l.b16 %v50
  %v723 = vunpack.c.l.b16 %v51
  %v724 = vunpack.c.l.b16 %v52
  %v725 = vunpack.c.l.b16 %v53
  %v726 = vunpack.c.l.b16 %v54
  %v727 = vunpack.c.l.b16 %v55
  %v728 = vunpack.c.l.b16 %v56
  %v729 = vunpack.c.l.b16 %v57
  %v730 = vunpack.c.l.b16 %v58
  %v731 = vunpack.c.l.b16 %v59
  %v732 = vunpack.c.l.b16 %v60
  %v733 = vunpack.c.l.b16 %v61
  %v734 = vunpack.c.l.b16 %v62
  %v735 = vunpack.c.l.b16 %v63
  %v736 = vunpack.c.l.b16 %v64
  %v737 = vunpack.c.l.b16 %v65
  %v738 = vunpack.c.l.b16 %v66
  %v739 = vunpack.c.l.b16 %v67
  %v740 = vunpack.c.l.b16 %v68
  %v741 = vunpack.c.l.b16 %v69
  %v742 = vunpack.c.l.b16 %v70
  %v743 = vunpack.c.l.b16 %v71
  %v744 = vunpack.c.l.b16 %v72
  %v745 = vunpack.c.l.b16 %v73
  %v746 = vunpack.c.l.b16 %v74
  %v747 = vunpack.c.l.b16 %v75
  %v748 = vunpack.c.l.b16 %v76
  %v749 = vunpack.c.l.b16 %v77
  %v750 = vunpack.c.l.b16 %v78
  %v751 = vunpack.c.l.b16 %v79
  %v752 = vunpack.c.l.b16 %v80
  %v753 = vunpack.c.l.b16 %v81
  %v754 = vunpack.c.l.b16 %v82
  %v755 = vunpack.c.l.b16 %v83
  %v756 = vunpack.c.l.b16 %v84
  %v757 = vunpack.c.l.b16 %v85
  %v758 = vunpack.c.l.b16 %v86
  %v759 = vunpack.c.l.b16 %v87
  %v760 = vunpack.c.l.b16 %v88
  %v761 = vunpack.c.l.b16 %v89
  %v762 = vunpack.c.l.b16 %v90
  %v763 = vunpack.c.l.b16 %v91
  %v764 = vunpack.c.l.b16 %v92
  %v765 = vunpack.c.l.b16 %v93
  %v766 = vunpack.c.l.b16 %v94
  %v767 = vunpack.c.l.b16 %v95
  %v768 = vunpack.c.l.b16 %v96
  %v769 = vunpack.c.l.b16 %v97
  %v770 = vunpack.c.l.b16 %v98
  %v771 = vunpack.c.l.b16 %v99
  %v772 = vunpack.c.l.b16 %v100
  %v773 = vunpack.c.l.b16 %v101
  %v774 = vunpack.c.l.b16 %v102
  %v775 = vunpack.c.l.b16 %v103
  %v776 = vunpack.c.l.b16 %v104
  %v777 = vunpack.c.l.b16 %v105
  %v778 = vunpack.c.l.b16 %v106
  %v779 = vunpack.c.l.b16 %v107
  %v780 = vunpack.c.l.b16 %v108
  %v781 = vunpack.c.l.b16 %v109
  %v782 = vunpack.c.l.b16 %v110
  %v783 = vunpack.c.l.b16 %v111
  %v784 = vunpack.c.l.b16 %v112
  %v785 = vunpack.c.l.b16 %v113
  %v786 = vunpack.c.l.b16 %v114
  %v787 = vunpack.c.l.b16 %v115
  %v788 = vunpack.c.l.b16 %v116
  %v789 = vunpack.c.l.b16 %v117
  %v790 = vunpack.c.l.b16 %v118
  %v791 = vunpack.c.l.b16 %v119
  %v792 = vunpack.c.l.b16 %v120
  %v793 = vunpack.c.l.b16 %v121
  %v794 = vunpack.c.l.b16 %v122
  %v795 = vunpack.c.l.b16 %v123
  %v796 = vunpack.c.l.b16 %v124
  %v797 = vunpack.c.l.b16 %v125
  %v798 = vunpack.c.l.b16 %v126
  %v799 = vunpack.c.l.b16 %v127
  %v800 = vunpack.c.l.b16 %v128
  %v801 = vunpack.c.l.b16 %v129
  %v802 = vunpack.c.l.b16 %v130
  %v803 = vunpack.c.l.b16 %v131
  %v804 = vunpack.c.l.b16 %v132
  %v805 = vunpack.c.l.b16 %v133
  %v806 = vunpack.c.l.b16 %v134
  %v807 = vunpack.c.l.b16 %v135
  %v808 = vunpack.c.l.b16 %v136
  %v809 = vunpack.c.l.b16 %v137
  %v810 = vunpack.c.l.b16 %v138
  %v811 = vunpack.c.l.b16 %v139
  %v812 = vunpack.c.l.b16 %v140
  %v813 = vunpack.c.l.b16 %v141
  %v814 = vunpack.c.l.b16 %v142
  %v815 = vunpack.c.l.b16 %v143
  %v816 = vunpack.c.l.b16 %v144
  %v817 = vunpack.c.l.b16 %v145
  %v818 = vunpack.c.l.b16 %v146
  %v819 = vunpack.c.l.b16 %v147
  %v820 = vunpack.c.l.b16 %v148
  %v821 = vunpack.c.l.b16 %v149
  %v822 = vunpack.c.l.b16 %v150
  %v823 = vunpack.c.l.b16 %v151
  %v824 = vunpack.c.l.b16 %v152
  %v825 = vunpack.c.l.b16 %v153
  %v826 = vunpack.c.l.b16 %v154
  %v827 = vunpack.c.l.b16 %v155
  %v828 = vunpack.c.l.b16 %v156
  %v829 = vunpack.c.l.b16 %v157
  %v830 = vunpack.c.l.b16 %v158
  %v831 = vunpack.c.l.b16 %v159
  %v832 = vunpack.c.l.b16 %v160
  %v833 = vunpack.c.l.b16 %v161
  %v834 = vunpack.c.l.b16 %v162
  %v835 = vunpack.c.l.b16 %v163
  %v836 = vunpack.c.l.b16 %v164
  %v837 = vunpack.c.l.b16 %v165
  %v838 = vunpack.c.l.b16 %v166
  %v839 = vunpack.c.l.b16 %v167
  %v840 = vunpack.c.l.b16 %v168
  %v841 = vunpack.c.l.b16 %v169
  %v842 = vunpack.c.l.b16 %v170
  %v843 = vunpack.c.l.b16 %v171
  %v844 = vunpack.c.l.b16 %v172
  %v845 = vunpack.c.l.b16 %v173
  %v846 = vunpack.c.l.b16 %v174
  %v847 = vunpack.c.l.b16 %v175
  %v848 = vunpack.c.l.b16 %v176
  %v849 = vunpack.c.l.b16 %v177
  %v850 = vunpack.c.l.b16 %v178
  %v851 = vunpack.c.l.b16 %v179
  %v852 = vunpack.c.l.b16 %v180
  %v853 = vunpack.c.l.b16 %v181
  %v854 = vunpack.c.l.b16 %v182
  %v855 = vunpack.c.l.b16 %v183
  %v856 = vunpack.c.l.b16 %v184
  %v857 = vunpack.c.l.b16 %v185
  %v858 = vunpack.c.l.b16 %v186
  %v859 = vunpack.c.l.b16 %v187
  %v860 = vunpack.c.l.b16 %v188
  %v861 = vunpack.c.l.b16 %v189
  %v862 = vunpack.c.l.b16 %v190
  %v863 = vunpack.c.l.b16 %v191
  %v864 = vunpack.c.l.b16 %v192
  %v865 = vunpack.c.l.b16 %v193
  %v866 = vunpack.c.l.b16 %v194
  %v867 = vunpack.c.l.b16 %v195
  %v868 = vunpack.c.l.b16 %v196
  %v869 = vunpack.c.l.b16 %v197
  %v870 = vunpack.c.l.b16 %v198
  %v871 = vunpack.c.l.b16 %v199
  %v872 = vunpack.c.l.b16 %v200
  %v873 = vunpack.c.l.b16 %v201
  %v874 = vunpack.c.l.b16 %v202
  %v875 = vunpack.c.l.b16 %v203
  %v876 = vunpack.c.l.b16 %v204
  %v877 = vunpack.c.l.b16 %v205
  %v878 = vunpack.c.l.b16 %v206
  %v879 = vunpack.c.l.b16 %v207
  %v880 = vunpack.c.l.b16 %v208
  %v881 = vunpack.c.l.b16 %v209
  %v882 = vunpack.c.l.b16 %v210
  %v883 = vunpack.c.l.b16 %v211
  %v884 = vunpack.c.l.b16 %v212
  %v885 = vunpack.c.l.b16 %v213
  %v886 = vunpack.c.l.b16 %v214
  %v887 = vunpack.c.l.b16 %v215
  %v888 = vunpack.c.l.b16 %v216
  %v889 = vunpack.c.l.b16 %v217
  %v890 = vunpack.c.l.b16 %v218
  %v891 = vunpack.c.l.b16 %v219
  %v892 = vunpack.c.l.b16 %v220
  %v893 = vunpack.c.l.b16 %v221
  %v894 = vunpack.c.l.b16 %v222
  %v895 = vunpack.c.l.b16 %v223
  %v896 = vunpack.c.l.b16 %v224
  %v897 = vunpack.c.l.b16 %v225
  %v898 = vunpack.c.l.b16 %v226
  %v899 = vunpack.c.l.b16 %v227
  %v900 = vunpack.c.l.b16 %v228
  %v901 = vunpack.c.l.b16 %v229
  %v902 = vunpack.c.l.b16 %v230
  %v903 = vunpack.c.l.b16 %v231
  %v904 = vunpack.c.l.b16 %v232
  %v905 = vunpack.c.l.b16 %v233
  %v906 = vunpack.c.l.b16 %v234
  %v907 = vunpack.c.l.b16 %v235
  %v908 = vunpack.c.l.b16 %v236
  %v909 = vunpack.c.l.b16 %v237
  %v910 = vunpack.c.l.b16 %v238
  %v911 = vunpack.c.l.b16 %v239
  %v912 = vunpack.c.l.b16 %v240
  %v913 = vunpack.c.l.b16 %v241
  %v914 = vunpack.c.l.b16 %v242
  %v915 = vunpack.c.l.b16 %v243
  %v916 = vunpack.c.l.b16 %v244
  %v917 = vunpack.c.l.b16 %v245
  %v918 = vunpack.c.l.b16 %v246
  %v919 = vunpack.c.l.b16 %v247
  %v920 = vunpack.c.l.b16 %v248
  %v921 = vunpack.c.l.b16 %v249
  %v922 = vunpack.c.l.b16 %v250
  %v923 = vunpack.c.l.b16 %v251
  %v924 = vunpack.c.l.b16 %v252
  %v925 = vunpack.c.l.b16 %v253
  %v926 = vunpack.c.l.b16 %v254
  %v927 = vunpack.c.l.b16 %v255
  %v928 = vunpack.c.l.b16 %v256
  %v929 = vunpack.c.l.b16 %v257
  %v930 = vunpack.c.l.b16 %v258
  %v931 = vunpack.c.l.b16 %v259
  %v932 = vunpack.c.l.b16 %v260
  %v933 = vunpack.c.l.b16 %v261
  %v934 = vunpack.c.l.b16 %v262
  %v935 = vunpack.c.l.b16 %v263
  %v936 = vunpack.c.l.b16 %v264
  %v937 = vunpack.c.l.b16 %v265
  %v938 = vunpack.c.l.b16 %v266
  %v939 = vunpack.c.l.b16 %v267
  %v940 = vunpack.c.l.b16 %v268
  %v941 = vunpack.c.l.b16 %v269
  %v942 = vunpack.c.l.b16 %v270
  %v943 = vunpack.c.l.b16 %v271
  %v944 = vunpack.c.l.b16 %v272
  %v945 = vunpack.c.l.b16 %v273
  %v946 = vunpack.c.l.b16 %v274
  %v947 = vunpack.c.l.b16 %v275
  %v948 = vunpack.c.l.b16 %v276
  %v949 = vunpack.c.l.b16 %v277
  %v950 = vunpack.c.l.b16 %v278
  %v951 = vunpack.c.l.b16 %v279
  %v952 = vunpack.c.l.b16 %v280
  %v953 = vunpack.c.l.b16 %v281
  %v954 = vunpack.c.l.b16 %v282
  %v955 = vunpack.c.l.b16 %v283
  %v956 = vunpack.c.l.b16 %v284
  %v957 = vunpack.c.l.b16 %v285
  %v958 = vunpack.c.l.b16 %v286
  %v959 = vunpack.c.l.b16 %v287
  %v960 = vunpack.c.l.b16 %v288
  %v961 = vunpack.c.l.b16 %v289
  %v962 = vunpack.c.l.b16 %v290
  %v963 = vunpack.c.l.b16 %v291
  %v964 = vunpack.c.l.b16 %v292
  %v965 = vunpack.c.l.b16 %v293
  %v966 = vunpack.c.l.b16 %v294
  %v967 = vunpack.c.l.b16 %v295
  %v968 = vunpack.c.l.b16 %v296
  %v969 = vunpack.c.l.b16 %v297
  %v970 = vunpack.c.l.b16 %v298
  %v971 = vunpack.c.l.b16 %v299
  %v972 = vunpack.c.l.b16 %v300
  %v973 = vunpack.c.l.b16 %v301
  %v974 = vunpack.c.l.b16 %v302
  %v975 = vunpack.c.l.b16 %v303
  %v976 = vunpack.c.l.b16 %v304
  %v977 = vunpack.c.l.b16 %v305
  %v978 = vpack.c.b16 %v723, %v722
  %v979 = vpack.c.b16 %v725, %v724
  %v980 = vpack.c.b16 %v727, %v726
  %v981 = vpack.c.b16 %v729, %v728
  %v982 = vpack.c.b16 %v731, %v730
  %v983 = vpack.c.b16 %v733, %v732
  %v984 = vpack.c.b16 %v735, %v734
  %v985 = vpack.c.b16 %v737, %v736
  %v986 = vpack.c.b16 %v739, %v738
  %v987 = vpack.c.b16 %v741, %v740
  %v988 = vpack.c.b16 %v743, %v742
  %v989 = vpack.c.b16 %v745, %v744
  %v990 = vpack.c.b16 %v747, %v746
  %v991 = vpack.c.b16 %v749, %v748
  %v992 = vpack.c.b16 %v751, %v750
  %v993 = vpack.c.b16 %v753, %v752
  %v994 = vpack.c.b16 %v755, %v754
  %v995 = vpack.c.b16 %v757, %v756
  %v996 = vpack.c.b16 %v759, %v758
  %v997 = vpack.c.b16 %v761, %v760
  %v998 = vpack.c.b16 %v763, %v762
  %v999 = vpack.c.b16 %v765, %v764
  %v1000 = vpack.c.b16 %v767, %v766
  %v1001 = vpack.c.b16 %v769, %v768
  %v1002 = vpack.c.b16 %v771, %v770
  %v1003 = vpack.c.b16 %v773, %v772
  %v1004 = vpack.c.b16 %v775, %v774
  %v1005 = vpack.c.b16 %v777, %v776
  %v1006 = vpack.c.b16 %v779, %v778
  %v1007 = vpack.c.b16 %v781, %v780
  %v1008 = vpack.c.b16 %v783, %v782
  %v1009 = vpack.c.b16 %v785, %v784
  %v1010 = vpack.c.b16 %v787, %v786
  %v1011 = vpack.c.b16 %v789, %v788
  %v1012 = vpack.c.b16 %v791, %v790
  %v1013 = vpack.c.b16 %v793, %v792
  %v1014 = vpack.c.b16 %v795, %v794
  %v1015 = vpack.c.b16 %v797, %v796
  %v1016 = vpack.c.b16 %v799, %v798
  %v1017 = vpack.c.b16 %v801, %v800
  %v1018 = vpack.c.b16 %v803, %v802
  %v1019 = vpack.c.b16 %v805, %v804
  %v1020 = vpack.c.b16 %v807, %v806
  %v1021 = vpack.c.b16 %v809, %v808
  %v1022 = vpack.c.b16 %v811, %v810
  %v1023 = vpack.c.b16 %v813, %v812
  %v1024 = vpack.c.b16 %v815, %v814
  %v1025 = vpack.c.b16 %v817, %v816
  %v1026 = vpack.c.b16 %v819, %v818
  %v1027 = vpack.c.b16 %v821, %v820
  %v1028 = vpack.c.b16 %v823, %v822
  %v1029 = vpack.c.b16 %v825, %v824
  %v1030 = vpack.c.b16 %v827, %v826
  %v1031 = vpack.c.b16 %v829, %v828
  %v1032 = vpack.c.b16 %v831, %v830
  %v1033 = vpack.c.b16 %v833, %v832
  %v1034 = vpack.c.b16 %v835, %v834
  %v1035 = vpack.c.b16 %v837, %v836
  %v1036 = vpack.c.b16 %v839, %v838
  %v1037 = vpack.c.b16 %v841, %v840
  %v1038 = vpack.c.b16 %v843, %v842
  %v1039 = vpack.c.b16 %v845, %v844
  %v1040 = vpack.c.b16 %v847, %v846
  %v1041 = vpack.c.b16 %v849, %v848
  %v1042 = vpack.c.b16 %v851, %v850
  %v1043 = vpack.c.b16 %v853, %v852
  %v1044 = vpack.c.b16 %v855, %v854
  %v1045 = vpack.c.b16 %v857, %v856
  %v1046 = vpack.c.b16 %v859, %v858
  %v1047 = vpack.c.b16 %v861, %v860
  %v1048 = vpack.c.b16 %v863, %v862
  %v1049 = vpack.c.b16 %v865, %v864
  %v1050 = vpack.c.b16 %v867, %v866
  %v1051 = vpack.c.b16 %v869, %v868
  %v1052 = vpack.c.b16 %v871, %v870
  %v1053 = vpack.c.b16 %v873, %v872
  %v1054 = vpack.c.b16 %v875, %v874
  %v1055 = vpack.c.b16 %v877, %v876
  %v1056 = vpack.c.b16 %v879, %v878
  %v1057 = vpack.c.b16 %v881, %v880
  %v1058 = vpack.c.b16 %v883, %v882
  %v1059 = vpack.c.b16 %v885, %v884
  %v1060 = vpack.c.b16 %v887, %v886
  %v1061 = vpack.c.b16 %v889, %v888
  %v1062 = vpack.c.b16 %v891, %v890
  %v1063 = vpack.c.b16 %v893, %v892
  %v1064 = vpack.c.b16 %v895, %v894
  %v1065 = vpack.c.b16 %v897, %v896
  %v1066 = vpack.c.b16 %v899, %v898
  %v1067 = vpack.c.b16 %v901, %v900
  %v1068 = vpack.c.b16 %v903, %v902
  %v1069 = vpack.c.b16 %v905, %v904
  %v1070 = vpack.c.b16 %v907, %v906
  %v1071 = vpack.c.b16 %v909, %v908
  %v1072 = vpack.c.b16 %v911, %v910
  %v1073 = vpack.c.b16 %v913, %v912
  %v1074 = vpack.c.b16 %v915, %v914
  %v1075 = vpack.c.b16 %v917, %v916
  %v1076 = vpack.c.b16 %v919, %v918
  %v1077 = vpack.c.b16 %v921, %v920
  %v1078 = vpack.c.b16 %v923, %v922
  %v1079 = vpack.c.b16 %v925, %v924
  %v1080 = vpack.c.b16 %v927, %v926
  %v1081 = vpack.c.b16 %v929, %v928
  %v1082 = vpack.c.b16 %v931, %v930
  %v1083 = vpack.c.b16 %v933, %v932
  %v1084 = vpack.c.b16 %v935, %v934
  %v1085 = vpack.c.b16 %v937, %v936
  %v1086 = vpack.c.b16 %v939, %v938
  %v1087 = vpack.c.b16 %v941, %v940
  %v1088 = vpack.c.b16 %v943, %v942
  %v1089 = vpack.c.b16 %v945, %v944
  %v1090 = vpack.c.b16 %v947, %v946
  %v1091 = vpack.c.b16 %v949, %v948
  %v1092 = vpack.c.b16 %v951, %v950
  %v1093 = vpack.c.b16 %v953, %v952
  %v1094 = vpack.c.b16 %v955, %v954
  %v1095 = vpack.c.b16 %v957, %v956
  %v1096 = vpack.c.b16 %v959, %v958
  %v1097 = vpack.c.b16 %v961, %v960
  %v1098 = vpack.c.b16 %v963, %v962
  %v1099 = vpack.c.b16 %v965, %v964
  %v1100 = vpack.c.b16 %v967, %v966
  %v1101 = vpack.c.b16 %v969, %v968
  %v1102 = vpack.c.b16 %v971, %v970
  %v1103 = vpack.c.b16 %v973, %v972
  %v1104 = vpack.c.b16 %v975, %v974
  %v1105 = vpack.c.b16 %v977, %v976
  %1234 = vmatprep.subr.bf16.mxu0 0
  %1235 = vmatpush1.bf16.msra.mxu0 %v985
  %1236 = vmatprep.subr.bf16.mxu0 0
  %1237 = vmatpush1.bf16.msra.mxu0 %v984
  %1238 = vmatprep.subr.bf16.mxu0 0
  %1239 = vmatpush1.bf16.msra.mxu0 %v983
  %1240 = vmatprep.subr.bf16.mxu0 0
  %1241 = vmatpush1.bf16.msra.mxu0 %v982
  %1242 = vmatprep.subr.bf16.mxu0 0
  %1243 = vmatpush1.bf16.msra.mxu0 %v981
  %1244 = vmatprep.subr.bf16.mxu0 0
  %1245 = vmatpush1.bf16.msra.mxu0 %v980
  %1246 = vmatprep.subr.bf16.mxu0 0
  %1247 = vmatpush1.bf16.msra.mxu0 %v979
  %1248 = vmatprep.subr.bf16.mxu0 0
  %1249 = vmatpush1.bf16.msra.mxu0 %v978
  %1250 = vmatprep.subr.bf16.mxu0 0
  %1251 = vmatpush2.bf16.msra.mxu0 %v993
  %1252 = vmatprep.subr.bf16.mxu0 0
  %1253 = vmatpush2.bf16.msra.mxu0 %v992
  %1254 = vmatprep.subr.bf16.mxu0 0
  %1255 = vmatpush2.bf16.msra.mxu0 %v991
  %1256 = vmatprep.subr.bf16.mxu0 0
  %1257 = vmatpush2.bf16.msra.mxu0 %v990
  %1258 = vmatprep.subr.bf16.mxu0 0
  %1259 = vmatpush2.bf16.msra.mxu0 %v989
  %1260 = vmatprep.subr.bf16.mxu0 0
  %1261 = vmatpush2.bf16.msra.mxu0 %v988
  %1262 = vmatprep.subr.bf16.mxu0 0
  %1263 = vmatpush2.bf16.msra.mxu0 %v987
  %1264 = vmatprep.subr.bf16.mxu0 0
  %1265 = vmatpush2.bf16.msra.mxu0 %v986
  %1266 = vmatprep.mubr.bf16.mxu0 %v403
  %1267 = vmatmul.mubr.bf16.gmra.mxu0 %v402
  %v1268 = vpop.f32.mrf.mxu0
  %v1269 = vadd.f32 0.0, %v1268
  %v1270 = vpop.f32.mrf.mxu0
  %v1271 = vpop.f32.mrf.mxu0
  %v1272 = vadd.f32 0.0, %v1271
  %v1273 = vpop.f32.mrf.mxu0
  %1274 = vmatprep.mubr.bf16.mxu0 %v419
  %1275 = vmatmul.mubr.bf16.gmra.mxu0 %v418
  %v1276 = vpop.f32.mrf.mxu0
  %v1277 = vadd.f32 0.0, %v1276
  %v1278 = vpop.f32.mrf.mxu0
  %v1279 = vpop.f32.mrf.mxu0
  %v1280 = vadd.f32 0.0, %v1279
  %v1281 = vpop.f32.mrf.mxu0
  %1282 = vdwg.mxu0
  %1283 = vmatprep.subr.bf16.mxu0 0
  %1284 = vmatpush1.bf16.msra.mxu0 %v1001
  %1285 = vmatprep.subr.bf16.mxu0 0
  %1286 = vmatpush1.bf16.msra.mxu0 %v1000
  %1287 = vmatprep.subr.bf16.mxu0 0
  %1288 = vmatpush1.bf16.msra.mxu0 %v999
  %1289 = vmatprep.subr.bf16.mxu0 0
  %1290 = vmatpush1.bf16.msra.mxu0 %v998
  %1291 = vmatprep.subr.bf16.mxu0 0
  %1292 = vmatpush1.bf16.msra.mxu0 %v997
  %1293 = vmatprep.subr.bf16.mxu0 0
  %1294 = vmatpush1.bf16.msra.mxu0 %v996
  %1295 = vmatprep.subr.bf16.mxu0 0
  %1296 = vmatpush1.bf16.msra.mxu0 %v995
  %1297 = vmatprep.subr.bf16.mxu0 0
  %1298 = vmatpush1.bf16.msra.mxu0 %v994
  %1299 = vmatprep.subr.bf16.mxu0 0
  %1300 = vmatpush2.bf16.msra.mxu0 %v1009
  %1301 = vmatprep.subr.bf16.mxu0 0
  %1302 = vmatpush2.bf16.msra.mxu0 %v1008
  %1303 = vmatprep.subr.bf16.mxu0 0
  %1304 = vmatpush2.bf16.msra.mxu0 %v1007
  %1305 = vmatprep.subr.bf16.mxu0 0
  %1306 = vmatpush2.bf16.msra.mxu0 %v1006
  %1307 = vmatprep.subr.bf16.mxu0 0
  %1308 = vmatpush2.bf16.msra.mxu0 %v1005
  %1309 = vmatprep.subr.bf16.mxu0 0
  %1310 = vmatpush2.bf16.msra.mxu0 %v1004
  %1311 = vmatprep.subr.bf16.mxu0 0
  %1312 = vmatpush2.bf16.msra.mxu0 %v1003
  %1313 = vmatprep.subr.bf16.mxu0 0
  %1314 = vmatpush2.bf16.msra.mxu0 %v1002
  %1315 = vmatprep.mubr.bf16.mxu0 %v405
  %1316 = vmatmul.mubr.bf16.gmra.mxu0 %v404
  %v1317 = vpop.f32.mrf.mxu0
  %v1318 = vadd.f32 %v1269, %v1317
  %v1319 = vpop.f32.mrf.mxu0
  %v1320 = vpop.f32.mrf.mxu0
  %v1321 = vadd.f32 %v1272, %v1320
  %v1322 = vpop.f32.mrf.mxu0
  %1323 = vmatprep.mubr.bf16.mxu0 %v421
  %1324 = vmatmul.mubr.bf16.gmra.mxu0 %v420
  %v1325 = vpop.f32.mrf.mxu0
  %v1326 = vadd.f32 %v1277, %v1325
  %v1327 = vpop.f32.mrf.mxu0
  %v1328 = vpop.f32.mrf.mxu0
  %v1329 = vadd.f32 %v1280, %v1328
  %v1330 = vpop.f32.mrf.mxu0
  %1331 = vdwg.mxu0
  %1332 = vmatprep.subr.bf16.mxu0 0
  %1333 = vmatpush1.bf16.msra.mxu0 %v1017
  %1334 = vmatprep.subr.bf16.mxu0 0
  %1335 = vmatpush1.bf16.msra.mxu0 %v1016
  %1336 = vmatprep.subr.bf16.mxu0 0
  %1337 = vmatpush1.bf16.msra.mxu0 %v1015
  %1338 = vmatprep.subr.bf16.mxu0 0
  %1339 = vmatpush1.bf16.msra.mxu0 %v1014
  %1340 = vmatprep.subr.bf16.mxu0 0
  %1341 = vmatpush1.bf16.msra.mxu0 %v1013
  %1342 = vmatprep.subr.bf16.mxu0 0
  %1343 = vmatpush1.bf16.msra.mxu0 %v1012
  %1344 = vmatprep.subr.bf16.mxu0 0
  %1345 = vmatpush1.bf16.msra.mxu0 %v1011
  %1346 = vmatprep.subr.bf16.mxu0 0
  %1347 = vmatpush1.bf16.msra.mxu0 %v1010
  %1348 = vmatprep.subr.bf16.mxu0 0
  %1349 = vmatpush2.bf16.msra.mxu0 %v1025
  %1350 = vmatprep.subr.bf16.mxu0 0
  %1351 = vmatpush2.bf16.msra.mxu0 %v1024
  %1352 = vmatprep.subr.bf16.mxu0 0
  %1353 = vmatpush2.bf16.msra.mxu0 %v1023
  %1354 = vmatprep.subr.bf16.mxu0 0
  %1355 = vmatpush2.bf16.msra.mxu0 %v1022
  %1356 = vmatprep.subr.bf16.mxu0 0
  %1357 = vmatpush2.bf16.msra.mxu0 %v1021
  %1358 = vmatprep.subr.bf16.mxu0 0
  %1359 = vmatpush2.bf16.msra.mxu0 %v1020
  %1360 = vmatprep.subr.bf16.mxu0 0
  %1361 = vmatpush2.bf16.msra.mxu0 %v1019
  %1362 = vmatprep.subr.bf16.mxu0 0
  %1363 = vmatpush2.bf16.msra.mxu0 %v1018
  %1364 = vmatprep.mubr.bf16.mxu0 %v407
  %1365 = vmatmul.mubr.bf16.gmra.mxu0 %v406
  %v1366 = vpop.f32.mrf.mxu0
  %v1367 = vadd.f32 %v1318, %v1366
  %v1368 = vpop.f32.mrf.mxu0
  %v1369 = vpop.f32.mrf.mxu0
  %v1370 = vadd.f32 %v1321, %v1369
  %v1371 = vpop.f32.mrf.mxu0
  %1372 = vmatprep.mubr.bf16.mxu0 %v423
  %1373 = vmatmul.mubr.bf16.gmra.mxu0 %v422
  %v1374 = vpop.f32.mrf.mxu0
  %v1375 = vadd.f32 %v1326, %v1374
  %v1376 = vpop.f32.mrf.mxu0
  %v1377 = vpop.f32.mrf.mxu0
  %v1378 = vadd.f32 %v1329, %v1377
  %v1379 = vpop.f32.mrf.mxu0
  %1380 = vdwg.mxu0
  %1381 = vmatprep.subr.bf16.mxu0 0
  %1382 = vmatpush1.bf16.msra.mxu0 %v1033
  %1383 = vmatprep.subr.bf16.mxu0 0
  %1384 = vmatpush1.bf16.msra.mxu0 %v1032
  %1385 = vmatprep.subr.bf16.mxu0 0
  %1386 = vmatpush1.bf16.msra.mxu0 %v1031
  %1387 = vmatprep.subr.bf16.mxu0 0
  %1388 = vmatpush1.bf16.msra.mxu0 %v1030
  %1389 = vmatprep.subr.bf16.mxu0 0
  %1390 = vmatpush1.bf16.msra.mxu0 %v1029
  %1391 = vmatprep.subr.bf16.mxu0 0
  %1392 = vmatpush1.bf16.msra.mxu0 %v1028
  %1393 = vmatprep.subr.bf16.mxu0 0
  %1394 = vmatpush1.bf16.msra.mxu0 %v1027
  %1395 = vmatprep.subr.bf16.mxu0 0
  %1396 = vmatpush1.bf16.msra.mxu0 %v1026
  %1397 = vmatprep.subr.bf16.mxu0 0
  %1398 = vmatpush2.bf16.msra.mxu0 %v1041
  %1399 = vmatprep.subr.bf16.mxu0 0
  %1400 = vmatpush2.bf16.msra.mxu0 %v1040
  %1401 = vmatprep.subr.bf16.mxu0 0
  %1402 = vmatpush2.bf16.msra.mxu0 %v1039
  %1403 = vmatprep.subr.bf16.mxu0 0
  %1404 = vmatpush2.bf16.msra.mxu0 %v1038
  %1405 = vmatprep.subr.bf16.mxu0 0
  %1406 = vmatpush2.bf16.msra.mxu0 %v1037
  %1407 = vmatprep.subr.bf16.mxu0 0
  %1408 = vmatpush2.bf16.msra.mxu0 %v1036
  %1409 = vmatprep.subr.bf16.mxu0 0
  %1410 = vmatpush2.bf16.msra.mxu0 %v1035
  %1411 = vmatprep.subr.bf16.mxu0 0
  %1412 = vmatpush2.bf16.msra.mxu0 %v1034
  %1413 = vmatprep.mubr.bf16.mxu0 %v409
  %1414 = vmatmul.mubr.bf16.gmra.mxu0 %v408
  %v1415 = vpop.f32.mrf.mxu0
  %v1416 = vadd.f32 %v1367, %v1415
  %v1417 = vpop.f32.mrf.mxu0
  %v1418 = vpop.f32.mrf.mxu0
  %v1419 = vadd.f32 %v1370, %v1418
  %v1420 = vpop.f32.mrf.mxu0
  %1421 = vmatprep.mubr.bf16.mxu0 %v425
  %1422 = vmatmul.mubr.bf16.gmra.mxu0 %v424
  %v1423 = vpop.f32.mrf.mxu0
  %v1424 = vadd.f32 %v1375, %v1423
  %v1425 = vpop.f32.mrf.mxu0
  %v1426 = vpop.f32.mrf.mxu0
  %v1427 = vadd.f32 %v1378, %v1426
  %v1428 = vpop.f32.mrf.mxu0
  %1429 = vdwg.mxu0
  %1430 = vmatprep.subr.bf16.mxu0 0
  %1431 = vmatpush1.bf16.msra.mxu0 %v1049
  %1432 = vmatprep.subr.bf16.mxu0 0
  %1433 = vmatpush1.bf16.msra.mxu0 %v1048
  %1434 = vmatprep.subr.bf16.mxu0 0
  %1435 = vmatpush1.bf16.msra.mxu0 %v1047
  %1436 = vmatprep.subr.bf16.mxu0 0
  %1437 = vmatpush1.bf16.msra.mxu0 %v1046
  %1438 = vmatprep.subr.bf16.mxu0 0
  %1439 = vmatpush1.bf16.msra.mxu0 %v1045
  %1440 = vmatprep.subr.bf16.mxu0 0
  %1441 = vmatpush1.bf16.msra.mxu0 %v1044
  %1442 = vmatprep.subr.bf16.mxu0 0
  %1443 = vmatpush1.bf16.msra.mxu0 %v1043
  %1444 = vmatprep.subr.bf16.mxu0 0
  %1445 = vmatpush1.bf16.msra.mxu0 %v1042
  %1446 = vmatprep.subr.bf16.mxu0 0
  %1447 = vmatpush2.bf16.msra.mxu0 %v1057
  %1448 = vmatprep.subr.bf16.mxu0 0
  %1449 = vmatpush2.bf16.msra.mxu0 %v1056
  %1450 = vmatprep.subr.bf16.mxu0 0
  %1451 = vmatpush2.bf16.msra.mxu0 %v1055
  %1452 = vmatprep.subr.bf16.mxu0 0
  %1453 = vmatpush2.bf16.msra.mxu0 %v1054
  %1454 = vmatprep.subr.bf16.mxu0 0
  %1455 = vmatpush2.bf16.msra.mxu0 %v1053
  %1456 = vmatprep.subr.bf16.mxu0 0
  %1457 = vmatpush2.bf16.msra.mxu0 %v1052
  %1458 = vmatprep.subr.bf16.mxu0 0
  %1459 = vmatpush2.bf16.msra.mxu0 %v1051
  %1460 = vmatprep.subr.bf16.mxu0 0
  %1461 = vmatpush2.bf16.msra.mxu0 %v1050
  %1462 = vmatprep.mubr.bf16.mxu0 %v411
  %1463 = vmatmul.mubr.bf16.gmra.mxu0 %v410
  %v1464 = vpop.f32.mrf.mxu0
  %v1465 = vadd.f32 %v1416, %v1464
  %v1466 = vpop.f32.mrf.mxu0
  %v1467 = vpop.f32.mrf.mxu0
  %v1468 = vadd.f32 %v1419, %v1467
  %v1469 = vpop.f32.mrf.mxu0
  %1470 = vmatprep.mubr.bf16.mxu0 %v427
  %1471 = vmatmul.mubr.bf16.gmra.mxu0 %v426
  %v1472 = vpop.f32.mrf.mxu0
  %v1473 = vadd.f32 %v1424, %v1472
  %v1474 = vpop.f32.mrf.mxu0
  %v1475 = vpop.f32.mrf.mxu0
  %v1476 = vadd.f32 %v1427, %v1475
  %v1477 = vpop.f32.mrf.mxu0
  %1478 = vdwg.mxu0
  %1479 = vmatprep.subr.bf16.mxu0 0
  %1480 = vmatpush1.bf16.msra.mxu0 %v1065
  %1481 = vmatprep.subr.bf16.mxu0 0
  %1482 = vmatpush1.bf16.msra.mxu0 %v1064
  %1483 = vmatprep.subr.bf16.mxu0 0
  %1484 = vmatpush1.bf16.msra.mxu0 %v1063
  %1485 = vmatprep.subr.bf16.mxu0 0
  %1486 = vmatpush1.bf16.msra.mxu0 %v1062
  %1487 = vmatprep.subr.bf16.mxu0 0
  %1488 = vmatpush1.bf16.msra.mxu0 %v1061
  %1489 = vmatprep.subr.bf16.mxu0 0
  %1490 = vmatpush1.bf16.msra.mxu0 %v1060
  %1491 = vmatprep.subr.bf16.mxu0 0
  %1492 = vmatpush1.bf16.msra.mxu0 %v1059
  %1493 = vmatprep.subr.bf16.mxu0 0
  %1494 = vmatpush1.bf16.msra.mxu0 %v1058
  %1495 = vmatprep.subr.bf16.mxu0 0
  %1496 = vmatpush2.bf16.msra.mxu0 %v1073
  %1497 = vmatprep.subr.bf16.mxu0 0
  %1498 = vmatpush2.bf16.msra.mxu0 %v1072
  %1499 = vmatprep.subr.bf16.mxu0 0
  %1500 = vmatpush2.bf16.msra.mxu0 %v1071
  %1501 = vmatprep.subr.bf16.mxu0 0
  %1502 = vmatpush2.bf16.msra.mxu0 %v1070
  %1503 = vmatprep.subr.bf16.mxu0 0
  %1504 = vmatpush2.bf16.msra.mxu0 %v1069
  %1505 = vmatprep.subr.bf16.mxu0 0
  %1506 = vmatpush2.bf16.msra.mxu0 %v1068
  %1507 = vmatprep.subr.bf16.mxu0 0
  %1508 = vmatpush2.bf16.msra.mxu0 %v1067
  %1509 = vmatprep.subr.bf16.mxu0 0
  %1510 = vmatpush2.bf16.msra.mxu0 %v1066
  %1511 = vmatprep.mubr.bf16.mxu0 %v413
  %1512 = vmatmul.mubr.bf16.gmra.mxu0 %v412
  %v1513 = vpop.f32.mrf.mxu0
  %v1514 = vadd.f32 %v1465, %v1513
  %v1515 = vpop.f32.mrf.mxu0
  %v1516 = vpop.f32.mrf.mxu0
  %v1517 = vadd.f32 %v1468, %v1516
  %v1518 = vpop.f32.mrf.mxu0
  %1519 = vmatprep.mubr.bf16.mxu0 %v429
  %1520 = vmatmul.mubr.bf16.gmra.mxu0 %v428
  %v1521 = vpop.f32.mrf.mxu0
  %v1522 = vadd.f32 %v1473, %v1521
  %v1523 = vpop.f32.mrf.mxu0
  %v1524 = vpop.f32.mrf.mxu0
  %v1525 = vadd.f32 %v1476, %v1524
  %v1526 = vpop.f32.mrf.mxu0
  %1527 = vdwg.mxu0
  %1528 = vmatprep.subr.bf16.mxu0 0
  %1529 = vmatpush1.bf16.msra.mxu0 %v1081
  %1530 = vmatprep.subr.bf16.mxu0 0
  %1531 = vmatpush1.bf16.msra.mxu0 %v1080
  %1532 = vmatprep.subr.bf16.mxu0 0
  %1533 = vmatpush1.bf16.msra.mxu0 %v1079
  %1534 = vmatprep.subr.bf16.mxu0 0
  %1535 = vmatpush1.bf16.msra.mxu0 %v1078
  %1536 = vmatprep.subr.bf16.mxu0 0
  %1537 = vmatpush1.bf16.msra.mxu0 %v1077
  %1538 = vmatprep.subr.bf16.mxu0 0
  %1539 = vmatpush1.bf16.msra.mxu0 %v1076
  %1540 = vmatprep.subr.bf16.mxu0 0
  %1541 = vmatpush1.bf16.msra.mxu0 %v1075
  %1542 = vmatprep.subr.bf16.mxu0 0
  %1543 = vmatpush1.bf16.msra.mxu0 %v1074
  %1544 = vmatprep.subr.bf16.mxu0 0
  %1545 = vmatpush2.bf16.msra.mxu0 %v1089
  %1546 = vmatprep.subr.bf16.mxu0 0
  %1547 = vmatpush2.bf16.msra.mxu0 %v1088
  %1548 = vmatprep.subr.bf16.mxu0 0
  %1549 = vmatpush2.bf16.msra.mxu0 %v1087
  %1550 = vmatprep.subr.bf16.mxu0 0
  %1551 = vmatpush2.bf16.msra.mxu0 %v1086
  %1552 = vmatprep.subr.bf16.mxu0 0
  %1553 = vmatpush2.bf16.msra.mxu0 %v1085
  %1554 = vmatprep.subr.bf16.mxu0 0
  %1555 = vmatpush2.bf16.msra.mxu0 %v1084
  %1556 = vmatprep.subr.bf16.mxu0 0
  %1557 = vmatpush2.bf16.msra.mxu0 %v1083
  %1558 = vmatprep.subr.bf16.mxu0 0
  %1559 = vmatpush2.bf16.msra.mxu0 %v1082
  %1560 = vmatprep.mubr.bf16.mxu0 %v415
  %1561 = vmatmul.mubr.bf16.gmra.mxu0 %v414
  %v1562 = vpop.f32.mrf.mxu0
  %v1563 = vadd.f32 %v1514, %v1562
  %v1564 = vpop.f32.mrf.mxu0
  %v1565 = vpop.f32.mrf.mxu0
  %v1566 = vadd.f32 %v1517, %v1565
  %v1567 = vpop.f32.mrf.mxu0
  %1568 = vmatprep.mubr.bf16.mxu0 %v431
  %1569 = vmatmul.mubr.bf16.gmra.mxu0 %v430
  %v1570 = vpop.f32.mrf.mxu0
  %v1571 = vadd.f32 %v1522, %v1570
  %v1572 = vpop.f32.mrf.mxu0
  %v1573 = vpop.f32.mrf.mxu0
  %v1574 = vadd.f32 %v1525, %v1573
  %v1575 = vpop.f32.mrf.mxu0
  %1576 = vdwg.mxu0
  %1577 = vmatprep.subr.bf16.mxu0 0
  %1578 = vmatpush1.bf16.msra.mxu0 %v1097
  %1579 = vmatprep.subr.bf16.mxu0 0
  %1580 = vmatpush1.bf16.msra.mxu0 %v1096
  %1581 = vmatprep.subr.bf16.mxu0 0
  %1582 = vmatpush1.bf16.msra.mxu0 %v1095
  %1583 = vmatprep.subr.bf16.mxu0 0
  %1584 = vmatpush1.bf16.msra.mxu0 %v1094
  %1585 = vmatprep.subr.bf16.mxu0 0
  %1586 = vmatpush1.bf16.msra.mxu0 %v1093
  %1587 = vmatprep.subr.bf16.mxu0 0
  %1588 = vmatpush1.bf16.msra.mxu0 %v1092
  %1589 = vmatprep.subr.bf16.mxu0 0
  %1590 = vmatpush1.bf16.msra.mxu0 %v1091
  %1591 = vmatprep.subr.bf16.mxu0 0
  %1592 = vmatpush1.bf16.msra.mxu0 %v1090
  %1593 = vmatprep.subr.bf16.mxu0 0
  %1594 = vmatpush2.bf16.msra.mxu0 %v1105
  %1595 = vmatprep.subr.bf16.mxu0 0
  %1596 = vmatpush2.bf16.msra.mxu0 %v1104
  %1597 = vmatprep.subr.bf16.mxu0 0
  %1598 = vmatpush2.bf16.msra.mxu0 %v1103
  %1599 = vmatprep.subr.bf16.mxu0 0
  %1600 = vmatpush2.bf16.msra.mxu0 %v1102
  %1601 = vmatprep.subr.bf16.mxu0 0
  %1602 = vmatpush2.bf16.msra.mxu0 %v1101
  %1603 = vmatprep.subr.bf16.mxu0 0
  %1604 = vmatpush2.bf16.msra.mxu0 %v1100
  %1605 = vmatprep.subr.bf16.mxu0 0
  %1606 = vmatpush2.bf16.msra.mxu0 %v1099
  %1607 = vmatprep.subr.bf16.mxu0 0
  %1608 = vmatpush2.bf16.msra.mxu0 %v1098
  %1609 = vmatprep.mubr.bf16.mxu0 %v417
  %1610 = vmatmul.mubr.bf16.gmra.mxu0 %v416
  %v1611 = vpop.f32.mrf.mxu0
  %v1612 = vadd.f32 %v1563, %v1611
  %v1613 = vpop.f32.mrf.mxu0
  %v1614 = vpop.f32.mrf.mxu0
  %v1615 = vadd.f32 %v1566, %v1614
  %v1616 = vpop.f32.mrf.mxu0
  %1617 = vmatprep.mubr.bf16.mxu0 %v433
  %1618 = vmatmul.mubr.bf16.gmra.mxu0 %v432
  %v1619 = vpop.f32.mrf.mxu0
  %v1620 = vadd.f32 %v1571, %v1619
  %v1621 = vpop.f32.mrf.mxu0
  %v1622 = vpop.f32.mrf.mxu0
  %v1623 = vadd.f32 %v1574, %v1622
  %v1624 = vpop.f32.mrf.mxu0
  %1625 = vdwg.mxu0
  %v1626 = vld [vmem:[%s2] sm:$0x1]
  %v1628 = vlaneseq
  %v1629 = vshrl.u32 %v1628, 7
  %v1630 = vsub.s32 0, %v1629
  %v1631 = vrot.slane %v1626, %v1630
  %v1633 = vmul.f32 %v1612, %v1631
  %v1634 = vmul.f32 %v1615, %v1631
  %v1635 = vmul.f32 %v1620, %v1631
  %v1636 = vmul.f32 %v1623, %v1631
  %v1637 = vld [vmem:[%s3] sm:$0x1]
  %v1639 = vlaneseq
  %v1640 = vshrl.u32 %v1639, 7
  %v1641 = vsub.s32 0, %v1640
  %v1642 = vrot.slane %v1637, %v1641
  %v1644 = vadd.f32 %v1633, %v1642
  %v1645 = vadd.f32 %v1634, %v1642
  %v1646 = vadd.f32 %v1635, %v1642
  %v1647 = vadd.f32 %v1636, %v1642
  %v1648 = vmax.f32 %v1644, 0.0
  %v1649 = vmax.f32 %v1645, 0.0
  %v1650 = vmax.f32 %v1646, 0.0
  %v1651 = vmax.f32 %v1647, 0.0
  %v1652 = vpack.c.bf16 %v1649, %v1648
  %v1653 = vpack.c.bf16 %v1651, %v1650
  %v1656 = vunpack.c.l.b16 %v1652
  %v1657 = vunpack.c.h.b16 %v1652
  %v1658 = vunpack.c.l.b16 %v1653
  %v1659 = vunpack.c.h.b16 %v1653
  %v1660 = vpack.c.b16 %v1656, %v1656
  %v1661 = vpack.c.b16 %v1657, %v1657
  %v1662 = vpack.c.b16 %v1658, %v1658
  %v1663 = vpack.c.b16 %v1659, %v1659
  %1668 = vst [vmem:[%s4] sm:$0xf] %v1660
  %1669 = vst [vmem:[%s4 + $0x4] sm:$0xf] %v1661
  %1670 = vst [vmem:[%s4 + $0x8] sm:$0xf] %v1662
  %1671 = vst [vmem:[%s4 + $0xc] sm:$0xf] %v1663
  // Predicated region
  $region18: #{_lambda_.11} parent=0 // pred_check
    _
  $region19: #{_lambda_.11} parent=0 // pred_check_branch
    %1673 = sbr.rel (0) target = $region21
  $region20: #{_lambda_.11} parent=0 // pred_region
    _
  $region21: #{_lambda_.11} parent=0 // pred_fallthru
    _
  // Predicated region
  $region22: #{_lambda_.11} parent=0 // pred_check
    _
  $region23: #{_lambda_.11} parent=0 // pred_check_branch
    %1675 = sbr.rel (0) target = $region25
  $region24: #{_lambda_.11} parent=0 // pred_region
    _
  $region25: #{_lambda_.11} parent=0 // pred_fallthru
    _

// kernel: _lambda_.13
$region0: #{_lambda_.13}
  #allocation0 [shape = 'u32[]', space=smem, size = 0x4, offset = 0x4, fixed_abs, tag = 'smem constant byte address 0x4 - core index']
  #allocation1 [shape = 'u32[144,128]{1,0:T(1,128)}', space=vmem, size = 0x12000, scoped, tag = 'internal scratch']
  %s0 = inlined_call_operand.vmem [shape: bf16[2,1024], index: 0, kind: input, shape index: {}]
  %s1 = inlined_call_operand.vmem [shape: bf16[1024,256], index: 1, kind: input, shape index: {}]
  %s2 = inlined_call_operand.vmem [shape: f32[1,256], index: 2, kind: input, shape index: {}]
  %s3 = inlined_call_operand.vmem [shape: f32[1,256], index: 3, kind: input, shape index: {}]
  %s4 = inlined_call_operand.vmem [shape: bf16[256,1024], index: 4, kind: input, shape index: {}]
  %s5 = inlined_call_operand.vmem [shape: f32[1,1024], index: 5, kind: input, shape index: {}]
  %s6 = inlined_call_operand.vmem [shape: f32[1,1024], index: 6, kind: input, shape index: {}]
  %s7 = inlined_call_operand.hbm [shape: f32[2,1024], index: 7, kind: output, shape index: {}]
  %s8 = sld [smem:[#allocation0]]
  $region38: #{_lambda_.13} parent=0
    _
  %s10 = ssub.s32 1, %s8
  %s11 = scalar_select 0, %s10, %s8
  $region1: #{_lambda_.13} parent=0
    #allocation2 [shape = 'u8[8192]{0}', space=vmem, size = 0x2000, scoped, tag = 'output window, operand 0, single buffered']
    #allocation3 [shape = 's32[1]{0}', space=sflag, size = 0x4, scoped, tag = 'scoped memory for _lambda_.13']
    %12 = vsyncpa [#allocation3], 0
    // Predicated region
    $region2: #{_lambda_.13} parent=1 // pred_check
      _
    $region3: #{_lambda_.13} parent=1 // pred_check_branch
      %14 = sbr.rel (0) target = $region5
    $region4: #{_lambda_.13} parent=1 // pred_region
      _
    $region5: #{_lambda_.13} parent=1 // pred_fallthru
      _
    // Predicated region
    $region6: #{_lambda_.13} parent=1 // pred_check
      _
    $region7: #{_lambda_.13} parent=1 // pred_check_branch
      %16 = sbr.rel (0) target = $region9
    $region8: #{_lambda_.13} parent=1 // pred_region
      _
    $region9: #{_lambda_.13} parent=1 // pred_fallthru
      _
    // Predicated region
    $region10: #{_lambda_.13} parent=1 // pred_check
      _
    $region11: #{_lambda_.13} parent=1 // pred_check_branch
      %18 = sbr.rel (0) target = $region13
    $region12: #{_lambda_.13} parent=1 // pred_region
      _
    $region13: #{_lambda_.13} parent=1 // pred_fallthru
      _
    // Predicated region
    $region14: #{_lambda_.13} parent=1 // pred_check
      _
    $region15: #{_lambda_.13} parent=1 // pred_check_branch
      %20 = sbr.rel (0) target = $region17
    $region16: #{_lambda_.13} parent=1 // pred_region
      _
    $region17: #{_lambda_.13} parent=1 // pred_fallthru
      _
    // Predicated region
    $region18: #{_lambda_.13} parent=1 // pred_check
      _
    $region19: #{_lambda_.13} parent=1 // pred_check_branch
      %22 = sbr.rel (0) target = $region21
    $region20: #{_lambda_.13} parent=1 // pred_region
      _
    $region21: #{_lambda_.13} parent=1 // pred_fallthru
      _
    // Predicated region
    $region22: #{_lambda_.13} parent=1 // pred_check
      _
    $region23: #{_lambda_.13} parent=1 // pred_check_branch
      %24 = sbr.rel (0) target = $region25
    $region24: #{_lambda_.13} parent=1 // pred_region
      _
    $region25: #{_lambda_.13} parent=1 // pred_fallthru
      _
    // Predicated region
    $region26: #{_lambda_.13} parent=1 // pred_check
      _
    $region27: #{_lambda_.13} parent=1 // pred_check_branch
      %26 = sbr.rel (0) target = $region29
    $region28: #{_lambda_.13} parent=1 // pred_region
      _
    $region29: #{_lambda_.13} parent=1 // pred_fallthru
      _
    %v27 = vld [vmem:[%s0] sm:$0xff]
    %v28 = vld [vmem:[%s1] sm:$0xff]
    %v29 = vld [vmem:[%s1 + $0x8] sm:$0xff]
    %v30 = vld [vmem:[%s1 + $0x10] sm:$0xff]
    %v31 = vld [vmem:[%s1 + $0x18] sm:$0xff]
    %v32 = vld [vmem:[%s1 + $0x20] sm:$0xff]
    %v33 = vld [vmem:[%s1 + $0x28] sm:$0xff]
    %v34 = vld [vmem:[%s1 + $0x30] sm:$0xff]
    %v35 = vld [vmem:[%s1 + $0x38] sm:$0xff]
    %v36 = vld [vmem:[%s1 + $0x40] sm:$0xff]
    %v37 = vld [vmem:[%s1 + $0x48] sm:$0xff]
    %v38 = vld [vmem:[%s1 + $0x50] sm:$0xff]
    %v39 = vld [vmem:[%s1 + $0x58] sm:$0xff]
    %v40 = vld [vmem:[%s1 + $0x60] sm:$0xff]
    %v41 = vld [vmem:[%s1 + $0x68] sm:$0xff]
    %v42 = vld [vmem:[%s1 + $0x70] sm:$0xff]
    %v43 = vld [vmem:[%s1 + $0x78] sm:$0xff]
    %v44 = vld [vmem:[%s1 + $0x80] sm:$0xff]
    %v45 = vld [vmem:[%s1 + $0x88] sm:$0xff]
    %v46 = vld [vmem:[%s1 + $0x90] sm:$0xff]
    %v47 = vld [vmem:[%s1 + $0x98] sm:$0xff]
    %v48 = vld [vmem:[%s1 + $0xa0] sm:$0xff]
    %v49 = vld [vmem:[%s1 + $0xa8] sm:$0xff]
    %v50 = vld [vmem:[%s1 + $0xb0] sm:$0xff]
    %v51 = vld [vmem:[%s1 + $0xb8] sm:$0xff]
    %v52 = vld [vmem:[%s1 + $0xc0] sm:$0xff]
    %v53 = vld [vmem:[%s1 + $0xc8] sm:$0xff]
    %v54 = vld [vmem:[%s1 + $0xd0] sm:$0xff]
    %v55 = vld [vmem:[%s1 + $0xd8] sm:$0xff]
    %v56 = vld [vmem:[%s1 + $0xe0] sm:$0xff]
    %v57 = vld [vmem:[%s1 + $0xe8] sm:$0xff]
    %v58 = vld [vmem:[%s1 + $0xf0] sm:$0xff]
    %v59 = vld [vmem:[%s1 + $0xf8] sm:$0xff]
    %v60 = vld [vmem:[%s1 + $0x100] sm:$0xff]
    %v61 = vld [vmem:[%s1 + $0x108] sm:$0xff]
    %v62 = vld [vmem:[%s1 + $0x110] sm:$0xff]
    %v63 = vld [vmem:[%s1 + $0x118] sm:$0xff]
    %v64 = vld [vmem:[%s1 + $0x120] sm:$0xff]
    %v65 = vld [vmem:[%s1 + $0x128] sm:$0xff]
    %v66 = vld [vmem:[%s1 + $0x130] sm:$0xff]
    %v67 = vld [vmem:[%s1 + $0x138] sm:$0xff]
    %v68 = vld [vmem:[%s1 + $0x140] sm:$0xff]
    %v69 = vld [vmem:[%s1 + $0x148] sm:$0xff]
    %v70 = vld [vmem:[%s1 + $0x150] sm:$0xff]
    %v71 = vld [vmem:[%s1 + $0x158] sm:$0xff]
    %v72 = vld [vmem:[%s1 + $0x160] sm:$0xff]
    %v73 = vld [vmem:[%s1 + $0x168] sm:$0xff]
    %v74 = vld [vmem:[%s1 + $0x170] sm:$0xff]
    %v75 = vld [vmem:[%s1 + $0x178] sm:$0xff]
    %v76 = vld [vmem:[%s1 + $0x180] sm:$0xff]
    %v77 = vld [vmem:[%s1 + $0x188] sm:$0xff]
    %v78 = vld [vmem:[%s1 + $0x190] sm:$0xff]
    %v79 = vld [vmem:[%s1 + $0x198] sm:$0xff]
    %v80 = vld [vmem:[%s1 + $0x1a0] sm:$0xff]
    %v81 = vld [vmem:[%s1 + $0x1a8] sm:$0xff]
    %v82 = vld [vmem:[%s1 + $0x1b0] sm:$0xff]
    %v83 = vld [vmem:[%s1 + $0x1b8] sm:$0xff]
    %v84 = vld [vmem:[%s1 + $0x1c0] sm:$0xff]
    %v85 = vld [vmem:[%s1 + $0x1c8] sm:$0xff]
    %v86 = vld [vmem:[%s1 + $0x1d0] sm:$0xff]
    %v87 = vld [vmem:[%s1 + $0x1d8] sm:$0xff]
    %v88 = vld [vmem:[%s1 + $0x1e0] sm:$0xff]
    %v89 = vld [vmem:[%s1 + $0x1e8] sm:$0xff]
    %v90 = vld [vmem:[%s1 + $0x1f0] sm:$0xff]
    %v91 = vld [vmem:[%s1 + $0x1f8] sm:$0xff]
    %v92 = vld [vmem:[%s1 + $0x200] sm:$0xff]
    %v93 = vld [vmem:[%s1 + $0x208] sm:$0xff]
    %v94 = vld [vmem:[%s1 + $0x210] sm:$0xff]
    %v95 = vld [vmem:[%s1 + $0x218] sm:$0xff]
    %v96 = vld [vmem:[%s1 + $0x220] sm:$0xff]
    %v97 = vld [vmem:[%s1 + $0x228] sm:$0xff]
    %v98 = vld [vmem:[%s1 + $0x230] sm:$0xff]
    %v99 = vld [vmem:[%s1 + $0x238] sm:$0xff]
    %v100 = vld [vmem:[%s1 + $0x240] sm:$0xff]
    %v101 = vld [vmem:[%s1 + $0x248] sm:$0xff]
    %v102 = vld [vmem:[%s1 + $0x250] sm:$0xff]
    %v103 = vld [vmem:[%s1 + $0x258] sm:$0xff]
    %v104 = vld [vmem:[%s1 + $0x260] sm:$0xff]
    %v105 = vld [vmem:[%s1 + $0x268] sm:$0xff]
    %v106 = vld [vmem:[%s1 + $0x270] sm:$0xff]
    %v107 = vld [vmem:[%s1 + $0x278] sm:$0xff]
    %v108 = vld [vmem:[%s1 + $0x280] sm:$0xff]
    %v109 = vld [vmem:[%s1 + $0x288] sm:$0xff]
    %v110 = vld [vmem:[%s1 + $0x290] sm:$0xff]
    %v111 = vld [vmem:[%s1 + $0x298] sm:$0xff]
    %v112 = vld [vmem:[%s1 + $0x2a0] sm:$0xff]
    %v113 = vld [vmem:[%s1 + $0x2a8] sm:$0xff]
    %v114 = vld [vmem:[%s1 + $0x2b0] sm:$0xff]
    %v115 = vld [vmem:[%s1 + $0x2b8] sm:$0xff]
    %v116 = vld [vmem:[%s1 + $0x2c0] sm:$0xff]
    %v117 = vld [vmem:[%s1 + $0x2c8] sm:$0xff]
    %v118 = vld [vmem:[%s1 + $0x2d0] sm:$0xff]
    %v119 = vld [vmem:[%s1 + $0x2d8] sm:$0xff]
    %v120 = vld [vmem:[%s1 + $0x2e0] sm:$0xff]
    %v121 = vld [vmem:[%s1 + $0x2e8] sm:$0xff]
    %v122 = vld [vmem:[%s1 + $0x2f0] sm:$0xff]
    %v123 = vld [vmem:[%s1 + $0x2f8] sm:$0xff]
    %v124 = vld [vmem:[%s1 + $0x300] sm:$0xff]
    %v125 = vld [vmem:[%s1 + $0x308] sm:$0xff]
    %v126 = vld [vmem:[%s1 + $0x310] sm:$0xff]
    %v127 = vld [vmem:[%s1 + $0x318] sm:$0xff]
    %v128 = vld [vmem:[%s1 + $0x320] sm:$0xff]
    %v129 = vld [vmem:[%s1 + $0x328] sm:$0xff]
    %v130 = vld [vmem:[%s1 + $0x330] sm:$0xff]
    %v131 = vld [vmem:[%s1 + $0x338] sm:$0xff]
    %v132 = vld [vmem:[%s1 + $0x340] sm:$0xff]
    %v133 = vld [vmem:[%s1 + $0x348] sm:$0xff]
    %v134 = vld [vmem:[%s1 + $0x350] sm:$0xff]
    %v135 = vld [vmem:[%s1 + $0x358] sm:$0xff]
    %v136 = vld [vmem:[%s1 + $0x360] sm:$0xff]
    %v137 = vld [vmem:[%s1 + $0x368] sm:$0xff]
    %v138 = vld [vmem:[%s1 + $0x370] sm:$0xff]
    %v139 = vld [vmem:[%s1 + $0x378] sm:$0xff]
    %v140 = vld [vmem:[%s1 + $0x380] sm:$0xff]
    %v141 = vld [vmem:[%s1 + $0x388] sm:$0xff]
    %v142 = vld [vmem:[%s1 + $0x390] sm:$0xff]
    %v143 = vld [vmem:[%s1 + $0x398] sm:$0xff]
    %v144 = vld [vmem:[%s1 + $0x3a0] sm:$0xff]
    %v145 = vld [vmem:[%s1 + $0x3a8] sm:$0xff]
    %v146 = vld [vmem:[%s1 + $0x3b0] sm:$0xff]
    %v147 = vld [vmem:[%s1 + $0x3b8] sm:$0xff]
    %v148 = vld [vmem:[%s1 + $0x3c0] sm:$0xff]
    %v149 = vld [vmem:[%s1 + $0x3c8] sm:$0xff]
    %v150 = vld [vmem:[%s1 + $0x3d0] sm:$0xff]
    %v151 = vld [vmem:[%s1 + $0x3d8] sm:$0xff]
    %v152 = vld [vmem:[%s1 + $0x3e0] sm:$0xff]
    %v153 = vld [vmem:[%s1 + $0x3e8] sm:$0xff]
    %v154 = vld [vmem:[%s1 + $0x3f0] sm:$0xff]
    %v155 = vld [vmem:[%s1 + $0x3f8] sm:$0xff]
    %v157 = vcombine.high %v27, %v27
    %v159 = vunpack.c.l.s4 1966171168
    %v160 = vunpack.c.0.s8 %v159
    %v161 = vlaneseq
    %v162 = vshrl.u32 %v161, 7
    %v163 = vsub.s32 %v160, %v162
    %v164 = vrot.slane %v27, %v163
    %v166 = vunpack.c.l.s4 1966171168
    %v167 = vunpack.c.0.s8 %v166
    %v168 = vlaneseq
    %v169 = vshrl.u32 %v168, 7
    %v170 = vsub.s32 %v167, %v169
    %v171 = vrot.slane %v157, %v170
    %v172 = vcombine.high %v164, %v164
    %v173 = vcombine.high %v171, %v171
    %v175 = vunpack.c.l.s4 1966171168
    %v176 = vunpack.c.0.s8 %v175
    %v177 = vlaneseq
    %v178 = vshrl.u32 %v177, 7
    %v179 = vsub.s32 %v176, %v178
    %v180 = vrot.slane %v164, %v179
    %v182 = vunpack.c.l.s4 1966171168
    %v183 = vunpack.c.0.s8 %v182
    %v184 = vlaneseq
    %v185 = vshrl.u32 %v184, 7
    %v186 = vsub.s32 %v183, %v185
    %v187 = vrot.slane %v171, %v186
    %v189 = vunpack.c.l.s4 1966171168
    %v190 = vunpack.c.0.s8 %v189
    %v191 = vlaneseq
    %v192 = vshrl.u32 %v191, 7
    %v193 = vsub.s32 %v190, %v192
    %v194 = vrot.slane %v172, %v193
    %v196 = vunpack.c.l.s4 1966171168
    %v197 = vunpack.c.0.s8 %v196
    %v198 = vlaneseq
    %v199 = vshrl.u32 %v198, 7
    %v200 = vsub.s32 %v197, %v199
    %v201 = vrot.slane %v173, %v200
    %v202 = vcombine.high %v180, %v180
    %v203 = vcombine.high %v187, %v187
    %v204 = vcombine.high %v194, %v194
    %v205 = vcombine.high %v201, %v201
    %v342 = vunpack.c.l.b16 %v28
    %v343 = vunpack.c.h.b16 %v28
    %v344 = vunpack.c.l.b16 %v29
    %v345 = vunpack.c.h.b16 %v29
    %v346 = vunpack.c.l.b16 %v30
    %v347 = vunpack.c.h.b16 %v30
    %v348 = vunpack.c.l.b16 %v31
    %v349 = vunpack.c.h.b16 %v31
    %v350 = vunpack.c.l.b16 %v32
    %v351 = vunpack.c.h.b16 %v32
    %v352 = vunpack.c.l.b16 %v33
    %v353 = vunpack.c.h.b16 %v33
    %v354 = vunpack.c.l.b16 %v34
    %v355 = vunpack.c.h.b16 %v34
    %v356 = vunpack.c.l.b16 %v35
    %v357 = vunpack.c.h.b16 %v35
    %v358 = vunpack.c.l.b16 %v36
    %v359 = vunpack.c.h.b16 %v36
    %v360 = vunpack.c.l.b16 %v37
    %v361 = vunpack.c.h.b16 %v37
    %v362 = vunpack.c.l.b16 %v38
    %v363 = vunpack.c.h.b16 %v38
    %v364 = vunpack.c.l.b16 %v39
    %v365 = vunpack.c.h.b16 %v39
    %v366 = vunpack.c.l.b16 %v40
    %v367 = vunpack.c.h.b16 %v40
    %v368 = vunpack.c.l.b16 %v41
    %v369 = vunpack.c.h.b16 %v41
    %v370 = vunpack.c.l.b16 %v42
    %v371 = vunpack.c.h.b16 %v42
    %v372 = vunpack.c.l.b16 %v43
    %v373 = vunpack.c.h.b16 %v43
    %v374 = vunpack.c.l.b16 %v44
    %v375 = vunpack.c.h.b16 %v44
    %v376 = vunpack.c.l.b16 %v45
    %v377 = vunpack.c.h.b16 %v45
    %v378 = vunpack.c.l.b16 %v46
    %v379 = vunpack.c.h.b16 %v46
    %v380 = vunpack.c.l.b16 %v47
    %v381 = vunpack.c.h.b16 %v47
    %v382 = vunpack.c.l.b16 %v48
    %v383 = vunpack.c.h.b16 %v48
    %v384 = vunpack.c.l.b16 %v49
    %v385 = vunpack.c.h.b16 %v49
    %v386 = vunpack.c.l.b16 %v50
    %v387 = vunpack.c.h.b16 %v50
    %v388 = vunpack.c.l.b16 %v51
    %v389 = vunpack.c.h.b16 %v51
    %v390 = vunpack.c.l.b16 %v52
    %v391 = vunpack.c.h.b16 %v52
    %v392 = vunpack.c.l.b16 %v53
    %v393 = vunpack.c.h.b16 %v53
    %v394 = vunpack.c.l.b16 %v54
    %v395 = vunpack.c.h.b16 %v54
    %v396 = vunpack.c.l.b16 %v55
    %v397 = vunpack.c.h.b16 %v55
    %v398 = vunpack.c.l.b16 %v56
    %v399 = vunpack.c.h.b16 %v56
    %v400 = vunpack.c.l.b16 %v57
    %v401 = vunpack.c.h.b16 %v57
    %v402 = vunpack.c.l.b16 %v58
    %v403 = vunpack.c.h.b16 %v58
    %v404 = vunpack.c.l.b16 %v59
    %v405 = vunpack.c.h.b16 %v59
    %v406 = vunpack.c.l.b16 %v60
    %v407 = vunpack.c.h.b16 %v60
    %v408 = vunpack.c.l.b16 %v61
    %v409 = vunpack.c.h.b16 %v61
    %v410 = vunpack.c.l.b16 %v62
    %v411 = vunpack.c.h.b16 %v62
    %v412 = vunpack.c.l.b16 %v63
    %v413 = vunpack.c.h.b16 %v63
    %v414 = vunpack.c.l.b16 %v64
    %v415 = vunpack.c.h.b16 %v64
    %v416 = vunpack.c.l.b16 %v65
    %v417 = vunpack.c.h.b16 %v65
    %v418 = vunpack.c.l.b16 %v66
    %v419 = vunpack.c.h.b16 %v66
    %v420 = vunpack.c.l.b16 %v67
    %v421 = vunpack.c.h.b16 %v67
    %v422 = vunpack.c.l.b16 %v68
    %v423 = vunpack.c.h.b16 %v68
    %v424 = vunpack.c.l.b16 %v69
    %v425 = vunpack.c.h.b16 %v69
    %v426 = vunpack.c.l.b16 %v70
    %v427 = vunpack.c.h.b16 %v70
    %v428 = vunpack.c.l.b16 %v71
    %v429 = vunpack.c.h.b16 %v71
    %v430 = vunpack.c.l.b16 %v72
    %v431 = vunpack.c.h.b16 %v72
    %v432 = vunpack.c.l.b16 %v73
    %v433 = vunpack.c.h.b16 %v73
    %v434 = vunpack.c.l.b16 %v74
    %v435 = vunpack.c.h.b16 %v74
    %v436 = vunpack.c.l.b16 %v75
    %v437 = vunpack.c.h.b16 %v75
    %v438 = vunpack.c.l.b16 %v76
    %v439 = vunpack.c.h.b16 %v76
    %v440 = vunpack.c.l.b16 %v77
    %v441 = vunpack.c.h.b16 %v77
    %v442 = vunpack.c.l.b16 %v78
    %v443 = vunpack.c.h.b16 %v78
    %v444 = vunpack.c.l.b16 %v79
    %v445 = vunpack.c.h.b16 %v79
    %v446 = vunpack.c.l.b16 %v80
    %v447 = vunpack.c.h.b16 %v80
    %v448 = vunpack.c.l.b16 %v81
    %v449 = vunpack.c.h.b16 %v81
    %v450 = vunpack.c.l.b16 %v82
    %v451 = vunpack.c.h.b16 %v82
    %v452 = vunpack.c.l.b16 %v83
    %v453 = vunpack.c.h.b16 %v83
    %v454 = vunpack.c.l.b16 %v84
    %v455 = vunpack.c.h.b16 %v84
    %v456 = vunpack.c.l.b16 %v85
    %v457 = vunpack.c.h.b16 %v85
    %v458 = vunpack.c.l.b16 %v86
    %v459 = vunpack.c.h.b16 %v86
    %v460 = vunpack.c.l.b16 %v87
    %v461 = vunpack.c.h.b16 %v87
    %v462 = vunpack.c.l.b16 %v88
    %v463 = vunpack.c.h.b16 %v88
    %v464 = vunpack.c.l.b16 %v89
    %v465 = vunpack.c.h.b16 %v89
    %v466 = vunpack.c.l.b16 %v90
    %v467 = vunpack.c.h.b16 %v90
    %v468 = vunpack.c.l.b16 %v91
    %v469 = vunpack.c.h.b16 %v91
    %v470 = vunpack.c.l.b16 %v92
    %v471 = vunpack.c.h.b16 %v92
    %v472 = vunpack.c.l.b16 %v93
    %v473 = vunpack.c.h.b16 %v93
    %v474 = vunpack.c.l.b16 %v94
    %v475 = vunpack.c.h.b16 %v94
    %v476 = vunpack.c.l.b16 %v95
    %v477 = vunpack.c.h.b16 %v95
    %v478 = vunpack.c.l.b16 %v96
    %v479 = vunpack.c.h.b16 %v96
    %v480 = vunpack.c.l.b16 %v97
    %v481 = vunpack.c.h.b16 %v97
    %v482 = vunpack.c.l.b16 %v98
    %v483 = vunpack.c.h.b16 %v98
    %v484 = vunpack.c.l.b16 %v99
    %v485 = vunpack.c.h.b16 %v99
    %v486 = vunpack.c.l.b16 %v100
    %v487 = vunpack.c.h.b16 %v100
    %v488 = vunpack.c.l.b16 %v101
    %v489 = vunpack.c.h.b16 %v101
    %v490 = vunpack.c.l.b16 %v102
    %v491 = vunpack.c.h.b16 %v102
    %v492 = vunpack.c.l.b16 %v103
    %v493 = vunpack.c.h.b16 %v103
    %v494 = vunpack.c.l.b16 %v104
    %v495 = vunpack.c.h.b16 %v104
    %v496 = vunpack.c.l.b16 %v105
    %v497 = vunpack.c.h.b16 %v105
    %v498 = vunpack.c.l.b16 %v106
    %v499 = vunpack.c.h.b16 %v106
    %v500 = vunpack.c.l.b16 %v107
    %v501 = vunpack.c.h.b16 %v107
    %v502 = vunpack.c.l.b16 %v108
    %v503 = vunpack.c.h.b16 %v108
    %v504 = vunpack.c.l.b16 %v109
    %v505 = vunpack.c.h.b16 %v109
    %v506 = vunpack.c.l.b16 %v110
    %v507 = vunpack.c.h.b16 %v110
    %v508 = vunpack.c.l.b16 %v111
    %v509 = vunpack.c.h.b16 %v111
    %v510 = vunpack.c.l.b16 %v112
    %v511 = vunpack.c.h.b16 %v112
    %v512 = vunpack.c.l.b16 %v113
    %v513 = vunpack.c.h.b16 %v113
    %v514 = vunpack.c.l.b16 %v114
    %v515 = vunpack.c.h.b16 %v114
    %v516 = vunpack.c.l.b16 %v115
    %v517 = vunpack.c.h.b16 %v115
    %v518 = vunpack.c.l.b16 %v116
    %v519 = vunpack.c.h.b16 %v116
    %v520 = vunpack.c.l.b16 %v117
    %v521 = vunpack.c.h.b16 %v117
    %v522 = vunpack.c.l.b16 %v118
    %v523 = vunpack.c.h.b16 %v118
    %v524 = vunpack.c.l.b16 %v119
    %v525 = vunpack.c.h.b16 %v119
    %v526 = vunpack.c.l.b16 %v120
    %v527 = vunpack.c.h.b16 %v120
    %v528 = vunpack.c.l.b16 %v121
    %v529 = vunpack.c.h.b16 %v121
    %v530 = vunpack.c.l.b16 %v122
    %v531 = vunpack.c.h.b16 %v122
    %v532 = vunpack.c.l.b16 %v123
    %v533 = vunpack.c.h.b16 %v123
    %v534 = vunpack.c.l.b16 %v124
    %v535 = vunpack.c.h.b16 %v124
    %v536 = vunpack.c.l.b16 %v125
    %v537 = vunpack.c.h.b16 %v125
    %v538 = vunpack.c.l.b16 %v126
    %v539 = vunpack.c.h.b16 %v126
    %v540 = vunpack.c.l.b16 %v127
    %v541 = vunpack.c.h.b16 %v127
    %v542 = vunpack.c.l.b16 %v128
    %v543 = vunpack.c.h.b16 %v128
    %v544 = vunpack.c.l.b16 %v129
    %v545 = vunpack.c.h.b16 %v129
    %v546 = vunpack.c.l.b16 %v130
    %v547 = vunpack.c.h.b16 %v130
    %v548 = vunpack.c.l.b16 %v131
    %v549 = vunpack.c.h.b16 %v131
    %v550 = vunpack.c.l.b16 %v132
    %v551 = vunpack.c.h.b16 %v132
    %v552 = vunpack.c.l.b16 %v133
    %v553 = vunpack.c.h.b16 %v133
    %v554 = vunpack.c.l.b16 %v134
    %v555 = vunpack.c.h.b16 %v134
    %v556 = vunpack.c.l.b16 %v135
    %v557 = vunpack.c.h.b16 %v135
    %v558 = vunpack.c.l.b16 %v136
    %v559 = vunpack.c.h.b16 %v136
    %v560 = vunpack.c.l.b16 %v137
    %v561 = vunpack.c.h.b16 %v137
    %v562 = vunpack.c.l.b16 %v138
    %v563 = vunpack.c.h.b16 %v138
    %v564 = vunpack.c.l.b16 %v139
    %v565 = vunpack.c.h.b16 %v139
    %v566 = vunpack.c.l.b16 %v140
    %v567 = vunpack.c.h.b16 %v140
    %v568 = vunpack.c.l.b16 %v141
    %v569 = vunpack.c.h.b16 %v141
    %v570 = vunpack.c.l.b16 %v142
    %v571 = vunpack.c.h.b16 %v142
    %v572 = vunpack.c.l.b16 %v143
    %v573 = vunpack.c.h.b16 %v143
    %v574 = vunpack.c.l.b16 %v144
    %v575 = vunpack.c.h.b16 %v144
    %v576 = vunpack.c.l.b16 %v145
    %v577 = vunpack.c.h.b16 %v145
    %v578 = vunpack.c.l.b16 %v146
    %v579 = vunpack.c.h.b16 %v146
    %v580 = vunpack.c.l.b16 %v147
    %v581 = vunpack.c.h.b16 %v147
    %v582 = vunpack.c.l.b16 %v148
    %v583 = vunpack.c.h.b16 %v148
    %v584 = vunpack.c.l.b16 %v149
    %v585 = vunpack.c.h.b16 %v149
    %v586 = vunpack.c.l.b16 %v150
    %v587 = vunpack.c.h.b16 %v150
    %v588 = vunpack.c.l.b16 %v151
    %v589 = vunpack.c.h.b16 %v151
    %v590 = vunpack.c.l.b16 %v152
    %v591 = vunpack.c.h.b16 %v152
    %v592 = vunpack.c.l.b16 %v153
    %v593 = vunpack.c.h.b16 %v153
    %v594 = vunpack.c.l.b16 %v154
    %v595 = vunpack.c.h.b16 %v154
    %v596 = vunpack.c.l.b16 %v155
    %v597 = vunpack.c.h.b16 %v155
    %v598 = vpack.c.b16 %v344, %v342
    %v599 = vpack.c.b16 %v345, %v343
    %v600 = vpack.c.b16 %v348, %v346
    %v601 = vpack.c.b16 %v349, %v347
    %v602 = vpack.c.b16 %v352, %v350
    %v603 = vpack.c.b16 %v353, %v351
    %v604 = vpack.c.b16 %v356, %v354
    %v605 = vpack.c.b16 %v357, %v355
    %v606 = vpack.c.b16 %v360, %v358
    %v607 = vpack.c.b16 %v361, %v359
    %v608 = vpack.c.b16 %v364, %v362
    %v609 = vpack.c.b16 %v365, %v363
    %v610 = vpack.c.b16 %v368, %v366
    %v611 = vpack.c.b16 %v369, %v367
    %v612 = vpack.c.b16 %v372, %v370
    %v613 = vpack.c.b16 %v373, %v371
    %v614 = vpack.c.b16 %v376, %v374
    %v615 = vpack.c.b16 %v377, %v375
    %v616 = vpack.c.b16 %v380, %v378
    %v617 = vpack.c.b16 %v381, %v379
    %v618 = vpack.c.b16 %v384, %v382
    %v619 = vpack.c.b16 %v385, %v383
    %v620 = vpack.c.b16 %v388, %v386
    %v621 = vpack.c.b16 %v389, %v387
    %v622 = vpack.c.b16 %v392, %v390
    %v623 = vpack.c.b16 %v393, %v391
    %v624 = vpack.c.b16 %v396, %v394
    %v625 = vpack.c.b16 %v397, %v395
    %v626 = vpack.c.b16 %v400, %v398
    %v627 = vpack.c.b16 %v401, %v399
    %v628 = vpack.c.b16 %v404, %v402
    %v629 = vpack.c.b16 %v405, %v403
    %v630 = vpack.c.b16 %v408, %v406
    %v631 = vpack.c.b16 %v409, %v407
    %v632 = vpack.c.b16 %v412, %v410
    %v633 = vpack.c.b16 %v413, %v411
    %v634 = vpack.c.b16 %v416, %v414
    %v635 = vpack.c.b16 %v417, %v415
    %v636 = vpack.c.b16 %v420, %v418
    %v637 = vpack.c.b16 %v421, %v419
    %v638 = vpack.c.b16 %v424, %v422
    %v639 = vpack.c.b16 %v425, %v423
    %v640 = vpack.c.b16 %v428, %v426
    %v641 = vpack.c.b16 %v429, %v427
    %v642 = vpack.c.b16 %v432, %v430
    %v643 = vpack.c.b16 %v433, %v431
    %v644 = vpack.c.b16 %v436, %v434
    %v645 = vpack.c.b16 %v437, %v435
    %v646 = vpack.c.b16 %v440, %v438
    %v647 = vpack.c.b16 %v441, %v439
    %v648 = vpack.c.b16 %v444, %v442
    %v649 = vpack.c.b16 %v445, %v443
    %v650 = vpack.c.b16 %v448, %v446
    %v651 = vpack.c.b16 %v449, %v447
    %v652 = vpack.c.b16 %v452, %v450
    %v653 = vpack.c.b16 %v453, %v451
    %v654 = vpack.c.b16 %v456, %v454
    %v655 = vpack.c.b16 %v457, %v455
    %v656 = vpack.c.b16 %v460, %v458
    %v657 = vpack.c.b16 %v461, %v459
    %v658 = vpack.c.b16 %v464, %v462
    %v659 = vpack.c.b16 %v465, %v463
    %v660 = vpack.c.b16 %v468, %v466
    %v661 = vpack.c.b16 %v469, %v467
    %v662 = vpack.c.b16 %v472, %v470
    %v663 = vpack.c.b16 %v473, %v471
    %v664 = vpack.c.b16 %v476, %v474
    %v665 = vpack.c.b16 %v477, %v475
    %v666 = vpack.c.b16 %v480, %v478
    %v667 = vpack.c.b16 %v481, %v479
    %v668 = vpack.c.b16 %v484, %v482
    %v669 = vpack.c.b16 %v485, %v483
    %v670 = vpack.c.b16 %v488, %v486
    %v671 = vpack.c.b16 %v489, %v487
    %v672 = vpack.c.b16 %v492, %v490
    %v673 = vpack.c.b16 %v493, %v491
    %v674 = vpack.c.b16 %v496, %v494
    %v675 = vpack.c.b16 %v497, %v495
    %v676 = vpack.c.b16 %v500, %v498
    %v677 = vpack.c.b16 %v501, %v499
    %v678 = vpack.c.b16 %v504, %v502
    %v679 = vpack.c.b16 %v505, %v503
    %v680 = vpack.c.b16 %v508, %v506
    %v681 = vpack.c.b16 %v509, %v507
    %v682 = vpack.c.b16 %v512, %v510
    %v683 = vpack.c.b16 %v513, %v511
    %v684 = vpack.c.b16 %v516, %v514
    %v685 = vpack.c.b16 %v517, %v515
    %v686 = vpack.c.b16 %v520, %v518
    %v687 = vpack.c.b16 %v521, %v519
    %v688 = vpack.c.b16 %v524, %v522
    %v689 = vpack.c.b16 %v525, %v523
    %v690 = vpack.c.b16 %v528, %v526
    %v691 = vpack.c.b16 %v529, %v527
    %v692 = vpack.c.b16 %v532, %v530
    %v693 = vpack.c.b16 %v533, %v531
    %v694 = vpack.c.b16 %v536, %v534
    %v695 = vpack.c.b16 %v537, %v535
    %v696 = vpack.c.b16 %v540, %v538
    %v697 = vpack.c.b16 %v541, %v539
    %v698 = vpack.c.b16 %v544, %v542
    %v699 = vpack.c.b16 %v545, %v543
    %v700 = vpack.c.b16 %v548, %v546
    %v701 = vpack.c.b16 %v549, %v547
    %v702 = vpack.c.b16 %v552, %v550
    %v703 = vpack.c.b16 %v553, %v551
    %v704 = vpack.c.b16 %v556, %v554
    %v705 = vpack.c.b16 %v557, %v555
    %v706 = vpack.c.b16 %v560, %v558
    %v707 = vpack.c.b16 %v561, %v559
    %v708 = vpack.c.b16 %v564, %v562
    %v709 = vpack.c.b16 %v565, %v563
    %v710 = vpack.c.b16 %v568, %v566
    %v711 = vpack.c.b16 %v569, %v567
    %v712 = vpack.c.b16 %v572, %v570
    %v713 = vpack.c.b16 %v573, %v571
    %v714 = vpack.c.b16 %v576, %v574
    %v715 = vpack.c.b16 %v577, %v575
    %v716 = vpack.c.b16 %v580, %v578
    %v717 = vpack.c.b16 %v581, %v579
    %v718 = vpack.c.b16 %v584, %v582
    %v719 = vpack.c.b16 %v585, %v583
    %v720 = vpack.c.b16 %v588, %v586
    %v721 = vpack.c.b16 %v589, %v587
    %v722 = vpack.c.b16 %v592, %v590
    %v723 = vpack.c.b16 %v593, %v591
    %v724 = vpack.c.b16 %v596, %v594
    %v725 = vpack.c.b16 %v597, %v595
    %854 = vmatprep.subr.bf16.mxu0 %v613
    %855 = vmatpush1.bf16.msra.mxu0 %v612
    %856 = vmatprep.subr.bf16.mxu0 %v611
    %857 = vmatpush1.bf16.msra.mxu0 %v610
    %858 = vmatprep.subr.bf16.mxu0 %v609
    %859 = vmatpush1.bf16.msra.mxu0 %v608
    %860 = vmatprep.subr.bf16.mxu0 %v607
    %861 = vmatpush1.bf16.msra.mxu0 %v606
    %862 = vmatprep.subr.bf16.mxu0 %v605
    %863 = vmatpush1.bf16.msra.mxu0 %v604
    %864 = vmatprep.subr.bf16.mxu0 %v603
    %865 = vmatpush1.bf16.msra.mxu0 %v602
    %866 = vmatprep.subr.bf16.mxu0 %v601
    %867 = vmatpush1.bf16.msra.mxu0 %v600
    %868 = vmatprep.subr.bf16.mxu0 %v599
    %869 = vmatpush1.bf16.msra.mxu0 %v598
    %870 = vmatprep.subr.bf16.mxu0 %v629
    %871 = vmatpush2.bf16.msra.mxu0 %v628
    %872 = vmatprep.subr.bf16.mxu0 %v627
    %873 = vmatpush2.bf16.msra.mxu0 %v626
    %874 = vmatprep.subr.bf16.mxu0 %v625
    %875 = vmatpush2.bf16.msra.mxu0 %v624
    %876 = vmatprep.subr.bf16.mxu0 %v623
    %877 = vmatpush2.bf16.msra.mxu0 %v622
    %878 = vmatprep.subr.bf16.mxu0 %v621
    %879 = vmatpush2.bf16.msra.mxu0 %v620
    %880 = vmatprep.subr.bf16.mxu0 %v619
    %881 = vmatpush2.bf16.msra.mxu0 %v618
    %882 = vmatprep.subr.bf16.mxu0 %v617
    %883 = vmatpush2.bf16.msra.mxu0 %v616
    %884 = vmatprep.subr.bf16.mxu0 %v615
    %885 = vmatpush2.bf16.msra.mxu0 %v614
    %886 = vmatprep.mubr.bf16.mxu0 %v194
    %887 = vmatmul.mubr.bf16.gmra.mxu0 %v180
    %v888 = vpop.f32.mrf.mxu0
    %v889 = vadd.f32 0.0, %v888
    %v890 = vpop.f32.mrf.mxu0
    %v891 = vadd.f32 0.0, %v890
    %v892 = vpop.f32.mrf.mxu0
    %v893 = vpop.f32.mrf.mxu0
    %894 = vdwg.mxu0
    %895 = vmatprep.subr.bf16.mxu0 %v645
    %896 = vmatpush1.bf16.msra.mxu0 %v644
    %897 = vmatprep.subr.bf16.mxu0 %v643
    %898 = vmatpush1.bf16.msra.mxu0 %v642
    %899 = vmatprep.subr.bf16.mxu0 %v641
    %900 = vmatpush1.bf16.msra.mxu0 %v640
    %901 = vmatprep.subr.bf16.mxu0 %v639
    %902 = vmatpush1.bf16.msra.mxu0 %v638
    %903 = vmatprep.subr.bf16.mxu0 %v637
    %904 = vmatpush1.bf16.msra.mxu0 %v636
    %905 = vmatprep.subr.bf16.mxu0 %v635
    %906 = vmatpush1.bf16.msra.mxu0 %v634
    %907 = vmatprep.subr.bf16.mxu0 %v633
    %908 = vmatpush1.bf16.msra.mxu0 %v632
    %909 = vmatprep.subr.bf16.mxu0 %v631
    %910 = vmatpush1.bf16.msra.mxu0 %v630
    %911 = vmatprep.subr.bf16.mxu0 %v661
    %912 = vmatpush2.bf16.msra.mxu0 %v660
    %913 = vmatprep.subr.bf16.mxu0 %v659
    %914 = vmatpush2.bf16.msra.mxu0 %v658
    %915 = vmatprep.subr.bf16.mxu0 %v657
    %916 = vmatpush2.bf16.msra.mxu0 %v656
    %917 = vmatprep.subr.bf16.mxu0 %v655
    %918 = vmatpush2.bf16.msra.mxu0 %v654
    %919 = vmatprep.subr.bf16.mxu0 %v653
    %920 = vmatpush2.bf16.msra.mxu0 %v652
    %921 = vmatprep.subr.bf16.mxu0 %v651
    %922 = vmatpush2.bf16.msra.mxu0 %v650
    %923 = vmatprep.subr.bf16.mxu0 %v649
    %924 = vmatpush2.bf16.msra.mxu0 %v648
    %925 = vmatprep.subr.bf16.mxu0 %v647
    %926 = vmatpush2.bf16.msra.mxu0 %v646
    %927 = vmatprep.mubr.bf16.mxu0 %v204
    %928 = vmatmul.mubr.bf16.gmra.mxu0 %v202
    %v929 = vpop.f32.mrf.mxu0
    %v930 = vadd.f32 %v889, %v929
    %v931 = vpop.f32.mrf.mxu0
    %v932 = vadd.f32 %v891, %v931
    %v933 = vpop.f32.mrf.mxu0
    %v934 = vpop.f32.mrf.mxu0
    %935 = vdwg.mxu0
    %936 = vmatprep.subr.bf16.mxu0 %v677
    %937 = vmatpush1.bf16.msra.mxu0 %v676
    %938 = vmatprep.subr.bf16.mxu0 %v675
    %939 = vmatpush1.bf16.msra.mxu0 %v674
    %940 = vmatprep.subr.bf16.mxu0 %v673
    %941 = vmatpush1.bf16.msra.mxu0 %v672
    %942 = vmatprep.subr.bf16.mxu0 %v671
    %943 = vmatpush1.bf16.msra.mxu0 %v670
    %944 = vmatprep.subr.bf16.mxu0 %v669
    %945 = vmatpush1.bf16.msra.mxu0 %v668
    %946 = vmatprep.subr.bf16.mxu0 %v667
    %947 = vmatpush1.bf16.msra.mxu0 %v666
    %948 = vmatprep.subr.bf16.mxu0 %v665
    %949 = vmatpush1.bf16.msra.mxu0 %v664
    %950 = vmatprep.subr.bf16.mxu0 %v663
    %951 = vmatpush1.bf16.msra.mxu0 %v662
    %952 = vmatprep.subr.bf16.mxu0 %v693
    %953 = vmatpush2.bf16.msra.mxu0 %v692
    %954 = vmatprep.subr.bf16.mxu0 %v691
    %955 = vmatpush2.bf16.msra.mxu0 %v690
    %956 = vmatprep.subr.bf16.mxu0 %v689
    %957 = vmatpush2.bf16.msra.mxu0 %v688
    %958 = vmatprep.subr.bf16.mxu0 %v687
    %959 = vmatpush2.bf16.msra.mxu0 %v686
    %960 = vmatprep.subr.bf16.mxu0 %v685
    %961 = vmatpush2.bf16.msra.mxu0 %v684
    %962 = vmatprep.subr.bf16.mxu0 %v683
    %963 = vmatpush2.bf16.msra.mxu0 %v682
    %964 = vmatprep.subr.bf16.mxu0 %v681
    %965 = vmatpush2.bf16.msra.mxu0 %v680
    %966 = vmatprep.subr.bf16.mxu0 %v679
    %967 = vmatpush2.bf16.msra.mxu0 %v678
    %968 = vmatprep.mubr.bf16.mxu0 %v201
    %969 = vmatmul.mubr.bf16.gmra.mxu0 %v187
    %v970 = vpop.f32.mrf.mxu0
    %v971 = vadd.f32 %v930, %v970
    %v972 = vpop.f32.mrf.mxu0
    %v973 = vadd.f32 %v932, %v972
    %v974 = vpop.f32.mrf.mxu0
    %v975 = vpop.f32.mrf.mxu0
    %976 = vdwg.mxu0
    %977 = vmatprep.subr.bf16.mxu0 %v709
    %978 = vmatpush1.bf16.msra.mxu0 %v708
    %979 = vmatprep.subr.bf16.mxu0 %v707
    %980 = vmatpush1.bf16.msra.mxu0 %v706
    %981 = vmatprep.subr.bf16.mxu0 %v705
    %982 = vmatpush1.bf16.msra.mxu0 %v704
    %983 = vmatprep.subr.bf16.mxu0 %v703
    %984 = vmatpush1.bf16.msra.mxu0 %v702
    %985 = vmatprep.subr.bf16.mxu0 %v701
    %986 = vmatpush1.bf16.msra.mxu0 %v700
    %987 = vmatprep.subr.bf16.mxu0 %v699
    %988 = vmatpush1.bf16.msra.mxu0 %v698
    %989 = vmatprep.subr.bf16.mxu0 %v697
    %990 = vmatpush1.bf16.msra.mxu0 %v696
    %991 = vmatprep.subr.bf16.mxu0 %v695
    %992 = vmatpush1.bf16.msra.mxu0 %v694
    %993 = vmatprep.subr.bf16.mxu0 %v725
    %994 = vmatpush2.bf16.msra.mxu0 %v724
    %995 = vmatprep.subr.bf16.mxu0 %v723
    %996 = vmatpush2.bf16.msra.mxu0 %v722
    %997 = vmatprep.subr.bf16.mxu0 %v721
    %998 = vmatpush2.bf16.msra.mxu0 %v720
    %999 = vmatprep.subr.bf16.mxu0 %v719
    %1000 = vmatpush2.bf16.msra.mxu0 %v718
    %1001 = vmatprep.subr.bf16.mxu0 %v717
    %1002 = vmatpush2.bf16.msra.mxu0 %v716
    %1003 = vmatprep.subr.bf16.mxu0 %v715
    %1004 = vmatpush2.bf16.msra.mxu0 %v714
    %1005 = vmatprep.subr.bf16.mxu0 %v713
    %1006 = vmatpush2.bf16.msra.mxu0 %v712
    %1007 = vmatprep.subr.bf16.mxu0 %v711
    %1008 = vmatpush2.bf16.msra.mxu0 %v710
    %1009 = vmatprep.mubr.bf16.mxu0 %v205
    %1010 = vmatmul.mubr.bf16.gmra.mxu0 %v203
    %v1011 = vpop.f32.mrf.mxu0
    %v1012 = vadd.f32 %v971, %v1011
    %v1013 = vpop.f32.mrf.mxu0
    %v1014 = vadd.f32 %v973, %v1013
    %v1015 = vpop.f32.mrf.mxu0
    %v1016 = vpop.f32.mrf.mxu0
    %1017 = vdwg.mxu0
    %v1018 = vld [vmem:[%s2] sm:$0x3]
    %v1020 = vlaneseq
    %v1021 = vshrl.u32 %v1020, 7
    %v1022 = vsub.s32 0, %v1021
    %v1023 = vrot.slane %v1018, %v1022
    %v1024 = vlaneseq
    %v1025 = vshrl.u32 %v1024, 7
    %v1026 = vsub.s32 1, %v1025
    %v1027 = vrot.slane %v1018, %v1026
    %v1030 = vmul.f32 %v1012, %v1023
    %v1031 = vmul.f32 %v1014, %v1027
    %v1032 = vld [vmem:[%s3] sm:$0x3]
    %v1034 = vlaneseq
    %v1035 = vshrl.u32 %v1034, 7
    %v1036 = vsub.s32 0, %v1035
    %v1037 = vrot.slane %v1032, %v1036
    %v1038 = vlaneseq
    %v1039 = vshrl.u32 %v1038, 7
    %v1040 = vsub.s32 1, %v1039
    %v1041 = vrot.slane %v1032, %v1040
    %v1044 = vadd.f32 %v1030, %v1037
    %v1045 = vadd.f32 %v1031, %v1041
    %v1046 = vmax.f32 %v1044, 0.0
    %v1047 = vmax.f32 %v1045, 0.0
    %v1048 = vpack.c.bf16 %v1046, %v1046
    %v1049 = vpack.c.bf16 %v1047, %v1047
    %v1050 = vld [vmem:[%s4] sm:$0xff]
    %v1051 = vld [vmem:[%s4 + $0x8] sm:$0xff]
    %v1052 = vld [vmem:[%s4 + $0x10] sm:$0xff]
    %v1053 = vld [vmem:[%s4 + $0x18] sm:$0xff]
    %v1054 = vld [vmem:[%s4 + $0x20] sm:$0xff]
    %v1055 = vld [vmem:[%s4 + $0x28] sm:$0xff]
    %v1056 = vld [vmem:[%s4 + $0x30] sm:$0xff]
    %v1057 = vld [vmem:[%s4 + $0x38] sm:$0xff]
    %v1058 = vld [vmem:[%s4 + $0x40] sm:$0xff]
    %v1059 = vld [vmem:[%s4 + $0x48] sm:$0xff]
    %v1060 = vld [vmem:[%s4 + $0x50] sm:$0xff]
    %v1061 = vld [vmem:[%s4 + $0x58] sm:$0xff]
    %v1062 = vld [vmem:[%s4 + $0x60] sm:$0xff]
    %v1063 = vld [vmem:[%s4 + $0x68] sm:$0xff]
    %v1064 = vld [vmem:[%s4 + $0x70] sm:$0xff]
    %v1065 = vld [vmem:[%s4 + $0x78] sm:$0xff]
    %v1066 = vld [vmem:[%s4 + $0x80] sm:$0xff]
    %v1067 = vld [vmem:[%s4 + $0x88] sm:$0xff]
    %v1068 = vld [vmem:[%s4 + $0x90] sm:$0xff]
    %v1069 = vld [vmem:[%s4 + $0x98] sm:$0xff]
    %v1070 = vld [vmem:[%s4 + $0xa0] sm:$0xff]
    %v1071 = vld [vmem:[%s4 + $0xa8] sm:$0xff]
    %v1072 = vld [vmem:[%s4 + $0xb0] sm:$0xff]
    %v1073 = vld [vmem:[%s4 + $0xb8] sm:$0xff]
    %v1074 = vld [vmem:[%s4 + $0xc0] sm:$0xff]
    %v1075 = vld [vmem:[%s4 + $0xc8] sm:$0xff]
    %v1076 = vld [vmem:[%s4 + $0xd0] sm:$0xff]
    %v1077 = vld [vmem:[%s4 + $0xd8] sm:$0xff]
    %v1078 = vld [vmem:[%s4 + $0xe0] sm:$0xff]
    %v1079 = vld [vmem:[%s4 + $0xe8] sm:$0xff]
    %v1080 = vld [vmem:[%s4 + $0xf0] sm:$0xff]
    %v1081 = vld [vmem:[%s4 + $0xf8] sm:$0xff]
    %v1082 = vld [vmem:[%s4 + $0x100] sm:$0xff]
    %v1083 = vld [vmem:[%s4 + $0x108] sm:$0xff]
    %v1084 = vld [vmem:[%s4 + $0x110] sm:$0xff]
    %v1085 = vld [vmem:[%s4 + $0x118] sm:$0xff]
    %v1086 = vld [vmem:[%s4 + $0x120] sm:$0xff]
    %v1087 = vld [vmem:[%s4 + $0x128] sm:$0xff]
    %v1088 = vld [vmem:[%s4 + $0x130] sm:$0xff]
    %v1089 = vld [vmem:[%s4 + $0x138] sm:$0xff]
    %v1090 = vld [vmem:[%s4 + $0x140] sm:$0xff]
    %v1091 = vld [vmem:[%s4 + $0x148] sm:$0xff]
    %v1092 = vld [vmem:[%s4 + $0x150] sm:$0xff]
    %v1093 = vld [vmem:[%s4 + $0x158] sm:$0xff]
    %v1094 = vld [vmem:[%s4 + $0x160] sm:$0xff]
    %v1095 = vld [vmem:[%s4 + $0x168] sm:$0xff]
    %v1096 = vld [vmem:[%s4 + $0x170] sm:$0xff]
    %v1097 = vld [vmem:[%s4 + $0x178] sm:$0xff]
    %v1098 = vld [vmem:[%s4 + $0x180] sm:$0xff]
    %v1099 = vld [vmem:[%s4 + $0x188] sm:$0xff]
    %v1100 = vld [vmem:[%s4 + $0x190] sm:$0xff]
    %v1101 = vld [vmem:[%s4 + $0x198] sm:$0xff]
    %v1102 = vld [vmem:[%s4 + $0x1a0] sm:$0xff]
    %v1103 = vld [vmem:[%s4 + $0x1a8] sm:$0xff]
    %v1104 = vld [vmem:[%s4 + $0x1b0] sm:$0xff]
    %v1105 = vld [vmem:[%s4 + $0x1b8] sm:$0xff]
    %v1106 = vld [vmem:[%s4 + $0x1c0] sm:$0xff]
    %v1107 = vld [vmem:[%s4 + $0x1c8] sm:$0xff]
    %v1108 = vld [vmem:[%s4 + $0x1d0] sm:$0xff]
    %v1109 = vld [vmem:[%s4 + $0x1d8] sm:$0xff]
    %v1110 = vld [vmem:[%s4 + $0x1e0] sm:$0xff]
    %v1111 = vld [vmem:[%s4 + $0x1e8] sm:$0xff]
    %v1112 = vld [vmem:[%s4 + $0x1f0] sm:$0xff]
    %v1113 = vld [vmem:[%s4 + $0x1f8] sm:$0xff]
    %v1114 = vld [vmem:[%s4 + $0x200] sm:$0xff]
    %v1115 = vld [vmem:[%s4 + $0x208] sm:$0xff]
    %v1116 = vld [vmem:[%s4 + $0x210] sm:$0xff]
    %v1117 = vld [vmem:[%s4 + $0x218] sm:$0xff]
    %v1118 = vld [vmem:[%s4 + $0x220] sm:$0xff]
    %v1119 = vld [vmem:[%s4 + $0x228] sm:$0xff]
    %v1120 = vld [vmem:[%s4 + $0x230] sm:$0xff]
    %v1121 = vld [vmem:[%s4 + $0x238] sm:$0xff]
    %v1122 = vld [vmem:[%s4 + $0x240] sm:$0xff]
    %v1123 = vld [vmem:[%s4 + $0x248] sm:$0xff]
    %v1124 = vld [vmem:[%s4 + $0x250] sm:$0xff]
    %v1125 = vld [vmem:[%s4 + $0x258] sm:$0xff]
    %v1126 = vld [vmem:[%s4 + $0x260] sm:$0xff]
    %v1127 = vld [vmem:[%s4 + $0x268] sm:$0xff]
    %v1128 = vld [vmem:[%s4 + $0x270] sm:$0xff]
    %v1129 = vld [vmem:[%s4 + $0x278] sm:$0xff]
    %v1130 = vld [vmem:[%s4 + $0x280] sm:$0xff]
    %v1131 = vld [vmem:[%s4 + $0x288] sm:$0xff]
    %v1132 = vld [vmem:[%s4 + $0x290] sm:$0xff]
    %v1133 = vld [vmem:[%s4 + $0x298] sm:$0xff]
    %v1134 = vld [vmem:[%s4 + $0x2a0] sm:$0xff]
    %v1135 = vld [vmem:[%s4 + $0x2a8] sm:$0xff]
    %v1136 = vld [vmem:[%s4 + $0x2b0] sm:$0xff]
    %v1137 = vld [vmem:[%s4 + $0x2b8] sm:$0xff]
    %v1138 = vld [vmem:[%s4 + $0x2c0] sm:$0xff]
    %v1139 = vld [vmem:[%s4 + $0x2c8] sm:$0xff]
    %v1140 = vld [vmem:[%s4 + $0x2d0] sm:$0xff]
    %v1141 = vld [vmem:[%s4 + $0x2d8] sm:$0xff]
    %v1142 = vld [vmem:[%s4 + $0x2e0] sm:$0xff]
    %v1143 = vld [vmem:[%s4 + $0x2e8] sm:$0xff]
    %v1144 = vld [vmem:[%s4 + $0x2f0] sm:$0xff]
    %v1145 = vld [vmem:[%s4 + $0x2f8] sm:$0xff]
    %v1146 = vld [vmem:[%s4 + $0x300] sm:$0xff]
    %v1147 = vld [vmem:[%s4 + $0x308] sm:$0xff]
    %v1148 = vld [vmem:[%s4 + $0x310] sm:$0xff]
    %v1149 = vld [vmem:[%s4 + $0x318] sm:$0xff]
    %v1150 = vld [vmem:[%s4 + $0x320] sm:$0xff]
    %v1151 = vld [vmem:[%s4 + $0x328] sm:$0xff]
    %v1152 = vld [vmem:[%s4 + $0x330] sm:$0xff]
    %v1153 = vld [vmem:[%s4 + $0x338] sm:$0xff]
    %v1154 = vld [vmem:[%s4 + $0x340] sm:$0xff]
    %v1155 = vld [vmem:[%s4 + $0x348] sm:$0xff]
    %v1156 = vld [vmem:[%s4 + $0x350] sm:$0xff]
    %v1157 = vld [vmem:[%s4 + $0x358] sm:$0xff]
    %v1158 = vld [vmem:[%s4 + $0x360] sm:$0xff]
    %v1159 = vld [vmem:[%s4 + $0x368] sm:$0xff]
    %v1160 = vld [vmem:[%s4 + $0x370] sm:$0xff]
    %v1161 = vld [vmem:[%s4 + $0x378] sm:$0xff]
    %v1162 = vld [vmem:[%s4 + $0x380] sm:$0xff]
    %v1163 = vld [vmem:[%s4 + $0x388] sm:$0xff]
    %v1164 = vld [vmem:[%s4 + $0x390] sm:$0xff]
    %v1165 = vld [vmem:[%s4 + $0x398] sm:$0xff]
    %v1166 = vld [vmem:[%s4 + $0x3a0] sm:$0xff]
    %v1167 = vld [vmem:[%s4 + $0x3a8] sm:$0xff]
    %v1168 = vld [vmem:[%s4 + $0x3b0] sm:$0xff]
    %v1169 = vld [vmem:[%s4 + $0x3b8] sm:$0xff]
    %v1170 = vld [vmem:[%s4 + $0x3c0] sm:$0xff]
    %v1171 = vld [vmem:[%s4 + $0x3c8] sm:$0xff]
    %v1172 = vld [vmem:[%s4 + $0x3d0] sm:$0xff]
    %v1173 = vld [vmem:[%s4 + $0x3d8] sm:$0xff]
    %v1174 = vld [vmem:[%s4 + $0x3e0] sm:$0xff]
    %v1175 = vld [vmem:[%s4 + $0x3e8] sm:$0xff]
    %v1176 = vld [vmem:[%s4 + $0x3f0] sm:$0xff]
    %v1177 = vld [vmem:[%s4 + $0x3f8] sm:$0xff]
    %v1306 = vunpack.c.l.b16 %v1050
    %v1307 = vunpack.c.h.b16 %v1050
    %v1308 = vunpack.c.l.b16 %v1051
    %v1309 = vunpack.c.h.b16 %v1051
    %v1310 = vunpack.c.l.b16 %v1052
    %v1311 = vunpack.c.h.b16 %v1052
    %v1312 = vunpack.c.l.b16 %v1053
    %v1313 = vunpack.c.h.b16 %v1053
    %v1314 = vunpack.c.l.b16 %v1054
    %v1315 = vunpack.c.h.b16 %v1054
    %v1316 = vunpack.c.l.b16 %v1055
    %v1317 = vunpack.c.h.b16 %v1055
    %v1318 = vunpack.c.l.b16 %v1056
    %v1319 = vunpack.c.h.b16 %v1056
    %v1320 = vunpack.c.l.b16 %v1057
    %v1321 = vunpack.c.h.b16 %v1057
    %v1322 = vunpack.c.l.b16 %v1058
    %v1323 = vunpack.c.h.b16 %v1058
    %v1324 = vunpack.c.l.b16 %v1059
    %v1325 = vunpack.c.h.b16 %v1059
    %v1326 = vunpack.c.l.b16 %v1060
    %v1327 = vunpack.c.h.b16 %v1060
    %v1328 = vunpack.c.l.b16 %v1061
    %v1329 = vunpack.c.h.b16 %v1061
    %v1330 = vunpack.c.l.b16 %v1062
    %v1331 = vunpack.c.h.b16 %v1062
    %v1332 = vunpack.c.l.b16 %v1063
    %v1333 = vunpack.c.h.b16 %v1063
    %v1334 = vunpack.c.l.b16 %v1064
    %v1335 = vunpack.c.h.b16 %v1064
    %v1336 = vunpack.c.l.b16 %v1065
    %v1337 = vunpack.c.h.b16 %v1065
    %v1338 = vunpack.c.l.b16 %v1066
    %v1339 = vunpack.c.h.b16 %v1066
    %v1340 = vunpack.c.l.b16 %v1067
    %v1341 = vunpack.c.h.b16 %v1067
    %v1342 = vunpack.c.l.b16 %v1068
    %v1343 = vunpack.c.h.b16 %v1068
    %v1344 = vunpack.c.l.b16 %v1069
    %v1345 = vunpack.c.h.b16 %v1069
    %v1346 = vunpack.c.l.b16 %v1070
    %v1347 = vunpack.c.h.b16 %v1070
    %v1348 = vunpack.c.l.b16 %v1071
    %v1349 = vunpack.c.h.b16 %v1071
    %v1350 = vunpack.c.l.b16 %v1072
    %v1351 = vunpack.c.h.b16 %v1072
    %v1352 = vunpack.c.l.b16 %v1073
    %v1353 = vunpack.c.h.b16 %v1073
    %v1354 = vunpack.c.l.b16 %v1074
    %v1355 = vunpack.c.h.b16 %v1074
    %v1356 = vunpack.c.l.b16 %v1075
    %v1357 = vunpack.c.h.b16 %v1075
    %v1358 = vunpack.c.l.b16 %v1076
    %v1359 = vunpack.c.h.b16 %v1076
    %v1360 = vunpack.c.l.b16 %v1077
    %v1361 = vunpack.c.h.b16 %v1077
    %v1362 = vunpack.c.l.b16 %v1078
    %v1363 = vunpack.c.h.b16 %v1078
    %v1364 = vunpack.c.l.b16 %v1079
    %v1365 = vunpack.c.h.b16 %v1079
    %v1366 = vunpack.c.l.b16 %v1080
    %v1367 = vunpack.c.h.b16 %v1080
    %v1368 = vunpack.c.l.b16 %v1081
    %v1369 = vunpack.c.h.b16 %v1081
    %v1370 = vunpack.c.l.b16 %v1082
    %v1371 = vunpack.c.h.b16 %v1082
    %v1372 = vunpack.c.l.b16 %v1083
    %v1373 = vunpack.c.h.b16 %v1083
    %v1374 = vunpack.c.l.b16 %v1084
    %v1375 = vunpack.c.h.b16 %v1084
    %v1376 = vunpack.c.l.b16 %v1085
    %v1377 = vunpack.c.h.b16 %v1085
    %v1378 = vunpack.c.l.b16 %v1086
    %v1379 = vunpack.c.h.b16 %v1086
    %v1380 = vunpack.c.l.b16 %v1087
    %v1381 = vunpack.c.h.b16 %v1087
    %v1382 = vunpack.c.l.b16 %v1088
    %v1383 = vunpack.c.h.b16 %v1088
    %v1384 = vunpack.c.l.b16 %v1089
    %v1385 = vunpack.c.h.b16 %v1089
    %v1386 = vunpack.c.l.b16 %v1090
    %v1387 = vunpack.c.h.b16 %v1090
    %v1388 = vunpack.c.l.b16 %v1091
    %v1389 = vunpack.c.h.b16 %v1091
    %v1390 = vunpack.c.l.b16 %v1092
    %v1391 = vunpack.c.h.b16 %v1092
    %v1392 = vunpack.c.l.b16 %v1093
    %v1393 = vunpack.c.h.b16 %v1093
    %v1394 = vunpack.c.l.b16 %v1094
    %v1395 = vunpack.c.h.b16 %v1094
    %v1396 = vunpack.c.l.b16 %v1095
    %v1397 = vunpack.c.h.b16 %v1095
    %v1398 = vunpack.c.l.b16 %v1096
    %v1399 = vunpack.c.h.b16 %v1096
    %v1400 = vunpack.c.l.b16 %v1097
    %v1401 = vunpack.c.h.b16 %v1097
    %v1402 = vunpack.c.l.b16 %v1098
    %v1403 = vunpack.c.h.b16 %v1098
    %v1404 = vunpack.c.l.b16 %v1099
    %v1405 = vunpack.c.h.b16 %v1099
    %v1406 = vunpack.c.l.b16 %v1100
    %v1407 = vunpack.c.h.b16 %v1100
    %v1408 = vunpack.c.l.b16 %v1101
    %v1409 = vunpack.c.h.b16 %v1101
    %v1410 = vunpack.c.l.b16 %v1102
    %v1411 = vunpack.c.h.b16 %v1102
    %v1412 = vunpack.c.l.b16 %v1103
    %v1413 = vunpack.c.h.b16 %v1103
    %v1414 = vunpack.c.l.b16 %v1104
    %v1415 = vunpack.c.h.b16 %v1104
    %v1416 = vunpack.c.l.b16 %v1105
    %v1417 = vunpack.c.h.b16 %v1105
    %v1418 = vunpack.c.l.b16 %v1106
    %v1419 = vunpack.c.h.b16 %v1106
    %v1420 = vunpack.c.l.b16 %v1107
    %v1421 = vunpack.c.h.b16 %v1107
    %v1422 = vunpack.c.l.b16 %v1108
    %v1423 = vunpack.c.h.b16 %v1108
    %v1424 = vunpack.c.l.b16 %v1109
    %v1425 = vunpack.c.h.b16 %v1109
    %v1426 = vunpack.c.l.b16 %v1110
    %v1427 = vunpack.c.h.b16 %v1110
    %v1428 = vunpack.c.l.b16 %v1111
    %v1429 = vunpack.c.h.b16 %v1111
    %v1430 = vunpack.c.l.b16 %v1112
    %v1431 = vunpack.c.h.b16 %v1112
    %v1432 = vunpack.c.l.b16 %v1113
    %v1433 = vunpack.c.h.b16 %v1113
    %v1434 = vunpack.c.l.b16 %v1114
    %v1435 = vunpack.c.h.b16 %v1114
    %v1436 = vunpack.c.l.b16 %v1115
    %v1437 = vunpack.c.h.b16 %v1115
    %v1438 = vunpack.c.l.b16 %v1116
    %v1439 = vunpack.c.h.b16 %v1116
    %v1440 = vunpack.c.l.b16 %v1117
    %v1441 = vunpack.c.h.b16 %v1117
    %v1442 = vunpack.c.l.b16 %v1118
    %v1443 = vunpack.c.h.b16 %v1118
    %v1444 = vunpack.c.l.b16 %v1119
    %v1445 = vunpack.c.h.b16 %v1119
    %v1446 = vunpack.c.l.b16 %v1120
    %v1447 = vunpack.c.h.b16 %v1120
    %v1448 = vunpack.c.l.b16 %v1121
    %v1449 = vunpack.c.h.b16 %v1121
    %v1450 = vunpack.c.l.b16 %v1122
    %v1451 = vunpack.c.h.b16 %v1122
    %v1452 = vunpack.c.l.b16 %v1123
    %v1453 = vunpack.c.h.b16 %v1123
    %v1454 = vunpack.c.l.b16 %v1124
    %v1455 = vunpack.c.h.b16 %v1124
    %v1456 = vunpack.c.l.b16 %v1125
    %v1457 = vunpack.c.h.b16 %v1125
    %v1458 = vunpack.c.l.b16 %v1126
    %v1459 = vunpack.c.h.b16 %v1126
    %v1460 = vunpack.c.l.b16 %v1127
    %v1461 = vunpack.c.h.b16 %v1127
    %v1462 = vunpack.c.l.b16 %v1128
    %v1463 = vunpack.c.h.b16 %v1128
    %v1464 = vunpack.c.l.b16 %v1129
    %v1465 = vunpack.c.h.b16 %v1129
    %v1466 = vunpack.c.l.b16 %v1130
    %v1467 = vunpack.c.h.b16 %v1130
    %v1468 = vunpack.c.l.b16 %v1131
    %v1469 = vunpack.c.h.b16 %v1131
    %v1470 = vunpack.c.l.b16 %v1132
    %v1471 = vunpack.c.h.b16 %v1132
    %v1472 = vunpack.c.l.b16 %v1133
    %v1473 = vunpack.c.h.b16 %v1133
    %v1474 = vunpack.c.l.b16 %v1134
    %v1475 = vunpack.c.h.b16 %v1134
    %v1476 = vunpack.c.l.b16 %v1135
    %v1477 = vunpack.c.h.b16 %v1135
    %v1478 = vunpack.c.l.b16 %v1136
    %v1479 = vunpack.c.h.b16 %v1136
    %v1480 = vunpack.c.l.b16 %v1137
    %v1481 = vunpack.c.h.b16 %v1137
    %v1482 = vunpack.c.l.b16 %v1138
    %v1483 = vunpack.c.h.b16 %v1138
    %v1484 = vunpack.c.l.b16 %v1139
    %v1485 = vunpack.c.h.b16 %v1139
    %v1486 = vunpack.c.l.b16 %v1140
    %v1487 = vunpack.c.h.b16 %v1140
    %v1488 = vunpack.c.l.b16 %v1141
    %v1489 = vunpack.c.h.b16 %v1141
    %v1490 = vunpack.c.l.b16 %v1142
    %v1491 = vunpack.c.h.b16 %v1142
    %v1492 = vunpack.c.l.b16 %v1143
    %v1493 = vunpack.c.h.b16 %v1143
    %v1494 = vunpack.c.l.b16 %v1144
    %v1495 = vunpack.c.h.b16 %v1144
    %v1496 = vunpack.c.l.b16 %v1145
    %v1497 = vunpack.c.h.b16 %v1145
    %v1498 = vunpack.c.l.b16 %v1146
    %v1499 = vunpack.c.h.b16 %v1146
    %v1500 = vunpack.c.l.b16 %v1147
    %v1501 = vunpack.c.h.b16 %v1147
    %v1502 = vunpack.c.l.b16 %v1148
    %v1503 = vunpack.c.h.b16 %v1148
    %v1504 = vunpack.c.l.b16 %v1149
    %v1505 = vunpack.c.h.b16 %v1149
    %v1506 = vunpack.c.l.b16 %v1150
    %v1507 = vunpack.c.h.b16 %v1150
    %v1508 = vunpack.c.l.b16 %v1151
    %v1509 = vunpack.c.h.b16 %v1151
    %v1510 = vunpack.c.l.b16 %v1152
    %v1511 = vunpack.c.h.b16 %v1152
    %v1512 = vunpack.c.l.b16 %v1153
    %v1513 = vunpack.c.h.b16 %v1153
    %v1514 = vunpack.c.l.b16 %v1154
    %v1515 = vunpack.c.h.b16 %v1154
    %v1516 = vunpack.c.l.b16 %v1155
    %v1517 = vunpack.c.h.b16 %v1155
    %v1518 = vunpack.c.l.b16 %v1156
    %v1519 = vunpack.c.h.b16 %v1156
    %v1520 = vunpack.c.l.b16 %v1157
    %v1521 = vunpack.c.h.b16 %v1157
    %v1522 = vunpack.c.l.b16 %v1158
    %v1523 = vunpack.c.h.b16 %v1158
    %v1524 = vunpack.c.l.b16 %v1159
    %v1525 = vunpack.c.h.b16 %v1159
    %v1526 = vunpack.c.l.b16 %v1160
    %v1527 = vunpack.c.h.b16 %v1160
    %v1528 = vunpack.c.l.b16 %v1161
    %v1529 = vunpack.c.h.b16 %v1161
    %v1530 = vunpack.c.l.b16 %v1162
    %v1531 = vunpack.c.h.b16 %v1162
    %v1532 = vunpack.c.l.b16 %v1163
    %v1533 = vunpack.c.h.b16 %v1163
    %v1534 = vunpack.c.l.b16 %v1164
    %v1535 = vunpack.c.h.b16 %v1164
    %v1536 = vunpack.c.l.b16 %v1165
    %v1537 = vunpack.c.h.b16 %v1165
    %v1538 = vunpack.c.l.b16 %v1166
    %v1539 = vunpack.c.h.b16 %v1166
    %v1540 = vunpack.c.l.b16 %v1167
    %v1541 = vunpack.c.h.b16 %v1167
    %v1542 = vunpack.c.l.b16 %v1168
    %v1543 = vunpack.c.h.b16 %v1168
    %v1544 = vunpack.c.l.b16 %v1169
    %v1545 = vunpack.c.h.b16 %v1169
    %v1546 = vunpack.c.l.b16 %v1170
    %v1547 = vunpack.c.h.b16 %v1170
    %v1548 = vunpack.c.l.b16 %v1171
    %v1549 = vunpack.c.h.b16 %v1171
    %v1550 = vunpack.c.l.b16 %v1172
    %v1551 = vunpack.c.h.b16 %v1172
    %v1552 = vunpack.c.l.b16 %v1173
    %v1553 = vunpack.c.h.b16 %v1173
    %v1554 = vunpack.c.l.b16 %v1174
    %v1555 = vunpack.c.h.b16 %v1174
    %v1556 = vunpack.c.l.b16 %v1175
    %v1557 = vunpack.c.h.b16 %v1175
    %v1558 = vunpack.c.l.b16 %v1176
    %v1559 = vunpack.c.h.b16 %v1176
    %v1560 = vunpack.c.l.b16 %v1177
    %v1561 = vunpack.c.h.b16 %v1177
    %v1562 = vpack.c.b16 %v1314, %v1306
    %v1563 = vpack.c.b16 %v1315, %v1307
    %v1564 = vpack.c.b16 %v1316, %v1308
    %v1565 = vpack.c.b16 %v1317, %v1309
    %v1566 = vpack.c.b16 %v1318, %v1310
    %v1567 = vpack.c.b16 %v1319, %v1311
    %v1568 = vpack.c.b16 %v1320, %v1312
    %v1569 = vpack.c.b16 %v1321, %v1313
    %v1570 = vpack.c.b16 %v1330, %v1322
    %v1571 = vpack.c.b16 %v1331, %v1323
    %v1572 = vpack.c.b16 %v1332, %v1324
    %v1573 = vpack.c.b16 %v1333, %v1325
    %v1574 = vpack.c.b16 %v1334, %v1326
    %v1575 = vpack.c.b16 %v1335, %v1327
    %v1576 = vpack.c.b16 %v1336, %v1328
    %v1577 = vpack.c.b16 %v1337, %v1329
    %v1578 = vpack.c.b16 %v1346, %v1338
    %v1579 = vpack.c.b16 %v1347, %v1339
    %v1580 = vpack.c.b16 %v1348, %v1340
    %v1581 = vpack.c.b16 %v1349, %v1341
    %v1582 = vpack.c.b16 %v1350, %v1342
    %v1583 = vpack.c.b16 %v1351, %v1343
    %v1584 = vpack.c.b16 %v1352, %v1344
    %v1585 = vpack.c.b16 %v1353, %v1345
    %v1586 = vpack.c.b16 %v1362, %v1354
    %v1587 = vpack.c.b16 %v1363, %v1355
    %v1588 = vpack.c.b16 %v1364, %v1356
    %v1589 = vpack.c.b16 %v1365, %v1357
    %v1590 = vpack.c.b16 %v1366, %v1358
    %v1591 = vpack.c.b16 %v1367, %v1359
    %v1592 = vpack.c.b16 %v1368, %v1360
    %v1593 = vpack.c.b16 %v1369, %v1361
    %v1594 = vpack.c.b16 %v1378, %v1370
    %v1595 = vpack.c.b16 %v1379, %v1371
    %v1596 = vpack.c.b16 %v1380, %v1372
    %v1597 = vpack.c.b16 %v1381, %v1373
    %v1598 = vpack.c.b16 %v1382, %v1374
    %v1599 = vpack.c.b16 %v1383, %v1375
    %v1600 = vpack.c.b16 %v1384, %v1376
    %v1601 = vpack.c.b16 %v1385, %v1377
    %v1602 = vpack.c.b16 %v1394, %v1386
    %v1603 = vpack.c.b16 %v1395, %v1387
    %v1604 = vpack.c.b16 %v1396, %v1388
    %v1605 = vpack.c.b16 %v1397, %v1389
    %v1606 = vpack.c.b16 %v1398, %v1390
    %v1607 = vpack.c.b16 %v1399, %v1391
    %v1608 = vpack.c.b16 %v1400, %v1392
    %v1609 = vpack.c.b16 %v1401, %v1393
    %v1610 = vpack.c.b16 %v1410, %v1402
    %v1611 = vpack.c.b16 %v1411, %v1403
    %v1612 = vpack.c.b16 %v1412, %v1404
    %v1613 = vpack.c.b16 %v1413, %v1405
    %v1614 = vpack.c.b16 %v1414, %v1406
    %v1615 = vpack.c.b16 %v1415, %v1407
    %v1616 = vpack.c.b16 %v1416, %v1408
    %v1617 = vpack.c.b16 %v1417, %v1409
    %v1618 = vpack.c.b16 %v1426, %v1418
    %v1619 = vpack.c.b16 %v1427, %v1419
    %v1620 = vpack.c.b16 %v1428, %v1420
    %v1621 = vpack.c.b16 %v1429, %v1421
    %v1622 = vpack.c.b16 %v1430, %v1422
    %v1623 = vpack.c.b16 %v1431, %v1423
    %v1624 = vpack.c.b16 %v1432, %v1424
    %v1625 = vpack.c.b16 %v1433, %v1425
    %v1626 = vpack.c.b16 %v1442, %v1434
    %v1627 = vpack.c.b16 %v1443, %v1435
    %v1628 = vpack.c.b16 %v1444, %v1436
    %v1629 = vpack.c.b16 %v1445, %v1437
    %v1630 = vpack.c.b16 %v1446, %v1438
    %v1631 = vpack.c.b16 %v1447, %v1439
    %v1632 = vpack.c.b16 %v1448, %v1440
    %v1633 = vpack.c.b16 %v1449, %v1441
    %v1634 = vpack.c.b16 %v1458, %v1450
    %v1635 = vpack.c.b16 %v1459, %v1451
    %v1636 = vpack.c.b16 %v1460, %v1452
    %v1637 = vpack.c.b16 %v1461, %v1453
    %v1638 = vpack.c.b16 %v1462, %v1454
    %v1639 = vpack.c.b16 %v1463, %v1455
    %v1640 = vpack.c.b16 %v1464, %v1456
    %v1641 = vpack.c.b16 %v1465, %v1457
    %v1642 = vpack.c.b16 %v1474, %v1466
    %v1643 = vpack.c.b16 %v1475, %v1467
    %v1644 = vpack.c.b16 %v1476, %v1468
    %v1645 = vpack.c.b16 %v1477, %v1469
    %v1646 = vpack.c.b16 %v1478, %v1470
    %v1647 = vpack.c.b16 %v1479, %v1471
    %v1648 = vpack.c.b16 %v1480, %v1472
    %v1649 = vpack.c.b16 %v1481, %v1473
    %v1650 = vpack.c.b16 %v1490, %v1482
    %v1651 = vpack.c.b16 %v1491, %v1483
    %v1652 = vpack.c.b16 %v1492, %v1484
    %v1653 = vpack.c.b16 %v1493, %v1485
    %v1654 = vpack.c.b16 %v1494, %v1486
    %v1655 = vpack.c.b16 %v1495, %v1487
    %v1656 = vpack.c.b16 %v1496, %v1488
    %v1657 = vpack.c.b16 %v1497, %v1489
    %v1658 = vpack.c.b16 %v1506, %v1498
    %v1659 = vpack.c.b16 %v1507, %v1499
    %v1660 = vpack.c.b16 %v1508, %v1500
    %v1661 = vpack.c.b16 %v1509, %v1501
    %v1662 = vpack.c.b16 %v1510, %v1502
    %v1663 = vpack.c.b16 %v1511, %v1503
    %v1664 = vpack.c.b16 %v1512, %v1504
    %v1665 = vpack.c.b16 %v1513, %v1505
    %v1666 = vpack.c.b16 %v1522, %v1514
    %v1667 = vpack.c.b16 %v1523, %v1515
    %v1668 = vpack.c.b16 %v1524, %v1516
    %v1669 = vpack.c.b16 %v1525, %v1517
    %v1670 = vpack.c.b16 %v1526, %v1518
    %v1671 = vpack.c.b16 %v1527, %v1519
    %v1672 = vpack.c.b16 %v1528, %v1520
    %v1673 = vpack.c.b16 %v1529, %v1521
    %v1674 = vpack.c.b16 %v1538, %v1530
    %v1675 = vpack.c.b16 %v1539, %v1531
    %v1676 = vpack.c.b16 %v1540, %v1532
    %v1677 = vpack.c.b16 %v1541, %v1533
    %v1678 = vpack.c.b16 %v1542, %v1534
    %v1679 = vpack.c.b16 %v1543, %v1535
    %v1680 = vpack.c.b16 %v1544, %v1536
    %v1681 = vpack.c.b16 %v1545, %v1537
    %v1682 = vpack.c.b16 %v1554, %v1546
    %v1683 = vpack.c.b16 %v1555, %v1547
    %v1684 = vpack.c.b16 %v1556, %v1548
    %v1685 = vpack.c.b16 %v1557, %v1549
    %v1686 = vpack.c.b16 %v1558, %v1550
    %v1687 = vpack.c.b16 %v1559, %v1551
    %v1688 = vpack.c.b16 %v1560, %v1552
    %v1689 = vpack.c.b16 %v1561, %v1553
    %1818 = vmatprep.subr.bf16.mxu0 %v1619
    %1819 = vmatpush1.bf16.msra.mxu0 %v1618
    %1820 = vmatprep.subr.bf16.mxu0 %v1611
    %1821 = vmatpush1.bf16.msra.mxu0 %v1610
    %1822 = vmatprep.subr.bf16.mxu0 %v1603
    %1823 = vmatpush1.bf16.msra.mxu0 %v1602
    %1824 = vmatprep.subr.bf16.mxu0 %v1595
    %1825 = vmatpush1.bf16.msra.mxu0 %v1594
    %1826 = vmatprep.subr.bf16.mxu0 %v1587
    %1827 = vmatpush1.bf16.msra.mxu0 %v1586
    %1828 = vmatprep.subr.bf16.mxu0 %v1579
    %1829 = vmatpush1.bf16.msra.mxu0 %v1578
    %1830 = vmatprep.subr.bf16.mxu0 %v1571
    %1831 = vmatpush1.bf16.msra.mxu0 %v1570
    %1832 = vmatprep.subr.bf16.mxu0 %v1563
    %1833 = vmatpush1.bf16.msra.mxu0 %v1562
    %1834 = vmatprep.subr.bf16.mxu0 %v1683
    %1835 = vmatpush2.bf16.msra.mxu0 %v1682
    %1836 = vmatprep.subr.bf16.mxu0 %v1675
    %1837 = vmatpush2.bf16.msra.mxu0 %v1674
    %1838 = vmatprep.subr.bf16.mxu0 %v1667
    %1839 = vmatpush2.bf16.msra.mxu0 %v1666
    %1840 = vmatprep.subr.bf16.mxu0 %v1659
    %1841 = vmatpush2.bf16.msra.mxu0 %v1658
    %1842 = vmatprep.subr.bf16.mxu0 %v1651
    %1843 = vmatpush2.bf16.msra.mxu0 %v1650
    %1844 = vmatprep.subr.bf16.mxu0 %v1643
    %1845 = vmatpush2.bf16.msra.mxu0 %v1642
    %1846 = vmatprep.subr.bf16.mxu0 %v1635
    %1847 = vmatpush2.bf16.msra.mxu0 %v1634
    %1848 = vmatprep.subr.bf16.mxu0 %v1627
    %1849 = vmatpush2.bf16.msra.mxu0 %v1626
    %1850 = vmatprep.mubr.bf16.mxu0 %v1049
    %1851 = vmatmul.mubr.bf16.gmra.mxu0 %v1048
    %v1852 = vpop.f32.mrf.mxu0
    %v1853 = vadd.f32 0.0, %v1852
    %v1854 = vpop.f32.mrf.mxu0
    %v1855 = vadd.f32 0.0, %v1854
    %v1856 = vpop.f32.mrf.mxu0
    %v1857 = vpop.f32.mrf.mxu0
    %1858 = vdwg.mxu0
    %1859 = vmatprep.subr.bf16.mxu0 %v1621
    %1860 = vmatpush1.bf16.msra.mxu0 %v1620
    %1861 = vmatprep.subr.bf16.mxu0 %v1613
    %1862 = vmatpush1.bf16.msra.mxu0 %v1612
    %1863 = vmatprep.subr.bf16.mxu0 %v1605
    %1864 = vmatpush1.bf16.msra.mxu0 %v1604
    %1865 = vmatprep.subr.bf16.mxu0 %v1597
    %1866 = vmatpush1.bf16.msra.mxu0 %v1596
    %1867 = vmatprep.subr.bf16.mxu0 %v1589
    %1868 = vmatpush1.bf16.msra.mxu0 %v1588
    %1869 = vmatprep.subr.bf16.mxu0 %v1581
    %1870 = vmatpush1.bf16.msra.mxu0 %v1580
    %1871 = vmatprep.subr.bf16.mxu0 %v1573
    %1872 = vmatpush1.bf16.msra.mxu0 %v1572
    %1873 = vmatprep.subr.bf16.mxu0 %v1565
    %1874 = vmatpush1.bf16.msra.mxu0 %v1564
    %1875 = vmatprep.subr.bf16.mxu0 %v1685
    %1876 = vmatpush2.bf16.msra.mxu0 %v1684
    %1877 = vmatprep.subr.bf16.mxu0 %v1677
    %1878 = vmatpush2.bf16.msra.mxu0 %v1676
    %1879 = vmatprep.subr.bf16.mxu0 %v1669
    %1880 = vmatpush2.bf16.msra.mxu0 %v1668
    %1881 = vmatprep.subr.bf16.mxu0 %v1661
    %1882 = vmatpush2.bf16.msra.mxu0 %v1660
    %1883 = vmatprep.subr.bf16.mxu0 %v1653
    %1884 = vmatpush2.bf16.msra.mxu0 %v1652
    %1885 = vmatprep.subr.bf16.mxu0 %v1645
    %1886 = vmatpush2.bf16.msra.mxu0 %v1644
    %1887 = vmatprep.subr.bf16.mxu0 %v1637
    %1888 = vmatpush2.bf16.msra.mxu0 %v1636
    %1889 = vmatprep.subr.bf16.mxu0 %v1629
    %1890 = vmatpush2.bf16.msra.mxu0 %v1628
    %1891 = vmatprep.mubr.bf16.mxu0 %v1049
    %1892 = vmatmul.mubr.bf16.gmra.mxu0 %v1048
    %v1893 = vpop.f32.mrf.mxu0
    %v1894 = vadd.f32 0.0, %v1893
    %v1895 = vpop.f32.mrf.mxu0
    %v1896 = vadd.f32 0.0, %v1895
    %v1897 = vpop.f32.mrf.mxu0
    %v1898 = vpop.f32.mrf.mxu0
    %1899 = vdwg.mxu0
    %1900 = vmatprep.subr.bf16.mxu0 %v1623
    %1901 = vmatpush1.bf16.msra.mxu0 %v1622
    %1902 = vmatprep.subr.bf16.mxu0 %v1615
    %1903 = vmatpush1.bf16.msra.mxu0 %v1614
    %1904 = vmatprep.subr.bf16.mxu0 %v1607
    %1905 = vmatpush1.bf16.msra.mxu0 %v1606
    %1906 = vmatprep.subr.bf16.mxu0 %v1599
    %1907 = vmatpush1.bf16.msra.mxu0 %v1598
    %1908 = vmatprep.subr.bf16.mxu0 %v1591
    %1909 = vmatpush1.bf16.msra.mxu0 %v1590
    %1910 = vmatprep.subr.bf16.mxu0 %v1583
    %1911 = vmatpush1.bf16.msra.mxu0 %v1582
    %1912 = vmatprep.subr.bf16.mxu0 %v1575
    %1913 = vmatpush1.bf16.msra.mxu0 %v1574
    %1914 = vmatprep.subr.bf16.mxu0 %v1567
    %1915 = vmatpush1.bf16.msra.mxu0 %v1566
    %1916 = vmatprep.subr.bf16.mxu0 %v1687
    %1917 = vmatpush2.bf16.msra.mxu0 %v1686
    %1918 = vmatprep.subr.bf16.mxu0 %v1679
    %1919 = vmatpush2.bf16.msra.mxu0 %v1678
    %1920 = vmatprep.subr.bf16.mxu0 %v1671
    %1921 = vmatpush2.bf16.msra.mxu0 %v1670
    %1922 = vmatprep.subr.bf16.mxu0 %v1663
    %1923 = vmatpush2.bf16.msra.mxu0 %v1662
    %1924 = vmatprep.subr.bf16.mxu0 %v1655
    %1925 = vmatpush2.bf16.msra.mxu0 %v1654
    %1926 = vmatprep.subr.bf16.mxu0 %v1647
    %1927 = vmatpush2.bf16.msra.mxu0 %v1646
    %1928 = vmatprep.subr.bf16.mxu0 %v1639
    %1929 = vmatpush2.bf16.msra.mxu0 %v1638
    %1930 = vmatprep.subr.bf16.mxu0 %v1631
    %1931 = vmatpush2.bf16.msra.mxu0 %v1630
    %1932 = vmatprep.mubr.bf16.mxu0 %v1049
    %1933 = vmatmul.mubr.bf16.gmra.mxu0 %v1048
    %v1934 = vpop.f32.mrf.mxu0
    %v1935 = vadd.f32 0.0, %v1934
    %v1936 = vpop.f32.mrf.mxu0
    %v1937 = vadd.f32 0.0, %v1936
    %v1938 = vpop.f32.mrf.mxu0
    %v1939 = vpop.f32.mrf.mxu0
    %1940 = vdwg.mxu0
    %1941 = vmatprep.subr.bf16.mxu0 %v1625
    %1942 = vmatpush1.bf16.msra.mxu0 %v1624
    %1943 = vmatprep.subr.bf16.mxu0 %v1617
    %1944 = vmatpush1.bf16.msra.mxu0 %v1616
    %1945 = vmatprep.subr.bf16.mxu0 %v1609
    %1946 = vmatpush1.bf16.msra.mxu0 %v1608
    %1947 = vmatprep.subr.bf16.mxu0 %v1601
    %1948 = vmatpush1.bf16.msra.mxu0 %v1600
    %1949 = vmatprep.subr.bf16.mxu0 %v1593
    %1950 = vmatpush1.bf16.msra.mxu0 %v1592
    %1951 = vmatprep.subr.bf16.mxu0 %v1585
    %1952 = vmatpush1.bf16.msra.mxu0 %v1584
    %1953 = vmatprep.subr.bf16.mxu0 %v1577
    %1954 = vmatpush1.bf16.msra.mxu0 %v1576
    %1955 = vmatprep.subr.bf16.mxu0 %v1569
    %1956 = vmatpush1.bf16.msra.mxu0 %v1568
    %1957 = vmatprep.subr.bf16.mxu0 %v1689
    %1958 = vmatpush2.bf16.msra.mxu0 %v1688
    %1959 = vmatprep.subr.bf16.mxu0 %v1681
    %1960 = vmatpush2.bf16.msra.mxu0 %v1680
    %1961 = vmatprep.subr.bf16.mxu0 %v1673
    %1962 = vmatpush2.bf16.msra.mxu0 %v1672
    %1963 = vmatprep.subr.bf16.mxu0 %v1665
    %1964 = vmatpush2.bf16.msra.mxu0 %v1664
    %1965 = vmatprep.subr.bf16.mxu0 %v1657
    %1966 = vmatpush2.bf16.msra.mxu0 %v1656
    %1967 = vmatprep.subr.bf16.mxu0 %v1649
    %1968 = vmatpush2.bf16.msra.mxu0 %v1648
    %1969 = vmatprep.subr.bf16.mxu0 %v1641
    %1970 = vmatpush2.bf16.msra.mxu0 %v1640
    %1971 = vmatprep.subr.bf16.mxu0 %v1633
    %1972 = vmatpush2.bf16.msra.mxu0 %v1632
    %1973 = vmatprep.mubr.bf16.mxu0 %v1049
    %1974 = vmatmul.mubr.bf16.gmra.mxu0 %v1048
    %v1975 = vpop.f32.mrf.mxu0
    %v1976 = vadd.f32 0.0, %v1975
    %v1977 = vpop.f32.mrf.mxu0
    %v1978 = vadd.f32 0.0, %v1977
    %v1979 = vpop.f32.mrf.mxu0
    %v1980 = vpop.f32.mrf.mxu0
    %1981 = vdwg.mxu0
    %v1982 = vld [vmem:[%s5] sm:$0xff]
    %v1984 = vlaneseq
    %v1985 = vshrl.u32 %v1984, 7
    %v1986 = vsub.s32 0, %v1985
    %v1987 = vrot.slane %v1982, %v1986
    %v1988 = vlaneseq
    %v1989 = vshrl.u32 %v1988, 7
    %v1990 = vsub.s32 1, %v1989
    %v1991 = vrot.slane %v1982, %v1990
    %v1992 = vlaneseq
    %v1993 = vshrl.u32 %v1992, 7
    %v1994 = vsub.s32 2, %v1993
    %v1995 = vrot.slane %v1982, %v1994
    %v1996 = vlaneseq
    %v1997 = vshrl.u32 %v1996, 7
    %v1998 = vsub.s32 3, %v1997
    %v1999 = vrot.slane %v1982, %v1998
    %v2000 = vlaneseq
    %v2001 = vshrl.u32 %v2000, 7
    %v2002 = vsub.s32 4, %v2001
    %v2003 = vrot.slane %v1982, %v2002
    %v2004 = vlaneseq
    %v2005 = vshrl.u32 %v2004, 7
    %v2006 = vsub.s32 5, %v2005
    %v2007 = vrot.slane %v1982, %v2006
    %v2008 = vlaneseq
    %v2009 = vshrl.u32 %v2008, 7
    %v2010 = vsub.s32 6, %v2009
    %v2011 = vrot.slane %v1982, %v2010
    %v2012 = vlaneseq
    %v2013 = vshrl.u32 %v2012, 7
    %v2014 = vsub.s32 7, %v2013
    %v2015 = vrot.slane %v1982, %v2014
    %v2024 = vmul.f32 %v1853, %v1987
    %v2025 = vmul.f32 %v1855, %v1991
    %v2026 = vmul.f32 %v1894, %v1995
    %v2027 = vmul.f32 %v1896, %v1999
    %v2028 = vmul.f32 %v1935, %v2003
    %v2029 = vmul.f32 %v1937, %v2007
    %v2030 = vmul.f32 %v1976, %v2011
    %v2031 = vmul.f32 %v1978, %v2015
    %v2032 = vld [vmem:[%s6] sm:$0xff]
    %v2034 = vlaneseq
    %v2035 = vshrl.u32 %v2034, 7
    %v2036 = vsub.s32 0, %v2035
    %v2037 = vrot.slane %v2032, %v2036
    %v2038 = vlaneseq
    %v2039 = vshrl.u32 %v2038, 7
    %v2040 = vsub.s32 1, %v2039
    %v2041 = vrot.slane %v2032, %v2040
    %v2042 = vlaneseq
    %v2043 = vshrl.u32 %v2042, 7
    %v2044 = vsub.s32 2, %v2043
    %v2045 = vrot.slane %v2032, %v2044
    %v2046 = vlaneseq
    %v2047 = vshrl.u32 %v2046, 7
    %v2048 = vsub.s32 3, %v2047
    %v2049 = vrot.slane %v2032, %v2048
    %v2050 = vlaneseq
    %v2051 = vshrl.u32 %v2050, 7
    %v2052 = vsub.s32 4, %v2051
    %v2053 = vrot.slane %v2032, %v2052
    %v2054 = vlaneseq
    %v2055 = vshrl.u32 %v2054, 7
    %v2056 = vsub.s32 5, %v2055
    %v2057 = vrot.slane %v2032, %v2056
    %v2058 = vlaneseq
    %v2059 = vshrl.u32 %v2058, 7
    %v2060 = vsub.s32 6, %v2059
    %v2061 = vrot.slane %v2032, %v2060
    %v2062 = vlaneseq
    %v2063 = vshrl.u32 %v2062, 7
    %v2064 = vsub.s32 7, %v2063
    %v2065 = vrot.slane %v2032, %v2064
    %v2074 = vadd.f32 %v2024, %v2037
    %v2075 = vadd.f32 %v2025, %v2041
    %v2076 = vadd.f32 %v2026, %v2045
    %v2077 = vadd.f32 %v2027, %v2049
    %v2078 = vadd.f32 %v2028, %v2053
    %v2079 = vadd.f32 %v2029, %v2057
    %v2080 = vadd.f32 %v2030, %v2061
    %v2081 = vadd.f32 %v2031, %v2065
    %v2082 = vmax.f32 %v2074, 0.0
    %v2083 = vmax.f32 %v2075, 0.0
    %v2084 = vmax.f32 %v2076, 0.0
    %v2085 = vmax.f32 %v2077, 0.0
    %v2086 = vmax.f32 %v2078, 0.0
    %v2087 = vmax.f32 %v2079, 0.0
    %v2088 = vmax.f32 %v2080, 0.0
    %v2089 = vmax.f32 %v2081, 0.0
    %v2098 = vcombine.low %v2082, %v2083
    %v2099 = vcombine.low %v2084, %v2085
    %v2101 = vunpack.c.l.s4 1983009808
    %v2102 = vunpack.c.0.s8 %v2101
    %v2103 = vlaneseq
    %v2104 = vshrl.u32 %v2103, 7
    %v2105 = vsub.s32 %v2102, %v2104
    %v2106 = vrot.slane %v2098, %v2105
    %v2108 = vunpack.c.l.s4 1983009808
    %v2109 = vunpack.c.0.s8 %v2108
    %v2110 = vlaneseq
    %v2111 = vshrl.u32 %v2110, 7
    %v2112 = vsub.s32 %v2109, %v2111
    %v2113 = vrot.slane %v2099, %v2112
    %v2114 = vcombine.low %v2106, %v2113
    %v2115 = vcombine.low %v2086, %v2087
    %v2116 = vcombine.low %v2088, %v2089
    %v2118 = vunpack.c.l.s4 1983009808
    %v2119 = vunpack.c.0.s8 %v2118
    %v2120 = vlaneseq
    %v2121 = vshrl.u32 %v2120, 7
    %v2122 = vsub.s32 %v2119, %v2121
    %v2123 = vrot.slane %v2115, %v2122
    %v2125 = vunpack.c.l.s4 1983009808
    %v2126 = vunpack.c.0.s8 %v2125
    %v2127 = vlaneseq
    %v2128 = vshrl.u32 %v2127, 7
    %v2129 = vsub.s32 %v2126, %v2128
    %v2130 = vrot.slane %v2116, %v2129
    %v2131 = vcombine.low %v2123, %v2130
    %2134 = vst [vmem:[#allocation2] sm:$0xff] %v2114
    %2135 = vst [vmem:[#allocation2 + $0x8] sm:$0xff] %v2131
    // Predicated region
    $region30: #{_lambda_.13} parent=1 // pred_check
      _
    $region31: #{_lambda_.13} parent=1 // pred_check_branch
      %2137 = sbr.rel (0) target = $region33
    $region32: #{_lambda_.13} parent=1 // pred_region
      %s2139 = ssub.s32 256, 256
      %2140 = vsyncadd [#allocation3], %s2139
      %s2142 = sshll.u32 [#allocation2], 4
      %s2143 = int_to_ptr.vmem [resolvable:$true] %s2142
      %2145 = dma.vmem_to_hbm [thread:$0]  %s2143, 256, %s7, [#allocation3]
    $region33: #{_lambda_.13} parent=1 // pred_fallthru
      _
    // Predicated region
    $region34: #{_lambda_.13} parent=1 // pred_check
      _
    $region35: #{_lambda_.13} parent=1 // pred_check_branch
      %2147 = sbr.rel (0) target = $region37
    $region36: #{_lambda_.13} parent=1 // pred_region
      %2148 = dma.done [#allocation3], 256
    $region37: #{_lambda_.13} parent=1 // pred_fallthru
      _
    %2149 = vsyncpa [#allocation3], 1

// kernel: _lambda_.12
$region0: #{_lambda_.12}
  #allocation0 [shape = 'u32[]', space=smem, size = 0x4, offset = 0x4, fixed_abs, tag = 'smem constant byte address 0x4 - core index']
  #allocation1 [shape = 'u32[144,128]{1,0:T(1,128)}', space=vmem, size = 0x12000, scoped, tag = 'internal scratch']
  %s0 = inlined_call_operand.vmem [shape: bf16[8,2048], index: 0, kind: input, shape index: {}]
  %s1 = inlined_call_operand.vmem [shape: bf16[2048,256], index: 1, kind: input, shape index: {}]
  %s2 = inlined_call_operand.vmem [shape: f32[1,256], index: 2, kind: input, shape index: {}]
  %s3 = inlined_call_operand.vmem [shape: f32[1,256], index: 3, kind: input, shape index: {}]
  %s4 = inlined_call_operand.vmem [shape: bf16[8,256], index: 4, kind: output, shape index: {}]
  %s5 = sld [smem:[#allocation0]]
  $region90: #{_lambda_.12} parent=0
    _
  %s7 = ssub.s32 1, %s5
  %s8 = scalar_select 0, %s7, %s5
  $region1: #{_lambda_.12} parent=0
    #allocation2 [shape = 'u8[1048576]{0}', space=vmem, size = 0x100000, scoped, tag = 'input window, operand 1']
    loop: start=0, step=1, limit=4
    $region2: #{_lambda_.12} parent=1 // loop_pre_header
      _
    $region3: #{_lambda_.12} parent=1 // loop_header
      %s10 = sphi 0, %s14
      %p11 = scmp.ge.s32.totalorder %s10, 4
      %s17 = sphi 0, %s29
      %s18 = sphi 0, %s25
      %s19 = sphi 0, %s17
      %s20 = sphi 0, %s18
      %s21 = sphi 0, %s19
      %s22 = sphi 0, %s20
      %s32 = sphi 0, %s34
      %s35 = sphi 0, %s32
      %s36 = sphi 0, %s35
      %s52 = sphi 0, %s36
      %s58 = sphi 0, %s60
      %s61 = sphi 0, %s58
      %s62 = sphi 0, %s61
      %s78 = sphi 0, %s62
      %s84 = sphi 0, %s86
      %s87 = sphi 0, %s84
      %s88 = sphi 0, %s87
      %s104 = sphi 0, %s88
      %s110 = sphi 0, %s112
      %s113 = sphi 0, %s110
      %s114 = sphi 0, %s113
      %s130 = sphi 0, %s114
      %s138 = sphi 0, %s140
      %s141 = sphi 0, %s138
      %s142 = sphi 0, %s141
      %s158 = sphi 0, %s142
    $region4: #{_lambda_.12} parent=1 // loop_header_branch
      %13 = sbr.rel (%p11) target = $region8
    $region5: #{_lambda_.12} parent=1 // loop_body
      %s15 = ssub.s32 %s10, 1
      %s16 = ssub.s32 %s10, 2
      %s23 = sadd.s32 1, %s18
      %p24 = scmp.ge.s32.totalorder %s23, 2
      %s25 = scalar_select %p24, 0, %s23
      %s26 = sadd.s32 1, %s17
      %s27 = scalar_select %p24, %s26, %s17
      %p28 = scmp.ge.s32.totalorder %s27, 1
      %s29 = scalar_select %p28, 0, %s27
      %s30 = ssub.s32 %s17, %s29
      %p31 = scmp.eq.s32.totalorder %s30, 0
      %s33 = sadd.s32 %s32, 1
      %s34 = scalar_select %p31, %s32, %s33
      %p37 = pneg %p31
      %p38 = scmp.eq.s32.totalorder %s10, 1
      %p39 = por %p37, %p38
      %p40 = scmp.ne.s32.totalorder %s32, %s35
      %p41 = scmp.eq.s32.totalorder %s10, 0
      %p42 = por %p40, %p41
      %p43 = scmp.ne.s32.totalorder %s32, %s35
      %p44 = scmp.eq.s32.totalorder %s15, 1
      %p45 = por %p43, %p44
      %p46 = scmp.ne.s32.totalorder %s35, %s36
      %p47 = scmp.eq.s32.totalorder %s15, 0
      %p48 = por %p46, %p47
      %p49 = scmp.ne.s32.totalorder %s35, %s36
      %p50 = scmp.eq.s32.totalorder %s16, 1
      %p51 = por %p49, %p50
      %p53 = scmp.ne.s32.totalorder %s36, %s52
      %p54 = scmp.eq.s32.totalorder %s16, 0
      %p55 = por %p53, %p54
      %s56 = ssub.s32 %s18, %s25
      %p57 = scmp.eq.s32.totalorder %s56, 0
      %s59 = sadd.s32 %s58, 1
      %s60 = scalar_select %p57, %s58, %s59
      %p63 = pneg %p57
      %p64 = scmp.eq.s32.totalorder %s10, 1
      %p65 = por %p63, %p64
      %p66 = scmp.ne.s32.totalorder %s58, %s61
      %p67 = scmp.eq.s32.totalorder %s10, 0
      %p68 = por %p66, %p67
      %p69 = scmp.ne.s32.totalorder %s58, %s61
      %p70 = scmp.eq.s32.totalorder %s15, 1
      %p71 = por %p69, %p70
      %p72 = scmp.ne.s32.totalorder %s61, %s62
      %p73 = scmp.eq.s32.totalorder %s15, 0
      %p74 = por %p72, %p73
      %p75 = scmp.ne.s32.totalorder %s61, %s62
      %p76 = scmp.eq.s32.totalorder %s16, 1
      %p77 = por %p75, %p76
      %p79 = scmp.ne.s32.totalorder %s62, %s78
      %p80 = scmp.eq.s32.totalorder %s16, 0
      %p81 = por %p79, %p80
      %s82 = ssub.s32 %s18, %s25
      %p83 = scmp.eq.s32.totalorder %s82, 0
      %s85 = sadd.s32 %s84, 1
      %s86 = scalar_select %p83, %s84, %s85
      %p89 = pneg %p83
      %p90 = scmp.eq.s32.totalorder %s10, 1
      %p91 = por %p89, %p90
      %p92 = scmp.ne.s32.totalorder %s84, %s87
      %p93 = scmp.eq.s32.totalorder %s10, 0
      %p94 = por %p92, %p93
      %p95 = scmp.ne.s32.totalorder %s84, %s87
      %p96 = scmp.eq.s32.totalorder %s15, 1
      %p97 = por %p95, %p96
      %p98 = scmp.ne.s32.totalorder %s87, %s88
      %p99 = scmp.eq.s32.totalorder %s15, 0
      %p100 = por %p98, %p99
      %p101 = scmp.ne.s32.totalorder %s87, %s88
      %p102 = scmp.eq.s32.totalorder %s16, 1
      %p103 = por %p101, %p102
      %p105 = scmp.ne.s32.totalorder %s88, %s104
      %p106 = scmp.eq.s32.totalorder %s16, 0
      %p107 = por %p105, %p106
      %s108 = ssub.s32 %s18, %s25
      %p109 = scmp.eq.s32.totalorder %s108, 0
      %s111 = sadd.s32 %s110, 1
      %s112 = scalar_select %p109, %s110, %s111
      %p115 = pneg %p109
      %p116 = scmp.eq.s32.totalorder %s10, 1
      %p117 = por %p115, %p116
      %p118 = scmp.ne.s32.totalorder %s110, %s113
      %p119 = scmp.eq.s32.totalorder %s10, 0
      %p120 = por %p118, %p119
      %p121 = scmp.ne.s32.totalorder %s110, %s113
      %p122 = scmp.eq.s32.totalorder %s15, 1
      %p123 = por %p121, %p122
      %p124 = scmp.ne.s32.totalorder %s113, %s114
      %p125 = scmp.eq.s32.totalorder %s15, 0
      %p126 = por %p124, %p125
      %p127 = scmp.ne.s32.totalorder %s113, %s114
      %p128 = scmp.eq.s32.totalorder %s16, 1
      %p129 = por %p127, %p128
      %p131 = scmp.ne.s32.totalorder %s114, %s130
      %p132 = scmp.eq.s32.totalorder %s16, 0
      %p133 = por %p131, %p132
      %s134 = ssub.s32 %s17, %s29
      %s135 = ssub.s32 %s18, %s25
      %s136 = sor.u32 %s134, %s135
      %p137 = scmp.eq.s32.totalorder %s136, 0
      %s139 = sadd.s32 %s138, 1
      %s140 = scalar_select %p137, %s138, %s139
      %p143 = pneg %p137
      %p144 = scmp.eq.s32.totalorder %s10, 1
      %p145 = por %p143, %p144
      %p146 = scmp.ne.s32.totalorder %s138, %s141
      %p147 = scmp.eq.s32.totalorder %s10, 0
      %p148 = por %p146, %p147
      %p149 = scmp.ne.s32.totalorder %s138, %s141
      %p150 = scmp.eq.s32.totalorder %s15, 1
      %p151 = por %p149, %p150
      %p152 = scmp.ne.s32.totalorder %s141, %s142
      %p153 = scmp.eq.s32.totalorder %s15, 0
      %p154 = por %p152, %p153
      %p155 = scmp.ne.s32.totalorder %s141, %s142
      %p156 = scmp.eq.s32.totalorder %s16, 1
      %p157 = por %p155, %p156
      %p159 = scmp.ne.s32.totalorder %s142, %s158
      %p160 = scmp.eq.s32.totalorder %s16, 0
      %p161 = por %p159, %p160
      %p162 = scmp.le.s32.totalorder 1, %s10
      %p163 = scmp.lt.s32.totalorder %s10, 3
      %p164 = pnand %p162, %p163
      %p165 = pneg %p164
      // Predicated region
      $region9: #{_lambda_.12} parent=5 // pred_check
        _
      $region10: #{_lambda_.12} parent=5 // pred_check_branch
        %167 = sbr.rel (%p164) target = $region12
      $region11: #{_lambda_.12} parent=5 // pred_region
        %s168 = ssub.s32 %s10, 1
        // Predicated region
        $region13: #{_lambda_.12} parent=11 // pred_check
          %p169 = pneg %p48
        $region14: #{_lambda_.12} parent=11 // pred_check_branch
          %171 = sbr.rel (%p169) target = $region16
        $region15: #{_lambda_.12} parent=11 // pred_region
          %p172 = scmp.lt.s32.totalorder %s19, 0
          %s173 = scalar_select %p172, %s19, 0
          %s174 = smul.addr %s173, 16
          %s175 = smul.addr %s174, 4
          %s176 = scalar_lea.vmem %s0, %s175
        $region16: #{_lambda_.12} parent=11 // pred_fallthru
          _
      $region12: #{_lambda_.12} parent=5 // pred_fallthru
        _
      %p177 = scmp.lt.s32.totalorder %s10, 2
      // Predicated region
      $region17: #{_lambda_.12} parent=5 // pred_check
        %p178 = pneg %p177
      $region18: #{_lambda_.12} parent=5 // pred_check_branch
        %180 = sbr.rel (%p178) target = $region20
      $region19: #{_lambda_.12} parent=5 // pred_region
        // Predicated region
        $region21: #{_lambda_.12} parent=19 // pred_check
          %p181 = pneg %p68
        $region22: #{_lambda_.12} parent=19 // pred_check_branch
          %183 = sbr.rel (%p181) target = $region24
        $region23: #{_lambda_.12} parent=19 // pred_region
          %s184 = sand.u32 %s58, 1
          %s185 = sand.u32 %s58, 1
          %s186 = smul.addr %s185, 1024
          %s187 = scalar_lea.vmem [#allocation2], %s186
          %s188 = smul.addr %s18, 4
          %s189 = scalar_lea.vmem %s1, %s188
          // Predicated region
          $region25: #{_lambda_.12} parent=23 // pred_check
            _
          $region26: #{_lambda_.12} parent=23 // pred_check_branch
            %191 = sbr.rel (0) target = $region28
          $region27: #{_lambda_.12} parent=23 // pred_region
            // Predicated region
            $region29: #{_lambda_.12} parent=27 // pred_check
              _
            $region30: #{_lambda_.12} parent=27 // pred_check_branch
              %193 = sbr.rel target = $region32
            $region31: #{_lambda_.12} parent=27 // pred_region
              // Predicated region
              $region44: #{_lambda_.12} parent=31 // pred_check
                _
              $region45: #{_lambda_.12} parent=31 // pred_check_branch
                %719 = sbr.rel (0) target = $region47
              $region46: #{_lambda_.12} parent=31 // pred_region
                loop: start=0, step=1, limit=1
                $region48: #{_lambda_.12} parent=46 // loop_pre_header
                  _
                $region49: #{_lambda_.12} parent=46 // loop_header
                  %s721 = sphi 0, %s725
                  %p722 = scmp.ge.s32.totalorder %s721, 1
                  %s726 = sphi %s189, %s189
                  %s727 = sphi %s187, %s187
                $region50: #{_lambda_.12} parent=46 // loop_header_branch
                  %724 = sbr.rel (%p722) target = $region54
                $region51: #{_lambda_.12} parent=46 // loop_body
                  _
                $region52: #{_lambda_.12} parent=46 // loop_footer
                  %s725 = sadd.s32 1, %s721
                $region53: #{_lambda_.12} parent=46 // loop_footer_branch
                  %720 = sbr.rel target = $region49
                $region54: #{_lambda_.12} parent=46 // loop_exit
                  _
                %s729 = ssub.s32 16, 1
                loop: start=0, step=1, limit=1
                $region55: #{_lambda_.12} parent=46 // loop_pre_header
                  _
                $region56: #{_lambda_.12} parent=46 // loop_header
                  %s731 = sphi 0, %s735
                  %p732 = scmp.ge.s32.totalorder %s731, 1
                  %s736 = sphi %s189, %s189
                  %s737 = sphi %s187, %s187
                $region57: #{_lambda_.12} parent=46 // loop_header_branch
                  %734 = sbr.rel (%p732) target = $region61
                $region58: #{_lambda_.12} parent=46 // loop_body
                  %v738 = vld [vmem:[%s736] sm:%s729]
                  %739 = vst [vmem:[%s737] sm:%s729] %v738
                  %v740 = vld [vmem:[%s736 + $0x8] sm:%s729]
                  %741 = vst [vmem:[%s737 + $0x4] sm:%s729] %v740
                  %v742 = vld [vmem:[%s736 + $0x10] sm:%s729]
                  %743 = vst [vmem:[%s737 + $0x8] sm:%s729] %v742
                  %v744 = vld [vmem:[%s736 + $0x18] sm:%s729]
                  %745 = vst [vmem:[%s737 + $0xc] sm:%s729] %v744
                  %v746 = vld [vmem:[%s736 + $0x20] sm:%s729]
                  %747 = vst [vmem:[%s737 + $0x10] sm:%s729] %v746
                  %v748 = vld [vmem:[%s736 + $0x28] sm:%s729]
                  %749 = vst [vmem:[%s737 + $0x14] sm:%s729] %v748
                  %v750 = vld [vmem:[%s736 + $0x30] sm:%s729]
                  %751 = vst [vmem:[%s737 + $0x18] sm:%s729] %v750
                  %v752 = vld [vmem:[%s736 + $0x38] sm:%s729]
                  %753 = vst [vmem:[%s737 + $0x1c] sm:%s729] %v752
                  %v754 = vld [vmem:[%s736 + $0x40] sm:%s729]
                  %755 = vst [vmem:[%s737 + $0x20] sm:%s729] %v754
                  %v756 = vld [vmem:[%s736 + $0x48] sm:%s729]
                  %757 = vst [vmem:[%s737 + $0x24] sm:%s729] %v756
                  %v758 = vld [vmem:[%s736 + $0x50] sm:%s729]
                  %759 = vst [vmem:[%s737 + $0x28] sm:%s729] %v758
                  %v760 = vld [vmem:[%s736 + $0x58] sm:%s729]
                  %761 = vst [vmem:[%s737 + $0x2c] sm:%s729] %v760
                  %v762 = vld [vmem:[%s736 + $0x60] sm:%s729]
                  %763 = vst [vmem:[%s737 + $0x30] sm:%s729] %v762
                  %v764 = vld [vmem:[%s736 + $0x68] sm:%s729]
                  %765 = vst [vmem:[%s737 + $0x34] sm:%s729] %v764
                  %v766 = vld [vmem:[%s736 + $0x70] sm:%s729]
                  %767 = vst [vmem:[%s737 + $0x38] sm:%s729] %v766
                  %v768 = vld [vmem:[%s736 + $0x78] sm:%s729]
                  %769 = vst [vmem:[%s737 + $0x3c] sm:%s729] %v768
                  %v770 = vld [vmem:[%s736 + $0x80] sm:%s729]
                  %771 = vst [vmem:[%s737 + $0x40] sm:%s729] %v770
                  %v772 = vld [vmem:[%s736 + $0x88] sm:%s729]
                  %773 = vst [vmem:[%s737 + $0x44] sm:%s729] %v772
                  %v774 = vld [vmem:[%s736 + $0x90] sm:%s729]
                  %775 = vst [vmem:[%s737 + $0x48] sm:%s729] %v774
                  %v776 = vld [vmem:[%s736 + $0x98] sm:%s729]
                  %777 = vst [vmem:[%s737 + $0x4c] sm:%s729] %v776
                  %v778 = vld [vmem:[%s736 + $0xa0] sm:%s729]
                  %779 = vst [vmem:[%s737 + $0x50] sm:%s729] %v778
                  %v780 = vld [vmem:[%s736 + $0xa8] sm:%s729]
                  %781 = vst [vmem:[%s737 + $0x54] sm:%s729] %v780
                  %v782 = vld [vmem:[%s736 + $0xb0] sm:%s729]
                  %783 = vst [vmem:[%s737 + $0x58] sm:%s729] %v782
                  %v784 = vld [vmem:[%s736 + $0xb8] sm:%s729]
                  %785 = vst [vmem:[%s737 + $0x5c] sm:%s729] %v784
                  %v786 = vld [vmem:[%s736 + $0xc0] sm:%s729]
                  %787 = vst [vmem:[%s737 + $0x60] sm:%s729] %v786
                  %v788 = vld [vmem:[%s736 + $0xc8] sm:%s729]
                  %789 = vst [vmem:[%s737 + $0x64] sm:%s729] %v788
                  %v790 = vld [vmem:[%s736 + $0xd0] sm:%s729]
                  %791 = vst [vmem:[%s737 + $0x68] sm:%s729] %v790
                  %v792 = vld [vmem:[%s736 + $0xd8] sm:%s729]
                  %793 = vst [vmem:[%s737 + $0x6c] sm:%s729] %v792
                  %v794 = vld [vmem:[%s736 + $0xe0] sm:%s729]
                  %795 = vst [vmem:[%s737 + $0x70] sm:%s729] %v794
                  %v796 = vld [vmem:[%s736 + $0xe8] sm:%s729]
                  %797 = vst [vmem:[%s737 + $0x74] sm:%s729] %v796
                  %v798 = vld [vmem:[%s736 + $0xf0] sm:%s729]
                  %799 = vst [vmem:[%s737 + $0x78] sm:%s729] %v798
                  %v800 = vld [vmem:[%s736 + $0xf8] sm:%s729]
                  %801 = vst [vmem:[%s737 + $0x7c] sm:%s729] %v800
                  %v802 = vld [vmem:[%s736 + $0x100] sm:%s729]
                  %803 = vst [vmem:[%s737 + $0x80] sm:%s729] %v802
                  %v804 = vld [vmem:[%s736 + $0x108] sm:%s729]
                  %805 = vst [vmem:[%s737 + $0x84] sm:%s729] %v804
                  %v806 = vld [vmem:[%s736 + $0x110] sm:%s729]
                  %807 = vst [vmem:[%s737 + $0x88] sm:%s729] %v806
                  %v808 = vld [vmem:[%s736 + $0x118] sm:%s729]
                  %809 = vst [vmem:[%s737 + $0x8c] sm:%s729] %v808
                  %v810 = vld [vmem:[%s736 + $0x120] sm:%s729]
                  %811 = vst [vmem:[%s737 + $0x90] sm:%s729] %v810
                  %v812 = vld [vmem:[%s736 + $0x128] sm:%s729]
                  %813 = vst [vmem:[%s737 + $0x94] sm:%s729] %v812
                  %v814 = vld [vmem:[%s736 + $0x130] sm:%s729]
                  %815 = vst [vmem:[%s737 + $0x98] sm:%s729] %v814
                  %v816 = vld [vmem:[%s736 + $0x138] sm:%s729]
                  %817 = vst [vmem:[%s737 + $0x9c] sm:%s729] %v816
                  %v818 = vld [vmem:[%s736 + $0x140] sm:%s729]
                  %819 = vst [vmem:[%s737 + $0xa0] sm:%s729] %v818
                  %v820 = vld [vmem:[%s736 + $0x148] sm:%s729]
                  %821 = vst [vmem:[%s737 + $0xa4] sm:%s729] %v820
                  %v822 = vld [vmem:[%s736 + $0x150] sm:%s729]
                  %823 = vst [vmem:[%s737 + $0xa8] sm:%s729] %v822
                  %v824 = vld [vmem:[%s736 + $0x158] sm:%s729]
                  %825 = vst [vmem:[%s737 + $0xac] sm:%s729] %v824
                  %v826 = vld [vmem:[%s736 + $0x160] sm:%s729]
                  %827 = vst [vmem:[%s737 + $0xb0] sm:%s729] %v826
                  %v828 = vld [vmem:[%s736 + $0x168] sm:%s729]
                  %829 = vst [vmem:[%s737 + $0xb4] sm:%s729] %v828
                  %v830 = vld [vmem:[%s736 + $0x170] sm:%s729]
                  %831 = vst [vmem:[%s737 + $0xb8] sm:%s729] %v830
                  %v832 = vld [vmem:[%s736 + $0x178] sm:%s729]
                  %833 = vst [vmem:[%s737 + $0xbc] sm:%s729] %v832
                  %v834 = vld [vmem:[%s736 + $0x180] sm:%s729]
                  %835 = vst [vmem:[%s737 + $0xc0] sm:%s729] %v834
                  %v836 = vld [vmem:[%s736 + $0x188] sm:%s729]
                  %837 = vst [vmem:[%s737 + $0xc4] sm:%s729] %v836
                  %v838 = vld [vmem:[%s736 + $0x190] sm:%s729]
                  %839 = vst [vmem:[%s737 + $0xc8] sm:%s729] %v838
                  %v840 = vld [vmem:[%s736 + $0x198] sm:%s729]
                  %841 = vst [vmem:[%s737 + $0xcc] sm:%s729] %v840
                  %v842 = vld [vmem:[%s736 + $0x1a0] sm:%s729]
                  %843 = vst [vmem:[%s737 + $0xd0] sm:%s729] %v842
                  %v844 = vld [vmem:[%s736 + $0x1a8] sm:%s729]
                  %845 = vst [vmem:[%s737 + $0xd4] sm:%s729] %v844
                  %v846 = vld [vmem:[%s736 + $0x1b0] sm:%s729]
                  %847 = vst [vmem:[%s737 + $0xd8] sm:%s729] %v846
                  %v848 = vld [vmem:[%s736 + $0x1b8] sm:%s729]
                  %849 = vst [vmem:[%s737 + $0xdc] sm:%s729] %v848
                  %v850 = vld [vmem:[%s736 + $0x1c0] sm:%s729]
                  %851 = vst [vmem:[%s737 + $0xe0] sm:%s729] %v850
                  %v852 = vld [vmem:[%s736 + $0x1c8] sm:%s729]
                  %853 = vst [vmem:[%s737 + $0xe4] sm:%s729] %v852
                  %v854 = vld [vmem:[%s736 + $0x1d0] sm:%s729]
                  %855 = vst [vmem:[%s737 + $0xe8] sm:%s729] %v854
                  %v856 = vld [vmem:[%s736 + $0x1d8] sm:%s729]
                  %857 = vst [vmem:[%s737 + $0xec] sm:%s729] %v856
                  %v858 = vld [vmem:[%s736 + $0x1e0] sm:%s729]
                  %859 = vst [vmem:[%s737 + $0xf0] sm:%s729] %v858
                  %v860 = vld [vmem:[%s736 + $0x1e8] sm:%s729]
                  %861 = vst [vmem:[%s737 + $0xf4] sm:%s729] %v860
                  %v862 = vld [vmem:[%s736 + $0x1f0] sm:%s729]
                  %863 = vst [vmem:[%s737 + $0xf8] sm:%s729] %v862
                  %v864 = vld [vmem:[%s736 + $0x1f8] sm:%s729]
                  %865 = vst [vmem:[%s737 + $0xfc] sm:%s729] %v864
                  %v866 = vld [vmem:[%s736 + $0x200] sm:%s729]
                  %867 = vst [vmem:[%s737 + $0x100] sm:%s729] %v866
                  %v868 = vld [vmem:[%s736 + $0x208] sm:%s729]
                  %869 = vst [vmem:[%s737 + $0x104] sm:%s729] %v868
                  %v870 = vld [vmem:[%s736 + $0x210] sm:%s729]
                  %871 = vst [vmem:[%s737 + $0x108] sm:%s729] %v870
                  %v872 = vld [vmem:[%s736 + $0x218] sm:%s729]
                  %873 = vst [vmem:[%s737 + $0x10c] sm:%s729] %v872
                  %v874 = vld [vmem:[%s736 + $0x220] sm:%s729]
                  %875 = vst [vmem:[%s737 + $0x110] sm:%s729] %v874
                  %v876 = vld [vmem:[%s736 + $0x228] sm:%s729]
                  %877 = vst [vmem:[%s737 + $0x114] sm:%s729] %v876
                  %v878 = vld [vmem:[%s736 + $0x230] sm:%s729]
                  %879 = vst [vmem:[%s737 + $0x118] sm:%s729] %v878
                  %v880 = vld [vmem:[%s736 + $0x238] sm:%s729]
                  %881 = vst [vmem:[%s737 + $0x11c] sm:%s729] %v880
                  %v882 = vld [vmem:[%s736 + $0x240] sm:%s729]
                  %883 = vst [vmem:[%s737 + $0x120] sm:%s729] %v882
                  %v884 = vld [vmem:[%s736 + $0x248] sm:%s729]
                  %885 = vst [vmem:[%s737 + $0x124] sm:%s729] %v884
                  %v886 = vld [vmem:[%s736 + $0x250] sm:%s729]
                  %887 = vst [vmem:[%s737 + $0x128] sm:%s729] %v886
                  %v888 = vld [vmem:[%s736 + $0x258] sm:%s729]
                  %889 = vst [vmem:[%s737 + $0x12c] sm:%s729] %v888
                  %v890 = vld [vmem:[%s736 + $0x260] sm:%s729]
                  %891 = vst [vmem:[%s737 + $0x130] sm:%s729] %v890
                  %v892 = vld [vmem:[%s736 + $0x268] sm:%s729]
                  %893 = vst [vmem:[%s737 + $0x134] sm:%s729] %v892
                  %v894 = vld [vmem:[%s736 + $0x270] sm:%s729]
                  %895 = vst [vmem:[%s737 + $0x138] sm:%s729] %v894
                  %v896 = vld [vmem:[%s736 + $0x278] sm:%s729]
                  %897 = vst [vmem:[%s737 + $0x13c] sm:%s729] %v896
                  %v898 = vld [vmem:[%s736 + $0x280] sm:%s729]
                  %899 = vst [vmem:[%s737 + $0x140] sm:%s729] %v898
                  %v900 = vld [vmem:[%s736 + $0x288] sm:%s729]
                  %901 = vst [vmem:[%s737 + $0x144] sm:%s729] %v900
                  %v902 = vld [vmem:[%s736 + $0x290] sm:%s729]
                  %903 = vst [vmem:[%s737 + $0x148] sm:%s729] %v902
                  %v904 = vld [vmem:[%s736 + $0x298] sm:%s729]
                  %905 = vst [vmem:[%s737 + $0x14c] sm:%s729] %v904
                  %v906 = vld [vmem:[%s736 + $0x2a0] sm:%s729]
                  %907 = vst [vmem:[%s737 + $0x150] sm:%s729] %v906
                  %v908 = vld [vmem:[%s736 + $0x2a8] sm:%s729]
                  %909 = vst [vmem:[%s737 + $0x154] sm:%s729] %v908
                  %v910 = vld [vmem:[%s736 + $0x2b0] sm:%s729]
                  %911 = vst [vmem:[%s737 + $0x158] sm:%s729] %v910
                  %v912 = vld [vmem:[%s736 + $0x2b8] sm:%s729]
                  %913 = vst [vmem:[%s737 + $0x15c] sm:%s729] %v912
                  %v914 = vld [vmem:[%s736 + $0x2c0] sm:%s729]
                  %915 = vst [vmem:[%s737 + $0x160] sm:%s729] %v914
                  %v916 = vld [vmem:[%s736 + $0x2c8] sm:%s729]
                  %917 = vst [vmem:[%s737 + $0x164] sm:%s729] %v916
                  %v918 = vld [vmem:[%s736 + $0x2d0] sm:%s729]
                  %919 = vst [vmem:[%s737 + $0x168] sm:%s729] %v918
                  %v920 = vld [vmem:[%s736 + $0x2d8] sm:%s729]
                  %921 = vst [vmem:[%s737 + $0x16c] sm:%s729] %v920
                  %v922 = vld [vmem:[%s736 + $0x2e0] sm:%s729]
                  %923 = vst [vmem:[%s737 + $0x170] sm:%s729] %v922
                  %v924 = vld [vmem:[%s736 + $0x2e8] sm:%s729]
                  %925 = vst [vmem:[%s737 + $0x174] sm:%s729] %v924
                  %v926 = vld [vmem:[%s736 + $0x2f0] sm:%s729]
                  %927 = vst [vmem:[%s737 + $0x178] sm:%s729] %v926
                  %v928 = vld [vmem:[%s736 + $0x2f8] sm:%s729]
                  %929 = vst [vmem:[%s737 + $0x17c] sm:%s729] %v928
                  %v930 = vld [vmem:[%s736 + $0x300] sm:%s729]
                  %931 = vst [vmem:[%s737 + $0x180] sm:%s729] %v930
                  %v932 = vld [vmem:[%s736 + $0x308] sm:%s729]
                  %933 = vst [vmem:[%s737 + $0x184] sm:%s729] %v932
                  %v934 = vld [vmem:[%s736 + $0x310] sm:%s729]
                  %935 = vst [vmem:[%s737 + $0x188] sm:%s729] %v934
                  %v936 = vld [vmem:[%s736 + $0x318] sm:%s729]
                  %937 = vst [vmem:[%s737 + $0x18c] sm:%s729] %v936
                  %v938 = vld [vmem:[%s736 + $0x320] sm:%s729]
                  %939 = vst [vmem:[%s737 + $0x190] sm:%s729] %v938
                  %v940 = vld [vmem:[%s736 + $0x328] sm:%s729]
                  %941 = vst [vmem:[%s737 + $0x194] sm:%s729] %v940
                  %v942 = vld [vmem:[%s736 + $0x330] sm:%s729]
                  %943 = vst [vmem:[%s737 + $0x198] sm:%s729] %v942
                  %v944 = vld [vmem:[%s736 + $0x338] sm:%s729]
                  %945 = vst [vmem:[%s737 + $0x19c] sm:%s729] %v944
                  %v946 = vld [vmem:[%s736 + $0x340] sm:%s729]
                  %947 = vst [vmem:[%s737 + $0x1a0] sm:%s729] %v946
                  %v948 = vld [vmem:[%s736 + $0x348] sm:%s729]
                  %949 = vst [vmem:[%s737 + $0x1a4] sm:%s729] %v948
                  %v950 = vld [vmem:[%s736 + $0x350] sm:%s729]
                  %951 = vst [vmem:[%s737 + $0x1a8] sm:%s729] %v950
                  %v952 = vld [vmem:[%s736 + $0x358] sm:%s729]
                  %953 = vst [vmem:[%s737 + $0x1ac] sm:%s729] %v952
                  %v954 = vld [vmem:[%s736 + $0x360] sm:%s729]
                  %955 = vst [vmem:[%s737 + $0x1b0] sm:%s729] %v954
                  %v956 = vld [vmem:[%s736 + $0x368] sm:%s729]
                  %957 = vst [vmem:[%s737 + $0x1b4] sm:%s729] %v956
                  %v958 = vld [vmem:[%s736 + $0x370] sm:%s729]
                  %959 = vst [vmem:[%s737 + $0x1b8] sm:%s729] %v958
                  %v960 = vld [vmem:[%s736 + $0x378] sm:%s729]
                  %961 = vst [vmem:[%s737 + $0x1bc] sm:%s729] %v960
                  %v962 = vld [vmem:[%s736 + $0x380] sm:%s729]
                  %963 = vst [vmem:[%s737 + $0x1c0] sm:%s729] %v962
                  %v964 = vld [vmem:[%s736 + $0x388] sm:%s729]
                  %965 = vst [vmem:[%s737 + $0x1c4] sm:%s729] %v964
                  %v966 = vld [vmem:[%s736 + $0x390] sm:%s729]
                  %967 = vst [vmem:[%s737 + $0x1c8] sm:%s729] %v966
                  %v968 = vld [vmem:[%s736 + $0x398] sm:%s729]
                  %969 = vst [vmem:[%s737 + $0x1cc] sm:%s729] %v968
                  %v970 = vld [vmem:[%s736 + $0x3a0] sm:%s729]
                  %971 = vst [vmem:[%s737 + $0x1d0] sm:%s729] %v970
                  %v972 = vld [vmem:[%s736 + $0x3a8] sm:%s729]
                  %973 = vst [vmem:[%s737 + $0x1d4] sm:%s729] %v972
                  %v974 = vld [vmem:[%s736 + $0x3b0] sm:%s729]
                  %975 = vst [vmem:[%s737 + $0x1d8] sm:%s729] %v974
                  %v976 = vld [vmem:[%s736 + $0x3b8] sm:%s729]
                  %977 = vst [vmem:[%s737 + $0x1dc] sm:%s729] %v976
                  %v978 = vld [vmem:[%s736 + $0x3c0] sm:%s729]
                  %979 = vst [vmem:[%s737 + $0x1e0] sm:%s729] %v978
                  %v980 = vld [vmem:[%s736 + $0x3c8] sm:%s729]
                  %981 = vst [vmem:[%s737 + $0x1e4] sm:%s729] %v980
                  %v982 = vld [vmem:[%s736 + $0x3d0] sm:%s729]
                  %983 = vst [vmem:[%s737 + $0x1e8] sm:%s729] %v982
                  %v984 = vld [vmem:[%s736 + $0x3d8] sm:%s729]
                  %985 = vst [vmem:[%s737 + $0x1ec] sm:%s729] %v984
                  %v986 = vld [vmem:[%s736 + $0x3e0] sm:%s729]
                  %987 = vst [vmem:[%s737 + $0x1f0] sm:%s729] %v986
                  %v988 = vld [vmem:[%s736 + $0x3e8] sm:%s729]
                  %989 = vst [vmem:[%s737 + $0x1f4] sm:%s729] %v988
                  %v990 = vld [vmem:[%s736 + $0x3f0] sm:%s729]
                  %991 = vst [vmem:[%s737 + $0x1f8] sm:%s729] %v990
                  %v992 = vld [vmem:[%s736 + $0x3f8] sm:%s729]
                  %993 = vst [vmem:[%s737 + $0x1fc] sm:%s729] %v992
                  %v994 = vld [vmem:[%s736 + $0x400] sm:%s729]
                  %995 = vst [vmem:[%s737 + $0x200] sm:%s729] %v994
                  %v996 = vld [vmem:[%s736 + $0x408] sm:%s729]
                  %997 = vst [vmem:[%s737 + $0x204] sm:%s729] %v996
                  %v998 = vld [vmem:[%s736 + $0x410] sm:%s729]
                  %999 = vst [vmem:[%s737 + $0x208] sm:%s729] %v998
                  %v1000 = vld [vmem:[%s736 + $0x418] sm:%s729]
                  %1001 = vst [vmem:[%s737 + $0x20c] sm:%s729] %v1000
                  %v1002 = vld [vmem:[%s736 + $0x420] sm:%s729]
                  %1003 = vst [vmem:[%s737 + $0x210] sm:%s729] %v1002
                  %v1004 = vld [vmem:[%s736 + $0x428] sm:%s729]
                  %1005 = vst [vmem:[%s737 + $0x214] sm:%s729] %v1004
                  %v1006 = vld [vmem:[%s736 + $0x430] sm:%s729]
                  %1007 = vst [vmem:[%s737 + $0x218] sm:%s729] %v1006
                  %v1008 = vld [vmem:[%s736 + $0x438] sm:%s729]
                  %1009 = vst [vmem:[%s737 + $0x21c] sm:%s729] %v1008
                  %v1010 = vld [vmem:[%s736 + $0x440] sm:%s729]
                  %1011 = vst [vmem:[%s737 + $0x220] sm:%s729] %v1010
                  %v1012 = vld [vmem:[%s736 + $0x448] sm:%s729]
                  %1013 = vst [vmem:[%s737 + $0x224] sm:%s729] %v1012
                  %v1014 = vld [vmem:[%s736 + $0x450] sm:%s729]
                  %1015 = vst [vmem:[%s737 + $0x228] sm:%s729] %v1014
                  %v1016 = vld [vmem:[%s736 + $0x458] sm:%s729]
                  %1017 = vst [vmem:[%s737 + $0x22c] sm:%s729] %v1016
                  %v1018 = vld [vmem:[%s736 + $0x460] sm:%s729]
                  %1019 = vst [vmem:[%s737 + $0x230] sm:%s729] %v1018
                  %v1020 = vld [vmem:[%s736 + $0x468] sm:%s729]
                  %1021 = vst [vmem:[%s737 + $0x234] sm:%s729] %v1020
                  %v1022 = vld [vmem:[%s736 + $0x470] sm:%s729]
                  %1023 = vst [vmem:[%s737 + $0x238] sm:%s729] %v1022
                  %v1024 = vld [vmem:[%s736 + $0x478] sm:%s729]
                  %1025 = vst [vmem:[%s737 + $0x23c] sm:%s729] %v1024
                  %v1026 = vld [vmem:[%s736 + $0x480] sm:%s729]
                  %1027 = vst [vmem:[%s737 + $0x240] sm:%s729] %v1026
                  %v1028 = vld [vmem:[%s736 + $0x488] sm:%s729]
                  %1029 = vst [vmem:[%s737 + $0x244] sm:%s729] %v1028
                  %v1030 = vld [vmem:[%s736 + $0x490] sm:%s729]
                  %1031 = vst [vmem:[%s737 + $0x248] sm:%s729] %v1030
                  %v1032 = vld [vmem:[%s736 + $0x498] sm:%s729]
                  %1033 = vst [vmem:[%s737 + $0x24c] sm:%s729] %v1032
                  %v1034 = vld [vmem:[%s736 + $0x4a0] sm:%s729]
                  %1035 = vst [vmem:[%s737 + $0x250] sm:%s729] %v1034
                  %v1036 = vld [vmem:[%s736 + $0x4a8] sm:%s729]
                  %1037 = vst [vmem:[%s737 + $0x254] sm:%s729] %v1036
                  %v1038 = vld [vmem:[%s736 + $0x4b0] sm:%s729]
                  %1039 = vst [vmem:[%s737 + $0x258] sm:%s729] %v1038
                  %v1040 = vld [vmem:[%s736 + $0x4b8] sm:%s729]
                  %1041 = vst [vmem:[%s737 + $0x25c] sm:%s729] %v1040
                  %v1042 = vld [vmem:[%s736 + $0x4c0] sm:%s729]
                  %1043 = vst [vmem:[%s737 + $0x260] sm:%s729] %v1042
                  %v1044 = vld [vmem:[%s736 + $0x4c8] sm:%s729]
                  %1045 = vst [vmem:[%s737 + $0x264] sm:%s729] %v1044
                  %v1046 = vld [vmem:[%s736 + $0x4d0] sm:%s729]
                  %1047 = vst [vmem:[%s737 + $0x268] sm:%s729] %v1046
                  %v1048 = vld [vmem:[%s736 + $0x4d8] sm:%s729]
                  %1049 = vst [vmem:[%s737 + $0x26c] sm:%s729] %v1048
                  %v1050 = vld [vmem:[%s736 + $0x4e0] sm:%s729]
                  %1051 = vst [vmem:[%s737 + $0x270] sm:%s729] %v1050
                  %v1052 = vld [vmem:[%s736 + $0x4e8] sm:%s729]
                  %1053 = vst [vmem:[%s737 + $0x274] sm:%s729] %v1052
                  %v1054 = vld [vmem:[%s736 + $0x4f0] sm:%s729]
                  %1055 = vst [vmem:[%s737 + $0x278] sm:%s729] %v1054
                  %v1056 = vld [vmem:[%s736 + $0x4f8] sm:%s729]
                  %1057 = vst [vmem:[%s737 + $0x27c] sm:%s729] %v1056
                  %v1058 = vld [vmem:[%s736 + $0x500] sm:%s729]
                  %1059 = vst [vmem:[%s737 + $0x280] sm:%s729] %v1058
                  %v1060 = vld [vmem:[%s736 + $0x508] sm:%s729]
                  %1061 = vst [vmem:[%s737 + $0x284] sm:%s729] %v1060
                  %v1062 = vld [vmem:[%s736 + $0x510] sm:%s729]
                  %1063 = vst [vmem:[%s737 + $0x288] sm:%s729] %v1062
                  %v1064 = vld [vmem:[%s736 + $0x518] sm:%s729]
                  %1065 = vst [vmem:[%s737 + $0x28c] sm:%s729] %v1064
                  %v1066 = vld [vmem:[%s736 + $0x520] sm:%s729]
                  %1067 = vst [vmem:[%s737 + $0x290] sm:%s729] %v1066
                  %v1068 = vld [vmem:[%s736 + $0x528] sm:%s729]
                  %1069 = vst [vmem:[%s737 + $0x294] sm:%s729] %v1068
                  %v1070 = vld [vmem:[%s736 + $0x530] sm:%s729]
                  %1071 = vst [vmem:[%s737 + $0x298] sm:%s729] %v1070
                  %v1072 = vld [vmem:[%s736 + $0x538] sm:%s729]
                  %1073 = vst [vmem:[%s737 + $0x29c] sm:%s729] %v1072
                  %v1074 = vld [vmem:[%s736 + $0x540] sm:%s729]
                  %1075 = vst [vmem:[%s737 + $0x2a0] sm:%s729] %v1074
                  %v1076 = vld [vmem:[%s736 + $0x548] sm:%s729]
                  %1077 = vst [vmem:[%s737 + $0x2a4] sm:%s729] %v1076
                  %v1078 = vld [vmem:[%s736 + $0x550] sm:%s729]
                  %1079 = vst [vmem:[%s737 + $0x2a8] sm:%s729] %v1078
                  %v1080 = vld [vmem:[%s736 + $0x558] sm:%s729]
                  %1081 = vst [vmem:[%s737 + $0x2ac] sm:%s729] %v1080
                  %v1082 = vld [vmem:[%s736 + $0x560] sm:%s729]
                  %1083 = vst [vmem:[%s737 + $0x2b0] sm:%s729] %v1082
                  %v1084 = vld [vmem:[%s736 + $0x568] sm:%s729]
                  %1085 = vst [vmem:[%s737 + $0x2b4] sm:%s729] %v1084
                  %v1086 = vld [vmem:[%s736 + $0x570] sm:%s729]
                  %1087 = vst [vmem:[%s737 + $0x2b8] sm:%s729] %v1086
                  %v1088 = vld [vmem:[%s736 + $0x578] sm:%s729]
                  %1089 = vst [vmem:[%s737 + $0x2bc] sm:%s729] %v1088
                  %v1090 = vld [vmem:[%s736 + $0x580] sm:%s729]
                  %1091 = vst [vmem:[%s737 + $0x2c0] sm:%s729] %v1090
                  %v1092 = vld [vmem:[%s736 + $0x588] sm:%s729]
                  %1093 = vst [vmem:[%s737 + $0x2c4] sm:%s729] %v1092
                  %v1094 = vld [vmem:[%s736 + $0x590] sm:%s729]
                  %1095 = vst [vmem:[%s737 + $0x2c8] sm:%s729] %v1094
                  %v1096 = vld [vmem:[%s736 + $0x598] sm:%s729]
                  %1097 = vst [vmem:[%s737 + $0x2cc] sm:%s729] %v1096
                  %v1098 = vld [vmem:[%s736 + $0x5a0] sm:%s729]
                  %1099 = vst [vmem:[%s737 + $0x2d0] sm:%s729] %v1098
                  %v1100 = vld [vmem:[%s736 + $0x5a8] sm:%s729]
                  %1101 = vst [vmem:[%s737 + $0x2d4] sm:%s729] %v1100
                  %v1102 = vld [vmem:[%s736 + $0x5b0] sm:%s729]
                  %1103 = vst [vmem:[%s737 + $0x2d8] sm:%s729] %v1102
                  %v1104 = vld [vmem:[%s736 + $0x5b8] sm:%s729]
                  %1105 = vst [vmem:[%s737 + $0x2dc] sm:%s729] %v1104
                  %v1106 = vld [vmem:[%s736 + $0x5c0] sm:%s729]
                  %1107 = vst [vmem:[%s737 + $0x2e0] sm:%s729] %v1106
                  %v1108 = vld [vmem:[%s736 + $0x5c8] sm:%s729]
                  %1109 = vst [vmem:[%s737 + $0x2e4] sm:%s729] %v1108
                  %v1110 = vld [vmem:[%s736 + $0x5d0] sm:%s729]
                  %1111 = vst [vmem:[%s737 + $0x2e8] sm:%s729] %v1110
                  %v1112 = vld [vmem:[%s736 + $0x5d8] sm:%s729]
                  %1113 = vst [vmem:[%s737 + $0x2ec] sm:%s729] %v1112
                  %v1114 = vld [vmem:[%s736 + $0x5e0] sm:%s729]
                  %1115 = vst [vmem:[%s737 + $0x2f0] sm:%s729] %v1114
                  %v1116 = vld [vmem:[%s736 + $0x5e8] sm:%s729]
                  %1117 = vst [vmem:[%s737 + $0x2f4] sm:%s729] %v1116
                  %v1118 = vld [vmem:[%s736 + $0x5f0] sm:%s729]
                  %1119 = vst [vmem:[%s737 + $0x2f8] sm:%s729] %v1118
                  %v1120 = vld [vmem:[%s736 + $0x5f8] sm:%s729]
                  %1121 = vst [vmem:[%s737 + $0x2fc] sm:%s729] %v1120
                  %v1122 = vld [vmem:[%s736 + $0x600] sm:%s729]
                  %1123 = vst [vmem:[%s737 + $0x300] sm:%s729] %v1122
                  %v1124 = vld [vmem:[%s736 + $0x608] sm:%s729]
                  %1125 = vst [vmem:[%s737 + $0x304] sm:%s729] %v1124
                  %v1126 = vld [vmem:[%s736 + $0x610] sm:%s729]
                  %1127 = vst [vmem:[%s737 + $0x308] sm:%s729] %v1126
                  %v1128 = vld [vmem:[%s736 + $0x618] sm:%s729]
                  %1129 = vst [vmem:[%s737 + $0x30c] sm:%s729] %v1128
                  %v1130 = vld [vmem:[%s736 + $0x620] sm:%s729]
                  %1131 = vst [vmem:[%s737 + $0x310] sm:%s729] %v1130
                  %v1132 = vld [vmem:[%s736 + $0x628] sm:%s729]
                  %1133 = vst [vmem:[%s737 + $0x314] sm:%s729] %v1132
                  %v1134 = vld [vmem:[%s736 + $0x630] sm:%s729]
                  %1135 = vst [vmem:[%s737 + $0x318] sm:%s729] %v1134
                  %v1136 = vld [vmem:[%s736 + $0x638] sm:%s729]
                  %1137 = vst [vmem:[%s737 + $0x31c] sm:%s729] %v1136
                  %v1138 = vld [vmem:[%s736 + $0x640] sm:%s729]
                  %1139 = vst [vmem:[%s737 + $0x320] sm:%s729] %v1138
                  %v1140 = vld [vmem:[%s736 + $0x648] sm:%s729]
                  %1141 = vst [vmem:[%s737 + $0x324] sm:%s729] %v1140
                  %v1142 = vld [vmem:[%s736 + $0x650] sm:%s729]
                  %1143 = vst [vmem:[%s737 + $0x328] sm:%s729] %v1142
                  %v1144 = vld [vmem:[%s736 + $0x658] sm:%s729]
                  %1145 = vst [vmem:[%s737 + $0x32c] sm:%s729] %v1144
                  %v1146 = vld [vmem:[%s736 + $0x660] sm:%s729]
                  %1147 = vst [vmem:[%s737 + $0x330] sm:%s729] %v1146
                  %v1148 = vld [vmem:[%s736 + $0x668] sm:%s729]
                  %1149 = vst [vmem:[%s737 + $0x334] sm:%s729] %v1148
                  %v1150 = vld [vmem:[%s736 + $0x670] sm:%s729]
                  %1151 = vst [vmem:[%s737 + $0x338] sm:%s729] %v1150
                  %v1152 = vld [vmem:[%s736 + $0x678] sm:%s729]
                  %1153 = vst [vmem:[%s737 + $0x33c] sm:%s729] %v1152
                  %v1154 = vld [vmem:[%s736 + $0x680] sm:%s729]
                  %1155 = vst [vmem:[%s737 + $0x340] sm:%s729] %v1154
                  %v1156 = vld [vmem:[%s736 + $0x688] sm:%s729]
                  %1157 = vst [vmem:[%s737 + $0x344] sm:%s729] %v1156
                  %v1158 = vld [vmem:[%s736 + $0x690] sm:%s729]
                  %1159 = vst [vmem:[%s737 + $0x348] sm:%s729] %v1158
                  %v1160 = vld [vmem:[%s736 + $0x698] sm:%s729]
                  %1161 = vst [vmem:[%s737 + $0x34c] sm:%s729] %v1160
                  %v1162 = vld [vmem:[%s736 + $0x6a0] sm:%s729]
                  %1163 = vst [vmem:[%s737 + $0x350] sm:%s729] %v1162
                  %v1164 = vld [vmem:[%s736 + $0x6a8] sm:%s729]
                  %1165 = vst [vmem:[%s737 + $0x354] sm:%s729] %v1164
                  %v1166 = vld [vmem:[%s736 + $0x6b0] sm:%s729]
                  %1167 = vst [vmem:[%s737 + $0x358] sm:%s729] %v1166
                  %v1168 = vld [vmem:[%s736 + $0x6b8] sm:%s729]
                  %1169 = vst [vmem:[%s737 + $0x35c] sm:%s729] %v1168
                  %v1170 = vld [vmem:[%s736 + $0x6c0] sm:%s729]
                  %1171 = vst [vmem:[%s737 + $0x360] sm:%s729] %v1170
                  %v1172 = vld [vmem:[%s736 + $0x6c8] sm:%s729]
                  %1173 = vst [vmem:[%s737 + $0x364] sm:%s729] %v1172
                  %v1174 = vld [vmem:[%s736 + $0x6d0] sm:%s729]
                  %1175 = vst [vmem:[%s737 + $0x368] sm:%s729] %v1174
                  %v1176 = vld [vmem:[%s736 + $0x6d8] sm:%s729]
                  %1177 = vst [vmem:[%s737 + $0x36c] sm:%s729] %v1176
                  %v1178 = vld [vmem:[%s736 + $0x6e0] sm:%s729]
                  %1179 = vst [vmem:[%s737 + $0x370] sm:%s729] %v1178
                  %v1180 = vld [vmem:[%s736 + $0x6e8] sm:%s729]
                  %1181 = vst [vmem:[%s737 + $0x374] sm:%s729] %v1180
                  %v1182 = vld [vmem:[%s736 + $0x6f0] sm:%s729]
                  %1183 = vst [vmem:[%s737 + $0x378] sm:%s729] %v1182
                  %v1184 = vld [vmem:[%s736 + $0x6f8] sm:%s729]
                  %1185 = vst [vmem:[%s737 + $0x37c] sm:%s729] %v1184
                  %v1186 = vld [vmem:[%s736 + $0x700] sm:%s729]
                  %1187 = vst [vmem:[%s737 + $0x380] sm:%s729] %v1186
                  %v1188 = vld [vmem:[%s736 + $0x708] sm:%s729]
                  %1189 = vst [vmem:[%s737 + $0x384] sm:%s729] %v1188
                  %v1190 = vld [vmem:[%s736 + $0x710] sm:%s729]
                  %1191 = vst [vmem:[%s737 + $0x388] sm:%s729] %v1190
                  %v1192 = vld [vmem:[%s736 + $0x718] sm:%s729]
                  %1193 = vst [vmem:[%s737 + $0x38c] sm:%s729] %v1192
                  %v1194 = vld [vmem:[%s736 + $0x720] sm:%s729]
                  %1195 = vst [vmem:[%s737 + $0x390] sm:%s729] %v1194
                  %v1196 = vld [vmem:[%s736 + $0x728] sm:%s729]
                  %1197 = vst [vmem:[%s737 + $0x394] sm:%s729] %v1196
                  %v1198 = vld [vmem:[%s736 + $0x730] sm:%s729]
                  %1199 = vst [vmem:[%s737 + $0x398] sm:%s729] %v1198
                  %v1200 = vld [vmem:[%s736 + $0x738] sm:%s729]
                  %1201 = vst [vmem:[%s737 + $0x39c] sm:%s729] %v1200
                  %v1202 = vld [vmem:[%s736 + $0x740] sm:%s729]
                  %1203 = vst [vmem:[%s737 + $0x3a0] sm:%s729] %v1202
                  %v1204 = vld [vmem:[%s736 + $0x748] sm:%s729]
                  %1205 = vst [vmem:[%s737 + $0x3a4] sm:%s729] %v1204
                  %v1206 = vld [vmem:[%s736 + $0x750] sm:%s729]
                  %1207 = vst [vmem:[%s737 + $0x3a8] sm:%s729] %v1206
                  %v1208 = vld [vmem:[%s736 + $0x758] sm:%s729]
                  %1209 = vst [vmem:[%s737 + $0x3ac] sm:%s729] %v1208
                  %v1210 = vld [vmem:[%s736 + $0x760] sm:%s729]
                  %1211 = vst [vmem:[%s737 + $0x3b0] sm:%s729] %v1210
                  %v1212 = vld [vmem:[%s736 + $0x768] sm:%s729]
                  %1213 = vst [vmem:[%s737 + $0x3b4] sm:%s729] %v1212
                  %v1214 = vld [vmem:[%s736 + $0x770] sm:%s729]
                  %1215 = vst [vmem:[%s737 + $0x3b8] sm:%s729] %v1214
                  %v1216 = vld [vmem:[%s736 + $0x778] sm:%s729]
                  %1217 = vst [vmem:[%s737 + $0x3bc] sm:%s729] %v1216
                  %v1218 = vld [vmem:[%s736 + $0x780] sm:%s729]
                  %1219 = vst [vmem:[%s737 + $0x3c0] sm:%s729] %v1218
                  %v1220 = vld [vmem:[%s736 + $0x788] sm:%s729]
                  %1221 = vst [vmem:[%s737 + $0x3c4] sm:%s729] %v1220
                  %v1222 = vld [vmem:[%s736 + $0x790] sm:%s729]
                  %1223 = vst [vmem:[%s737 + $0x3c8] sm:%s729] %v1222
                  %v1224 = vld [vmem:[%s736 + $0x798] sm:%s729]
                  %1225 = vst [vmem:[%s737 + $0x3cc] sm:%s729] %v1224
                  %v1226 = vld [vmem:[%s736 + $0x7a0] sm:%s729]
                  %1227 = vst [vmem:[%s737 + $0x3d0] sm:%s729] %v1226
                  %v1228 = vld [vmem:[%s736 + $0x7a8] sm:%s729]
                  %1229 = vst [vmem:[%s737 + $0x3d4] sm:%s729] %v1228
                  %v1230 = vld [vmem:[%s736 + $0x7b0] sm:%s729]
                  %1231 = vst [vmem:[%s737 + $0x3d8] sm:%s729] %v1230
                  %v1232 = vld [vmem:[%s736 + $0x7b8] sm:%s729]
                  %1233 = vst [vmem:[%s737 + $0x3dc] sm:%s729] %v1232
                  %v1234 = vld [vmem:[%s736 + $0x7c0] sm:%s729]
                  %1235 = vst [vmem:[%s737 + $0x3e0] sm:%s729] %v1234
                  %v1236 = vld [vmem:[%s736 + $0x7c8] sm:%s729]
                  %1237 = vst [vmem:[%s737 + $0x3e4] sm:%s729] %v1236
                  %v1238 = vld [vmem:[%s736 + $0x7d0] sm:%s729]
                  %1239 = vst [vmem:[%s737 + $0x3e8] sm:%s729] %v1238
                  %v1240 = vld [vmem:[%s736 + $0x7d8] sm:%s729]
                  %1241 = vst [vmem:[%s737 + $0x3ec] sm:%s729] %v1240
                  %v1242 = vld [vmem:[%s736 + $0x7e0] sm:%s729]
                  %1243 = vst [vmem:[%s737 + $0x3f0] sm:%s729] %v1242
                  %v1244 = vld [vmem:[%s736 + $0x7e8] sm:%s729]
                  %1245 = vst [vmem:[%s737 + $0x3f4] sm:%s729] %v1244
                  %v1246 = vld [vmem:[%s736 + $0x7f0] sm:%s729]
                  %1247 = vst [vmem:[%s737 + $0x3f8] sm:%s729] %v1246
                  %v1248 = vld [vmem:[%s736 + $0x7f8] sm:%s729]
                  %1249 = vst [vmem:[%s737 + $0x3fc] sm:%s729] %v1248
                $region59: #{_lambda_.12} parent=46 // loop_footer
                  %s735 = sadd.s32 1, %s731
                $region60: #{_lambda_.12} parent=46 // loop_footer_branch
                  %730 = sbr.rel target = $region56
                $region61: #{_lambda_.12} parent=46 // loop_exit
                  _
              $region47: #{_lambda_.12} parent=31 // pred_fallthru
                _
            $region32: #{_lambda_.12} parent=27 // pred_fallthru
              _
            // Predicated region
            $region33: #{_lambda_.12} parent=27 // pred_check
              _
            $region34: #{_lambda_.12} parent=27 // pred_check_branch
              %195 = sbr.rel (0) target = $region36
            $region35: #{_lambda_.12} parent=27 // pred_region
              %s197 = ssub.s32 16, 1
              loop: start=0, step=1, limit=1
              $region37: #{_lambda_.12} parent=35 // loop_pre_header
                _
              $region38: #{_lambda_.12} parent=35 // loop_header
                %s199 = sphi 0, %s203
                %p200 = scmp.ge.s32.totalorder %s199, 1
                %s204 = sphi %s189, %s189
                %s205 = sphi %s187, %s187
              $region39: #{_lambda_.12} parent=35 // loop_header_branch
                %202 = sbr.rel (%p200) target = $region43
              $region40: #{_lambda_.12} parent=35 // loop_body
                %v206 = vld [vmem:[%s204] sm:%s197]
                %207 = vst [vmem:[%s205] sm:%s197] %v206
                %v208 = vld [vmem:[%s204 + $0x8] sm:%s197]
                %209 = vst [vmem:[%s205 + $0x4] sm:%s197] %v208
                %v210 = vld [vmem:[%s204 + $0x10] sm:%s197]
                %211 = vst [vmem:[%s205 + $0x8] sm:%s197] %v210
                %v212 = vld [vmem:[%s204 + $0x18] sm:%s197]
                %213 = vst [vmem:[%s205 + $0xc] sm:%s197] %v212
                %v214 = vld [vmem:[%s204 + $0x20] sm:%s197]
                %215 = vst [vmem:[%s205 + $0x10] sm:%s197] %v214
                %v216 = vld [vmem:[%s204 + $0x28] sm:%s197]
                %217 = vst [vmem:[%s205 + $0x14] sm:%s197] %v216
                %v218 = vld [vmem:[%s204 + $0x30] sm:%s197]
                %219 = vst [vmem:[%s205 + $0x18] sm:%s197] %v218
                %v220 = vld [vmem:[%s204 + $0x38] sm:%s197]
                %221 = vst [vmem:[%s205 + $0x1c] sm:%s197] %v220
                %v222 = vld [vmem:[%s204 + $0x40] sm:%s197]
                %223 = vst [vmem:[%s205 + $0x20] sm:%s197] %v222
                %v224 = vld [vmem:[%s204 + $0x48] sm:%s197]
                %225 = vst [vmem:[%s205 + $0x24] sm:%s197] %v224
                %v226 = vld [vmem:[%s204 + $0x50] sm:%s197]
                %227 = vst [vmem:[%s205 + $0x28] sm:%s197] %v226
                %v228 = vld [vmem:[%s204 + $0x58] sm:%s197]
                %229 = vst [vmem:[%s205 + $0x2c] sm:%s197] %v228
                %v230 = vld [vmem:[%s204 + $0x60] sm:%s197]
                %231 = vst [vmem:[%s205 + $0x30] sm:%s197] %v230
                %v232 = vld [vmem:[%s204 + $0x68] sm:%s197]
                %233 = vst [vmem:[%s205 + $0x34] sm:%s197] %v232
                %v234 = vld [vmem:[%s204 + $0x70] sm:%s197]
                %235 = vst [vmem:[%s205 + $0x38] sm:%s197] %v234
                %v236 = vld [vmem:[%s204 + $0x78] sm:%s197]
                %237 = vst [vmem:[%s205 + $0x3c] sm:%s197] %v236
                %v238 = vld [vmem:[%s204 + $0x80] sm:%s197]
                %239 = vst [vmem:[%s205 + $0x40] sm:%s197] %v238
                %v240 = vld [vmem:[%s204 + $0x88] sm:%s197]
                %241 = vst [vmem:[%s205 + $0x44] sm:%s197] %v240
                %v242 = vld [vmem:[%s204 + $0x90] sm:%s197]
                %243 = vst [vmem:[%s205 + $0x48] sm:%s197] %v242
                %v244 = vld [vmem:[%s204 + $0x98] sm:%s197]
                %245 = vst [vmem:[%s205 + $0x4c] sm:%s197] %v244
                %v246 = vld [vmem:[%s204 + $0xa0] sm:%s197]
                %247 = vst [vmem:[%s205 + $0x50] sm:%s197] %v246
                %v248 = vld [vmem:[%s204 + $0xa8] sm:%s197]
                %249 = vst [vmem:[%s205 + $0x54] sm:%s197] %v248
                %v250 = vld [vmem:[%s204 + $0xb0] sm:%s197]
                %251 = vst [vmem:[%s205 + $0x58] sm:%s197] %v250
                %v252 = vld [vmem:[%s204 + $0xb8] sm:%s197]
                %253 = vst [vmem:[%s205 + $0x5c] sm:%s197] %v252
                %v254 = vld [vmem:[%s204 + $0xc0] sm:%s197]
                %255 = vst [vmem:[%s205 + $0x60] sm:%s197] %v254
                %v256 = vld [vmem:[%s204 + $0xc8] sm:%s197]
                %257 = vst [vmem:[%s205 + $0x64] sm:%s197] %v256
                %v258 = vld [vmem:[%s204 + $0xd0] sm:%s197]
                %259 = vst [vmem:[%s205 + $0x68] sm:%s197] %v258
                %v260 = vld [vmem:[%s204 + $0xd8] sm:%s197]
                %261 = vst [vmem:[%s205 + $0x6c] sm:%s197] %v260
                %v262 = vld [vmem:[%s204 + $0xe0] sm:%s197]
                %263 = vst [vmem:[%s205 + $0x70] sm:%s197] %v262
                %v264 = vld [vmem:[%s204 + $0xe8] sm:%s197]
                %265 = vst [vmem:[%s205 + $0x74] sm:%s197] %v264
                %v266 = vld [vmem:[%s204 + $0xf0] sm:%s197]
                %267 = vst [vmem:[%s205 + $0x78] sm:%s197] %v266
                %v268 = vld [vmem:[%s204 + $0xf8] sm:%s197]
                %269 = vst [vmem:[%s205 + $0x7c] sm:%s197] %v268
                %v270 = vld [vmem:[%s204 + $0x100] sm:%s197]
                %271 = vst [vmem:[%s205 + $0x80] sm:%s197] %v270
                %v272 = vld [vmem:[%s204 + $0x108] sm:%s197]
                %273 = vst [vmem:[%s205 + $0x84] sm:%s197] %v272
                %v274 = vld [vmem:[%s204 + $0x110] sm:%s197]
                %275 = vst [vmem:[%s205 + $0x88] sm:%s197] %v274
                %v276 = vld [vmem:[%s204 + $0x118] sm:%s197]
                %277 = vst [vmem:[%s205 + $0x8c] sm:%s197] %v276
                %v278 = vld [vmem:[%s204 + $0x120] sm:%s197]
                %279 = vst [vmem:[%s205 + $0x90] sm:%s197] %v278
                %v280 = vld [vmem:[%s204 + $0x128] sm:%s197]
                %281 = vst [vmem:[%s205 + $0x94] sm:%s197] %v280
                %v282 = vld [vmem:[%s204 + $0x130] sm:%s197]
                %283 = vst [vmem:[%s205 + $0x98] sm:%s197] %v282
                %v284 = vld [vmem:[%s204 + $0x138] sm:%s197]
                %285 = vst [vmem:[%s205 + $0x9c] sm:%s197] %v284
                %v286 = vld [vmem:[%s204 + $0x140] sm:%s197]
                %287 = vst [vmem:[%s205 + $0xa0] sm:%s197] %v286
                %v288 = vld [vmem:[%s204 + $0x148] sm:%s197]
                %289 = vst [vmem:[%s205 + $0xa4] sm:%s197] %v288
                %v290 = vld [vmem:[%s204 + $0x150] sm:%s197]
                %291 = vst [vmem:[%s205 + $0xa8] sm:%s197] %v290
                %v292 = vld [vmem:[%s204 + $0x158] sm:%s197]
                %293 = vst [vmem:[%s205 + $0xac] sm:%s197] %v292
                %v294 = vld [vmem:[%s204 + $0x160] sm:%s197]
                %295 = vst [vmem:[%s205 + $0xb0] sm:%s197] %v294
                %v296 = vld [vmem:[%s204 + $0x168] sm:%s197]
                %297 = vst [vmem:[%s205 + $0xb4] sm:%s197] %v296
                %v298 = vld [vmem:[%s204 + $0x170] sm:%s197]
                %299 = vst [vmem:[%s205 + $0xb8] sm:%s197] %v298
                %v300 = vld [vmem:[%s204 + $0x178] sm:%s197]
                %301 = vst [vmem:[%s205 + $0xbc] sm:%s197] %v300
                %v302 = vld [vmem:[%s204 + $0x180] sm:%s197]
                %303 = vst [vmem:[%s205 + $0xc0] sm:%s197] %v302
                %v304 = vld [vmem:[%s204 + $0x188] sm:%s197]
                %305 = vst [vmem:[%s205 + $0xc4] sm:%s197] %v304
                %v306 = vld [vmem:[%s204 + $0x190] sm:%s197]
                %307 = vst [vmem:[%s205 + $0xc8] sm:%s197] %v306
                %v308 = vld [vmem:[%s204 + $0x198] sm:%s197]
                %309 = vst [vmem:[%s205 + $0xcc] sm:%s197] %v308
                %v310 = vld [vmem:[%s204 + $0x1a0] sm:%s197]
                %311 = vst [vmem:[%s205 + $0xd0] sm:%s197] %v310
                %v312 = vld [vmem:[%s204 + $0x1a8] sm:%s197]
                %313 = vst [vmem:[%s205 + $0xd4] sm:%s197] %v312
                %v314 = vld [vmem:[%s204 + $0x1b0] sm:%s197]
                %315 = vst [vmem:[%s205 + $0xd8] sm:%s197] %v314
                %v316 = vld [vmem:[%s204 + $0x1b8] sm:%s197]
                %317 = vst [vmem:[%s205 + $0xdc] sm:%s197] %v316
                %v318 = vld [vmem:[%s204 + $0x1c0] sm:%s197]
                %319 = vst [vmem:[%s205 + $0xe0] sm:%s197] %v318
                %v320 = vld [vmem:[%s204 + $0x1c8] sm:%s197]
                %321 = vst [vmem:[%s205 + $0xe4] sm:%s197] %v320
                %v322 = vld [vmem:[%s204 + $0x1d0] sm:%s197]
                %323 = vst [vmem:[%s205 + $0xe8] sm:%s197] %v322
                %v324 = vld [vmem:[%s204 + $0x1d8] sm:%s197]
                %325 = vst [vmem:[%s205 + $0xec] sm:%s197] %v324
                %v326 = vld [vmem:[%s204 + $0x1e0] sm:%s197]
                %327 = vst [vmem:[%s205 + $0xf0] sm:%s197] %v326
                %v328 = vld [vmem:[%s204 + $0x1e8] sm:%s197]
                %329 = vst [vmem:[%s205 + $0xf4] sm:%s197] %v328
                %v330 = vld [vmem:[%s204 + $0x1f0] sm:%s197]
                %331 = vst [vmem:[%s205 + $0xf8] sm:%s197] %v330
                %v332 = vld [vmem:[%s204 + $0x1f8] sm:%s197]
                %333 = vst [vmem:[%s205 + $0xfc] sm:%s197] %v332
                %v334 = vld [vmem:[%s204 + $0x200] sm:%s197]
                %335 = vst [vmem:[%s205 + $0x100] sm:%s197] %v334
                %v336 = vld [vmem:[%s204 + $0x208] sm:%s197]
                %337 = vst [vmem:[%s205 + $0x104] sm:%s197] %v336
                %v338 = vld [vmem:[%s204 + $0x210] sm:%s197]
                %339 = vst [vmem:[%s205 + $0x108] sm:%s197] %v338
                %v340 = vld [vmem:[%s204 + $0x218] sm:%s197]
                %341 = vst [vmem:[%s205 + $0x10c] sm:%s197] %v340
                %v342 = vld [vmem:[%s204 + $0x220] sm:%s197]
                %343 = vst [vmem:[%s205 + $0x110] sm:%s197] %v342
                %v344 = vld [vmem:[%s204 + $0x228] sm:%s197]
                %345 = vst [vmem:[%s205 + $0x114] sm:%s197] %v344
                %v346 = vld [vmem:[%s204 + $0x230] sm:%s197]
                %347 = vst [vmem:[%s205 + $0x118] sm:%s197] %v346
                %v348 = vld [vmem:[%s204 + $0x238] sm:%s197]
                %349 = vst [vmem:[%s205 + $0x11c] sm:%s197] %v348
                %v350 = vld [vmem:[%s204 + $0x240] sm:%s197]
                %351 = vst [vmem:[%s205 + $0x120] sm:%s197] %v350
                %v352 = vld [vmem:[%s204 + $0x248] sm:%s197]
                %353 = vst [vmem:[%s205 + $0x124] sm:%s197] %v352
                %v354 = vld [vmem:[%s204 + $0x250] sm:%s197]
                %355 = vst [vmem:[%s205 + $0x128] sm:%s197] %v354
                %v356 = vld [vmem:[%s204 + $0x258] sm:%s197]
                %357 = vst [vmem:[%s205 + $0x12c] sm:%s197] %v356
                %v358 = vld [vmem:[%s204 + $0x260] sm:%s197]
                %359 = vst [vmem:[%s205 + $0x130] sm:%s197] %v358
                %v360 = vld [vmem:[%s204 + $0x268] sm:%s197]
                %361 = vst [vmem:[%s205 + $0x134] sm:%s197] %v360
                %v362 = vld [vmem:[%s204 + $0x270] sm:%s197]
                %363 = vst [vmem:[%s205 + $0x138] sm:%s197] %v362
                %v364 = vld [vmem:[%s204 + $0x278] sm:%s197]
                %365 = vst [vmem:[%s205 + $0x13c] sm:%s197] %v364
                %v366 = vld [vmem:[%s204 + $0x280] sm:%s197]
                %367 = vst [vmem:[%s205 + $0x140] sm:%s197] %v366
                %v368 = vld [vmem:[%s204 + $0x288] sm:%s197]
                %369 = vst [vmem:[%s205 + $0x144] sm:%s197] %v368
                %v370 = vld [vmem:[%s204 + $0x290] sm:%s197]
                %371 = vst [vmem:[%s205 + $0x148] sm:%s197] %v370
                %v372 = vld [vmem:[%s204 + $0x298] sm:%s197]
                %373 = vst [vmem:[%s205 + $0x14c] sm:%s197] %v372
                %v374 = vld [vmem:[%s204 + $0x2a0] sm:%s197]
                %375 = vst [vmem:[%s205 + $0x150] sm:%s197] %v374
                %v376 = vld [vmem:[%s204 + $0x2a8] sm:%s197]
                %377 = vst [vmem:[%s205 + $0x154] sm:%s197] %v376
                %v378 = vld [vmem:[%s204 + $0x2b0] sm:%s197]
                %379 = vst [vmem:[%s205 + $0x158] sm:%s197] %v378
                %v380 = vld [vmem:[%s204 + $0x2b8] sm:%s197]
                %381 = vst [vmem:[%s205 + $0x15c] sm:%s197] %v380
                %v382 = vld [vmem:[%s204 + $0x2c0] sm:%s197]
                %383 = vst [vmem:[%s205 + $0x160] sm:%s197] %v382
                %v384 = vld [vmem:[%s204 + $0x2c8] sm:%s197]
                %385 = vst [vmem:[%s205 + $0x164] sm:%s197] %v384
                %v386 = vld [vmem:[%s204 + $0x2d0] sm:%s197]
                %387 = vst [vmem:[%s205 + $0x168] sm:%s197] %v386
                %v388 = vld [vmem:[%s204 + $0x2d8] sm:%s197]
                %389 = vst [vmem:[%s205 + $0x16c] sm:%s197] %v388
                %v390 = vld [vmem:[%s204 + $0x2e0] sm:%s197]
                %391 = vst [vmem:[%s205 + $0x170] sm:%s197] %v390
                %v392 = vld [vmem:[%s204 + $0x2e8] sm:%s197]
                %393 = vst [vmem:[%s205 + $0x174] sm:%s197] %v392
                %v394 = vld [vmem:[%s204 + $0x2f0] sm:%s197]
                %395 = vst [vmem:[%s205 + $0x178] sm:%s197] %v394
                %v396 = vld [vmem:[%s204 + $0x2f8] sm:%s197]
                %397 = vst [vmem:[%s205 + $0x17c] sm:%s197] %v396
                %v398 = vld [vmem:[%s204 + $0x300] sm:%s197]
                %399 = vst [vmem:[%s205 + $0x180] sm:%s197] %v398
                %v400 = vld [vmem:[%s204 + $0x308] sm:%s197]
                %401 = vst [vmem:[%s205 + $0x184] sm:%s197] %v400
                %v402 = vld [vmem:[%s204 + $0x310] sm:%s197]
                %403 = vst [vmem:[%s205 + $0x188] sm:%s197] %v402
                %v404 = vld [vmem:[%s204 + $0x318] sm:%s197]
                %405 = vst [vmem:[%s205 + $0x18c] sm:%s197] %v404
                %v406 = vld [vmem:[%s204 + $0x320] sm:%s197]
                %407 = vst [vmem:[%s205 + $0x190] sm:%s197] %v406
                %v408 = vld [vmem:[%s204 + $0x328] sm:%s197]
                %409 = vst [vmem:[%s205 + $0x194] sm:%s197] %v408
                %v410 = vld [vmem:[%s204 + $0x330] sm:%s197]
                %411 = vst [vmem:[%s205 + $0x198] sm:%s197] %v410
                %v412 = vld [vmem:[%s204 + $0x338] sm:%s197]
                %413 = vst [vmem:[%s205 + $0x19c] sm:%s197] %v412
                %v414 = vld [vmem:[%s204 + $0x340] sm:%s197]
                %415 = vst [vmem:[%s205 + $0x1a0] sm:%s197] %v414
                %v416 = vld [vmem:[%s204 + $0x348] sm:%s197]
                %417 = vst [vmem:[%s205 + $0x1a4] sm:%s197] %v416
                %v418 = vld [vmem:[%s204 + $0x350] sm:%s197]
                %419 = vst [vmem:[%s205 + $0x1a8] sm:%s197] %v418
                %v420 = vld [vmem:[%s204 + $0x358] sm:%s197]
                %421 = vst [vmem:[%s205 + $0x1ac] sm:%s197] %v420
                %v422 = vld [vmem:[%s204 + $0x360] sm:%s197]
                %423 = vst [vmem:[%s205 + $0x1b0] sm:%s197] %v422
                %v424 = vld [vmem:[%s204 + $0x368] sm:%s197]
                %425 = vst [vmem:[%s205 + $0x1b4] sm:%s197] %v424
                %v426 = vld [vmem:[%s204 + $0x370] sm:%s197]
                %427 = vst [vmem:[%s205 + $0x1b8] sm:%s197] %v426
                %v428 = vld [vmem:[%s204 + $0x378] sm:%s197]
                %429 = vst [vmem:[%s205 + $0x1bc] sm:%s197] %v428
                %v430 = vld [vmem:[%s204 + $0x380] sm:%s197]
                %431 = vst [vmem:[%s205 + $0x1c0] sm:%s197] %v430
                %v432 = vld [vmem:[%s204 + $0x388] sm:%s197]
                %433 = vst [vmem:[%s205 + $0x1c4] sm:%s197] %v432
                %v434 = vld [vmem:[%s204 + $0x390] sm:%s197]
                %435 = vst [vmem:[%s205 + $0x1c8] sm:%s197] %v434
                %v436 = vld [vmem:[%s204 + $0x398] sm:%s197]
                %437 = vst [vmem:[%s205 + $0x1cc] sm:%s197] %v436
                %v438 = vld [vmem:[%s204 + $0x3a0] sm:%s197]
                %439 = vst [vmem:[%s205 + $0x1d0] sm:%s197] %v438
                %v440 = vld [vmem:[%s204 + $0x3a8] sm:%s197]
                %441 = vst [vmem:[%s205 + $0x1d4] sm:%s197] %v440
                %v442 = vld [vmem:[%s204 + $0x3b0] sm:%s197]
                %443 = vst [vmem:[%s205 + $0x1d8] sm:%s197] %v442
                %v444 = vld [vmem:[%s204 + $0x3b8] sm:%s197]
                %445 = vst [vmem:[%s205 + $0x1dc] sm:%s197] %v444
                %v446 = vld [vmem:[%s204 + $0x3c0] sm:%s197]
                %447 = vst [vmem:[%s205 + $0x1e0] sm:%s197] %v446
                %v448 = vld [vmem:[%s204 + $0x3c8] sm:%s197]
                %449 = vst [vmem:[%s205 + $0x1e4] sm:%s197] %v448
                %v450 = vld [vmem:[%s204 + $0x3d0] sm:%s197]
                %451 = vst [vmem:[%s205 + $0x1e8] sm:%s197] %v450
                %v452 = vld [vmem:[%s204 + $0x3d8] sm:%s197]
                %453 = vst [vmem:[%s205 + $0x1ec] sm:%s197] %v452
                %v454 = vld [vmem:[%s204 + $0x3e0] sm:%s197]
                %455 = vst [vmem:[%s205 + $0x1f0] sm:%s197] %v454
                %v456 = vld [vmem:[%s204 + $0x3e8] sm:%s197]
                %457 = vst [vmem:[%s205 + $0x1f4] sm:%s197] %v456
                %v458 = vld [vmem:[%s204 + $0x3f0] sm:%s197]
                %459 = vst [vmem:[%s205 + $0x1f8] sm:%s197] %v458
                %v460 = vld [vmem:[%s204 + $0x3f8] sm:%s197]
                %461 = vst [vmem:[%s205 + $0x1fc] sm:%s197] %v460
                %v462 = vld [vmem:[%s204 + $0x400] sm:%s197]
                %463 = vst [vmem:[%s205 + $0x200] sm:%s197] %v462
                %v464 = vld [vmem:[%s204 + $0x408] sm:%s197]
                %465 = vst [vmem:[%s205 + $0x204] sm:%s197] %v464
                %v466 = vld [vmem:[%s204 + $0x410] sm:%s197]
                %467 = vst [vmem:[%s205 + $0x208] sm:%s197] %v466
                %v468 = vld [vmem:[%s204 + $0x418] sm:%s197]
                %469 = vst [vmem:[%s205 + $0x20c] sm:%s197] %v468
                %v470 = vld [vmem:[%s204 + $0x420] sm:%s197]
                %471 = vst [vmem:[%s205 + $0x210] sm:%s197] %v470
                %v472 = vld [vmem:[%s204 + $0x428] sm:%s197]
                %473 = vst [vmem:[%s205 + $0x214] sm:%s197] %v472
                %v474 = vld [vmem:[%s204 + $0x430] sm:%s197]
                %475 = vst [vmem:[%s205 + $0x218] sm:%s197] %v474
                %v476 = vld [vmem:[%s204 + $0x438] sm:%s197]
                %477 = vst [vmem:[%s205 + $0x21c] sm:%s197] %v476
                %v478 = vld [vmem:[%s204 + $0x440] sm:%s197]
                %479 = vst [vmem:[%s205 + $0x220] sm:%s197] %v478
                %v480 = vld [vmem:[%s204 + $0x448] sm:%s197]
                %481 = vst [vmem:[%s205 + $0x224] sm:%s197] %v480
                %v482 = vld [vmem:[%s204 + $0x450] sm:%s197]
                %483 = vst [vmem:[%s205 + $0x228] sm:%s197] %v482
                %v484 = vld [vmem:[%s204 + $0x458] sm:%s197]
                %485 = vst [vmem:[%s205 + $0x22c] sm:%s197] %v484
                %v486 = vld [vmem:[%s204 + $0x460] sm:%s197]
                %487 = vst [vmem:[%s205 + $0x230] sm:%s197] %v486
                %v488 = vld [vmem:[%s204 + $0x468] sm:%s197]
                %489 = vst [vmem:[%s205 + $0x234] sm:%s197] %v488
                %v490 = vld [vmem:[%s204 + $0x470] sm:%s197]
                %491 = vst [vmem:[%s205 + $0x238] sm:%s197] %v490
                %v492 = vld [vmem:[%s204 + $0x478] sm:%s197]
                %493 = vst [vmem:[%s205 + $0x23c] sm:%s197] %v492
                %v494 = vld [vmem:[%s204 + $0x480] sm:%s197]
                %495 = vst [vmem:[%s205 + $0x240] sm:%s197] %v494
                %v496 = vld [vmem:[%s204 + $0x488] sm:%s197]
                %497 = vst [vmem:[%s205 + $0x244] sm:%s197] %v496
                %v498 = vld [vmem:[%s204 + $0x490] sm:%s197]
                %499 = vst [vmem:[%s205 + $0x248] sm:%s197] %v498
                %v500 = vld [vmem:[%s204 + $0x498] sm:%s197]
                %501 = vst [vmem:[%s205 + $0x24c] sm:%s197] %v500
                %v502 = vld [vmem:[%s204 + $0x4a0] sm:%s197]
                %503 = vst [vmem:[%s205 + $0x250] sm:%s197] %v502
                %v504 = vld [vmem:[%s204 + $0x4a8] sm:%s197]
                %505 = vst [vmem:[%s205 + $0x254] sm:%s197] %v504
                %v506 = vld [vmem:[%s204 + $0x4b0] sm:%s197]
                %507 = vst [vmem:[%s205 + $0x258] sm:%s197] %v506
                %v508 = vld [vmem:[%s204 + $0x4b8] sm:%s197]
                %509 = vst [vmem:[%s205 + $0x25c] sm:%s197] %v508
                %v510 = vld [vmem:[%s204 + $0x4c0] sm:%s197]
                %511 = vst [vmem:[%s205 + $0x260] sm:%s197] %v510
                %v512 = vld [vmem:[%s204 + $0x4c8] sm:%s197]
                %513 = vst [vmem:[%s205 + $0x264] sm:%s197] %v512
                %v514 = vld [vmem:[%s204 + $0x4d0] sm:%s197]
                %515 = vst [vmem:[%s205 + $0x268] sm:%s197] %v514
                %v516 = vld [vmem:[%s204 + $0x4d8] sm:%s197]
                %517 = vst [vmem:[%s205 + $0x26c] sm:%s197] %v516
                %v518 = vld [vmem:[%s204 + $0x4e0] sm:%s197]
                %519 = vst [vmem:[%s205 + $0x270] sm:%s197] %v518
                %v520 = vld [vmem:[%s204 + $0x4e8] sm:%s197]
                %521 = vst [vmem:[%s205 + $0x274] sm:%s197] %v520
                %v522 = vld [vmem:[%s204 + $0x4f0] sm:%s197]
                %523 = vst [vmem:[%s205 + $0x278] sm:%s197] %v522
                %v524 = vld [vmem:[%s204 + $0x4f8] sm:%s197]
                %525 = vst [vmem:[%s205 + $0x27c] sm:%s197] %v524
                %v526 = vld [vmem:[%s204 + $0x500] sm:%s197]
                %527 = vst [vmem:[%s205 + $0x280] sm:%s197] %v526
                %v528 = vld [vmem:[%s204 + $0x508] sm:%s197]
                %529 = vst [vmem:[%s205 + $0x284] sm:%s197] %v528
                %v530 = vld [vmem:[%s204 + $0x510] sm:%s197]
                %531 = vst [vmem:[%s205 + $0x288] sm:%s197] %v530
                %v532 = vld [vmem:[%s204 + $0x518] sm:%s197]
                %533 = vst [vmem:[%s205 + $0x28c] sm:%s197] %v532
                %v534 = vld [vmem:[%s204 + $0x520] sm:%s197]
                %535 = vst [vmem:[%s205 + $0x290] sm:%s197] %v534
                %v536 = vld [vmem:[%s204 + $0x528] sm:%s197]
                %537 = vst [vmem:[%s205 + $0x294] sm:%s197] %v536
                %v538 = vld [vmem:[%s204 + $0x530] sm:%s197]
                %539 = vst [vmem:[%s205 + $0x298] sm:%s197] %v538
                %v540 = vld [vmem:[%s204 + $0x538] sm:%s197]
                %541 = vst [vmem:[%s205 + $0x29c] sm:%s197] %v540
                %v542 = vld [vmem:[%s204 + $0x540] sm:%s197]
                %543 = vst [vmem:[%s205 + $0x2a0] sm:%s197] %v542
                %v544 = vld [vmem:[%s204 + $0x548] sm:%s197]
                %545 = vst [vmem:[%s205 + $0x2a4] sm:%s197] %v544
                %v546 = vld [vmem:[%s204 + $0x550] sm:%s197]
                %547 = vst [vmem:[%s205 + $0x2a8] sm:%s197] %v546
                %v548 = vld [vmem:[%s204 + $0x558] sm:%s197]
                %549 = vst [vmem:[%s205 + $0x2ac] sm:%s197] %v548
                %v550 = vld [vmem:[%s204 + $0x560] sm:%s197]
                %551 = vst [vmem:[%s205 + $0x2b0] sm:%s197] %v550
                %v552 = vld [vmem:[%s204 + $0x568] sm:%s197]
                %553 = vst [vmem:[%s205 + $0x2b4] sm:%s197] %v552
                %v554 = vld [vmem:[%s204 + $0x570] sm:%s197]
                %555 = vst [vmem:[%s205 + $0x2b8] sm:%s197] %v554
                %v556 = vld [vmem:[%s204 + $0x578] sm:%s197]
                %557 = vst [vmem:[%s205 + $0x2bc] sm:%s197] %v556
                %v558 = vld [vmem:[%s204 + $0x580] sm:%s197]
                %559 = vst [vmem:[%s205 + $0x2c0] sm:%s197] %v558
                %v560 = vld [vmem:[%s204 + $0x588] sm:%s197]
                %561 = vst [vmem:[%s205 + $0x2c4] sm:%s197] %v560
                %v562 = vld [vmem:[%s204 + $0x590] sm:%s197]
                %563 = vst [vmem:[%s205 + $0x2c8] sm:%s197] %v562
                %v564 = vld [vmem:[%s204 + $0x598] sm:%s197]
                %565 = vst [vmem:[%s205 + $0x2cc] sm:%s197] %v564
                %v566 = vld [vmem:[%s204 + $0x5a0] sm:%s197]
                %567 = vst [vmem:[%s205 + $0x2d0] sm:%s197] %v566
                %v568 = vld [vmem:[%s204 + $0x5a8] sm:%s197]
                %569 = vst [vmem:[%s205 + $0x2d4] sm:%s197] %v568
                %v570 = vld [vmem:[%s204 + $0x5b0] sm:%s197]
                %571 = vst [vmem:[%s205 + $0x2d8] sm:%s197] %v570
                %v572 = vld [vmem:[%s204 + $0x5b8] sm:%s197]
                %573 = vst [vmem:[%s205 + $0x2dc] sm:%s197] %v572
                %v574 = vld [vmem:[%s204 + $0x5c0] sm:%s197]
                %575 = vst [vmem:[%s205 + $0x2e0] sm:%s197] %v574
                %v576 = vld [vmem:[%s204 + $0x5c8] sm:%s197]
                %577 = vst [vmem:[%s205 + $0x2e4] sm:%s197] %v576
                %v578 = vld [vmem:[%s204 + $0x5d0] sm:%s197]
                %579 = vst [vmem:[%s205 + $0x2e8] sm:%s197] %v578
                %v580 = vld [vmem:[%s204 + $0x5d8] sm:%s197]
                %581 = vst [vmem:[%s205 + $0x2ec] sm:%s197] %v580
                %v582 = vld [vmem:[%s204 + $0x5e0] sm:%s197]
                %583 = vst [vmem:[%s205 + $0x2f0] sm:%s197] %v582
                %v584 = vld [vmem:[%s204 + $0x5e8] sm:%s197]
                %585 = vst [vmem:[%s205 + $0x2f4] sm:%s197] %v584
                %v586 = vld [vmem:[%s204 + $0x5f0] sm:%s197]
                %587 = vst [vmem:[%s205 + $0x2f8] sm:%s197] %v586
                %v588 = vld [vmem:[%s204 + $0x5f8] sm:%s197]
                %589 = vst [vmem:[%s205 + $0x2fc] sm:%s197] %v588
                %v590 = vld [vmem:[%s204 + $0x600] sm:%s197]
                %591 = vst [vmem:[%s205 + $0x300] sm:%s197] %v590
                %v592 = vld [vmem:[%s204 + $0x608] sm:%s197]
                %593 = vst [vmem:[%s205 + $0x304] sm:%s197] %v592
                %v594 = vld [vmem:[%s204 + $0x610] sm:%s197]
                %595 = vst [vmem:[%s205 + $0x308] sm:%s197] %v594
                %v596 = vld [vmem:[%s204 + $0x618] sm:%s197]
                %597 = vst [vmem:[%s205 + $0x30c] sm:%s197] %v596
                %v598 = vld [vmem:[%s204 + $0x620] sm:%s197]
                %599 = vst [vmem:[%s205 + $0x310] sm:%s197] %v598
                %v600 = vld [vmem:[%s204 + $0x628] sm:%s197]
                %601 = vst [vmem:[%s205 + $0x314] sm:%s197] %v600
                %v602 = vld [vmem:[%s204 + $0x630] sm:%s197]
                %603 = vst [vmem:[%s205 + $0x318] sm:%s197] %v602
                %v604 = vld [vmem:[%s204 + $0x638] sm:%s197]
                %605 = vst [vmem:[%s205 + $0x31c] sm:%s197] %v604
                %v606 = vld [vmem:[%s204 + $0x640] sm:%s197]
                %607 = vst [vmem:[%s205 + $0x320] sm:%s197] %v606
                %v608 = vld [vmem:[%s204 + $0x648] sm:%s197]
                %609 = vst [vmem:[%s205 + $0x324] sm:%s197] %v608
                %v610 = vld [vmem:[%s204 + $0x650] sm:%s197]
                %611 = vst [vmem:[%s205 + $0x328] sm:%s197] %v610
                %v612 = vld [vmem:[%s204 + $0x658] sm:%s197]
                %613 = vst [vmem:[%s205 + $0x32c] sm:%s197] %v612
                %v614 = vld [vmem:[%s204 + $0x660] sm:%s197]
                %615 = vst [vmem:[%s205 + $0x330] sm:%s197] %v614
                %v616 = vld [vmem:[%s204 + $0x668] sm:%s197]
                %617 = vst [vmem:[%s205 + $0x334] sm:%s197] %v616
                %v618 = vld [vmem:[%s204 + $0x670] sm:%s197]
                %619 = vst [vmem:[%s205 + $0x338] sm:%s197] %v618
                %v620 = vld [vmem:[%s204 + $0x678] sm:%s197]
                %621 = vst [vmem:[%s205 + $0x33c] sm:%s197] %v620
                %v622 = vld [vmem:[%s204 + $0x680] sm:%s197]
                %623 = vst [vmem:[%s205 + $0x340] sm:%s197] %v622
                %v624 = vld [vmem:[%s204 + $0x688] sm:%s197]
                %625 = vst [vmem:[%s205 + $0x344] sm:%s197] %v624
                %v626 = vld [vmem:[%s204 + $0x690] sm:%s197]
                %627 = vst [vmem:[%s205 + $0x348] sm:%s197] %v626
                %v628 = vld [vmem:[%s204 + $0x698] sm:%s197]
                %629 = vst [vmem:[%s205 + $0x34c] sm:%s197] %v628
                %v630 = vld [vmem:[%s204 + $0x6a0] sm:%s197]
                %631 = vst [vmem:[%s205 + $0x350] sm:%s197] %v630
                %v632 = vld [vmem:[%s204 + $0x6a8] sm:%s197]
                %633 = vst [vmem:[%s205 + $0x354] sm:%s197] %v632
                %v634 = vld [vmem:[%s204 + $0x6b0] sm:%s197]
                %635 = vst [vmem:[%s205 + $0x358] sm:%s197] %v634
                %v636 = vld [vmem:[%s204 + $0x6b8] sm:%s197]
                %637 = vst [vmem:[%s205 + $0x35c] sm:%s197] %v636
                %v638 = vld [vmem:[%s204 + $0x6c0] sm:%s197]
                %639 = vst [vmem:[%s205 + $0x360] sm:%s197] %v638
                %v640 = vld [vmem:[%s204 + $0x6c8] sm:%s197]
                %641 = vst [vmem:[%s205 + $0x364] sm:%s197] %v640
                %v642 = vld [vmem:[%s204 + $0x6d0] sm:%s197]
                %643 = vst [vmem:[%s205 + $0x368] sm:%s197] %v642
                %v644 = vld [vmem:[%s204 + $0x6d8] sm:%s197]
                %645 = vst [vmem:[%s205 + $0x36c] sm:%s197] %v644
                %v646 = vld [vmem:[%s204 + $0x6e0] sm:%s197]
                %647 = vst [vmem:[%s205 + $0x370] sm:%s197] %v646
                %v648 = vld [vmem:[%s204 + $0x6e8] sm:%s197]
                %649 = vst [vmem:[%s205 + $0x374] sm:%s197] %v648
                %v650 = vld [vmem:[%s204 + $0x6f0] sm:%s197]
                %651 = vst [vmem:[%s205 + $0x378] sm:%s197] %v650
                %v652 = vld [vmem:[%s204 + $0x6f8] sm:%s197]
                %653 = vst [vmem:[%s205 + $0x37c] sm:%s197] %v652
                %v654 = vld [vmem:[%s204 + $0x700] sm:%s197]
                %655 = vst [vmem:[%s205 + $0x380] sm:%s197] %v654
                %v656 = vld [vmem:[%s204 + $0x708] sm:%s197]
                %657 = vst [vmem:[%s205 + $0x384] sm:%s197] %v656
                %v658 = vld [vmem:[%s204 + $0x710] sm:%s197]
                %659 = vst [vmem:[%s205 + $0x388] sm:%s197] %v658
                %v660 = vld [vmem:[%s204 + $0x718] sm:%s197]
                %661 = vst [vmem:[%s205 + $0x38c] sm:%s197] %v660
                %v662 = vld [vmem:[%s204 + $0x720] sm:%s197]
                %663 = vst [vmem:[%s205 + $0x390] sm:%s197] %v662
                %v664 = vld [vmem:[%s204 + $0x728] sm:%s197]
                %665 = vst [vmem:[%s205 + $0x394] sm:%s197] %v664
                %v666 = vld [vmem:[%s204 + $0x730] sm:%s197]
                %667 = vst [vmem:[%s205 + $0x398] sm:%s197] %v666
                %v668 = vld [vmem:[%s204 + $0x738] sm:%s197]
                %669 = vst [vmem:[%s205 + $0x39c] sm:%s197] %v668
                %v670 = vld [vmem:[%s204 + $0x740] sm:%s197]
                %671 = vst [vmem:[%s205 + $0x3a0] sm:%s197] %v670
                %v672 = vld [vmem:[%s204 + $0x748] sm:%s197]
                %673 = vst [vmem:[%s205 + $0x3a4] sm:%s197] %v672
                %v674 = vld [vmem:[%s204 + $0x750] sm:%s197]
                %675 = vst [vmem:[%s205 + $0x3a8] sm:%s197] %v674
                %v676 = vld [vmem:[%s204 + $0x758] sm:%s197]
                %677 = vst [vmem:[%s205 + $0x3ac] sm:%s197] %v676
                %v678 = vld [vmem:[%s204 + $0x760] sm:%s197]
                %679 = vst [vmem:[%s205 + $0x3b0] sm:%s197] %v678
                %v680 = vld [vmem:[%s204 + $0x768] sm:%s197]
                %681 = vst [vmem:[%s205 + $0x3b4] sm:%s197] %v680
                %v682 = vld [vmem:[%s204 + $0x770] sm:%s197]
                %683 = vst [vmem:[%s205 + $0x3b8] sm:%s197] %v682
                %v684 = vld [vmem:[%s204 + $0x778] sm:%s197]
                %685 = vst [vmem:[%s205 + $0x3bc] sm:%s197] %v684
                %v686 = vld [vmem:[%s204 + $0x780] sm:%s197]
                %687 = vst [vmem:[%s205 + $0x3c0] sm:%s197] %v686
                %v688 = vld [vmem:[%s204 + $0x788] sm:%s197]
                %689 = vst [vmem:[%s205 + $0x3c4] sm:%s197] %v688
                %v690 = vld [vmem:[%s204 + $0x790] sm:%s197]
                %691 = vst [vmem:[%s205 + $0x3c8] sm:%s197] %v690
                %v692 = vld [vmem:[%s204 + $0x798] sm:%s197]
                %693 = vst [vmem:[%s205 + $0x3cc] sm:%s197] %v692
                %v694 = vld [vmem:[%s204 + $0x7a0] sm:%s197]
                %695 = vst [vmem:[%s205 + $0x3d0] sm:%s197] %v694
                %v696 = vld [vmem:[%s204 + $0x7a8] sm:%s197]
                %697 = vst [vmem:[%s205 + $0x3d4] sm:%s197] %v696
                %v698 = vld [vmem:[%s204 + $0x7b0] sm:%s197]
                %699 = vst [vmem:[%s205 + $0x3d8] sm:%s197] %v698
                %v700 = vld [vmem:[%s204 + $0x7b8] sm:%s197]
                %701 = vst [vmem:[%s205 + $0x3dc] sm:%s197] %v700
                %v702 = vld [vmem:[%s204 + $0x7c0] sm:%s197]
                %703 = vst [vmem:[%s205 + $0x3e0] sm:%s197] %v702
                %v704 = vld [vmem:[%s204 + $0x7c8] sm:%s197]
                %705 = vst [vmem:[%s205 + $0x3e4] sm:%s197] %v704
                %v706 = vld [vmem:[%s204 + $0x7d0] sm:%s197]
                %707 = vst [vmem:[%s205 + $0x3e8] sm:%s197] %v706
                %v708 = vld [vmem:[%s204 + $0x7d8] sm:%s197]
                %709 = vst [vmem:[%s205 + $0x3ec] sm:%s197] %v708
                %v710 = vld [vmem:[%s204 + $0x7e0] sm:%s197]
                %711 = vst [vmem:[%s205 + $0x3f0] sm:%s197] %v710
                %v712 = vld [vmem:[%s204 + $0x7e8] sm:%s197]
                %713 = vst [vmem:[%s205 + $0x3f4] sm:%s197] %v712
                %v714 = vld [vmem:[%s204 + $0x7f0] sm:%s197]
                %715 = vst [vmem:[%s205 + $0x3f8] sm:%s197] %v714
                %v716 = vld [vmem:[%s204 + $0x7f8] sm:%s197]
                %717 = vst [vmem:[%s205 + $0x3fc] sm:%s197] %v716
              $region41: #{_lambda_.12} parent=35 // loop_footer
                %s203 = sadd.s32 1, %s199
              $region42: #{_lambda_.12} parent=35 // loop_footer_branch
                %198 = sbr.rel target = $region38
              $region43: #{_lambda_.12} parent=35 // loop_exit
                _
            $region36: #{_lambda_.12} parent=27 // pred_fallthru
              _
          $region28: #{_lambda_.12} parent=23 // pred_fallthru
            _
          %1250 = vnop
        $region24: #{_lambda_.12} parent=19 // pred_fallthru
          _
        // Predicated region
        $region62: #{_lambda_.12} parent=19 // pred_check
          %p1251 = pneg %p94
        $region63: #{_lambda_.12} parent=19 // pred_check_branch
          %1253 = sbr.rel (%p1251) target = $region65
        $region64: #{_lambda_.12} parent=19 // pred_region
          %p1254 = scmp.lt.s32.totalorder %s18, 1
          %s1255 = scalar_select %p1254, %s18, 1
          %s1256 = scalar_lea.vmem %s2, %s1255
        $region65: #{_lambda_.12} parent=19 // pred_fallthru
          _
        // Predicated region
        $region66: #{_lambda_.12} parent=19 // pred_check
          %p1257 = pneg %p120
        $region67: #{_lambda_.12} parent=19 // pred_check_branch
          %1259 = sbr.rel (%p1257) target = $region69
        $region68: #{_lambda_.12} parent=19 // pred_region
          %p1260 = scmp.lt.s32.totalorder %s18, 1
          %s1261 = scalar_select %p1260, %s18, 1
          %s1262 = scalar_lea.vmem %s3, %s1261
        $region69: #{_lambda_.12} parent=19 // pred_fallthru
          _
      $region20: #{_lambda_.12} parent=5 // pred_fallthru
        _
      %p1263 = scmp.le.s32.totalorder 1, %s10
      %p1264 = scmp.lt.s32.totalorder %s10, 3
      %p1265 = pnand %p1263, %p1264
      %p1266 = pneg %p1265
      // Predicated region
      $region70: #{_lambda_.12} parent=5 // pred_check
        _
      $region71: #{_lambda_.12} parent=5 // pred_check_branch
        %1268 = sbr.rel (%p1265) target = $region73
      $region72: #{_lambda_.12} parent=5 // pred_region
        %s1269 = ssub.s32 %s10, 1
        %s1270 = sand.u32 %s61, 1
        %s1271 = sand.u32 %s61, 1
        %s1272 = smul.addr %s1271, 1024
        %s1273 = scalar_lea.vmem [#allocation2], %s1272
        // Predicated region
        $region74: #{_lambda_.12} parent=72 // pred_check
          %p1274 = pneg %p74
        $region75: #{_lambda_.12} parent=72 // pred_check_branch
          %1276 = sbr.rel (%p1274) target = $region77
        $region76: #{_lambda_.12} parent=72 // pred_region
          _
        $region77: #{_lambda_.12} parent=72 // pred_fallthru
          _
        %p1277 = scmp.lt.s32.totalorder %s19, 0
        %s1278 = scalar_select %p1277, %s19, 0
        %s1279 = smul.addr %s1278, 16
        %s1280 = smul.addr %s1279, 4
        %s1281 = scalar_lea.vmem %s0, %s1280
        %p1282 = pneg %p48
        %p1283 = pneg %p45
        %s1284 = sand.u32 %s61, 1
        %s1285 = sand.u32 %s61, 1
        %s1286 = smul.addr %s1285, 1024
        %s1287 = scalar_lea.vmem [#allocation2], %s1286
        %p1288 = pneg %p74
        %p1289 = pneg %p71
        %p1290 = scmp.lt.s32.totalorder %s20, 1
        %s1291 = scalar_select %p1290, %s20, 1
        %s1292 = scalar_lea.vmem %s2, %s1291
        %p1293 = pneg %p100
        %p1294 = pneg %p97
        %p1295 = scmp.lt.s32.totalorder %s20, 1
        %s1296 = scalar_select %p1295, %s20, 1
        %s1297 = scalar_lea.vmem %s3, %s1296
        %p1298 = pneg %p126
        %p1299 = pneg %p123
        %p1300 = pneg %p154
        %p1301 = pneg %p151
        %p1302 = scmp.lt.s32.totalorder %s19, 0
        %s1303 = scalar_select %p1302, %s19, 0
        %p1304 = scmp.lt.s32.totalorder %s20, 1
        %s1305 = scalar_select %p1304, %s20, 1
        %s1306 = smul.addr %s1303, 2
        %s1307 = sadd.s32 %s1305, %s1306
        %s1308 = smul.addr %s1307, 4
        %s1309 = scalar_lea.vmem %s4, %s1308
        %p1310 = scmp.lt.s32.totalorder %s19, 0
        %s1311 = scalar_select %p1310, %s19, 0
        %s1312 = smul.addr %s1311, 16
        %s1313 = smul.addr %s1312, 4
        %s1314 = scalar_lea.vmem %s0, %s1313
        %p1315 = scmp.lt.s32.totalorder %s20, 1
        %s1316 = scalar_select %p1315, %s20, 1
        %s1317 = scalar_lea.vmem %s2, %s1316
        %p1318 = scmp.lt.s32.totalorder %s20, 1
        %s1319 = scalar_select %p1318, %s20, 1
        %s1320 = scalar_lea.vmem %s3, %s1319
        %p1321 = scmp.lt.s32.totalorder %s19, 0
        %s1322 = scalar_select %p1321, %s19, 0
        %p1323 = scmp.lt.s32.totalorder %s20, 1
        %s1324 = scalar_select %p1323, %s20, 1
        %s1325 = smul.addr %s1322, 2
        %s1326 = sadd.s32 %s1324, %s1325
        %s1327 = smul.addr %s1326, 4
        %s1328 = scalar_lea.vmem %s4, %s1327
        %v1330 = vld [vmem:[%s1314] sm:$0xff]
        %v1331 = vld [vmem:[%s1314 + $0x8] sm:$0xff]
        %v1332 = vld [vmem:[%s1314 + $0x10] sm:$0xff]
        %v1333 = vld [vmem:[%s1314 + $0x18] sm:$0xff]
        %v1334 = vld [vmem:[%s1314 + $0x20] sm:$0xff]
        %v1335 = vld [vmem:[%s1314 + $0x28] sm:$0xff]
        %v1336 = vld [vmem:[%s1314 + $0x30] sm:$0xff]
        %v1337 = vld [vmem:[%s1314 + $0x38] sm:$0xff]
        %v1338 = vld [vmem:[%s1273] sm:$0xf]
        %v1339 = vld [vmem:[%s1273 + $0x4] sm:$0xf]
        %v1340 = vld [vmem:[%s1273 + $0x8] sm:$0xf]
        %v1341 = vld [vmem:[%s1273 + $0xc] sm:$0xf]
        %v1342 = vld [vmem:[%s1273 + $0x10] sm:$0xf]
        %v1343 = vld [vmem:[%s1273 + $0x14] sm:$0xf]
        %v1344 = vld [vmem:[%s1273 + $0x18] sm:$0xf]
        %v1345 = vld [vmem:[%s1273 + $0x1c] sm:$0xf]
        %v1346 = vld [vmem:[%s1273 + $0x20] sm:$0xf]
        %v1347 = vld [vmem:[%s1273 + $0x24] sm:$0xf]
        %v1348 = vld [vmem:[%s1273 + $0x28] sm:$0xf]
        %v1349 = vld [vmem:[%s1273 + $0x2c] sm:$0xf]
        %v1350 = vld [vmem:[%s1273 + $0x30] sm:$0xf]
        %v1351 = vld [vmem:[%s1273 + $0x34] sm:$0xf]
        %v1352 = vld [vmem:[%s1273 + $0x38] sm:$0xf]
        %v1353 = vld [vmem:[%s1273 + $0x3c] sm:$0xf]
        %v1354 = vld [vmem:[%s1273 + $0x40] sm:$0xf]
        %v1355 = vld [vmem:[%s1273 + $0x44] sm:$0xf]
        %v1356 = vld [vmem:[%s1273 + $0x48] sm:$0xf]
        %v1357 = vld [vmem:[%s1273 + $0x4c] sm:$0xf]
        %v1358 = vld [vmem:[%s1273 + $0x50] sm:$0xf]
        %v1359 = vld [vmem:[%s1273 + $0x54] sm:$0xf]
        %v1360 = vld [vmem:[%s1273 + $0x58] sm:$0xf]
        %v1361 = vld [vmem:[%s1273 + $0x5c] sm:$0xf]
        %v1362 = vld [vmem:[%s1273 + $0x60] sm:$0xf]
        %v1363 = vld [vmem:[%s1273 + $0x64] sm:$0xf]
        %v1364 = vld [vmem:[%s1273 + $0x68] sm:$0xf]
        %v1365 = vld [vmem:[%s1273 + $0x6c] sm:$0xf]
        %v1366 = vld [vmem:[%s1273 + $0x70] sm:$0xf]
        %v1367 = vld [vmem:[%s1273 + $0x74] sm:$0xf]
        %v1368 = vld [vmem:[%s1273 + $0x78] sm:$0xf]
        %v1369 = vld [vmem:[%s1273 + $0x7c] sm:$0xf]
        %v1370 = vld [vmem:[%s1273 + $0x80] sm:$0xf]
        %v1371 = vld [vmem:[%s1273 + $0x84] sm:$0xf]
        %v1372 = vld [vmem:[%s1273 + $0x88] sm:$0xf]
        %v1373 = vld [vmem:[%s1273 + $0x8c] sm:$0xf]
        %v1374 = vld [vmem:[%s1273 + $0x90] sm:$0xf]
        %v1375 = vld [vmem:[%s1273 + $0x94] sm:$0xf]
        %v1376 = vld [vmem:[%s1273 + $0x98] sm:$0xf]
        %v1377 = vld [vmem:[%s1273 + $0x9c] sm:$0xf]
        %v1378 = vld [vmem:[%s1273 + $0xa0] sm:$0xf]
        %v1379 = vld [vmem:[%s1273 + $0xa4] sm:$0xf]
        %v1380 = vld [vmem:[%s1273 + $0xa8] sm:$0xf]
        %v1381 = vld [vmem:[%s1273 + $0xac] sm:$0xf]
        %v1382 = vld [vmem:[%s1273 + $0xb0] sm:$0xf]
        %v1383 = vld [vmem:[%s1273 + $0xb4] sm:$0xf]
        %v1384 = vld [vmem:[%s1273 + $0xb8] sm:$0xf]
        %v1385 = vld [vmem:[%s1273 + $0xbc] sm:$0xf]
        %v1386 = vld [vmem:[%s1273 + $0xc0] sm:$0xf]
        %v1387 = vld [vmem:[%s1273 + $0xc4] sm:$0xf]
        %v1388 = vld [vmem:[%s1273 + $0xc8] sm:$0xf]
        %v1389 = vld [vmem:[%s1273 + $0xcc] sm:$0xf]
        %v1390 = vld [vmem:[%s1273 + $0xd0] sm:$0xf]
        %v1391 = vld [vmem:[%s1273 + $0xd4] sm:$0xf]
        %v1392 = vld [vmem:[%s1273 + $0xd8] sm:$0xf]
        %v1393 = vld [vmem:[%s1273 + $0xdc] sm:$0xf]
        %v1394 = vld [vmem:[%s1273 + $0xe0] sm:$0xf]
        %v1395 = vld [vmem:[%s1273 + $0xe4] sm:$0xf]
        %v1396 = vld [vmem:[%s1273 + $0xe8] sm:$0xf]
        %v1397 = vld [vmem:[%s1273 + $0xec] sm:$0xf]
        %v1398 = vld [vmem:[%s1273 + $0xf0] sm:$0xf]
        %v1399 = vld [vmem:[%s1273 + $0xf4] sm:$0xf]
        %v1400 = vld [vmem:[%s1273 + $0xf8] sm:$0xf]
        %v1401 = vld [vmem:[%s1273 + $0xfc] sm:$0xf]
        %v1402 = vld [vmem:[%s1273 + $0x100] sm:$0xf]
        %v1403 = vld [vmem:[%s1273 + $0x104] sm:$0xf]
        %v1404 = vld [vmem:[%s1273 + $0x108] sm:$0xf]
        %v1405 = vld [vmem:[%s1273 + $0x10c] sm:$0xf]
        %v1406 = vld [vmem:[%s1273 + $0x110] sm:$0xf]
        %v1407 = vld [vmem:[%s1273 + $0x114] sm:$0xf]
        %v1408 = vld [vmem:[%s1273 + $0x118] sm:$0xf]
        %v1409 = vld [vmem:[%s1273 + $0x11c] sm:$0xf]
        %v1410 = vld [vmem:[%s1273 + $0x120] sm:$0xf]
        %v1411 = vld [vmem:[%s1273 + $0x124] sm:$0xf]
        %v1412 = vld [vmem:[%s1273 + $0x128] sm:$0xf]
        %v1413 = vld [vmem:[%s1273 + $0x12c] sm:$0xf]
        %v1414 = vld [vmem:[%s1273 + $0x130] sm:$0xf]
        %v1415 = vld [vmem:[%s1273 + $0x134] sm:$0xf]
        %v1416 = vld [vmem:[%s1273 + $0x138] sm:$0xf]
        %v1417 = vld [vmem:[%s1273 + $0x13c] sm:$0xf]
        %v1418 = vld [vmem:[%s1273 + $0x140] sm:$0xf]
        %v1419 = vld [vmem:[%s1273 + $0x144] sm:$0xf]
        %v1420 = vld [vmem:[%s1273 + $0x148] sm:$0xf]
        %v1421 = vld [vmem:[%s1273 + $0x14c] sm:$0xf]
        %v1422 = vld [vmem:[%s1273 + $0x150] sm:$0xf]
        %v1423 = vld [vmem:[%s1273 + $0x154] sm:$0xf]
        %v1424 = vld [vmem:[%s1273 + $0x158] sm:$0xf]
        %v1425 = vld [vmem:[%s1273 + $0x15c] sm:$0xf]
        %v1426 = vld [vmem:[%s1273 + $0x160] sm:$0xf]
        %v1427 = vld [vmem:[%s1273 + $0x164] sm:$0xf]
        %v1428 = vld [vmem:[%s1273 + $0x168] sm:$0xf]
        %v1429 = vld [vmem:[%s1273 + $0x16c] sm:$0xf]
        %v1430 = vld [vmem:[%s1273 + $0x170] sm:$0xf]
        %v1431 = vld [vmem:[%s1273 + $0x174] sm:$0xf]
        %v1432 = vld [vmem:[%s1273 + $0x178] sm:$0xf]
        %v1433 = vld [vmem:[%s1273 + $0x17c] sm:$0xf]
        %v1434 = vld [vmem:[%s1273 + $0x180] sm:$0xf]
        %v1435 = vld [vmem:[%s1273 + $0x184] sm:$0xf]
        %v1436 = vld [vmem:[%s1273 + $0x188] sm:$0xf]
        %v1437 = vld [vmem:[%s1273 + $0x18c] sm:$0xf]
        %v1438 = vld [vmem:[%s1273 + $0x190] sm:$0xf]
        %v1439 = vld [vmem:[%s1273 + $0x194] sm:$0xf]
        %v1440 = vld [vmem:[%s1273 + $0x198] sm:$0xf]
        %v1441 = vld [vmem:[%s1273 + $0x19c] sm:$0xf]
        %v1442 = vld [vmem:[%s1273 + $0x1a0] sm:$0xf]
        %v1443 = vld [vmem:[%s1273 + $0x1a4] sm:$0xf]
        %v1444 = vld [vmem:[%s1273 + $0x1a8] sm:$0xf]
        %v1445 = vld [vmem:[%s1273 + $0x1ac] sm:$0xf]
        %v1446 = vld [vmem:[%s1273 + $0x1b0] sm:$0xf]
        %v1447 = vld [vmem:[%s1273 + $0x1b4] sm:$0xf]
        %v1448 = vld [vmem:[%s1273 + $0x1b8] sm:$0xf]
        %v1449 = vld [vmem:[%s1273 + $0x1bc] sm:$0xf]
        %v1450 = vld [vmem:[%s1273 + $0x1c0] sm:$0xf]
        %v1451 = vld [vmem:[%s1273 + $0x1c4] sm:$0xf]
        %v1452 = vld [vmem:[%s1273 + $0x1c8] sm:$0xf]
        %v1453 = vld [vmem:[%s1273 + $0x1cc] sm:$0xf]
        %v1454 = vld [vmem:[%s1273 + $0x1d0] sm:$0xf]
        %v1455 = vld [vmem:[%s1273 + $0x1d4] sm:$0xf]
        %v1456 = vld [vmem:[%s1273 + $0x1d8] sm:$0xf]
        %v1457 = vld [vmem:[%s1273 + $0x1dc] sm:$0xf]
        %v1458 = vld [vmem:[%s1273 + $0x1e0] sm:$0xf]
        %v1459 = vld [vmem:[%s1273 + $0x1e4] sm:$0xf]
        %v1460 = vld [vmem:[%s1273 + $0x1e8] sm:$0xf]
        %v1461 = vld [vmem:[%s1273 + $0x1ec] sm:$0xf]
        %v1462 = vld [vmem:[%s1273 + $0x1f0] sm:$0xf]
        %v1463 = vld [vmem:[%s1273 + $0x1f4] sm:$0xf]
        %v1464 = vld [vmem:[%s1273 + $0x1f8] sm:$0xf]
        %v1465 = vld [vmem:[%s1273 + $0x1fc] sm:$0xf]
        %v1466 = vld [vmem:[%s1273 + $0x200] sm:$0xf]
        %v1467 = vld [vmem:[%s1273 + $0x204] sm:$0xf]
        %v1468 = vld [vmem:[%s1273 + $0x208] sm:$0xf]
        %v1469 = vld [vmem:[%s1273 + $0x20c] sm:$0xf]
        %v1470 = vld [vmem:[%s1273 + $0x210] sm:$0xf]
        %v1471 = vld [vmem:[%s1273 + $0x214] sm:$0xf]
        %v1472 = vld [vmem:[%s1273 + $0x218] sm:$0xf]
        %v1473 = vld [vmem:[%s1273 + $0x21c] sm:$0xf]
        %v1474 = vld [vmem:[%s1273 + $0x220] sm:$0xf]
        %v1475 = vld [vmem:[%s1273 + $0x224] sm:$0xf]
        %v1476 = vld [vmem:[%s1273 + $0x228] sm:$0xf]
        %v1477 = vld [vmem:[%s1273 + $0x22c] sm:$0xf]
        %v1478 = vld [vmem:[%s1273 + $0x230] sm:$0xf]
        %v1479 = vld [vmem:[%s1273 + $0x234] sm:$0xf]
        %v1480 = vld [vmem:[%s1273 + $0x238] sm:$0xf]
        %v1481 = vld [vmem:[%s1273 + $0x23c] sm:$0xf]
        %v1482 = vld [vmem:[%s1273 + $0x240] sm:$0xf]
        %v1483 = vld [vmem:[%s1273 + $0x244] sm:$0xf]
        %v1484 = vld [vmem:[%s1273 + $0x248] sm:$0xf]
        %v1485 = vld [vmem:[%s1273 + $0x24c] sm:$0xf]
        %v1486 = vld [vmem:[%s1273 + $0x250] sm:$0xf]
        %v1487 = vld [vmem:[%s1273 + $0x254] sm:$0xf]
        %v1488 = vld [vmem:[%s1273 + $0x258] sm:$0xf]
        %v1489 = vld [vmem:[%s1273 + $0x25c] sm:$0xf]
        %v1490 = vld [vmem:[%s1273 + $0x260] sm:$0xf]
        %v1491 = vld [vmem:[%s1273 + $0x264] sm:$0xf]
        %v1492 = vld [vmem:[%s1273 + $0x268] sm:$0xf]
        %v1493 = vld [vmem:[%s1273 + $0x26c] sm:$0xf]
        %v1494 = vld [vmem:[%s1273 + $0x270] sm:$0xf]
        %v1495 = vld [vmem:[%s1273 + $0x274] sm:$0xf]
        %v1496 = vld [vmem:[%s1273 + $0x278] sm:$0xf]
        %v1497 = vld [vmem:[%s1273 + $0x27c] sm:$0xf]
        %v1498 = vld [vmem:[%s1273 + $0x280] sm:$0xf]
        %v1499 = vld [vmem:[%s1273 + $0x284] sm:$0xf]
        %v1500 = vld [vmem:[%s1273 + $0x288] sm:$0xf]
        %v1501 = vld [vmem:[%s1273 + $0x28c] sm:$0xf]
        %v1502 = vld [vmem:[%s1273 + $0x290] sm:$0xf]
        %v1503 = vld [vmem:[%s1273 + $0x294] sm:$0xf]
        %v1504 = vld [vmem:[%s1273 + $0x298] sm:$0xf]
        %v1505 = vld [vmem:[%s1273 + $0x29c] sm:$0xf]
        %v1506 = vld [vmem:[%s1273 + $0x2a0] sm:$0xf]
        %v1507 = vld [vmem:[%s1273 + $0x2a4] sm:$0xf]
        %v1508 = vld [vmem:[%s1273 + $0x2a8] sm:$0xf]
        %v1509 = vld [vmem:[%s1273 + $0x2ac] sm:$0xf]
        %v1510 = vld [vmem:[%s1273 + $0x2b0] sm:$0xf]
        %v1511 = vld [vmem:[%s1273 + $0x2b4] sm:$0xf]
        %v1512 = vld [vmem:[%s1273 + $0x2b8] sm:$0xf]
        %v1513 = vld [vmem:[%s1273 + $0x2bc] sm:$0xf]
        %v1514 = vld [vmem:[%s1273 + $0x2c0] sm:$0xf]
        %v1515 = vld [vmem:[%s1273 + $0x2c4] sm:$0xf]
        %v1516 = vld [vmem:[%s1273 + $0x2c8] sm:$0xf]
        %v1517 = vld [vmem:[%s1273 + $0x2cc] sm:$0xf]
        %v1518 = vld [vmem:[%s1273 + $0x2d0] sm:$0xf]
        %v1519 = vld [vmem:[%s1273 + $0x2d4] sm:$0xf]
        %v1520 = vld [vmem:[%s1273 + $0x2d8] sm:$0xf]
        %v1521 = vld [vmem:[%s1273 + $0x2dc] sm:$0xf]
        %v1522 = vld [vmem:[%s1273 + $0x2e0] sm:$0xf]
        %v1523 = vld [vmem:[%s1273 + $0x2e4] sm:$0xf]
        %v1524 = vld [vmem:[%s1273 + $0x2e8] sm:$0xf]
        %v1525 = vld [vmem:[%s1273 + $0x2ec] sm:$0xf]
        %v1526 = vld [vmem:[%s1273 + $0x2f0] sm:$0xf]
        %v1527 = vld [vmem:[%s1273 + $0x2f4] sm:$0xf]
        %v1528 = vld [vmem:[%s1273 + $0x2f8] sm:$0xf]
        %v1529 = vld [vmem:[%s1273 + $0x2fc] sm:$0xf]
        %v1530 = vld [vmem:[%s1273 + $0x300] sm:$0xf]
        %v1531 = vld [vmem:[%s1273 + $0x304] sm:$0xf]
        %v1532 = vld [vmem:[%s1273 + $0x308] sm:$0xf]
        %v1533 = vld [vmem:[%s1273 + $0x30c] sm:$0xf]
        %v1534 = vld [vmem:[%s1273 + $0x310] sm:$0xf]
        %v1535 = vld [vmem:[%s1273 + $0x314] sm:$0xf]
        %v1536 = vld [vmem:[%s1273 + $0x318] sm:$0xf]
        %v1537 = vld [vmem:[%s1273 + $0x31c] sm:$0xf]
        %v1538 = vld [vmem:[%s1273 + $0x320] sm:$0xf]
        %v1539 = vld [vmem:[%s1273 + $0x324] sm:$0xf]
        %v1540 = vld [vmem:[%s1273 + $0x328] sm:$0xf]
        %v1541 = vld [vmem:[%s1273 + $0x32c] sm:$0xf]
        %v1542 = vld [vmem:[%s1273 + $0x330] sm:$0xf]
        %v1543 = vld [vmem:[%s1273 + $0x334] sm:$0xf]
        %v1544 = vld [vmem:[%s1273 + $0x338] sm:$0xf]
        %v1545 = vld [vmem:[%s1273 + $0x33c] sm:$0xf]
        %v1546 = vld [vmem:[%s1273 + $0x340] sm:$0xf]
        %v1547 = vld [vmem:[%s1273 + $0x344] sm:$0xf]
        %v1548 = vld [vmem:[%s1273 + $0x348] sm:$0xf]
        %v1549 = vld [vmem:[%s1273 + $0x34c] sm:$0xf]
        %v1550 = vld [vmem:[%s1273 + $0x350] sm:$0xf]
        %v1551 = vld [vmem:[%s1273 + $0x354] sm:$0xf]
        %v1552 = vld [vmem:[%s1273 + $0x358] sm:$0xf]
        %v1553 = vld [vmem:[%s1273 + $0x35c] sm:$0xf]
        %v1554 = vld [vmem:[%s1273 + $0x360] sm:$0xf]
        %v1555 = vld [vmem:[%s1273 + $0x364] sm:$0xf]
        %v1556 = vld [vmem:[%s1273 + $0x368] sm:$0xf]
        %v1557 = vld [vmem:[%s1273 + $0x36c] sm:$0xf]
        %v1558 = vld [vmem:[%s1273 + $0x370] sm:$0xf]
        %v1559 = vld [vmem:[%s1273 + $0x374] sm:$0xf]
        %v1560 = vld [vmem:[%s1273 + $0x378] sm:$0xf]
        %v1561 = vld [vmem:[%s1273 + $0x37c] sm:$0xf]
        %v1562 = vld [vmem:[%s1273 + $0x380] sm:$0xf]
        %v1563 = vld [vmem:[%s1273 + $0x384] sm:$0xf]
        %v1564 = vld [vmem:[%s1273 + $0x388] sm:$0xf]
        %v1565 = vld [vmem:[%s1273 + $0x38c] sm:$0xf]
        %v1566 = vld [vmem:[%s1273 + $0x390] sm:$0xf]
        %v1567 = vld [vmem:[%s1273 + $0x394] sm:$0xf]
        %v1568 = vld [vmem:[%s1273 + $0x398] sm:$0xf]
        %v1569 = vld [vmem:[%s1273 + $0x39c] sm:$0xf]
        %v1570 = vld [vmem:[%s1273 + $0x3a0] sm:$0xf]
        %v1571 = vld [vmem:[%s1273 + $0x3a4] sm:$0xf]
        %v1572 = vld [vmem:[%s1273 + $0x3a8] sm:$0xf]
        %v1573 = vld [vmem:[%s1273 + $0x3ac] sm:$0xf]
        %v1574 = vld [vmem:[%s1273 + $0x3b0] sm:$0xf]
        %v1575 = vld [vmem:[%s1273 + $0x3b4] sm:$0xf]
        %v1576 = vld [vmem:[%s1273 + $0x3b8] sm:$0xf]
        %v1577 = vld [vmem:[%s1273 + $0x3bc] sm:$0xf]
        %v1578 = vld [vmem:[%s1273 + $0x3c0] sm:$0xf]
        %v1579 = vld [vmem:[%s1273 + $0x3c4] sm:$0xf]
        %v1580 = vld [vmem:[%s1273 + $0x3c8] sm:$0xf]
        %v1581 = vld [vmem:[%s1273 + $0x3cc] sm:$0xf]
        %v1582 = vld [vmem:[%s1273 + $0x3d0] sm:$0xf]
        %v1583 = vld [vmem:[%s1273 + $0x3d4] sm:$0xf]
        %v1584 = vld [vmem:[%s1273 + $0x3d8] sm:$0xf]
        %v1585 = vld [vmem:[%s1273 + $0x3dc] sm:$0xf]
        %v1586 = vld [vmem:[%s1273 + $0x3e0] sm:$0xf]
        %v1587 = vld [vmem:[%s1273 + $0x3e4] sm:$0xf]
        %v1588 = vld [vmem:[%s1273 + $0x3e8] sm:$0xf]
        %v1589 = vld [vmem:[%s1273 + $0x3ec] sm:$0xf]
        %v1590 = vld [vmem:[%s1273 + $0x3f0] sm:$0xf]
        %v1591 = vld [vmem:[%s1273 + $0x3f4] sm:$0xf]
        %v1592 = vld [vmem:[%s1273 + $0x3f8] sm:$0xf]
        %v1593 = vld [vmem:[%s1273 + $0x3fc] sm:$0xf]
        %v1602 = vunpack.c.l.b16 %v1330
        %v1603 = vunpack.c.h.b16 %v1330
        %v1604 = vunpack.c.l.b16 %v1331
        %v1605 = vunpack.c.h.b16 %v1331
        %v1606 = vunpack.c.l.b16 %v1332
        %v1607 = vunpack.c.h.b16 %v1332
        %v1608 = vunpack.c.l.b16 %v1333
        %v1609 = vunpack.c.h.b16 %v1333
        %v1610 = vunpack.c.l.b16 %v1334
        %v1611 = vunpack.c.h.b16 %v1334
        %v1612 = vunpack.c.l.b16 %v1335
        %v1613 = vunpack.c.h.b16 %v1335
        %v1614 = vunpack.c.l.b16 %v1336
        %v1615 = vunpack.c.h.b16 %v1336
        %v1616 = vunpack.c.l.b16 %v1337
        %v1617 = vunpack.c.h.b16 %v1337
        %v1618 = vpack.c.b16 %v1602, %v1602
        %v1619 = vpack.c.b16 %v1603, %v1603
        %v1620 = vpack.c.b16 %v1604, %v1604
        %v1621 = vpack.c.b16 %v1605, %v1605
        %v1622 = vpack.c.b16 %v1606, %v1606
        %v1623 = vpack.c.b16 %v1607, %v1607
        %v1624 = vpack.c.b16 %v1608, %v1608
        %v1625 = vpack.c.b16 %v1609, %v1609
        %v1626 = vpack.c.b16 %v1610, %v1610
        %v1627 = vpack.c.b16 %v1611, %v1611
        %v1628 = vpack.c.b16 %v1612, %v1612
        %v1629 = vpack.c.b16 %v1613, %v1613
        %v1630 = vpack.c.b16 %v1614, %v1614
        %v1631 = vpack.c.b16 %v1615, %v1615
        %v1632 = vpack.c.b16 %v1616, %v1616
        %v1633 = vpack.c.b16 %v1617, %v1617
        %v1906 = vunpack.c.l.b16 %v1338
        %v1907 = vunpack.c.l.b16 %v1339
        %v1908 = vunpack.c.l.b16 %v1340
        %v1909 = vunpack.c.l.b16 %v1341
        %v1910 = vunpack.c.l.b16 %v1342
        %v1911 = vunpack.c.l.b16 %v1343
        %v1912 = vunpack.c.l.b16 %v1344
        %v1913 = vunpack.c.l.b16 %v1345
        %v1914 = vunpack.c.l.b16 %v1346
        %v1915 = vunpack.c.l.b16 %v1347
        %v1916 = vunpack.c.l.b16 %v1348
        %v1917 = vunpack.c.l.b16 %v1349
        %v1918 = vunpack.c.l.b16 %v1350
        %v1919 = vunpack.c.l.b16 %v1351
        %v1920 = vunpack.c.l.b16 %v1352
        %v1921 = vunpack.c.l.b16 %v1353
        %v1922 = vunpack.c.l.b16 %v1354
        %v1923 = vunpack.c.l.b16 %v1355
        %v1924 = vunpack.c.l.b16 %v1356
        %v1925 = vunpack.c.l.b16 %v1357
        %v1926 = vunpack.c.l.b16 %v1358
        %v1927 = vunpack.c.l.b16 %v1359
        %v1928 = vunpack.c.l.b16 %v1360
        %v1929 = vunpack.c.l.b16 %v1361
        %v1930 = vunpack.c.l.b16 %v1362
        %v1931 = vunpack.c.l.b16 %v1363
        %v1932 = vunpack.c.l.b16 %v1364
        %v1933 = vunpack.c.l.b16 %v1365
        %v1934 = vunpack.c.l.b16 %v1366
        %v1935 = vunpack.c.l.b16 %v1367
        %v1936 = vunpack.c.l.b16 %v1368
        %v1937 = vunpack.c.l.b16 %v1369
        %v1938 = vunpack.c.l.b16 %v1370
        %v1939 = vunpack.c.l.b16 %v1371
        %v1940 = vunpack.c.l.b16 %v1372
        %v1941 = vunpack.c.l.b16 %v1373
        %v1942 = vunpack.c.l.b16 %v1374
        %v1943 = vunpack.c.l.b16 %v1375
        %v1944 = vunpack.c.l.b16 %v1376
        %v1945 = vunpack.c.l.b16 %v1377
        %v1946 = vunpack.c.l.b16 %v1378
        %v1947 = vunpack.c.l.b16 %v1379
        %v1948 = vunpack.c.l.b16 %v1380
        %v1949 = vunpack.c.l.b16 %v1381
        %v1950 = vunpack.c.l.b16 %v1382
        %v1951 = vunpack.c.l.b16 %v1383
        %v1952 = vunpack.c.l.b16 %v1384
        %v1953 = vunpack.c.l.b16 %v1385
        %v1954 = vunpack.c.l.b16 %v1386
        %v1955 = vunpack.c.l.b16 %v1387
        %v1956 = vunpack.c.l.b16 %v1388
        %v1957 = vunpack.c.l.b16 %v1389
        %v1958 = vunpack.c.l.b16 %v1390
        %v1959 = vunpack.c.l.b16 %v1391
        %v1960 = vunpack.c.l.b16 %v1392
        %v1961 = vunpack.c.l.b16 %v1393
        %v1962 = vunpack.c.l.b16 %v1394
        %v1963 = vunpack.c.l.b16 %v1395
        %v1964 = vunpack.c.l.b16 %v1396
        %v1965 = vunpack.c.l.b16 %v1397
        %v1966 = vunpack.c.l.b16 %v1398
        %v1967 = vunpack.c.l.b16 %v1399
        %v1968 = vunpack.c.l.b16 %v1400
        %v1969 = vunpack.c.l.b16 %v1401
        %v1970 = vunpack.c.l.b16 %v1402
        %v1971 = vunpack.c.l.b16 %v1403
        %v1972 = vunpack.c.l.b16 %v1404
        %v1973 = vunpack.c.l.b16 %v1405
        %v1974 = vunpack.c.l.b16 %v1406
        %v1975 = vunpack.c.l.b16 %v1407
        %v1976 = vunpack.c.l.b16 %v1408
        %v1977 = vunpack.c.l.b16 %v1409
        %v1978 = vunpack.c.l.b16 %v1410
        %v1979 = vunpack.c.l.b16 %v1411
        %v1980 = vunpack.c.l.b16 %v1412
        %v1981 = vunpack.c.l.b16 %v1413
        %v1982 = vunpack.c.l.b16 %v1414
        %v1983 = vunpack.c.l.b16 %v1415
        %v1984 = vunpack.c.l.b16 %v1416
        %v1985 = vunpack.c.l.b16 %v1417
        %v1986 = vunpack.c.l.b16 %v1418
        %v1987 = vunpack.c.l.b16 %v1419
        %v1988 = vunpack.c.l.b16 %v1420
        %v1989 = vunpack.c.l.b16 %v1421
        %v1990 = vunpack.c.l.b16 %v1422
        %v1991 = vunpack.c.l.b16 %v1423
        %v1992 = vunpack.c.l.b16 %v1424
        %v1993 = vunpack.c.l.b16 %v1425
        %v1994 = vunpack.c.l.b16 %v1426
        %v1995 = vunpack.c.l.b16 %v1427
        %v1996 = vunpack.c.l.b16 %v1428
        %v1997 = vunpack.c.l.b16 %v1429
        %v1998 = vunpack.c.l.b16 %v1430
        %v1999 = vunpack.c.l.b16 %v1431
        %v2000 = vunpack.c.l.b16 %v1432
        %v2001 = vunpack.c.l.b16 %v1433
        %v2002 = vunpack.c.l.b16 %v1434
        %v2003 = vunpack.c.l.b16 %v1435
        %v2004 = vunpack.c.l.b16 %v1436
        %v2005 = vunpack.c.l.b16 %v1437
        %v2006 = vunpack.c.l.b16 %v1438
        %v2007 = vunpack.c.l.b16 %v1439
        %v2008 = vunpack.c.l.b16 %v1440
        %v2009 = vunpack.c.l.b16 %v1441
        %v2010 = vunpack.c.l.b16 %v1442
        %v2011 = vunpack.c.l.b16 %v1443
        %v2012 = vunpack.c.l.b16 %v1444
        %v2013 = vunpack.c.l.b16 %v1445
        %v2014 = vunpack.c.l.b16 %v1446
        %v2015 = vunpack.c.l.b16 %v1447
        %v2016 = vunpack.c.l.b16 %v1448
        %v2017 = vunpack.c.l.b16 %v1449
        %v2018 = vunpack.c.l.b16 %v1450
        %v2019 = vunpack.c.l.b16 %v1451
        %v2020 = vunpack.c.l.b16 %v1452
        %v2021 = vunpack.c.l.b16 %v1453
        %v2022 = vunpack.c.l.b16 %v1454
        %v2023 = vunpack.c.l.b16 %v1455
        %v2024 = vunpack.c.l.b16 %v1456
        %v2025 = vunpack.c.l.b16 %v1457
        %v2026 = vunpack.c.l.b16 %v1458
        %v2027 = vunpack.c.l.b16 %v1459
        %v2028 = vunpack.c.l.b16 %v1460
        %v2029 = vunpack.c.l.b16 %v1461
        %v2030 = vunpack.c.l.b16 %v1462
        %v2031 = vunpack.c.l.b16 %v1463
        %v2032 = vunpack.c.l.b16 %v1464
        %v2033 = vunpack.c.l.b16 %v1465
        %v2034 = vunpack.c.l.b16 %v1466
        %v2035 = vunpack.c.l.b16 %v1467
        %v2036 = vunpack.c.l.b16 %v1468
        %v2037 = vunpack.c.l.b16 %v1469
        %v2038 = vunpack.c.l.b16 %v1470
        %v2039 = vunpack.c.l.b16 %v1471
        %v2040 = vunpack.c.l.b16 %v1472
        %v2041 = vunpack.c.l.b16 %v1473
        %v2042 = vunpack.c.l.b16 %v1474
        %v2043 = vunpack.c.l.b16 %v1475
        %v2044 = vunpack.c.l.b16 %v1476
        %v2045 = vunpack.c.l.b16 %v1477
        %v2046 = vunpack.c.l.b16 %v1478
        %v2047 = vunpack.c.l.b16 %v1479
        %v2048 = vunpack.c.l.b16 %v1480
        %v2049 = vunpack.c.l.b16 %v1481
        %v2050 = vunpack.c.l.b16 %v1482
        %v2051 = vunpack.c.l.b16 %v1483
        %v2052 = vunpack.c.l.b16 %v1484
        %v2053 = vunpack.c.l.b16 %v1485
        %v2054 = vunpack.c.l.b16 %v1486
        %v2055 = vunpack.c.l.b16 %v1487
        %v2056 = vunpack.c.l.b16 %v1488
        %v2057 = vunpack.c.l.b16 %v1489
        %v2058 = vunpack.c.l.b16 %v1490
        %v2059 = vunpack.c.l.b16 %v1491
        %v2060 = vunpack.c.l.b16 %v1492
        %v2061 = vunpack.c.l.b16 %v1493
        %v2062 = vunpack.c.l.b16 %v1494
        %v2063 = vunpack.c.l.b16 %v1495
        %v2064 = vunpack.c.l.b16 %v1496
        %v2065 = vunpack.c.l.b16 %v1497
        %v2066 = vunpack.c.l.b16 %v1498
        %v2067 = vunpack.c.l.b16 %v1499
        %v2068 = vunpack.c.l.b16 %v1500
        %v2069 = vunpack.c.l.b16 %v1501
        %v2070 = vunpack.c.l.b16 %v1502
        %v2071 = vunpack.c.l.b16 %v1503
        %v2072 = vunpack.c.l.b16 %v1504
        %v2073 = vunpack.c.l.b16 %v1505
        %v2074 = vunpack.c.l.b16 %v1506
        %v2075 = vunpack.c.l.b16 %v1507
        %v2076 = vunpack.c.l.b16 %v1508
        %v2077 = vunpack.c.l.b16 %v1509
        %v2078 = vunpack.c.l.b16 %v1510
        %v2079 = vunpack.c.l.b16 %v1511
        %v2080 = vunpack.c.l.b16 %v1512
        %v2081 = vunpack.c.l.b16 %v1513
        %v2082 = vunpack.c.l.b16 %v1514
        %v2083 = vunpack.c.l.b16 %v1515
        %v2084 = vunpack.c.l.b16 %v1516
        %v2085 = vunpack.c.l.b16 %v1517
        %v2086 = vunpack.c.l.b16 %v1518
        %v2087 = vunpack.c.l.b16 %v1519
        %v2088 = vunpack.c.l.b16 %v1520
        %v2089 = vunpack.c.l.b16 %v1521
        %v2090 = vunpack.c.l.b16 %v1522
        %v2091 = vunpack.c.l.b16 %v1523
        %v2092 = vunpack.c.l.b16 %v1524
        %v2093 = vunpack.c.l.b16 %v1525
        %v2094 = vunpack.c.l.b16 %v1526
        %v2095 = vunpack.c.l.b16 %v1527
        %v2096 = vunpack.c.l.b16 %v1528
        %v2097 = vunpack.c.l.b16 %v1529
        %v2098 = vunpack.c.l.b16 %v1530
        %v2099 = vunpack.c.l.b16 %v1531
        %v2100 = vunpack.c.l.b16 %v1532
        %v2101 = vunpack.c.l.b16 %v1533
        %v2102 = vunpack.c.l.b16 %v1534
        %v2103 = vunpack.c.l.b16 %v1535
        %v2104 = vunpack.c.l.b16 %v1536
        %v2105 = vunpack.c.l.b16 %v1537
        %v2106 = vunpack.c.l.b16 %v1538
        %v2107 = vunpack.c.l.b16 %v1539
        %v2108 = vunpack.c.l.b16 %v1540
        %v2109 = vunpack.c.l.b16 %v1541
        %v2110 = vunpack.c.l.b16 %v1542
        %v2111 = vunpack.c.l.b16 %v1543
        %v2112 = vunpack.c.l.b16 %v1544
        %v2113 = vunpack.c.l.b16 %v1545
        %v2114 = vunpack.c.l.b16 %v1546
        %v2115 = vunpack.c.l.b16 %v1547
        %v2116 = vunpack.c.l.b16 %v1548
        %v2117 = vunpack.c.l.b16 %v1549
        %v2118 = vunpack.c.l.b16 %v1550
        %v2119 = vunpack.c.l.b16 %v1551
        %v2120 = vunpack.c.l.b16 %v1552
        %v2121 = vunpack.c.l.b16 %v1553
        %v2122 = vunpack.c.l.b16 %v1554
        %v2123 = vunpack.c.l.b16 %v1555
        %v2124 = vunpack.c.l.b16 %v1556
        %v2125 = vunpack.c.l.b16 %v1557
        %v2126 = vunpack.c.l.b16 %v1558
        %v2127 = vunpack.c.l.b16 %v1559
        %v2128 = vunpack.c.l.b16 %v1560
        %v2129 = vunpack.c.l.b16 %v1561
        %v2130 = vunpack.c.l.b16 %v1562
        %v2131 = vunpack.c.l.b16 %v1563
        %v2132 = vunpack.c.l.b16 %v1564
        %v2133 = vunpack.c.l.b16 %v1565
        %v2134 = vunpack.c.l.b16 %v1566
        %v2135 = vunpack.c.l.b16 %v1567
        %v2136 = vunpack.c.l.b16 %v1568
        %v2137 = vunpack.c.l.b16 %v1569
        %v2138 = vunpack.c.l.b16 %v1570
        %v2139 = vunpack.c.l.b16 %v1571
        %v2140 = vunpack.c.l.b16 %v1572
        %v2141 = vunpack.c.l.b16 %v1573
        %v2142 = vunpack.c.l.b16 %v1574
        %v2143 = vunpack.c.l.b16 %v1575
        %v2144 = vunpack.c.l.b16 %v1576
        %v2145 = vunpack.c.l.b16 %v1577
        %v2146 = vunpack.c.l.b16 %v1578
        %v2147 = vunpack.c.l.b16 %v1579
        %v2148 = vunpack.c.l.b16 %v1580
        %v2149 = vunpack.c.l.b16 %v1581
        %v2150 = vunpack.c.l.b16 %v1582
        %v2151 = vunpack.c.l.b16 %v1583
        %v2152 = vunpack.c.l.b16 %v1584
        %v2153 = vunpack.c.l.b16 %v1585
        %v2154 = vunpack.c.l.b16 %v1586
        %v2155 = vunpack.c.l.b16 %v1587
        %v2156 = vunpack.c.l.b16 %v1588
        %v2157 = vunpack.c.l.b16 %v1589
        %v2158 = vunpack.c.l.b16 %v1590
        %v2159 = vunpack.c.l.b16 %v1591
        %v2160 = vunpack.c.l.b16 %v1592
        %v2161 = vunpack.c.l.b16 %v1593
        %v2162 = vpack.c.b16 %v1907, %v1906
        %v2163 = vpack.c.b16 %v1909, %v1908
        %v2164 = vpack.c.b16 %v1911, %v1910
        %v2165 = vpack.c.b16 %v1913, %v1912
        %v2166 = vpack.c.b16 %v1915, %v1914
        %v2167 = vpack.c.b16 %v1917, %v1916
        %v2168 = vpack.c.b16 %v1919, %v1918
        %v2169 = vpack.c.b16 %v1921, %v1920
        %v2170 = vpack.c.b16 %v1923, %v1922
        %v2171 = vpack.c.b16 %v1925, %v1924
        %v2172 = vpack.c.b16 %v1927, %v1926
        %v2173 = vpack.c.b16 %v1929, %v1928
        %v2174 = vpack.c.b16 %v1931, %v1930
        %v2175 = vpack.c.b16 %v1933, %v1932
        %v2176 = vpack.c.b16 %v1935, %v1934
        %v2177 = vpack.c.b16 %v1937, %v1936
        %v2178 = vpack.c.b16 %v1939, %v1938
        %v2179 = vpack.c.b16 %v1941, %v1940
        %v2180 = vpack.c.b16 %v1943, %v1942
        %v2181 = vpack.c.b16 %v1945, %v1944
        %v2182 = vpack.c.b16 %v1947, %v1946
        %v2183 = vpack.c.b16 %v1949, %v1948
        %v2184 = vpack.c.b16 %v1951, %v1950
        %v2185 = vpack.c.b16 %v1953, %v1952
        %v2186 = vpack.c.b16 %v1955, %v1954
        %v2187 = vpack.c.b16 %v1957, %v1956
        %v2188 = vpack.c.b16 %v1959, %v1958
        %v2189 = vpack.c.b16 %v1961, %v1960
        %v2190 = vpack.c.b16 %v1963, %v1962
        %v2191 = vpack.c.b16 %v1965, %v1964
        %v2192 = vpack.c.b16 %v1967, %v1966
        %v2193 = vpack.c.b16 %v1969, %v1968
        %v2194 = vpack.c.b16 %v1971, %v1970
        %v2195 = vpack.c.b16 %v1973, %v1972
        %v2196 = vpack.c.b16 %v1975, %v1974
        %v2197 = vpack.c.b16 %v1977, %v1976
        %v2198 = vpack.c.b16 %v1979, %v1978
        %v2199 = vpack.c.b16 %v1981, %v1980
        %v2200 = vpack.c.b16 %v1983, %v1982
        %v2201 = vpack.c.b16 %v1985, %v1984
        %v2202 = vpack.c.b16 %v1987, %v1986
        %v2203 = vpack.c.b16 %v1989, %v1988
        %v2204 = vpack.c.b16 %v1991, %v1990
        %v2205 = vpack.c.b16 %v1993, %v1992
        %v2206 = vpack.c.b16 %v1995, %v1994
        %v2207 = vpack.c.b16 %v1997, %v1996
        %v2208 = vpack.c.b16 %v1999, %v1998
        %v2209 = vpack.c.b16 %v2001, %v2000
        %v2210 = vpack.c.b16 %v2003, %v2002
        %v2211 = vpack.c.b16 %v2005, %v2004
        %v2212 = vpack.c.b16 %v2007, %v2006
        %v2213 = vpack.c.b16 %v2009, %v2008
        %v2214 = vpack.c.b16 %v2011, %v2010
        %v2215 = vpack.c.b16 %v2013, %v2012
        %v2216 = vpack.c.b16 %v2015, %v2014
        %v2217 = vpack.c.b16 %v2017, %v2016
        %v2218 = vpack.c.b16 %v2019, %v2018
        %v2219 = vpack.c.b16 %v2021, %v2020
        %v2220 = vpack.c.b16 %v2023, %v2022
        %v2221 = vpack.c.b16 %v2025, %v2024
        %v2222 = vpack.c.b16 %v2027, %v2026
        %v2223 = vpack.c.b16 %v2029, %v2028
        %v2224 = vpack.c.b16 %v2031, %v2030
        %v2225 = vpack.c.b16 %v2033, %v2032
        %v2226 = vpack.c.b16 %v2035, %v2034
        %v2227 = vpack.c.b16 %v2037, %v2036
        %v2228 = vpack.c.b16 %v2039, %v2038
        %v2229 = vpack.c.b16 %v2041, %v2040
        %v2230 = vpack.c.b16 %v2043, %v2042
        %v2231 = vpack.c.b16 %v2045, %v2044
        %v2232 = vpack.c.b16 %v2047, %v2046
        %v2233 = vpack.c.b16 %v2049, %v2048
        %v2234 = vpack.c.b16 %v2051, %v2050
        %v2235 = vpack.c.b16 %v2053, %v2052
        %v2236 = vpack.c.b16 %v2055, %v2054
        %v2237 = vpack.c.b16 %v2057, %v2056
        %v2238 = vpack.c.b16 %v2059, %v2058
        %v2239 = vpack.c.b16 %v2061, %v2060
        %v2240 = vpack.c.b16 %v2063, %v2062
        %v2241 = vpack.c.b16 %v2065, %v2064
        %v2242 = vpack.c.b16 %v2067, %v2066
        %v2243 = vpack.c.b16 %v2069, %v2068
        %v2244 = vpack.c.b16 %v2071, %v2070
        %v2245 = vpack.c.b16 %v2073, %v2072
        %v2246 = vpack.c.b16 %v2075, %v2074
        %v2247 = vpack.c.b16 %v2077, %v2076
        %v2248 = vpack.c.b16 %v2079, %v2078
        %v2249 = vpack.c.b16 %v2081, %v2080
        %v2250 = vpack.c.b16 %v2083, %v2082
        %v2251 = vpack.c.b16 %v2085, %v2084
        %v2252 = vpack.c.b16 %v2087, %v2086
        %v2253 = vpack.c.b16 %v2089, %v2088
        %v2254 = vpack.c.b16 %v2091, %v2090
        %v2255 = vpack.c.b16 %v2093, %v2092
        %v2256 = vpack.c.b16 %v2095, %v2094
        %v2257 = vpack.c.b16 %v2097, %v2096
        %v2258 = vpack.c.b16 %v2099, %v2098
        %v2259 = vpack.c.b16 %v2101, %v2100
        %v2260 = vpack.c.b16 %v2103, %v2102
        %v2261 = vpack.c.b16 %v2105, %v2104
        %v2262 = vpack.c.b16 %v2107, %v2106
        %v2263 = vpack.c.b16 %v2109, %v2108
        %v2264 = vpack.c.b16 %v2111, %v2110
        %v2265 = vpack.c.b16 %v2113, %v2112
        %v2266 = vpack.c.b16 %v2115, %v2114
        %v2267 = vpack.c.b16 %v2117, %v2116
        %v2268 = vpack.c.b16 %v2119, %v2118
        %v2269 = vpack.c.b16 %v2121, %v2120
        %v2270 = vpack.c.b16 %v2123, %v2122
        %v2271 = vpack.c.b16 %v2125, %v2124
        %v2272 = vpack.c.b16 %v2127, %v2126
        %v2273 = vpack.c.b16 %v2129, %v2128
        %v2274 = vpack.c.b16 %v2131, %v2130
        %v2275 = vpack.c.b16 %v2133, %v2132
        %v2276 = vpack.c.b16 %v2135, %v2134
        %v2277 = vpack.c.b16 %v2137, %v2136
        %v2278 = vpack.c.b16 %v2139, %v2138
        %v2279 = vpack.c.b16 %v2141, %v2140
        %v2280 = vpack.c.b16 %v2143, %v2142
        %v2281 = vpack.c.b16 %v2145, %v2144
        %v2282 = vpack.c.b16 %v2147, %v2146
        %v2283 = vpack.c.b16 %v2149, %v2148
        %v2284 = vpack.c.b16 %v2151, %v2150
        %v2285 = vpack.c.b16 %v2153, %v2152
        %v2286 = vpack.c.b16 %v2155, %v2154
        %v2287 = vpack.c.b16 %v2157, %v2156
        %v2288 = vpack.c.b16 %v2159, %v2158
        %v2289 = vpack.c.b16 %v2161, %v2160
        %2418 = vmatprep.subr.bf16.mxu0 0
        %2419 = vmatpush1.bf16.msra.mxu0 %v2169
        %2420 = vmatprep.subr.bf16.mxu0 0
        %2421 = vmatpush1.bf16.msra.mxu0 %v2168
        %2422 = vmatprep.subr.bf16.mxu0 0
        %2423 = vmatpush1.bf16.msra.mxu0 %v2167
        %2424 = vmatprep.subr.bf16.mxu0 0
        %2425 = vmatpush1.bf16.msra.mxu0 %v2166
        %2426 = vmatprep.subr.bf16.mxu0 0
        %2427 = vmatpush1.bf16.msra.mxu0 %v2165
        %2428 = vmatprep.subr.bf16.mxu0 0
        %2429 = vmatpush1.bf16.msra.mxu0 %v2164
        %2430 = vmatprep.subr.bf16.mxu0 0
        %2431 = vmatpush1.bf16.msra.mxu0 %v2163
        %2432 = vmatprep.subr.bf16.mxu0 0
        %2433 = vmatpush1.bf16.msra.mxu0 %v2162
        %2434 = vmatprep.subr.bf16.mxu0 0
        %2435 = vmatpush2.bf16.msra.mxu0 %v2177
        %2436 = vmatprep.subr.bf16.mxu0 0
        %2437 = vmatpush2.bf16.msra.mxu0 %v2176
        %2438 = vmatprep.subr.bf16.mxu0 0
        %2439 = vmatpush2.bf16.msra.mxu0 %v2175
        %2440 = vmatprep.subr.bf16.mxu0 0
        %2441 = vmatpush2.bf16.msra.mxu0 %v2174
        %2442 = vmatprep.subr.bf16.mxu0 0
        %2443 = vmatpush2.bf16.msra.mxu0 %v2173
        %2444 = vmatprep.subr.bf16.mxu0 0
        %2445 = vmatpush2.bf16.msra.mxu0 %v2172
        %2446 = vmatprep.subr.bf16.mxu0 0
        %2447 = vmatpush2.bf16.msra.mxu0 %v2171
        %2448 = vmatprep.subr.bf16.mxu0 0
        %2449 = vmatpush2.bf16.msra.mxu0 %v2170
        %2450 = vmatprep.mubr.bf16.mxu0 %v1619
        %2451 = vmatmul.mubr.bf16.gmra.mxu0 %v1618
        %v2452 = vpop.f32.mrf.mxu0
        %v2453 = vadd.f32 0.0, %v2452
        %v2454 = vpop.f32.mrf.mxu0
        %v2455 = vpop.f32.mrf.mxu0
        %v2456 = vpop.f32.mrf.mxu0
        %2457 = vdwg.mxu0
        %2458 = vmatprep.subr.bf16.mxu0 0
        %2459 = vmatpush1.bf16.msra.mxu0 %v2185
        %2460 = vmatprep.subr.bf16.mxu0 0
        %2461 = vmatpush1.bf16.msra.mxu0 %v2184
        %2462 = vmatprep.subr.bf16.mxu0 0
        %2463 = vmatpush1.bf16.msra.mxu0 %v2183
        %2464 = vmatprep.subr.bf16.mxu0 0
        %2465 = vmatpush1.bf16.msra.mxu0 %v2182
        %2466 = vmatprep.subr.bf16.mxu0 0
        %2467 = vmatpush1.bf16.msra.mxu0 %v2181
        %2468 = vmatprep.subr.bf16.mxu0 0
        %2469 = vmatpush1.bf16.msra.mxu0 %v2180
        %2470 = vmatprep.subr.bf16.mxu0 0
        %2471 = vmatpush1.bf16.msra.mxu0 %v2179
        %2472 = vmatprep.subr.bf16.mxu0 0
        %2473 = vmatpush1.bf16.msra.mxu0 %v2178
        %2474 = vmatprep.subr.bf16.mxu0 0
        %2475 = vmatpush2.bf16.msra.mxu0 %v2193
        %2476 = vmatprep.subr.bf16.mxu0 0
        %2477 = vmatpush2.bf16.msra.mxu0 %v2192
        %2478 = vmatprep.subr.bf16.mxu0 0
        %2479 = vmatpush2.bf16.msra.mxu0 %v2191
        %2480 = vmatprep.subr.bf16.mxu0 0
        %2481 = vmatpush2.bf16.msra.mxu0 %v2190
        %2482 = vmatprep.subr.bf16.mxu0 0
        %2483 = vmatpush2.bf16.msra.mxu0 %v2189
        %2484 = vmatprep.subr.bf16.mxu0 0
        %2485 = vmatpush2.bf16.msra.mxu0 %v2188
        %2486 = vmatprep.subr.bf16.mxu0 0
        %2487 = vmatpush2.bf16.msra.mxu0 %v2187
        %2488 = vmatprep.subr.bf16.mxu0 0
        %2489 = vmatpush2.bf16.msra.mxu0 %v2186
        %2490 = vmatprep.mubr.bf16.mxu0 %v1621
        %2491 = vmatmul.mubr.bf16.gmra.mxu0 %v1620
        %v2492 = vpop.f32.mrf.mxu0
        %v2493 = vadd.f32 %v2453, %v2492
        %v2494 = vpop.f32.mrf.mxu0
        %v2495 = vpop.f32.mrf.mxu0
        %v2496 = vpop.f32.mrf.mxu0
        %2497 = vdwg.mxu0
        %2498 = vmatprep.subr.bf16.mxu0 0
        %2499 = vmatpush1.bf16.msra.mxu0 %v2201
        %2500 = vmatprep.subr.bf16.mxu0 0
        %2501 = vmatpush1.bf16.msra.mxu0 %v2200
        %2502 = vmatprep.subr.bf16.mxu0 0
        %2503 = vmatpush1.bf16.msra.mxu0 %v2199
        %2504 = vmatprep.subr.bf16.mxu0 0
        %2505 = vmatpush1.bf16.msra.mxu0 %v2198
        %2506 = vmatprep.subr.bf16.mxu0 0
        %2507 = vmatpush1.bf16.msra.mxu0 %v2197
        %2508 = vmatprep.subr.bf16.mxu0 0
        %2509 = vmatpush1.bf16.msra.mxu0 %v2196
        %2510 = vmatprep.subr.bf16.mxu0 0
        %2511 = vmatpush1.bf16.msra.mxu0 %v2195
        %2512 = vmatprep.subr.bf16.mxu0 0
        %2513 = vmatpush1.bf16.msra.mxu0 %v2194
        %2514 = vmatprep.subr.bf16.mxu0 0
        %2515 = vmatpush2.bf16.msra.mxu0 %v2209
        %2516 = vmatprep.subr.bf16.mxu0 0
        %2517 = vmatpush2.bf16.msra.mxu0 %v2208
        %2518 = vmatprep.subr.bf16.mxu0 0
        %2519 = vmatpush2.bf16.msra.mxu0 %v2207
        %2520 = vmatprep.subr.bf16.mxu0 0
        %2521 = vmatpush2.bf16.msra.mxu0 %v2206
        %2522 = vmatprep.subr.bf16.mxu0 0
        %2523 = vmatpush2.bf16.msra.mxu0 %v2205
        %2524 = vmatprep.subr.bf16.mxu0 0
        %2525 = vmatpush2.bf16.msra.mxu0 %v2204
        %2526 = vmatprep.subr.bf16.mxu0 0
        %2527 = vmatpush2.bf16.msra.mxu0 %v2203
        %2528 = vmatprep.subr.bf16.mxu0 0
        %2529 = vmatpush2.bf16.msra.mxu0 %v2202
        %2530 = vmatprep.mubr.bf16.mxu0 %v1623
        %2531 = vmatmul.mubr.bf16.gmra.mxu0 %v1622
        %v2532 = vpop.f32.mrf.mxu0
        %v2533 = vadd.f32 %v2493, %v2532
        %v2534 = vpop.f32.mrf.mxu0
        %v2535 = vpop.f32.mrf.mxu0
        %v2536 = vpop.f32.mrf.mxu0
        %2537 = vdwg.mxu0
        %2538 = vmatprep.subr.bf16.mxu0 0
        %2539 = vmatpush1.bf16.msra.mxu0 %v2217
        %2540 = vmatprep.subr.bf16.mxu0 0
        %2541 = vmatpush1.bf16.msra.mxu0 %v2216
        %2542 = vmatprep.subr.bf16.mxu0 0
        %2543 = vmatpush1.bf16.msra.mxu0 %v2215
        %2544 = vmatprep.subr.bf16.mxu0 0
        %2545 = vmatpush1.bf16.msra.mxu0 %v2214
        %2546 = vmatprep.subr.bf16.mxu0 0
        %2547 = vmatpush1.bf16.msra.mxu0 %v2213
        %2548 = vmatprep.subr.bf16.mxu0 0
        %2549 = vmatpush1.bf16.msra.mxu0 %v2212
        %2550 = vmatprep.subr.bf16.mxu0 0
        %2551 = vmatpush1.bf16.msra.mxu0 %v2211
        %2552 = vmatprep.subr.bf16.mxu0 0
        %2553 = vmatpush1.bf16.msra.mxu0 %v2210
        %2554 = vmatprep.subr.bf16.mxu0 0
        %2555 = vmatpush2.bf16.msra.mxu0 %v2225
        %2556 = vmatprep.subr.bf16.mxu0 0
        %2557 = vmatpush2.bf16.msra.mxu0 %v2224
        %2558 = vmatprep.subr.bf16.mxu0 0
        %2559 = vmatpush2.bf16.msra.mxu0 %v2223
        %2560 = vmatprep.subr.bf16.mxu0 0
        %2561 = vmatpush2.bf16.msra.mxu0 %v2222
        %2562 = vmatprep.subr.bf16.mxu0 0
        %2563 = vmatpush2.bf16.msra.mxu0 %v2221
        %2564 = vmatprep.subr.bf16.mxu0 0
        %2565 = vmatpush2.bf16.msra.mxu0 %v2220
        %2566 = vmatprep.subr.bf16.mxu0 0
        %2567 = vmatpush2.bf16.msra.mxu0 %v2219
        %2568 = vmatprep.subr.bf16.mxu0 0
        %2569 = vmatpush2.bf16.msra.mxu0 %v2218
        %2570 = vmatprep.mubr.bf16.mxu0 %v1625
        %2571 = vmatmul.mubr.bf16.gmra.mxu0 %v1624
        %v2572 = vpop.f32.mrf.mxu0
        %v2573 = vadd.f32 %v2533, %v2572
        %v2574 = vpop.f32.mrf.mxu0
        %v2575 = vpop.f32.mrf.mxu0
        %v2576 = vpop.f32.mrf.mxu0
        %2577 = vdwg.mxu0
        %2578 = vmatprep.subr.bf16.mxu0 0
        %2579 = vmatpush1.bf16.msra.mxu0 %v2233
        %2580 = vmatprep.subr.bf16.mxu0 0
        %2581 = vmatpush1.bf16.msra.mxu0 %v2232
        %2582 = vmatprep.subr.bf16.mxu0 0
        %2583 = vmatpush1.bf16.msra.mxu0 %v2231
        %2584 = vmatprep.subr.bf16.mxu0 0
        %2585 = vmatpush1.bf16.msra.mxu0 %v2230
        %2586 = vmatprep.subr.bf16.mxu0 0
        %2587 = vmatpush1.bf16.msra.mxu0 %v2229
        %2588 = vmatprep.subr.bf16.mxu0 0
        %2589 = vmatpush1.bf16.msra.mxu0 %v2228
        %2590 = vmatprep.subr.bf16.mxu0 0
        %2591 = vmatpush1.bf16.msra.mxu0 %v2227
        %2592 = vmatprep.subr.bf16.mxu0 0
        %2593 = vmatpush1.bf16.msra.mxu0 %v2226
        %2594 = vmatprep.subr.bf16.mxu0 0
        %2595 = vmatpush2.bf16.msra.mxu0 %v2241
        %2596 = vmatprep.subr.bf16.mxu0 0
        %2597 = vmatpush2.bf16.msra.mxu0 %v2240
        %2598 = vmatprep.subr.bf16.mxu0 0
        %2599 = vmatpush2.bf16.msra.mxu0 %v2239
        %2600 = vmatprep.subr.bf16.mxu0 0
        %2601 = vmatpush2.bf16.msra.mxu0 %v2238
        %2602 = vmatprep.subr.bf16.mxu0 0
        %2603 = vmatpush2.bf16.msra.mxu0 %v2237
        %2604 = vmatprep.subr.bf16.mxu0 0
        %2605 = vmatpush2.bf16.msra.mxu0 %v2236
        %2606 = vmatprep.subr.bf16.mxu0 0
        %2607 = vmatpush2.bf16.msra.mxu0 %v2235
        %2608 = vmatprep.subr.bf16.mxu0 0
        %2609 = vmatpush2.bf16.msra.mxu0 %v2234
        %2610 = vmatprep.mubr.bf16.mxu0 %v1627
        %2611 = vmatmul.mubr.bf16.gmra.mxu0 %v1626
        %v2612 = vpop.f32.mrf.mxu0
        %v2613 = vadd.f32 %v2573, %v2612
        %v2614 = vpop.f32.mrf.mxu0
        %v2615 = vpop.f32.mrf.mxu0
        %v2616 = vpop.f32.mrf.mxu0
        %2617 = vdwg.mxu0
        %2618 = vmatprep.subr.bf16.mxu0 0
        %2619 = vmatpush1.bf16.msra.mxu0 %v2249
        %2620 = vmatprep.subr.bf16.mxu0 0
        %2621 = vmatpush1.bf16.msra.mxu0 %v2248
        %2622 = vmatprep.subr.bf16.mxu0 0
        %2623 = vmatpush1.bf16.msra.mxu0 %v2247
        %2624 = vmatprep.subr.bf16.mxu0 0
        %2625 = vmatpush1.bf16.msra.mxu0 %v2246
        %2626 = vmatprep.subr.bf16.mxu0 0
        %2627 = vmatpush1.bf16.msra.mxu0 %v2245
        %2628 = vmatprep.subr.bf16.mxu0 0
        %2629 = vmatpush1.bf16.msra.mxu0 %v2244
        %2630 = vmatprep.subr.bf16.mxu0 0
        %2631 = vmatpush1.bf16.msra.mxu0 %v2243
        %2632 = vmatprep.subr.bf16.mxu0 0
        %2633 = vmatpush1.bf16.msra.mxu0 %v2242
        %2634 = vmatprep.subr.bf16.mxu0 0
        %2635 = vmatpush2.bf16.msra.mxu0 %v2257
        %2636 = vmatprep.subr.bf16.mxu0 0
        %2637 = vmatpush2.bf16.msra.mxu0 %v2256
        %2638 = vmatprep.subr.bf16.mxu0 0
        %2639 = vmatpush2.bf16.msra.mxu0 %v2255
        %2640 = vmatprep.subr.bf16.mxu0 0
        %2641 = vmatpush2.bf16.msra.mxu0 %v2254
        %2642 = vmatprep.subr.bf16.mxu0 0
        %2643 = vmatpush2.bf16.msra.mxu0 %v2253
        %2644 = vmatprep.subr.bf16.mxu0 0
        %2645 = vmatpush2.bf16.msra.mxu0 %v2252
        %2646 = vmatprep.subr.bf16.mxu0 0
        %2647 = vmatpush2.bf16.msra.mxu0 %v2251
        %2648 = vmatprep.subr.bf16.mxu0 0
        %2649 = vmatpush2.bf16.msra.mxu0 %v2250
        %2650 = vmatprep.mubr.bf16.mxu0 %v1629
        %2651 = vmatmul.mubr.bf16.gmra.mxu0 %v1628
        %v2652 = vpop.f32.mrf.mxu0
        %v2653 = vadd.f32 %v2613, %v2652
        %v2654 = vpop.f32.mrf.mxu0
        %v2655 = vpop.f32.mrf.mxu0
        %v2656 = vpop.f32.mrf.mxu0
        %2657 = vdwg.mxu0
        %2658 = vmatprep.subr.bf16.mxu0 0
        %2659 = vmatpush1.bf16.msra.mxu0 %v2265
        %2660 = vmatprep.subr.bf16.mxu0 0
        %2661 = vmatpush1.bf16.msra.mxu0 %v2264
        %2662 = vmatprep.subr.bf16.mxu0 0
        %2663 = vmatpush1.bf16.msra.mxu0 %v2263
        %2664 = vmatprep.subr.bf16.mxu0 0
        %2665 = vmatpush1.bf16.msra.mxu0 %v2262
        %2666 = vmatprep.subr.bf16.mxu0 0
        %2667 = vmatpush1.bf16.msra.mxu0 %v2261
        %2668 = vmatprep.subr.bf16.mxu0 0
        %2669 = vmatpush1.bf16.msra.mxu0 %v2260
        %2670 = vmatprep.subr.bf16.mxu0 0
        %2671 = vmatpush1.bf16.msra.mxu0 %v2259
        %2672 = vmatprep.subr.bf16.mxu0 0
        %2673 = vmatpush1.bf16.msra.mxu0 %v2258
        %2674 = vmatprep.subr.bf16.mxu0 0
        %2675 = vmatpush2.bf16.msra.mxu0 %v2273
        %2676 = vmatprep.subr.bf16.mxu0 0
        %2677 = vmatpush2.bf16.msra.mxu0 %v2272
        %2678 = vmatprep.subr.bf16.mxu0 0
        %2679 = vmatpush2.bf16.msra.mxu0 %v2271
        %2680 = vmatprep.subr.bf16.mxu0 0
        %2681 = vmatpush2.bf16.msra.mxu0 %v2270
        %2682 = vmatprep.subr.bf16.mxu0 0
        %2683 = vmatpush2.bf16.msra.mxu0 %v2269
        %2684 = vmatprep.subr.bf16.mxu0 0
        %2685 = vmatpush2.bf16.msra.mxu0 %v2268
        %2686 = vmatprep.subr.bf16.mxu0 0
        %2687 = vmatpush2.bf16.msra.mxu0 %v2267
        %2688 = vmatprep.subr.bf16.mxu0 0
        %2689 = vmatpush2.bf16.msra.mxu0 %v2266
        %2690 = vmatprep.mubr.bf16.mxu0 %v1631
        %2691 = vmatmul.mubr.bf16.gmra.mxu0 %v1630
        %v2692 = vpop.f32.mrf.mxu0
        %v2693 = vadd.f32 %v2653, %v2692
        %v2694 = vpop.f32.mrf.mxu0
        %v2695 = vpop.f32.mrf.mxu0
        %v2696 = vpop.f32.mrf.mxu0
        %2697 = vdwg.mxu0
        %2698 = vmatprep.subr.bf16.mxu0 0
        %2699 = vmatpush1.bf16.msra.mxu0 %v2281
        %2700 = vmatprep.subr.bf16.mxu0 0
        %2701 = vmatpush1.bf16.msra.mxu0 %v2280
        %2702 = vmatprep.subr.bf16.mxu0 0
        %2703 = vmatpush1.bf16.msra.mxu0 %v2279
        %2704 = vmatprep.subr.bf16.mxu0 0
        %2705 = vmatpush1.bf16.msra.mxu0 %v2278
        %2706 = vmatprep.subr.bf16.mxu0 0
        %2707 = vmatpush1.bf16.msra.mxu0 %v2277
        %2708 = vmatprep.subr.bf16.mxu0 0
        %2709 = vmatpush1.bf16.msra.mxu0 %v2276
        %2710 = vmatprep.subr.bf16.mxu0 0
        %2711 = vmatpush1.bf16.msra.mxu0 %v2275
        %2712 = vmatprep.subr.bf16.mxu0 0
        %2713 = vmatpush1.bf16.msra.mxu0 %v2274
        %2714 = vmatprep.subr.bf16.mxu0 0
        %2715 = vmatpush2.bf16.msra.mxu0 %v2289
        %2716 = vmatprep.subr.bf16.mxu0 0
        %2717 = vmatpush2.bf16.msra.mxu0 %v2288
        %2718 = vmatprep.subr.bf16.mxu0 0
        %2719 = vmatpush2.bf16.msra.mxu0 %v2287
        %2720 = vmatprep.subr.bf16.mxu0 0
        %2721 = vmatpush2.bf16.msra.mxu0 %v2286
        %2722 = vmatprep.subr.bf16.mxu0 0
        %2723 = vmatpush2.bf16.msra.mxu0 %v2285
        %2724 = vmatprep.subr.bf16.mxu0 0
        %2725 = vmatpush2.bf16.msra.mxu0 %v2284
        %2726 = vmatprep.subr.bf16.mxu0 0
        %2727 = vmatpush2.bf16.msra.mxu0 %v2283
        %2728 = vmatprep.subr.bf16.mxu0 0
        %2729 = vmatpush2.bf16.msra.mxu0 %v2282
        %2730 = vmatprep.mubr.bf16.mxu0 %v1633
        %2731 = vmatmul.mubr.bf16.gmra.mxu0 %v1632
        %v2732 = vpop.f32.mrf.mxu0
        %v2733 = vadd.f32 %v2693, %v2732
        %v2734 = vpop.f32.mrf.mxu0
        %v2735 = vpop.f32.mrf.mxu0
        %v2736 = vpop.f32.mrf.mxu0
        %2737 = vdwg.mxu0
        %v2738 = vld [vmem:[%s1317] sm:$0x1]
        %v2740 = vlaneseq
        %v2741 = vshrl.u32 %v2740, 7
        %v2742 = vsub.s32 0, %v2741
        %v2743 = vrot.slane %v2738, %v2742
        %v2745 = vmul.f32 %v2733, %v2743
        %v2746 = vld [vmem:[%s1320] sm:$0x1]
        %v2748 = vlaneseq
        %v2749 = vshrl.u32 %v2748, 7
        %v2750 = vsub.s32 0, %v2749
        %v2751 = vrot.slane %v2746, %v2750
        %v2753 = vadd.f32 %v2745, %v2751
        %v2754 = vmax.f32 %v2753, 0.0
        %v2755 = vpack.c.bf16 %v2754, %v2754
        %2756 = vst [vmem:[%s1328] sm:$0xf] %v2755
        %p2757 = scmp.lt.s32.totalorder %s19, 0
        %s2758 = scalar_select %p2757, %s19, 0
        %p2759 = scmp.lt.s32.totalorder %s20, 1
        %s2760 = scalar_select %p2759, %s20, 1
        %s2761 = smul.addr %s2758, 2
        %s2762 = sadd.s32 %s2760, %s2761
        %s2763 = smul.addr %s2762, 4
        %s2764 = scalar_lea.vmem %s4, %s2763
        // Predicated region
        $region78: #{_lambda_.12} parent=72 // pred_check
          %p2765 = pneg %p151
        $region79: #{_lambda_.12} parent=72 // pred_check_branch
          %2767 = sbr.rel (%p2765) target = $region81
        $region80: #{_lambda_.12} parent=72 // pred_region
          _
        $region81: #{_lambda_.12} parent=72 // pred_fallthru
          _
      $region73: #{_lambda_.12} parent=5 // pred_fallthru
        _
      %p2768 = scmp.le.s32.totalorder 2, %s10
      // Predicated region
      $region82: #{_lambda_.12} parent=5 // pred_check
        %p2769 = pneg %p2768
      $region83: #{_lambda_.12} parent=5 // pred_check_branch
        %2771 = sbr.rel (%p2769) target = $region85
      $region84: #{_lambda_.12} parent=5 // pred_region
        %s2772 = ssub.s32 %s10, 2
        // Predicated region
        $region86: #{_lambda_.12} parent=84 // pred_check
          %p2773 = pneg %p157
        $region87: #{_lambda_.12} parent=84 // pred_check_branch
          %2775 = sbr.rel (%p2773) target = $region89
        $region88: #{_lambda_.12} parent=84 // pred_region
          %p2776 = scmp.lt.s32.totalorder %s21, 0
          %s2777 = scalar_select %p2776, %s21, 0
          %p2778 = scmp.lt.s32.totalorder %s22, 1
          %s2779 = scalar_select %p2778, %s22, 1
          %s2780 = smul.addr %s2777, 2
          %s2781 = sadd.s32 %s2779, %s2780
          %s2782 = smul.addr %s2781, 4
          %s2783 = scalar_lea.vmem %s4, %s2782
        $region89: #{_lambda_.12} parent=84 // pred_fallthru
          _
      $region85: #{_lambda_.12} parent=5 // pred_fallthru
        _
    $region6: #{_lambda_.12} parent=1 // loop_footer
      %s14 = sadd.s32 1, %s10
    $region7: #{_lambda_.12} parent=1 // loop_footer_branch
      %9 = sbr.rel target = $region3
    $region8: #{_lambda_.12} parent=1 // loop_exit
      _

</llo_original>
